<compile_context>
chip_gen: v5e
topology: v5e:2x2
jax: 0.10.0
libtpu: 0.0.40
codegen_flags: <defaults>
</compile_context>

<pallas_src>
import math
import jax
import jax.numpy as jnp
from jax.experimental import pallas as pl
from jax.experimental.pallas import tpu as pltpu


def make_encoder_kernel(num_convs, num_heads, kernel_size, rows, hidden):
    K = kernel_size
    pad = (K - 1) // 2
    NH = num_heads
    H = hidden
    R = rows                      # rows per grid step = block_batch * seq_len
    f32 = jnp.float32
    bf16 = jnp.bfloat16

    def kernel(*refs):
        it = iter(refs)
        x_ref = next(it)          # (R, H)   packed input rows
        bias_ref = next(it)       # (R, R)   additive attn bias (block-diag + key padding)
        pe_ref = next(it)         # (R, H)   positional encodings tiled per block
        tap_ref = next(it)        # (K, R, 1) depthwise-conv tap validity masks
        convs = [[next(it) for _ in range(4)] for _ in range(num_convs)]
        lns = [[next(it) for _ in range(2)] for _ in range(num_convs + 2)]
        wq_h, wk_h, wv_h, wo_h = next(it), next(it), next(it), next(it)
        ffw, ffb, ff2w, ff2b = next(it), next(it), next(it), next(it)
        o_ref = next(it)          # (R, H)

        def layer_norm(v, g_ref, b_ref):          # v: (R, H) f32
            mu = jnp.mean(v, axis=-1, keepdims=True)
            var = jnp.mean((v - mu) ** 2, axis=-1, keepdims=True)
            return (v - mu) * jax.lax.rsqrt(var + 1e-5) * g_ref[...] + b_ref[...]

        # ---- positional encoding (dropout == identity in eval mode) ----
        out = x_ref[...].astype(f32) + pe_ref[...]

        # ---- depthwise-separable conv blocks ----
        for i in range(num_convs):
            dw_w, dw_b, pw_wt, pw_b = convs[i]
            residual = out
            h = layer_norm(out, *lns[i])
            # depthwise conv over the seq axis, 'same' zero padding; the per-tap
            # masks zero out-of-sequence contributions for the packed rows.
            zeros = jnp.zeros((pad, H), f32)
            hp = jnp.concatenate([zeros, h, zeros], axis=0)      # (R + 2*pad, H)
            w2 = dw_w[...]                                       # (K, H) f32
            acc = jnp.zeros((R, H), f32)
            for k in range(K):
                acc = acc + (hp[k:k + R, :] * tap_ref[k]) * w2[k:k + 1, :]
            acc = acc + dw_b[...]
            # pointwise 1x1 conv == matmul over hidden (bf16 operands, f32 accum)
            pw = jnp.dot(acc.astype(bf16), pw_wt[...],
                         preferred_element_type=f32) + pw_b[...]
            out = jnp.maximum(pw, 0.0) + residual

        # ---- self-attention block ----
        residual = out
        h = layer_norm(out, *lns[num_convs])
        hb = jnp.broadcast_to(h.astype(bf16)[None], (NH, R, H))   # replicate once per head
        # per-head projections; weights already fold w_q @ in_proj_q and the
        # 1/sqrt(head_dim) scale (exact algebraic fold done on the host).
        q = jnp.einsum('nrk,nkd->nrd', hb, wq_h[...],
                       preferred_element_type=f32).astype(bf16)
        k_ = jnp.einsum('nrk,nkd->nrd', hb, wk_h[...],
                        preferred_element_type=f32).astype(bf16)
        v_ = jnp.einsum('nrk,nkd->nrd', hb, wv_h[...],
                        preferred_element_type=f32).astype(bf16)
        # logits over all packed rows; bias kills cross-sequence / padded keys.
        # TODO(synk): for long sequences (QANet S~400+) tile this flash-style over
        # key blocks so the (R, R) logits never fully reside in VMEM (v7x 64 MiB).
        logits = jnp.einsum('nrd,ntd->nrt', q, k_,
                            preferred_element_type=f32)           # (NH, R, R) f32
        logits = logits + bias_ref[...][None]
        logits = logits - jnp.max(logits, axis=-1, keepdims=True)
        e = jnp.exp(logits)
        p = e * pl.reciprocal(jnp.sum(e, axis=-1, keepdims=True), approx=True)
        ctx = jnp.einsum('nrt,ntd->nrd', p.astype(bf16), v_,
                         preferred_element_type=f32)              # (NH, R, Dh)
        # output projection: sum_h ctx_h @ Wo_h  (== concat(heads) @ Wo)
        per_head = jnp.einsum('nrd,ndk->nrk', ctx.astype(bf16), wo_h[...],
                              preferred_element_type=f32)         # (NH, R, H)
        out = jnp.sum(per_head, axis=0) + residual

        # ---- feed-forward block (two 1x1 convs) ----
        residual = out
        h = layer_norm(out, *lns[num_convs + 1])
        f1 = jnp.maximum(jnp.dot(h.astype(bf16), ffw[...],
                                 preferred_element_type=f32) + ffb[...], 0.0)
        f2 = jnp.dot(f1.astype(bf16), ff2w[...],
                     preferred_element_type=f32) + ff2b[...]
        o_ref[...] = (f2 + residual).astype(o_ref.dtype)

    return kernel


def encoder_block_forward(x, x_mask, params, *, num_convs, num_heads, kernel_size,
                          block_batch=None):
    """x: (B, S, H) float32;  x_mask: (B, S) bool, True = valid token."""
    B, S, H = x.shape
    NH = num_heads
    Dh = H // NH
    K = kernel_size
    pad = (K - 1) // 2
    f32, bf16 = jnp.float32, jnp.bfloat16

    # Pack several sequences per grid step so matmuls see ~128 rows.
    if block_batch is None:
        block_batch = B
        for bt in range(B, 0, -1):
            if B % bt == 0 and bt * S <= 128 and (bt * S) % 8 == 0:
                block_batch = bt
                break
    Bt = block_batch
    assert B % Bt == 0
    R = Bt * S
    G = B // Bt

    # ---------------- host-side preparation (exact algebraic folds) ------------
    # Fold the outer w_q/w_k/w_v Linears into the MHA in_proj and fold the
    # 1/sqrt(head_dim) scale into Q; split per head; cast matmul weights to bf16.
    scale = 1.0 / math.sqrt(Dh)
    wq_eff = (params["wqT"] @ params["iqT"]) * scale
    wk_eff = params["wkT"] @ params["ikT"]
    wv_eff = params["wvT"] @ params["ivT"]

    def split_heads_in(w):      # (H, H) -> (NH, H, Dh), head-contiguous columns
        return jnp.transpose(w.reshape(H, NH, Dh), (1, 0, 2)).astype(bf16)

    wq_h = split_heads_in(wq_eff)
    wk_h = split_heads_in(wk_eff)
    wv_h = split_heads_in(wv_eff)
    wo_h = params["woT"].reshape(NH, Dh, H).astype(bf16)       # out_proj per head

    # Flatten batch*seq into rows; tile position encodings per packed block.
    x2 = x.reshape(B * S, H)
    pe_tiled = jnp.tile(params["pe"].astype(f32), (Bt, 1))     # (R, H)

    # Additive attention bias per block: block-diagonal over the packed
    # sequences + key-padding mask (1e30 stays in f32 inside the kernel).
    rows = jnp.arange(R)
    same_seq = (rows[:, None] // S) == (rows[None, :] // S)            # (R, R)
    key_valid = x_mask.reshape(G, R)                                   # (G, R)
    attn_bias = jnp.where(same_seq[None] & key_valid[:, None, :],
                          0.0, -1e30).astype(f32)                      # (G, R, R)

    # Depthwise-conv tap validity: zero padding at sequence edges and no
    # bleeding across packed-sequence boundaries.
    t_in_seq = rows % S
    tap_valid = jnp.stack([((t_in_seq + (k - pad)) >= 0) &
                           ((t_in_seq + (k - pad)) < S) for k in range(K)])
    tap_valid = tap_valid.astype(f32).reshape(K, R, 1)

    flat = [pe_tiled, tap_valid]
    for i in range(num_convs):
        c = params["convs"][i]
        flat += [c["dw_w"].astype(f32), c["dw_b"].astype(f32),
                 c["pw_wT"].astype(bf16), c["pw_b"].astype(f32)]
    for j in range(num_convs + 2):
        l = params["lns"][j]
        flat += [l["g"].astype(f32), l["b"].astype(f32)]
    flat += [wq_h, wk_h, wv_h, wo_h,
             params["ffwT"].astype(bf16), params["ffb"].astype(f32),
             params["ff2wT"].astype(bf16), params["ff2b"].astype(f32)]

    in_specs = [
        pl.BlockSpec((R, H), lambda b: (b, 0)),             # packed input rows
        pl.BlockSpec((None, R, R), lambda b: (b, 0, 0)),    # attention bias for block
    ]
    for p in flat:
        in_specs.append(pl.BlockSpec(p.shape, lambda b, n=p.ndim: (0,) * n))

    kernel = make_encoder_kernel(num_convs, NH, K, R, H)
    out2 = pl.pallas_call(
        kernel,
        out_shape=jax.ShapeDtypeStruct((B * S, H), f32),
        grid=(G,),
        in_specs=in_specs,
        out_specs=pl.BlockSpec((R, H), lambda b: (b, 0)),
        compiler_params=pltpu.CompilerParams(
            dimension_semantics=("parallel",),              # batch blocks independent
            vmem_limit_bytes=32 * 1024 * 1024),
    )(x2, attn_bias, *flat)
    return out2.reshape(B, S, H)


def init_params(key, *, hidden, num_convs, kernel_size, seq_len):
    keys = iter(jax.random.split(key, 64))

    def w(shape, scale=0.1):
        return jax.random.normal(next(keys), shape, jnp.float32) * scale

    H, K, S = hidden, kernel_size, seq_len
    params = {}

    # sinusoidal position encodings (matches PositionEncoder.__init__)
    freq_idx = jnp.arange(H // 2, dtype=jnp.float32)
    freqs = jnp.power(10000.0, 2.0 * freq_idx / H)
    pos = jnp.arange(S, dtype=jnp.float32)[:, None]
    ang = pos / freqs[None, :]
    pe = jnp.zeros((S, H), jnp.float32)
    pe = pe.at[:, 0::2].set(jnp.sin(ang))
    pe = pe.at[:, 1::2].set(jnp.cos(ang))
    params["pe"] = pe

    # depthwise-separable convs: depthwise weight stored as (K, H) (= PyTorch
    # (H, 1, K) transposed), pointwise weight stored pre-transposed (in, out).
    params["convs"] = [dict(dw_w=w((K, H)), dw_b=w((1, H)),
                            pw_wT=w((H, H)), pw_b=w((1, H)))
                       for _ in range(num_convs)]

    # layer norms: default gamma=1, beta=0
    params["lns"] = [dict(g=jnp.ones((1, H), jnp.float32),
                          b=jnp.zeros((1, H), jnp.float32))
                     for _ in range(num_convs + 2)]

    # self-attention: w_q/w_k/w_v (outer Linears, no bias), MHA in_proj split
    # into q/k/v parts, out_proj (no bias).  All stored pre-transposed (in, out).
    for name in ["wqT", "wkT", "wvT", "iqT", "ikT", "ivT", "woT"]:
        params[name] = w((H, H))

    # feed-forward 1x1 convs (with bias), weights pre-transposed.
    params["ffwT"] = w((H, H))
    params["ffb"] = w((1, H))
    params["ff2wT"] = w((H, H))
    params["ff2b"] = w((1, H))
    return params


if __name__ == "__main__":
    B, S, H = 16, 16, 32
    NUM_CONVS, NUM_HEADS, KSIZE = 2, 4, 5

    key = jax.random.PRNGKey(0)
    kx, kp = jax.random.split(key)
    x = jax.random.normal(kx, (B, S, H), jnp.float32)
    lengths = (jnp.arange(B, dtype=jnp.int32) % S) + 1       # varied valid lengths
    x_mask = jnp.arange(S)[None, :] < lengths[:, None]       # (B, S) bool, True = valid

    params = init_params(kp, hidden=H, num_convs=NUM_CONVS,
                         kernel_size=KSIZE, seq_len=S)

    out = encoder_block_forward(x, x_mask, params,
                                num_convs=NUM_CONVS, num_heads=NUM_HEADS,
                                kernel_size=KSIZE)
    out = jax.block_until_ready(out)
    assert out.shape == (B, S, H)
    assert bool(jnp.all(jnp.isfinite(out)))
    print("KERNEL_OK")
</pallas_src>

<mosaic_0001>
module attributes {stable_mosaic.version = 11 : i64} {
  func.func @kernel(%arg0: i32, %arg1: memref<128x32xf32, #tpu.memory_space<vmem>>, %arg2: memref<1x128x128xf32, #tpu.memory_space<vmem>>, %arg3: memref<128x32xf32, #tpu.memory_space<vmem>>, %arg4: memref<5x128x1xf32, #tpu.memory_space<vmem>>, %arg5: memref<5x32xf32, #tpu.memory_space<vmem>>, %arg6: memref<1x32xf32, #tpu.memory_space<vmem>>, %arg7: memref<32x32xbf16, #tpu.memory_space<vmem>>, %arg8: memref<1x32xf32, #tpu.memory_space<vmem>>, %arg9: memref<5x32xf32, #tpu.memory_space<vmem>>, %arg10: memref<1x32xf32, #tpu.memory_space<vmem>>, %arg11: memref<32x32xbf16, #tpu.memory_space<vmem>>, %arg12: memref<1x32xf32, #tpu.memory_space<vmem>>, %arg13: memref<1x32xf32, #tpu.memory_space<vmem>>, %arg14: memref<1x32xf32, #tpu.memory_space<vmem>>, %arg15: memref<1x32xf32, #tpu.memory_space<vmem>>, %arg16: memref<1x32xf32, #tpu.memory_space<vmem>>, %arg17: memref<1x32xf32, #tpu.memory_space<vmem>>, %arg18: memref<1x32xf32, #tpu.memory_space<vmem>>, %arg19: memref<1x32xf32, #tpu.memory_space<vmem>>, %arg20: memref<1x32xf32, #tpu.memory_space<vmem>>, %arg21: memref<4x32x8xbf16, #tpu.memory_space<vmem>>, %arg22: memref<4x32x8xbf16, #tpu.memory_space<vmem>>, %arg23: memref<4x32x8xbf16, #tpu.memory_space<vmem>>, %arg24: memref<4x8x32xbf16, #tpu.memory_space<vmem>>, %arg25: memref<32x32xbf16, #tpu.memory_space<vmem>>, %arg26: memref<1x32xf32, #tpu.memory_space<vmem>>, %arg27: memref<32x32xbf16, #tpu.memory_space<vmem>>, %arg28: memref<1x32xf32, #tpu.memory_space<vmem>>, %arg29: memref<128x32xf32, #tpu.memory_space<vmem>>) attributes {dimension_semantics = [#tpu.dimension_semantics<parallel>], iteration_bounds = array<i64: 2>, scalar_prefetch = 0 : i64, scratch_operands = 0 : i64, tpu.core_type = #tpu.core_type<tc>, window_params = [{transform_indices = @transform_0, window_bounds = array<i64: 128, 32>}, {transform_indices = @transform_1, window_bounds = array<i64: 1, 128, 128>}, {pipeline_mode = #tpu.pipeline_mode<synchronous>, transform_indices = @transform_2, window_bounds = array<i64: 128, 32>}, {pipeline_mode = #tpu.pipeline_mode<synchronous>, transform_indices = @transform_3, window_bounds = array<i64: 5, 128, 1>}, {pipeline_mode = #tpu.pipeline_mode<synchronous>, transform_indices = @transform_4, window_bounds = array<i64: 5, 32>}, {pipeline_mode = #tpu.pipeline_mode<synchronous>, transform_indices = @transform_5, window_bounds = array<i64: 1, 32>}, {pipeline_mode = #tpu.pipeline_mode<synchronous>, transform_indices = @transform_6, window_bounds = array<i64: 32, 32>}, {pipeline_mode = #tpu.pipeline_mode<synchronous>, transform_indices = @transform_7, window_bounds = array<i64: 1, 32>}, {pipeline_mode = #tpu.pipeline_mode<synchronous>, transform_indices = @transform_8, window_bounds = array<i64: 5, 32>}, {pipeline_mode = #tpu.pipeline_mode<synchronous>, transform_indices = @transform_9, window_bounds = array<i64: 1, 32>}, {pipeline_mode = #tpu.pipeline_mode<synchronous>, transform_indices = @transform_10, window_bounds = array<i64: 32, 32>}, {pipeline_mode = #tpu.pipeline_mode<synchronous>, transform_indices = @transform_11, window_bounds = array<i64: 1, 32>}, {pipeline_mode = #tpu.pipeline_mode<synchronous>, transform_indices = @transform_12, window_bounds = array<i64: 1, 32>}, {pipeline_mode = #tpu.pipeline_mode<synchronous>, transform_indices = @transform_13, window_bounds = array<i64: 1, 32>}, {pipeline_mode = #tpu.pipeline_mode<synchronous>, transform_indices = @transform_14, window_bounds = array<i64: 1, 32>}, {pipeline_mode = #tpu.pipeline_mode<synchronous>, transform_indices = @transform_15, window_bounds = array<i64: 1, 32>}, {pipeline_mode = #tpu.pipeline_mode<synchronous>, transform_indices = @transform_16, window_bounds = array<i64: 1, 32>}, {pipeline_mode = #tpu.pipeline_mode<synchronous>, transform_indices = @transform_17, window_bounds = array<i64: 1, 32>}, {pipeline_mode = #tpu.pipeline_mode<synchronous>, transform_indices = @transform_18, window_bounds = array<i64: 1, 32>}, {pipeline_mode = #tpu.pipeline_mode<synchronous>, transform_indices = @transform_19, window_bounds = array<i64: 1, 32>}, {pipeline_mode = #tpu.pipeline_mode<synchronous>, transform_indices = @transform_20, window_bounds = array<i64: 4, 32, 8>}, {pipeline_mode = #tpu.pipeline_mode<synchronous>, transform_indices = @transform_21, window_bounds = array<i64: 4, 32, 8>}, {pipeline_mode = #tpu.pipeline_mode<synchronous>, transform_indices = @transform_22, window_bounds = array<i64: 4, 32, 8>}, {pipeline_mode = #tpu.pipeline_mode<synchronous>, transform_indices = @transform_23, window_bounds = array<i64: 4, 8, 32>}, {pipeline_mode = #tpu.pipeline_mode<synchronous>, transform_indices = @transform_24, window_bounds = array<i64: 32, 32>}, {pipeline_mode = #tpu.pipeline_mode<synchronous>, transform_indices = @transform_25, window_bounds = array<i64: 1, 32>}, {pipeline_mode = #tpu.pipeline_mode<synchronous>, transform_indices = @transform_26, window_bounds = array<i64: 32, 32>}, {pipeline_mode = #tpu.pipeline_mode<synchronous>, transform_indices = @transform_27, window_bounds = array<i64: 1, 32>}, {transform_indices = @transform_28, window_bounds = array<i64: 128, 32>}]} {
    %c0 = arith.constant 0 : index
    %c0_0 = arith.constant 0 : index
    %0 = vector.load %arg1[%c0, %c0_0] : memref<128x32xf32, #tpu.memory_space<vmem>>, vector<128x32xf32>
    %c0_1 = arith.constant 0 : index
    %c0_2 = arith.constant 0 : index
    %1 = vector.load %arg3[%c0_1, %c0_2] : memref<128x32xf32, #tpu.memory_space<vmem>>, vector<128x32xf32>
    %2 = arith.addf %0, %1 : vector<128x32xf32>
    %cst = arith.constant dense<0.000000e+00> : vector<128xf32>
    %3 = vector.multi_reduction <add>, %2, %cst [1] : vector<128x32xf32> to vector<128xf32>
    %4 = vector.shape_cast %3 : vector<128xf32> to vector<128x1xf32>
    %cst_3 = arith.constant 3.200000e+01 : f32
    %5 = vector.broadcast %cst_3 : f32 to vector<128x1xf32>
    %6 = arith.divf %4, %5 : vector<128x1xf32>
    %7 = vector.broadcast %6 : vector<128x1xf32> to vector<128x32xf32>
    %8 = arith.subf %2, %7 : vector<128x32xf32>
    %9 = arith.mulf %8, %8 : vector<128x32xf32>
    %cst_4 = arith.constant dense<0.000000e+00> : vector<128xf32>
    %10 = vector.multi_reduction <add>, %9, %cst_4 [1] : vector<128x32xf32> to vector<128xf32>
    %11 = vector.shape_cast %10 : vector<128xf32> to vector<128x1xf32>
    %cst_5 = arith.constant 3.200000e+01 : f32
    %12 = vector.broadcast %cst_5 : f32 to vector<128x1xf32>
    %13 = arith.divf %11, %12 : vector<128x1xf32>
    %14 = vector.broadcast %6 : vector<128x1xf32> to vector<128x32xf32>
    %15 = arith.subf %2, %14 : vector<128x32xf32>
    %cst_6 = arith.constant 9.99999974E-6 : f32
    %16 = vector.broadcast %cst_6 : f32 to vector<128x1xf32>
    %17 = arith.addf %13, %16 : vector<128x1xf32>
    %18 = math.rsqrt %17 : vector<128x1xf32>
    %19 = vector.broadcast %18 : vector<128x1xf32> to vector<128x32xf32>
    %20 = arith.mulf %15, %19 : vector<128x32xf32>
    %c0_7 = arith.constant 0 : index
    %c0_8 = arith.constant 0 : index
    %21 = vector.load %arg13[%c0_7, %c0_8] : memref<1x32xf32, #tpu.memory_space<vmem>>, vector<1x32xf32>
    %22 = vector.broadcast %21 : vector<1x32xf32> to vector<128x32xf32>
    %23 = arith.mulf %20, %22 : vector<128x32xf32>
    %c0_9 = arith.constant 0 : index
    %c0_10 = arith.constant 0 : index
    %24 = vector.load %arg14[%c0_9, %c0_10] : memref<1x32xf32, #tpu.memory_space<vmem>>, vector<1x32xf32>
    %25 = vector.broadcast %24 : vector<1x32xf32> to vector<128x32xf32>
    %26 = arith.addf %23, %25 : vector<128x32xf32>
    %cst_11 = arith.constant 0.000000e+00 : f32
    %27 = vector.broadcast %cst_11 : f32 to vector<2x32xf32>
    %28 = tpu.concatenate %27, %26, %27 in 0 : vector<2x32xf32>, vector<128x32xf32>, vector<2x32xf32> -> vector<132x32xf32>
    %c0_12 = arith.constant 0 : index
    %c0_13 = arith.constant 0 : index
    %29 = vector.load %arg5[%c0_12, %c0_13] : memref<5x32xf32, #tpu.memory_space<vmem>>, vector<5x32xf32>
    %cst_14 = arith.constant 0.000000e+00 : f32
    %30 = vector.broadcast %cst_14 : f32 to vector<128x32xf32>
    %31 = vector.extract_strided_slice %28 {offsets = [0, 0], sizes = [128, 32], strides = [1, 1]} : vector<132x32xf32> to vector<128x32xf32>
    %c0_15 = arith.constant 0 : index
    %c0_16 = arith.constant 0 : index
    %c0_17 = arith.constant 0 : index
    %32 = vector.load %arg4[%c0_15, %c0_16, %c0_17] : memref<5x128x1xf32, #tpu.memory_space<vmem>>, vector<1x128x1xf32>
    %33 = vector.shape_cast %32 : vector<1x128x1xf32> to vector<128x1xf32>
    %34 = vector.broadcast %33 : vector<128x1xf32> to vector<128x32xf32>
    %35 = arith.mulf %31, %34 : vector<128x32xf32>
    %36 = vector.extract_strided_slice %29 {offsets = [0, 0], sizes = [1, 32], strides = [1, 1]} : vector<5x32xf32> to vector<1x32xf32>
    %37 = vector.broadcast %36 : vector<1x32xf32> to vector<128x32xf32>
    %38 = arith.mulf %35, %37 : vector<128x32xf32>
    %39 = arith.addf %30, %38 : vector<128x32xf32>
    %40 = vector.extract_strided_slice %28 {offsets = [1, 0], sizes = [128, 32], strides = [1, 1]} : vector<132x32xf32> to vector<128x32xf32>
    %c1 = arith.constant 1 : index
    %c0_18 = arith.constant 0 : index
    %c0_19 = arith.constant 0 : index
    %41 = vector.load %arg4[%c1, %c0_18, %c0_19] : memref<5x128x1xf32, #tpu.memory_space<vmem>>, vector<1x128x1xf32>
    %42 = vector.shape_cast %41 : vector<1x128x1xf32> to vector<128x1xf32>
    %43 = vector.broadcast %42 : vector<128x1xf32> to vector<128x32xf32>
    %44 = arith.mulf %40, %43 : vector<128x32xf32>
    %45 = vector.extract_strided_slice %29 {offsets = [1, 0], sizes = [1, 32], strides = [1, 1]} : vector<5x32xf32> to vector<1x32xf32>
    %46 = vector.broadcast %45 : vector<1x32xf32> to vector<128x32xf32>
    %47 = arith.mulf %44, %46 : vector<128x32xf32>
    %48 = arith.addf %39, %47 : vector<128x32xf32>
    %49 = vector.extract_strided_slice %28 {offsets = [2, 0], sizes = [128, 32], strides = [1, 1]} : vector<132x32xf32> to vector<128x32xf32>
    %c2 = arith.constant 2 : index
    %c0_20 = arith.constant 0 : index
    %c0_21 = arith.constant 0 : index
    %50 = vector.load %arg4[%c2, %c0_20, %c0_21] : memref<5x128x1xf32, #tpu.memory_space<vmem>>, vector<1x128x1xf32>
    %51 = vector.shape_cast %50 : vector<1x128x1xf32> to vector<128x1xf32>
    %52 = vector.broadcast %51 : vector<128x1xf32> to vector<128x32xf32>
    %53 = arith.mulf %49, %52 : vector<128x32xf32>
    %54 = vector.extract_strided_slice %29 {offsets = [2, 0], sizes = [1, 32], strides = [1, 1]} : vector<5x32xf32> to vector<1x32xf32>
    %55 = vector.broadcast %54 : vector<1x32xf32> to vector<128x32xf32>
    %56 = arith.mulf %53, %55 : vector<128x32xf32>
    %57 = arith.addf %48, %56 : vector<128x32xf32>
    %58 = vector.extract_strided_slice %28 {offsets = [3, 0], sizes = [128, 32], strides = [1, 1]} : vector<132x32xf32> to vector<128x32xf32>
    %c3 = arith.constant 3 : index
    %c0_22 = arith.constant 0 : index
    %c0_23 = arith.constant 0 : index
    %59 = vector.load %arg4[%c3, %c0_22, %c0_23] : memref<5x128x1xf32, #tpu.memory_space<vmem>>, vector<1x128x1xf32>
    %60 = vector.shape_cast %59 : vector<1x128x1xf32> to vector<128x1xf32>
    %61 = vector.broadcast %60 : vector<128x1xf32> to vector<128x32xf32>
    %62 = arith.mulf %58, %61 : vector<128x32xf32>
    %63 = vector.extract_strided_slice %29 {offsets = [3, 0], sizes = [1, 32], strides = [1, 1]} : vector<5x32xf32> to vector<1x32xf32>
    %64 = vector.broadcast %63 : vector<1x32xf32> to vector<128x32xf32>
    %65 = arith.mulf %62, %64 : vector<128x32xf32>
    %66 = arith.addf %57, %65 : vector<128x32xf32>
    %67 = vector.extract_strided_slice %28 {offsets = [4, 0], sizes = [128, 32], strides = [1, 1]} : vector<132x32xf32> to vector<128x32xf32>
    %c4 = arith.constant 4 : index
    %c0_24 = arith.constant 0 : index
    %c0_25 = arith.constant 0 : index
    %68 = vector.load %arg4[%c4, %c0_24, %c0_25] : memref<5x128x1xf32, #tpu.memory_space<vmem>>, vector<1x128x1xf32>
    %69 = vector.shape_cast %68 : vector<1x128x1xf32> to vector<128x1xf32>
    %70 = vector.broadcast %69 : vector<128x1xf32> to vector<128x32xf32>
    %71 = arith.mulf %67, %70 : vector<128x32xf32>
    %72 = vector.extract_strided_slice %29 {offsets = [4, 0], sizes = [1, 32], strides = [1, 1]} : vector<5x32xf32> to vector<1x32xf32>
    %73 = vector.broadcast %72 : vector<1x32xf32> to vector<128x32xf32>
    %74 = arith.mulf %71, %73 : vector<128x32xf32>
    %75 = arith.addf %66, %74 : vector<128x32xf32>
    %c0_26 = arith.constant 0 : index
    %c0_27 = arith.constant 0 : index
    %76 = vector.load %arg6[%c0_26, %c0_27] : memref<1x32xf32, #tpu.memory_space<vmem>>, vector<1x32xf32>
    %77 = vector.broadcast %76 : vector<1x32xf32> to vector<128x32xf32>
    %78 = arith.addf %75, %77 : vector<128x32xf32>
    %79 = arith.truncf %78 : vector<128x32xf32> to vector<128x32xbf16>
    %c0_28 = arith.constant 0 : index
    %c0_29 = arith.constant 0 : index
    %80 = vector.load %arg7[%c0_28, %c0_29] : memref<32x32xbf16, #tpu.memory_space<vmem>>, vector<32x32xbf16>
    %cst_30 = arith.constant dense<0.000000e+00> : vector<128x32xf32>
    %81 = tpu.matmul %79, %80, %cst_30 {dimension_numbers = #tpu.dot_dimension_numbers<[1], [0], [0], [1], [0, 0, 1, 1], [], []>} : vector<128x32xbf16>, vector<32x32xbf16>, vector<128x32xf32> -> vector<128x32xf32>
    %c0_31 = arith.constant 0 : index
    %c0_32 = arith.constant 0 : index
    %82 = vector.load %arg8[%c0_31, %c0_32] : memref<1x32xf32, #tpu.memory_space<vmem>>, vector<1x32xf32>
    %83 = vector.broadcast %82 : vector<1x32xf32> to vector<128x32xf32>
    %84 = arith.addf %81, %83 : vector<128x32xf32>
    %cst_33 = arith.constant 0.000000e+00 : f32
    %85 = vector.broadcast %cst_33 : f32 to vector<128x32xf32>
    %86 = arith.maximumf %84, %85 : vector<128x32xf32>
    %87 = arith.addf %86, %2 : vector<128x32xf32>
    %cst_34 = arith.constant dense<0.000000e+00> : vector<128xf32>
    %88 = vector.multi_reduction <add>, %87, %cst_34 [1] : vector<128x32xf32> to vector<128xf32>
    %89 = vector.shape_cast %88 : vector<128xf32> to vector<128x1xf32>
    %cst_35 = arith.constant 3.200000e+01 : f32
    %90 = vector.broadcast %cst_35 : f32 to vector<128x1xf32>
    %91 = arith.divf %89, %90 : vector<128x1xf32>
    %92 = vector.broadcast %91 : vector<128x1xf32> to vector<128x32xf32>
    %93 = arith.subf %87, %92 : vector<128x32xf32>
    %94 = arith.mulf %93, %93 : vector<128x32xf32>
    %cst_36 = arith.constant dense<0.000000e+00> : vector<128xf32>
    %95 = vector.multi_reduction <add>, %94, %cst_36 [1] : vector<128x32xf32> to vector<128xf32>
    %96 = vector.shape_cast %95 : vector<128xf32> to vector<128x1xf32>
    %cst_37 = arith.constant 3.200000e+01 : f32
    %97 = vector.broadcast %cst_37 : f32 to vector<128x1xf32>
    %98 = arith.divf %96, %97 : vector<128x1xf32>
    %99 = vector.broadcast %91 : vector<128x1xf32> to vector<128x32xf32>
    %100 = arith.subf %87, %99 : vector<128x32xf32>
    %cst_38 = arith.constant 9.99999974E-6 : f32
    %101 = vector.broadcast %cst_38 : f32 to vector<128x1xf32>
    %102 = arith.addf %98, %101 : vector<128x1xf32>
    %103 = math.rsqrt %102 : vector<128x1xf32>
    %104 = vector.broadcast %103 : vector<128x1xf32> to vector<128x32xf32>
    %105 = arith.mulf %100, %104 : vector<128x32xf32>
    %c0_39 = arith.constant 0 : index
    %c0_40 = arith.constant 0 : index
    %106 = vector.load %arg15[%c0_39, %c0_40] : memref<1x32xf32, #tpu.memory_space<vmem>>, vector<1x32xf32>
    %107 = vector.broadcast %106 : vector<1x32xf32> to vector<128x32xf32>
    %108 = arith.mulf %105, %107 : vector<128x32xf32>
    %c0_41 = arith.constant 0 : index
    %c0_42 = arith.constant 0 : index
    %109 = vector.load %arg16[%c0_41, %c0_42] : memref<1x32xf32, #tpu.memory_space<vmem>>, vector<1x32xf32>
    %110 = vector.broadcast %109 : vector<1x32xf32> to vector<128x32xf32>
    %111 = arith.addf %108, %110 : vector<128x32xf32>
    %cst_43 = arith.constant 0.000000e+00 : f32
    %112 = vector.broadcast %cst_43 : f32 to vector<2x32xf32>
    %113 = tpu.concatenate %112, %111, %112 in 0 : vector<2x32xf32>, vector<128x32xf32>, vector<2x32xf32> -> vector<132x32xf32>
    %c0_44 = arith.constant 0 : index
    %c0_45 = arith.constant 0 : index
    %114 = vector.load %arg9[%c0_44, %c0_45] : memref<5x32xf32, #tpu.memory_space<vmem>>, vector<5x32xf32>
    %cst_46 = arith.constant 0.000000e+00 : f32
    %115 = vector.broadcast %cst_46 : f32 to vector<128x32xf32>
    %116 = vector.extract_strided_slice %113 {offsets = [0, 0], sizes = [128, 32], strides = [1, 1]} : vector<132x32xf32> to vector<128x32xf32>
    %c0_47 = arith.constant 0 : index
    %c0_48 = arith.constant 0 : index
    %c0_49 = arith.constant 0 : index
    %117 = vector.load %arg4[%c0_47, %c0_48, %c0_49] : memref<5x128x1xf32, #tpu.memory_space<vmem>>, vector<1x128x1xf32>
    %118 = vector.shape_cast %117 : vector<1x128x1xf32> to vector<128x1xf32>
    %119 = vector.broadcast %118 : vector<128x1xf32> to vector<128x32xf32>
    %120 = arith.mulf %116, %119 : vector<128x32xf32>
    %121 = vector.extract_strided_slice %114 {offsets = [0, 0], sizes = [1, 32], strides = [1, 1]} : vector<5x32xf32> to vector<1x32xf32>
    %122 = vector.broadcast %121 : vector<1x32xf32> to vector<128x32xf32>
    %123 = arith.mulf %120, %122 : vector<128x32xf32>
    %124 = arith.addf %115, %123 : vector<128x32xf32>
    %125 = vector.extract_strided_slice %113 {offsets = [1, 0], sizes = [128, 32], strides = [1, 1]} : vector<132x32xf32> to vector<128x32xf32>
    %c1_50 = arith.constant 1 : index
    %c0_51 = arith.constant 0 : index
    %c0_52 = arith.constant 0 : index
    %126 = vector.load %arg4[%c1_50, %c0_51, %c0_52] : memref<5x128x1xf32, #tpu.memory_space<vmem>>, vector<1x128x1xf32>
    %127 = vector.shape_cast %126 : vector<1x128x1xf32> to vector<128x1xf32>
    %128 = vector.broadcast %127 : vector<128x1xf32> to vector<128x32xf32>
    %129 = arith.mulf %125, %128 : vector<128x32xf32>
    %130 = vector.extract_strided_slice %114 {offsets = [1, 0], sizes = [1, 32], strides = [1, 1]} : vector<5x32xf32> to vector<1x32xf32>
    %131 = vector.broadcast %130 : vector<1x32xf32> to vector<128x32xf32>
    %132 = arith.mulf %129, %131 : vector<128x32xf32>
    %133 = arith.addf %124, %132 : vector<128x32xf32>
    %134 = vector.extract_strided_slice %113 {offsets = [2, 0], sizes = [128, 32], strides = [1, 1]} : vector<132x32xf32> to vector<128x32xf32>
    %c2_53 = arith.constant 2 : index
    %c0_54 = arith.constant 0 : index
    %c0_55 = arith.constant 0 : index
    %135 = vector.load %arg4[%c2_53, %c0_54, %c0_55] : memref<5x128x1xf32, #tpu.memory_space<vmem>>, vector<1x128x1xf32>
    %136 = vector.shape_cast %135 : vector<1x128x1xf32> to vector<128x1xf32>
    %137 = vector.broadcast %136 : vector<128x1xf32> to vector<128x32xf32>
    %138 = arith.mulf %134, %137 : vector<128x32xf32>
    %139 = vector.extract_strided_slice %114 {offsets = [2, 0], sizes = [1, 32], strides = [1, 1]} : vector<5x32xf32> to vector<1x32xf32>
    %140 = vector.broadcast %139 : vector<1x32xf32> to vector<128x32xf32>
    %141 = arith.mulf %138, %140 : vector<128x32xf32>
    %142 = arith.addf %133, %141 : vector<128x32xf32>
    %143 = vector.extract_strided_slice %113 {offsets = [3, 0], sizes = [128, 32], strides = [1, 1]} : vector<132x32xf32> to vector<128x32xf32>
    %c3_56 = arith.constant 3 : index
    %c0_57 = arith.constant 0 : index
    %c0_58 = arith.constant 0 : index
    %144 = vector.load %arg4[%c3_56, %c0_57, %c0_58] : memref<5x128x1xf32, #tpu.memory_space<vmem>>, vector<1x128x1xf32>
    %145 = vector.shape_cast %144 : vector<1x128x1xf32> to vector<128x1xf32>
    %146 = vector.broadcast %145 : vector<128x1xf32> to vector<128x32xf32>
    %147 = arith.mulf %143, %146 : vector<128x32xf32>
    %148 = vector.extract_strided_slice %114 {offsets = [3, 0], sizes = [1, 32], strides = [1, 1]} : vector<5x32xf32> to vector<1x32xf32>
    %149 = vector.broadcast %148 : vector<1x32xf32> to vector<128x32xf32>
    %150 = arith.mulf %147, %149 : vector<128x32xf32>
    %151 = arith.addf %142, %150 : vector<128x32xf32>
    %152 = vector.extract_strided_slice %113 {offsets = [4, 0], sizes = [128, 32], strides = [1, 1]} : vector<132x32xf32> to vector<128x32xf32>
    %c4_59 = arith.constant 4 : index
    %c0_60 = arith.constant 0 : index
    %c0_61 = arith.constant 0 : index
    %153 = vector.load %arg4[%c4_59, %c0_60, %c0_61] : memref<5x128x1xf32, #tpu.memory_space<vmem>>, vector<1x128x1xf32>
    %154 = vector.shape_cast %153 : vector<1x128x1xf32> to vector<128x1xf32>
    %155 = vector.broadcast %154 : vector<128x1xf32> to vector<128x32xf32>
    %156 = arith.mulf %152, %155 : vector<128x32xf32>
    %157 = vector.extract_strided_slice %114 {offsets = [4, 0], sizes = [1, 32], strides = [1, 1]} : vector<5x32xf32> to vector<1x32xf32>
    %158 = vector.broadcast %157 : vector<1x32xf32> to vector<128x32xf32>
    %159 = arith.mulf %156, %158 : vector<128x32xf32>
    %160 = arith.addf %151, %159 : vector<128x32xf32>
    %c0_62 = arith.constant 0 : index
    %c0_63 = arith.constant 0 : index
    %161 = vector.load %arg10[%c0_62, %c0_63] : memref<1x32xf32, #tpu.memory_space<vmem>>, vector<1x32xf32>
    %162 = vector.broadcast %161 : vector<1x32xf32> to vector<128x32xf32>
    %163 = arith.addf %160, %162 : vector<128x32xf32>
    %164 = arith.truncf %163 : vector<128x32xf32> to vector<128x32xbf16>
    %c0_64 = arith.constant 0 : index
    %c0_65 = arith.constant 0 : index
    %165 = vector.load %arg11[%c0_64, %c0_65] : memref<32x32xbf16, #tpu.memory_space<vmem>>, vector<32x32xbf16>
    %cst_66 = arith.constant dense<0.000000e+00> : vector<128x32xf32>
    %166 = tpu.matmul %164, %165, %cst_66 {dimension_numbers = #tpu.dot_dimension_numbers<[1], [0], [0], [1], [0, 0, 1, 1], [], []>} : vector<128x32xbf16>, vector<32x32xbf16>, vector<128x32xf32> -> vector<128x32xf32>
    %c0_67 = arith.constant 0 : index
    %c0_68 = arith.constant 0 : index
    %167 = vector.load %arg12[%c0_67, %c0_68] : memref<1x32xf32, #tpu.memory_space<vmem>>, vector<1x32xf32>
    %168 = vector.broadcast %167 : vector<1x32xf32> to vector<128x32xf32>
    %169 = arith.addf %166, %168 : vector<128x32xf32>
    %cst_69 = arith.constant 0.000000e+00 : f32
    %170 = vector.broadcast %cst_69 : f32 to vector<128x32xf32>
    %171 = arith.maximumf %169, %170 : vector<128x32xf32>
    %172 = arith.addf %171, %87 : vector<128x32xf32>
    %cst_70 = arith.constant dense<0.000000e+00> : vector<128xf32>
    %173 = vector.multi_reduction <add>, %172, %cst_70 [1] : vector<128x32xf32> to vector<128xf32>
    %174 = vector.shape_cast %173 : vector<128xf32> to vector<128x1xf32>
    %cst_71 = arith.constant 3.200000e+01 : f32
    %175 = vector.broadcast %cst_71 : f32 to vector<128x1xf32>
    %176 = arith.divf %174, %175 : vector<128x1xf32>
    %177 = vector.broadcast %176 : vector<128x1xf32> to vector<128x32xf32>
    %178 = arith.subf %172, %177 : vector<128x32xf32>
    %179 = arith.mulf %178, %178 : vector<128x32xf32>
    %cst_72 = arith.constant dense<0.000000e+00> : vector<128xf32>
    %180 = vector.multi_reduction <add>, %179, %cst_72 [1] : vector<128x32xf32> to vector<128xf32>
    %181 = vector.shape_cast %180 : vector<128xf32> to vector<128x1xf32>
    %cst_73 = arith.constant 3.200000e+01 : f32
    %182 = vector.broadcast %cst_73 : f32 to vector<128x1xf32>
    %183 = arith.divf %181, %182 : vector<128x1xf32>
    %184 = vector.broadcast %176 : vector<128x1xf32> to vector<128x32xf32>
    %185 = arith.subf %172, %184 : vector<128x32xf32>
    %cst_74 = arith.constant 9.99999974E-6 : f32
    %186 = vector.broadcast %cst_74 : f32 to vector<128x1xf32>
    %187 = arith.addf %183, %186 : vector<128x1xf32>
    %188 = math.rsqrt %187 : vector<128x1xf32>
    %189 = vector.broadcast %188 : vector<128x1xf32> to vector<128x32xf32>
    %190 = arith.mulf %185, %189 : vector<128x32xf32>
    %c0_75 = arith.constant 0 : index
    %c0_76 = arith.constant 0 : index
    %191 = vector.load %arg17[%c0_75, %c0_76] : memref<1x32xf32, #tpu.memory_space<vmem>>, vector<1x32xf32>
    %192 = vector.broadcast %191 : vector<1x32xf32> to vector<128x32xf32>
    %193 = arith.mulf %190, %192 : vector<128x32xf32>
    %c0_77 = arith.constant 0 : index
    %c0_78 = arith.constant 0 : index
    %194 = vector.load %arg18[%c0_77, %c0_78] : memref<1x32xf32, #tpu.memory_space<vmem>>, vector<1x32xf32>
    %195 = vector.broadcast %194 : vector<1x32xf32> to vector<128x32xf32>
    %196 = arith.addf %193, %195 : vector<128x32xf32>
    %197 = arith.truncf %196 : vector<128x32xf32> to vector<128x32xbf16>
    %198 = vector.shape_cast %197 : vector<128x32xbf16> to vector<1x128x32xbf16>
    %199 = vector.shape_cast %198 : vector<1x128x32xbf16> to vector<1x128x32xbf16>
    %200 = vector.broadcast %199 : vector<1x128x32xbf16> to vector<4x128x32xbf16>
    %c0_79 = arith.constant 0 : index
    %c0_80 = arith.constant 0 : index
    %c0_81 = arith.constant 0 : index
    %201 = vector.load %arg21[%c0_79, %c0_80, %c0_81] : memref<4x32x8xbf16, #tpu.memory_space<vmem>>, vector<4x32x8xbf16>
    "tpu.trace_start"() <{level = 10 : i32, message = "nrk,nkd->nrd"}> : () -> ()
    %cst_82 = arith.constant dense<0.000000e+00> : vector<4x128x8xf32>
    %202 = tpu.matmul %200, %201, %cst_82 {dimension_numbers = #tpu.dot_dimension_numbers<[2], [1], [1], [2], [0, 0, 0, 1, 1, 2], [0], [0]>} : vector<4x128x32xbf16>, vector<4x32x8xbf16>, vector<4x128x8xf32> -> vector<4x128x8xf32>
    "tpu.trace_stop"() : () -> ()
    %203 = arith.truncf %202 : vector<4x128x8xf32> to vector<4x128x8xbf16>
    %c0_83 = arith.constant 0 : index
    %c0_84 = arith.constant 0 : index
    %c0_85 = arith.constant 0 : index
    %204 = vector.load %arg22[%c0_83, %c0_84, %c0_85] : memref<4x32x8xbf16, #tpu.memory_space<vmem>>, vector<4x32x8xbf16>
    "tpu.trace_start"() <{level = 10 : i32, message = "nrk,nkd->nrd"}> : () -> ()
    %cst_86 = arith.constant dense<0.000000e+00> : vector<4x128x8xf32>
    %205 = tpu.matmul %200, %204, %cst_86 {dimension_numbers = #tpu.dot_dimension_numbers<[2], [1], [1], [2], [0, 0, 0, 1, 1, 2], [0], [0]>} : vector<4x128x32xbf16>, vector<4x32x8xbf16>, vector<4x128x8xf32> -> vector<4x128x8xf32>
    "tpu.trace_stop"() : () -> ()
    %206 = arith.truncf %205 : vector<4x128x8xf32> to vector<4x128x8xbf16>
    %c0_87 = arith.constant 0 : index
    %c0_88 = arith.constant 0 : index
    %c0_89 = arith.constant 0 : index
    %207 = vector.load %arg23[%c0_87, %c0_88, %c0_89] : memref<4x32x8xbf16, #tpu.memory_space<vmem>>, vector<4x32x8xbf16>
    "tpu.trace_start"() <{level = 10 : i32, message = "nrk,nkd->nrd"}> : () -> ()
    %cst_90 = arith.constant dense<0.000000e+00> : vector<4x128x8xf32>
    %208 = tpu.matmul %200, %207, %cst_90 {dimension_numbers = #tpu.dot_dimension_numbers<[2], [1], [1], [2], [0, 0, 0, 1, 1, 2], [0], [0]>} : vector<4x128x32xbf16>, vector<4x32x8xbf16>, vector<4x128x8xf32> -> vector<4x128x8xf32>
    "tpu.trace_stop"() : () -> ()
    %209 = arith.truncf %208 : vector<4x128x8xf32> to vector<4x128x8xbf16>
    "tpu.trace_start"() <{level = 10 : i32, message = "nrd,ntd->nrt"}> : () -> ()
    %cst_91 = arith.constant dense<0.000000e+00> : vector<4x128x128xf32>
    %210 = tpu.matmul %203, %206, %cst_91 {dimension_numbers = #tpu.dot_dimension_numbers<[2], [2], [1], [1], [0, 0, 0, 1, 1, 1], [0], [0]>} : vector<4x128x8xbf16>, vector<4x128x8xbf16>, vector<4x128x128xf32> -> vector<4x128x128xf32>
    "tpu.trace_stop"() : () -> ()
    %c0_92 = arith.constant 0 : index
    %c0_93 = arith.constant 0 : index
    %c0_94 = arith.constant 0 : index
    %211 = vector.load %arg2[%c0_92, %c0_93, %c0_94] : memref<1x128x128xf32, #tpu.memory_space<vmem>>, vector<1x128x128xf32>
    %212 = vector.shape_cast %211 : vector<1x128x128xf32> to vector<128x128xf32>
    %213 = vector.shape_cast %212 : vector<128x128xf32> to vector<1x128x128xf32>
    %214 = vector.broadcast %213 : vector<1x128x128xf32> to vector<4x128x128xf32>
    %215 = arith.addf %210, %214 : vector<4x128x128xf32>
    %cst_95 = arith.constant dense<0xFF800000> : vector<4x128xf32>
    %216 = vector.multi_reduction <maximumf>, %215, %cst_95 [2] : vector<4x128x128xf32> to vector<4x128xf32>
    %217 = vector.shape_cast %216 : vector<4x128xf32> to vector<4x128x1xf32>
    %218 = vector.broadcast %217 : vector<4x128x1xf32> to vector<4x128x128xf32>
    %219 = arith.subf %215, %218 : vector<4x128x128xf32>
    %220 = math.exp %219 : vector<4x128x128xf32>
    %cst_96 = arith.constant dense<0.000000e+00> : vector<4x128xf32>
    %221 = vector.multi_reduction <add>, %220, %cst_96 [2] : vector<4x128x128xf32> to vector<4x128xf32>
    %222 = vector.shape_cast %221 : vector<4x128xf32> to vector<4x128x1xf32>
    %223 = tpu.reciprocal %222 {approx = true} : vector<4x128x1xf32> -> vector<4x128x1xf32>
    %224 = vector.broadcast %223 : vector<4x128x1xf32> to vector<4x128x128xf32>
    %225 = arith.mulf %220, %224 : vector<4x128x128xf32>
    %226 = arith.truncf %225 : vector<4x128x128xf32> to vector<4x128x128xbf16>
    "tpu.trace_start"() <{level = 10 : i32, message = "nrt,ntd->nrd"}> : () -> ()
    %cst_97 = arith.constant dense<0.000000e+00> : vector<4x128x8xf32>
    %227 = tpu.matmul %226, %209, %cst_97 {dimension_numbers = #tpu.dot_dimension_numbers<[2], [1], [1], [2], [0, 0, 0, 1, 1, 2], [0], [0]>} : vector<4x128x128xbf16>, vector<4x128x8xbf16>, vector<4x128x8xf32> -> vector<4x128x8xf32>
    "tpu.trace_stop"() : () -> ()
    %228 = arith.truncf %227 : vector<4x128x8xf32> to vector<4x128x8xbf16>
    %c0_98 = arith.constant 0 : index
    %c0_99 = arith.constant 0 : index
    %c0_100 = arith.constant 0 : index
    %229 = vector.load %arg24[%c0_98, %c0_99, %c0_100] : memref<4x8x32xbf16, #tpu.memory_space<vmem>>, vector<4x8x32xbf16>
    "tpu.trace_start"() <{level = 10 : i32, message = "nrd,ndk->nrk"}> : () -> ()
    %cst_101 = arith.constant dense<0.000000e+00> : vector<4x128x32xf32>
    %230 = tpu.matmul %228, %229, %cst_101 {dimension_numbers = #tpu.dot_dimension_numbers<[2], [1], [1], [2], [0, 0, 0, 1, 1, 2], [0], [0]>} : vector<4x128x8xbf16>, vector<4x8x32xbf16>, vector<4x128x32xf32> -> vector<4x128x32xf32>
    "tpu.trace_stop"() : () -> ()
    %cst_102 = arith.constant dense<0.000000e+00> : vector<128x32xf32>
    %231 = vector.multi_reduction <add>, %230, %cst_102 [0] : vector<4x128x32xf32> to vector<128x32xf32>
    %232 = arith.addf %231, %172 : vector<128x32xf32>
    %cst_103 = arith.constant dense<0.000000e+00> : vector<128xf32>
    %233 = vector.multi_reduction <add>, %232, %cst_103 [1] : vector<128x32xf32> to vector<128xf32>
    %234 = vector.shape_cast %233 : vector<128xf32> to vector<128x1xf32>
    %cst_104 = arith.constant 3.200000e+01 : f32
    %235 = vector.broadcast %cst_104 : f32 to vector<128x1xf32>
    %236 = arith.divf %234, %235 : vector<128x1xf32>
    %237 = vector.broadcast %236 : vector<128x1xf32> to vector<128x32xf32>
    %238 = arith.subf %232, %237 : vector<128x32xf32>
    %239 = arith.mulf %238, %238 : vector<128x32xf32>
    %cst_105 = arith.constant dense<0.000000e+00> : vector<128xf32>
    %240 = vector.multi_reduction <add>, %239, %cst_105 [1] : vector<128x32xf32> to vector<128xf32>
    %241 = vector.shape_cast %240 : vector<128xf32> to vector<128x1xf32>
    %cst_106 = arith.constant 3.200000e+01 : f32
    %242 = vector.broadcast %cst_106 : f32 to vector<128x1xf32>
    %243 = arith.divf %241, %242 : vector<128x1xf32>
    %244 = vector.broadcast %236 : vector<128x1xf32> to vector<128x32xf32>
    %245 = arith.subf %232, %244 : vector<128x32xf32>
    %cst_107 = arith.constant 9.99999974E-6 : f32
    %246 = vector.broadcast %cst_107 : f32 to vector<128x1xf32>
    %247 = arith.addf %243, %246 : vector<128x1xf32>
    %248 = math.rsqrt %247 : vector<128x1xf32>
    %249 = vector.broadcast %248 : vector<128x1xf32> to vector<128x32xf32>
    %250 = arith.mulf %245, %249 : vector<128x32xf32>
    %c0_108 = arith.constant 0 : index
    %c0_109 = arith.constant 0 : index
    %251 = vector.load %arg19[%c0_108, %c0_109] : memref<1x32xf32, #tpu.memory_space<vmem>>, vector<1x32xf32>
    %252 = vector.broadcast %251 : vector<1x32xf32> to vector<128x32xf32>
    %253 = arith.mulf %250, %252 : vector<128x32xf32>
    %c0_110 = arith.constant 0 : index
    %c0_111 = arith.constant 0 : index
    %254 = vector.load %arg20[%c0_110, %c0_111] : memref<1x32xf32, #tpu.memory_space<vmem>>, vector<1x32xf32>
    %255 = vector.broadcast %254 : vector<1x32xf32> to vector<128x32xf32>
    %256 = arith.addf %253, %255 : vector<128x32xf32>
    %257 = arith.truncf %256 : vector<128x32xf32> to vector<128x32xbf16>
    %c0_112 = arith.constant 0 : index
    %c0_113 = arith.constant 0 : index
    %258 = vector.load %arg25[%c0_112, %c0_113] : memref<32x32xbf16, #tpu.memory_space<vmem>>, vector<32x32xbf16>
    %cst_114 = arith.constant dense<0.000000e+00> : vector<128x32xf32>
    %259 = tpu.matmul %257, %258, %cst_114 {dimension_numbers = #tpu.dot_dimension_numbers<[1], [0], [0], [1], [0, 0, 1, 1], [], []>} : vector<128x32xbf16>, vector<32x32xbf16>, vector<128x32xf32> -> vector<128x32xf32>
    %c0_115 = arith.constant 0 : index
    %c0_116 = arith.constant 0 : index
    %260 = vector.load %arg26[%c0_115, %c0_116] : memref<1x32xf32, #tpu.memory_space<vmem>>, vector<1x32xf32>
    %261 = vector.broadcast %260 : vector<1x32xf32> to vector<128x32xf32>
    %262 = arith.addf %259, %261 : vector<128x32xf32>
    %cst_117 = arith.constant 0.000000e+00 : f32
    %263 = vector.broadcast %cst_117 : f32 to vector<128x32xf32>
    %264 = arith.maximumf %262, %263 : vector<128x32xf32>
    %265 = arith.truncf %264 : vector<128x32xf32> to vector<128x32xbf16>
    %c0_118 = arith.constant 0 : index
    %c0_119 = arith.constant 0 : index
    %266 = vector.load %arg27[%c0_118, %c0_119] : memref<32x32xbf16, #tpu.memory_space<vmem>>, vector<32x32xbf16>
    %cst_120 = arith.constant dense<0.000000e+00> : vector<128x32xf32>
    %267 = tpu.matmul %265, %266, %cst_120 {dimension_numbers = #tpu.dot_dimension_numbers<[1], [0], [0], [1], [0, 0, 1, 1], [], []>} : vector<128x32xbf16>, vector<32x32xbf16>, vector<128x32xf32> -> vector<128x32xf32>
    %c0_121 = arith.constant 0 : index
    %c0_122 = arith.constant 0 : index
    %268 = vector.load %arg28[%c0_121, %c0_122] : memref<1x32xf32, #tpu.memory_space<vmem>>, vector<1x32xf32>
    %269 = vector.broadcast %268 : vector<1x32xf32> to vector<128x32xf32>
    %270 = arith.addf %267, %269 : vector<128x32xf32>
    %271 = arith.addf %270, %232 : vector<128x32xf32>
    %c0_123 = arith.constant 0 : index
    %c0_124 = arith.constant 0 : index
    %272 = vector.load %arg29[%c0_123, %c0_124] : memref<128x32xf32, #tpu.memory_space<vmem>>, vector<128x32xf32>
    tpu.vector_store %arg29[%c0_123, %c0_124], %271 {strides = array<i32>} : memref<128x32xf32, #tpu.memory_space<vmem>>, vector<128x32xf32>,
    return
  }
  func.func @transform_0(%arg0: i32) -> (i32, i32) {
    %c0_i32 = arith.constant 0 : i32
    %c0_i32_0 = arith.constant 0 : i32
    return %arg0, %c0_i32 : i32, i32
  }
  func.func @transform_1(%arg0: i32) -> (i32, i32, i32) {
    %c0_i32 = arith.constant 0 : i32
    %c0_i32_0 = arith.constant 0 : i32
    %c0_i32_1 = arith.constant 0 : i32
    return %arg0, %c0_i32, %c0_i32_0 : i32, i32, i32
  }
  func.func @transform_2(%arg0: i32) -> (i32, i32) {
    %c0_i32 = arith.constant 0 : i32
    %c0_i32_0 = arith.constant 0 : i32
    %c0_i32_1 = arith.constant 0 : i32
    return %c0_i32, %c0_i32_0 : i32, i32
  }
  func.func @transform_3(%arg0: i32) -> (i32, i32, i32) {
    %c0_i32 = arith.constant 0 : i32
    %c0_i32_0 = arith.constant 0 : i32
    %c0_i32_1 = arith.constant 0 : i32
    %c0_i32_2 = arith.constant 0 : i32
    return %c0_i32, %c0_i32_0, %c0_i32_1 : i32, i32, i32
  }
  func.func @transform_4(%arg0: i32) -> (i32, i32) {
    %c0_i32 = arith.constant 0 : i32
    %c0_i32_0 = arith.constant 0 : i32
    %c0_i32_1 = arith.constant 0 : i32
    return %c0_i32, %c0_i32_0 : i32, i32
  }
  func.func @transform_5(%arg0: i32) -> (i32, i32) {
    %c0_i32 = arith.constant 0 : i32
    %c0_i32_0 = arith.constant 0 : i32
    %c0_i32_1 = arith.constant 0 : i32
    return %c0_i32, %c0_i32_0 : i32, i32
  }
  func.func @transform_6(%arg0: i32) -> (i32, i32) {
    %c0_i32 = arith.constant 0 : i32
    %c0_i32_0 = arith.constant 0 : i32
    %c0_i32_1 = arith.constant 0 : i32
    return %c0_i32, %c0_i32_0 : i32, i32
  }
  func.func @transform_7(%arg0: i32) -> (i32, i32) {
    %c0_i32 = arith.constant 0 : i32
    %c0_i32_0 = arith.constant 0 : i32
    %c0_i32_1 = arith.constant 0 : i32
    return %c0_i32, %c0_i32_0 : i32, i32
  }
  func.func @transform_8(%arg0: i32) -> (i32, i32) {
    %c0_i32 = arith.constant 0 : i32
    %c0_i32_0 = arith.constant 0 : i32
    %c0_i32_1 = arith.constant 0 : i32
    return %c0_i32, %c0_i32_0 : i32, i32
  }
  func.func @transform_9(%arg0: i32) -> (i32, i32) {
    %c0_i32 = arith.constant 0 : i32
    %c0_i32_0 = arith.constant 0 : i32
    %c0_i32_1 = arith.constant 0 : i32
    return %c0_i32, %c0_i32_0 : i32, i32
  }
  func.func @transform_10(%arg0: i32) -> (i32, i32) {
    %c0_i32 = arith.constant 0 : i32
    %c0_i32_0 = arith.constant 0 : i32
    %c0_i32_1 = arith.constant 0 : i32
    return %c0_i32, %c0_i32_0 : i32, i32
  }
  func.func @transform_11(%arg0: i32) -> (i32, i32) {
    %c0_i32 = arith.constant 0 : i32
    %c0_i32_0 = arith.constant 0 : i32
    %c0_i32_1 = arith.constant 0 : i32
    return %c0_i32, %c0_i32_0 : i32, i32
  }
  func.func @transform_12(%arg0: i32) -> (i32, i32) {
    %c0_i32 = arith.constant 0 : i32
    %c0_i32_0 = arith.constant 0 : i32
    %c0_i32_1 = arith.constant 0 : i32
    return %c0_i32, %c0_i32_0 : i32, i32
  }
  func.func @transform_13(%arg0: i32) -> (i32, i32) {
    %c0_i32 = arith.constant 0 : i32
    %c0_i32_0 = arith.constant 0 : i32
    %c0_i32_1 = arith.constant 0 : i32
    return %c0_i32, %c0_i32_0 : i32, i32
  }
  func.func @transform_14(%arg0: i32) -> (i32, i32) {
    %c0_i32 = arith.constant 0 : i32
    %c0_i32_0 = arith.constant 0 : i32
    %c0_i32_1 = arith.constant 0 : i32
    return %c0_i32, %c0_i32_0 : i32, i32
  }
  func.func @transform_15(%arg0: i32) -> (i32, i32) {
    %c0_i32 = arith.constant 0 : i32
    %c0_i32_0 = arith.constant 0 : i32
    %c0_i32_1 = arith.constant 0 : i32
    return %c0_i32, %c0_i32_0 : i32, i32
  }
  func.func @transform_16(%arg0: i32) -> (i32, i32) {
    %c0_i32 = arith.constant 0 : i32
    %c0_i32_0 = arith.constant 0 : i32
    %c0_i32_1 = arith.constant 0 : i32
    return %c0_i32, %c0_i32_0 : i32, i32
  }
  func.func @transform_17(%arg0: i32) -> (i32, i32) {
    %c0_i32 = arith.constant 0 : i32
    %c0_i32_0 = arith.constant 0 : i32
    %c0_i32_1 = arith.constant 0 : i32
    return %c0_i32, %c0_i32_0 : i32, i32
  }
  func.func @transform_18(%arg0: i32) -> (i32, i32) {
    %c0_i32 = arith.constant 0 : i32
    %c0_i32_0 = arith.constant 0 : i32
    %c0_i32_1 = arith.constant 0 : i32
    return %c0_i32, %c0_i32_0 : i32, i32
  }
  func.func @transform_19(%arg0: i32) -> (i32, i32) {
    %c0_i32 = arith.constant 0 : i32
    %c0_i32_0 = arith.constant 0 : i32
    %c0_i32_1 = arith.constant 0 : i32
    return %c0_i32, %c0_i32_0 : i32, i32
  }
  func.func @transform_20(%arg0: i32) -> (i32, i32, i32) {
    %c0_i32 = arith.constant 0 : i32
    %c0_i32_0 = arith.constant 0 : i32
    %c0_i32_1 = arith.constant 0 : i32
    %c0_i32_2 = arith.constant 0 : i32
    return %c0_i32, %c0_i32_0, %c0_i32_1 : i32, i32, i32
  }
  func.func @transform_21(%arg0: i32) -> (i32, i32, i32) {
    %c0_i32 = arith.constant 0 : i32
    %c0_i32_0 = arith.constant 0 : i32
    %c0_i32_1 = arith.constant 0 : i32
    %c0_i32_2 = arith.constant 0 : i32
    return %c0_i32, %c0_i32_0, %c0_i32_1 : i32, i32, i32
  }
  func.func @transform_22(%arg0: i32) -> (i32, i32, i32) {
    %c0_i32 = arith.constant 0 : i32
    %c0_i32_0 = arith.constant 0 : i32
    %c0_i32_1 = arith.constant 0 : i32
    %c0_i32_2 = arith.constant 0 : i32
    return %c0_i32, %c0_i32_0, %c0_i32_1 : i32, i32, i32
  }
  func.func @transform_23(%arg0: i32) -> (i32, i32, i32) {
    %c0_i32 = arith.constant 0 : i32
    %c0_i32_0 = arith.constant 0 : i32
    %c0_i32_1 = arith.constant 0 : i32
    %c0_i32_2 = arith.constant 0 : i32
    return %c0_i32, %c0_i32_0, %c0_i32_1 : i32, i32, i32
  }
  func.func @transform_24(%arg0: i32) -> (i32, i32) {
    %c0_i32 = arith.constant 0 : i32
    %c0_i32_0 = arith.constant 0 : i32
    %c0_i32_1 = arith.constant 0 : i32
    return %c0_i32, %c0_i32_0 : i32, i32
  }
  func.func @transform_25(%arg0: i32) -> (i32, i32) {
    %c0_i32 = arith.constant 0 : i32
    %c0_i32_0 = arith.constant 0 : i32
    %c0_i32_1 = arith.constant 0 : i32
    return %c0_i32, %c0_i32_0 : i32, i32
  }
  func.func @transform_26(%arg0: i32) -> (i32, i32) {
    %c0_i32 = arith.constant 0 : i32
    %c0_i32_0 = arith.constant 0 : i32
    %c0_i32_1 = arith.constant 0 : i32
    return %c0_i32, %c0_i32_0 : i32, i32
  }
  func.func @transform_27(%arg0: i32) -> (i32, i32) {
    %c0_i32 = arith.constant 0 : i32
    %c0_i32_0 = arith.constant 0 : i32
    %c0_i32_1 = arith.constant 0 : i32
    return %c0_i32, %c0_i32_0 : i32, i32
  }
  func.func @transform_28(%arg0: i32) -> (i32, i32) {
    %c0_i32 = arith.constant 0 : i32
    %c0_i32_0 = arith.constant 0 : i32
    return %arg0, %c0_i32 : i32, i32
  }
}

</mosaic_0001>

<llo_original>
// kernel: tpu_custom_call.1
$region0: #{tpu_custom_call.1}
  #allocation0 [shape = 'u32[]', space=smem, size = 0x4, offset = 0x4, fixed_abs, tag = 'smem constant byte address 0x4 - core index']
  #allocation1 [shape = 'u32[72,128]{1,0:T(1,128)}', space=vmem, size = 0x9000, scoped, tag = 'internal scratch']
  %s0 = inlined_call_operand.vmem [shape: f32[256,32], index: 0, kind: input, shape index: {}]
  %s1 = inlined_call_operand.vmem [shape: f32[2,128,128], index: 1, kind: input, shape index: {}]
  %s2 = inlined_call_operand.vmem [shape: f32[128,32], index: 2, kind: input, shape index: {}]
  %s3 = inlined_call_operand.vmem [shape: f32[5,128,1], index: 3, kind: input, shape index: {}]
  %s4 = inlined_call_operand.vmem [shape: f32[5,32], index: 4, kind: input, shape index: {}]
  %s5 = inlined_call_operand.vmem [shape: f32[1,32], index: 5, kind: input, shape index: {}]
  %s6 = inlined_call_operand.vmem [shape: bf16[32,32], index: 6, kind: input, shape index: {}]
  %s7 = inlined_call_operand.vmem [shape: f32[1,32], index: 7, kind: input, shape index: {}]
  %s8 = inlined_call_operand.vmem [shape: f32[5,32], index: 8, kind: input, shape index: {}]
  %s9 = inlined_call_operand.vmem [shape: f32[1,32], index: 9, kind: input, shape index: {}]
  %s10 = inlined_call_operand.vmem [shape: bf16[32,32], index: 10, kind: input, shape index: {}]
  %s11 = inlined_call_operand.vmem [shape: f32[1,32], index: 11, kind: input, shape index: {}]
  %s12 = inlined_call_operand.vmem [shape: f32[1,32], index: 12, kind: input, shape index: {}]
  %s13 = inlined_call_operand.vmem [shape: f32[1,32], index: 13, kind: input, shape index: {}]
  %s14 = inlined_call_operand.vmem [shape: f32[1,32], index: 14, kind: input, shape index: {}]
  %s15 = inlined_call_operand.vmem [shape: f32[1,32], index: 15, kind: input, shape index: {}]
  %s16 = inlined_call_operand.vmem [shape: f32[1,32], index: 16, kind: input, shape index: {}]
  %s17 = inlined_call_operand.vmem [shape: f32[1,32], index: 17, kind: input, shape index: {}]
  %s18 = inlined_call_operand.vmem [shape: f32[1,32], index: 18, kind: input, shape index: {}]
  %s19 = inlined_call_operand.vmem [shape: f32[1,32], index: 19, kind: input, shape index: {}]
  %s20 = inlined_call_operand.vmem [shape: bf16[4,32,8], index: 20, kind: input, shape index: {}]
  %s21 = inlined_call_operand.vmem [shape: bf16[4,32,8], index: 21, kind: input, shape index: {}]
  %s22 = inlined_call_operand.vmem [shape: bf16[4,32,8], index: 22, kind: input, shape index: {}]
  %s23 = inlined_call_operand.vmem [shape: bf16[4,8,32], index: 23, kind: input, shape index: {}]
  %s24 = inlined_call_operand.vmem [shape: bf16[32,32], index: 24, kind: input, shape index: {}]
  %s25 = inlined_call_operand.vmem [shape: f32[1,32], index: 25, kind: input, shape index: {}]
  %s26 = inlined_call_operand.vmem [shape: bf16[32,32], index: 26, kind: input, shape index: {}]
  %s27 = inlined_call_operand.vmem [shape: f32[1,32], index: 27, kind: input, shape index: {}]
  %s28 = inlined_call_operand.vmem [shape: f32[256,32], index: 28, kind: output, shape index: {}]
  %s29 = sld [smem:[#allocation0]]
  $region145: #{tpu_custom_call.1} parent=0
    _
  %s31 = ssub.s32 1, %s29
  %s32 = scalar_select 0, %s31, %s29
  loop: start=0, step=1, limit=4
  $region2: #{tpu_custom_call.1} parent=0 // loop_pre_header
    _
  $region3: #{tpu_custom_call.1} parent=0 // loop_header
    %s34 = sphi 0, %s38
    %p35 = scmp.ge.s32.totalorder %s34, 4
    %s44 = sphi 0, %s46
    %s47 = sphi 0, %s44
    %s48 = sphi 0, %s47
    %s64 = sphi 0, %s48
    %s70 = sphi 0, %s72
    %s73 = sphi 0, %s70
    %s74 = sphi 0, %s73
    %s90 = sphi 0, %s74
    %s94 = sphi 0, %s94
    %s96 = sphi 0, %s94
    %s97 = sphi 0, %s96
    %s111 = sphi 0, %s97
    %s115 = sphi 0, %s115
    %s117 = sphi 0, %s115
    %s118 = sphi 0, %s117
    %s132 = sphi 0, %s118
    %s136 = sphi 0, %s136
    %s138 = sphi 0, %s136
    %s139 = sphi 0, %s138
    %s153 = sphi 0, %s139
    %s157 = sphi 0, %s157
    %s159 = sphi 0, %s157
    %s160 = sphi 0, %s159
    %s174 = sphi 0, %s160
    %s178 = sphi 0, %s178
    %s180 = sphi 0, %s178
    %s181 = sphi 0, %s180
    %s195 = sphi 0, %s181
    %s199 = sphi 0, %s199
    %s201 = sphi 0, %s199
    %s202 = sphi 0, %s201
    %s216 = sphi 0, %s202
    %s220 = sphi 0, %s220
    %s222 = sphi 0, %s220
    %s223 = sphi 0, %s222
    %s237 = sphi 0, %s223
    %s241 = sphi 0, %s241
    %s243 = sphi 0, %s241
    %s244 = sphi 0, %s243
    %s258 = sphi 0, %s244
    %s262 = sphi 0, %s262
    %s264 = sphi 0, %s262
    %s265 = sphi 0, %s264
    %s279 = sphi 0, %s265
    %s283 = sphi 0, %s283
    %s285 = sphi 0, %s283
    %s286 = sphi 0, %s285
    %s300 = sphi 0, %s286
    %s304 = sphi 0, %s304
    %s306 = sphi 0, %s304
    %s307 = sphi 0, %s306
    %s321 = sphi 0, %s307
    %s325 = sphi 0, %s325
    %s327 = sphi 0, %s325
    %s328 = sphi 0, %s327
    %s342 = sphi 0, %s328
    %s346 = sphi 0, %s346
    %s348 = sphi 0, %s346
    %s349 = sphi 0, %s348
    %s363 = sphi 0, %s349
    %s367 = sphi 0, %s367
    %s369 = sphi 0, %s367
    %s370 = sphi 0, %s369
    %s384 = sphi 0, %s370
    %s388 = sphi 0, %s388
    %s390 = sphi 0, %s388
    %s391 = sphi 0, %s390
    %s405 = sphi 0, %s391
    %s409 = sphi 0, %s409
    %s411 = sphi 0, %s409
    %s412 = sphi 0, %s411
    %s426 = sphi 0, %s412
    %s430 = sphi 0, %s430
    %s432 = sphi 0, %s430
    %s433 = sphi 0, %s432
    %s447 = sphi 0, %s433
    %s451 = sphi 0, %s451
    %s453 = sphi 0, %s451
    %s454 = sphi 0, %s453
    %s468 = sphi 0, %s454
    %s472 = sphi 0, %s472
    %s474 = sphi 0, %s472
    %s475 = sphi 0, %s474
    %s489 = sphi 0, %s475
    %s493 = sphi 0, %s493
    %s495 = sphi 0, %s493
    %s496 = sphi 0, %s495
    %s510 = sphi 0, %s496
    %s514 = sphi 0, %s514
    %s516 = sphi 0, %s514
    %s517 = sphi 0, %s516
    %s531 = sphi 0, %s517
    %s535 = sphi 0, %s535
    %s537 = sphi 0, %s535
    %s538 = sphi 0, %s537
    %s552 = sphi 0, %s538
    %s556 = sphi 0, %s556
    %s558 = sphi 0, %s556
    %s559 = sphi 0, %s558
    %s573 = sphi 0, %s559
    %s577 = sphi 0, %s577
    %s579 = sphi 0, %s577
    %s580 = sphi 0, %s579
    %s594 = sphi 0, %s580
    %s598 = sphi 0, %s598
    %s600 = sphi 0, %s598
    %s601 = sphi 0, %s600
    %s615 = sphi 0, %s601
    %s619 = sphi 0, %s619
    %s621 = sphi 0, %s619
    %s622 = sphi 0, %s621
    %s636 = sphi 0, %s622
    %s642 = sphi 0, %s644
    %s645 = sphi 0, %s642
    %s646 = sphi 0, %s645
    %s662 = sphi 0, %s646
  $region4: #{tpu_custom_call.1} parent=0 // loop_header_branch
    %37 = sbr.rel (%p35) target = $region8
  $region5: #{tpu_custom_call.1} parent=0 // loop_body
    %s39 = ssub.s32 %s34, 1
    %s40 = ssub.s32 %s34, 2
    %s41 = sadd.s32 %s34, 1
    %s42 = ssub.s32 %s34, %s41
    %p43 = scmp.eq.s32.totalorder %s42, 0
    %s45 = sadd.s32 %s44, 1
    %s46 = scalar_select %p43, %s44, %s45
    %p49 = pneg %p43
    %p50 = scmp.eq.s32.totalorder %s34, 1
    %p51 = por %p49, %p50
    %p52 = scmp.ne.s32.totalorder %s44, %s47
    %p53 = scmp.eq.s32.totalorder %s34, 0
    %p54 = por %p52, %p53
    %p55 = scmp.ne.s32.totalorder %s44, %s47
    %p56 = scmp.eq.s32.totalorder %s39, 1
    %p57 = por %p55, %p56
    %p58 = scmp.ne.s32.totalorder %s47, %s48
    %p59 = scmp.eq.s32.totalorder %s39, 0
    %p60 = por %p58, %p59
    %p61 = scmp.ne.s32.totalorder %s47, %s48
    %p62 = scmp.eq.s32.totalorder %s40, 1
    %p63 = por %p61, %p62
    %p65 = scmp.ne.s32.totalorder %s48, %s64
    %p66 = scmp.eq.s32.totalorder %s40, 0
    %p67 = por %p65, %p66
    %s68 = ssub.s32 %s34, %s41
    %p69 = scmp.eq.s32.totalorder %s68, 0
    %s71 = sadd.s32 %s70, 1
    %s72 = scalar_select %p69, %s70, %s71
    %p75 = pneg %p69
    %p76 = scmp.eq.s32.totalorder %s34, 1
    %p77 = por %p75, %p76
    %p78 = scmp.ne.s32.totalorder %s70, %s73
    %p79 = scmp.eq.s32.totalorder %s34, 0
    %p80 = por %p78, %p79
    %p81 = scmp.ne.s32.totalorder %s70, %s73
    %p82 = scmp.eq.s32.totalorder %s39, 1
    %p83 = por %p81, %p82
    %p84 = scmp.ne.s32.totalorder %s73, %s74
    %p85 = scmp.eq.s32.totalorder %s39, 0
    %p86 = por %p84, %p85
    %p87 = scmp.ne.s32.totalorder %s73, %s74
    %p88 = scmp.eq.s32.totalorder %s40, 1
    %p89 = por %p87, %p88
    %p91 = scmp.ne.s32.totalorder %s74, %s90
    %p92 = scmp.eq.s32.totalorder %s40, 0
    %p93 = por %p91, %p92
    %s95 = sadd.s32 %s94, 1
    %p98 = scmp.eq.s32.totalorder %s34, 1
    %p99 = scmp.ne.s32.totalorder %s94, %s96
    %p100 = scmp.eq.s32.totalorder %s34, 0
    %p101 = por %p99, %p100
    %p102 = scmp.ne.s32.totalorder %s94, %s96
    %p103 = scmp.eq.s32.totalorder %s39, 1
    %p104 = por %p102, %p103
    %p105 = scmp.ne.s32.totalorder %s96, %s97
    %p106 = scmp.eq.s32.totalorder %s39, 0
    %p107 = por %p105, %p106
    %p108 = scmp.ne.s32.totalorder %s96, %s97
    %p109 = scmp.eq.s32.totalorder %s40, 1
    %p110 = por %p108, %p109
    %p112 = scmp.ne.s32.totalorder %s97, %s111
    %p113 = scmp.eq.s32.totalorder %s40, 0
    %p114 = por %p112, %p113
    %s116 = sadd.s32 %s115, 1
    %p119 = scmp.eq.s32.totalorder %s34, 1
    %p120 = scmp.ne.s32.totalorder %s115, %s117
    %p121 = scmp.eq.s32.totalorder %s34, 0
    %p122 = por %p120, %p121
    %p123 = scmp.ne.s32.totalorder %s115, %s117
    %p124 = scmp.eq.s32.totalorder %s39, 1
    %p125 = por %p123, %p124
    %p126 = scmp.ne.s32.totalorder %s117, %s118
    %p127 = scmp.eq.s32.totalorder %s39, 0
    %p128 = por %p126, %p127
    %p129 = scmp.ne.s32.totalorder %s117, %s118
    %p130 = scmp.eq.s32.totalorder %s40, 1
    %p131 = por %p129, %p130
    %p133 = scmp.ne.s32.totalorder %s118, %s132
    %p134 = scmp.eq.s32.totalorder %s40, 0
    %p135 = por %p133, %p134
    %s137 = sadd.s32 %s136, 1
    %p140 = scmp.eq.s32.totalorder %s34, 1
    %p141 = scmp.ne.s32.totalorder %s136, %s138
    %p142 = scmp.eq.s32.totalorder %s34, 0
    %p143 = por %p141, %p142
    %p144 = scmp.ne.s32.totalorder %s136, %s138
    %p145 = scmp.eq.s32.totalorder %s39, 1
    %p146 = por %p144, %p145
    %p147 = scmp.ne.s32.totalorder %s138, %s139
    %p148 = scmp.eq.s32.totalorder %s39, 0
    %p149 = por %p147, %p148
    %p150 = scmp.ne.s32.totalorder %s138, %s139
    %p151 = scmp.eq.s32.totalorder %s40, 1
    %p152 = por %p150, %p151
    %p154 = scmp.ne.s32.totalorder %s139, %s153
    %p155 = scmp.eq.s32.totalorder %s40, 0
    %p156 = por %p154, %p155
    %s158 = sadd.s32 %s157, 1
    %p161 = scmp.eq.s32.totalorder %s34, 1
    %p162 = scmp.ne.s32.totalorder %s157, %s159
    %p163 = scmp.eq.s32.totalorder %s34, 0
    %p164 = por %p162, %p163
    %p165 = scmp.ne.s32.totalorder %s157, %s159
    %p166 = scmp.eq.s32.totalorder %s39, 1
    %p167 = por %p165, %p166
    %p168 = scmp.ne.s32.totalorder %s159, %s160
    %p169 = scmp.eq.s32.totalorder %s39, 0
    %p170 = por %p168, %p169
    %p171 = scmp.ne.s32.totalorder %s159, %s160
    %p172 = scmp.eq.s32.totalorder %s40, 1
    %p173 = por %p171, %p172
    %p175 = scmp.ne.s32.totalorder %s160, %s174
    %p176 = scmp.eq.s32.totalorder %s40, 0
    %p177 = por %p175, %p176
    %s179 = sadd.s32 %s178, 1
    %p182 = scmp.eq.s32.totalorder %s34, 1
    %p183 = scmp.ne.s32.totalorder %s178, %s180
    %p184 = scmp.eq.s32.totalorder %s34, 0
    %p185 = por %p183, %p184
    %p186 = scmp.ne.s32.totalorder %s178, %s180
    %p187 = scmp.eq.s32.totalorder %s39, 1
    %p188 = por %p186, %p187
    %p189 = scmp.ne.s32.totalorder %s180, %s181
    %p190 = scmp.eq.s32.totalorder %s39, 0
    %p191 = por %p189, %p190
    %p192 = scmp.ne.s32.totalorder %s180, %s181
    %p193 = scmp.eq.s32.totalorder %s40, 1
    %p194 = por %p192, %p193
    %p196 = scmp.ne.s32.totalorder %s181, %s195
    %p197 = scmp.eq.s32.totalorder %s40, 0
    %p198 = por %p196, %p197
    %s200 = sadd.s32 %s199, 1
    %p203 = scmp.eq.s32.totalorder %s34, 1
    %p204 = scmp.ne.s32.totalorder %s199, %s201
    %p205 = scmp.eq.s32.totalorder %s34, 0
    %p206 = por %p204, %p205
    %p207 = scmp.ne.s32.totalorder %s199, %s201
    %p208 = scmp.eq.s32.totalorder %s39, 1
    %p209 = por %p207, %p208
    %p210 = scmp.ne.s32.totalorder %s201, %s202
    %p211 = scmp.eq.s32.totalorder %s39, 0
    %p212 = por %p210, %p211
    %p213 = scmp.ne.s32.totalorder %s201, %s202
    %p214 = scmp.eq.s32.totalorder %s40, 1
    %p215 = por %p213, %p214
    %p217 = scmp.ne.s32.totalorder %s202, %s216
    %p218 = scmp.eq.s32.totalorder %s40, 0
    %p219 = por %p217, %p218
    %s221 = sadd.s32 %s220, 1
    %p224 = scmp.eq.s32.totalorder %s34, 1
    %p225 = scmp.ne.s32.totalorder %s220, %s222
    %p226 = scmp.eq.s32.totalorder %s34, 0
    %p227 = por %p225, %p226
    %p228 = scmp.ne.s32.totalorder %s220, %s222
    %p229 = scmp.eq.s32.totalorder %s39, 1
    %p230 = por %p228, %p229
    %p231 = scmp.ne.s32.totalorder %s222, %s223
    %p232 = scmp.eq.s32.totalorder %s39, 0
    %p233 = por %p231, %p232
    %p234 = scmp.ne.s32.totalorder %s222, %s223
    %p235 = scmp.eq.s32.totalorder %s40, 1
    %p236 = por %p234, %p235
    %p238 = scmp.ne.s32.totalorder %s223, %s237
    %p239 = scmp.eq.s32.totalorder %s40, 0
    %p240 = por %p238, %p239
    %s242 = sadd.s32 %s241, 1
    %p245 = scmp.eq.s32.totalorder %s34, 1
    %p246 = scmp.ne.s32.totalorder %s241, %s243
    %p247 = scmp.eq.s32.totalorder %s34, 0
    %p248 = por %p246, %p247
    %p249 = scmp.ne.s32.totalorder %s241, %s243
    %p250 = scmp.eq.s32.totalorder %s39, 1
    %p251 = por %p249, %p250
    %p252 = scmp.ne.s32.totalorder %s243, %s244
    %p253 = scmp.eq.s32.totalorder %s39, 0
    %p254 = por %p252, %p253
    %p255 = scmp.ne.s32.totalorder %s243, %s244
    %p256 = scmp.eq.s32.totalorder %s40, 1
    %p257 = por %p255, %p256
    %p259 = scmp.ne.s32.totalorder %s244, %s258
    %p260 = scmp.eq.s32.totalorder %s40, 0
    %p261 = por %p259, %p260
    %s263 = sadd.s32 %s262, 1
    %p266 = scmp.eq.s32.totalorder %s34, 1
    %p267 = scmp.ne.s32.totalorder %s262, %s264
    %p268 = scmp.eq.s32.totalorder %s34, 0
    %p269 = por %p267, %p268
    %p270 = scmp.ne.s32.totalorder %s262, %s264
    %p271 = scmp.eq.s32.totalorder %s39, 1
    %p272 = por %p270, %p271
    %p273 = scmp.ne.s32.totalorder %s264, %s265
    %p274 = scmp.eq.s32.totalorder %s39, 0
    %p275 = por %p273, %p274
    %p276 = scmp.ne.s32.totalorder %s264, %s265
    %p277 = scmp.eq.s32.totalorder %s40, 1
    %p278 = por %p276, %p277
    %p280 = scmp.ne.s32.totalorder %s265, %s279
    %p281 = scmp.eq.s32.totalorder %s40, 0
    %p282 = por %p280, %p281
    %s284 = sadd.s32 %s283, 1
    %p287 = scmp.eq.s32.totalorder %s34, 1
    %p288 = scmp.ne.s32.totalorder %s283, %s285
    %p289 = scmp.eq.s32.totalorder %s34, 0
    %p290 = por %p288, %p289
    %p291 = scmp.ne.s32.totalorder %s283, %s285
    %p292 = scmp.eq.s32.totalorder %s39, 1
    %p293 = por %p291, %p292
    %p294 = scmp.ne.s32.totalorder %s285, %s286
    %p295 = scmp.eq.s32.totalorder %s39, 0
    %p296 = por %p294, %p295
    %p297 = scmp.ne.s32.totalorder %s285, %s286
    %p298 = scmp.eq.s32.totalorder %s40, 1
    %p299 = por %p297, %p298
    %p301 = scmp.ne.s32.totalorder %s286, %s300
    %p302 = scmp.eq.s32.totalorder %s40, 0
    %p303 = por %p301, %p302
    %s305 = sadd.s32 %s304, 1
    %p308 = scmp.eq.s32.totalorder %s34, 1
    %p309 = scmp.ne.s32.totalorder %s304, %s306
    %p310 = scmp.eq.s32.totalorder %s34, 0
    %p311 = por %p309, %p310
    %p312 = scmp.ne.s32.totalorder %s304, %s306
    %p313 = scmp.eq.s32.totalorder %s39, 1
    %p314 = por %p312, %p313
    %p315 = scmp.ne.s32.totalorder %s306, %s307
    %p316 = scmp.eq.s32.totalorder %s39, 0
    %p317 = por %p315, %p316
    %p318 = scmp.ne.s32.totalorder %s306, %s307
    %p319 = scmp.eq.s32.totalorder %s40, 1
    %p320 = por %p318, %p319
    %p322 = scmp.ne.s32.totalorder %s307, %s321
    %p323 = scmp.eq.s32.totalorder %s40, 0
    %p324 = por %p322, %p323
    %s326 = sadd.s32 %s325, 1
    %p329 = scmp.eq.s32.totalorder %s34, 1
    %p330 = scmp.ne.s32.totalorder %s325, %s327
    %p331 = scmp.eq.s32.totalorder %s34, 0
    %p332 = por %p330, %p331
    %p333 = scmp.ne.s32.totalorder %s325, %s327
    %p334 = scmp.eq.s32.totalorder %s39, 1
    %p335 = por %p333, %p334
    %p336 = scmp.ne.s32.totalorder %s327, %s328
    %p337 = scmp.eq.s32.totalorder %s39, 0
    %p338 = por %p336, %p337
    %p339 = scmp.ne.s32.totalorder %s327, %s328
    %p340 = scmp.eq.s32.totalorder %s40, 1
    %p341 = por %p339, %p340
    %p343 = scmp.ne.s32.totalorder %s328, %s342
    %p344 = scmp.eq.s32.totalorder %s40, 0
    %p345 = por %p343, %p344
    %s347 = sadd.s32 %s346, 1
    %p350 = scmp.eq.s32.totalorder %s34, 1
    %p351 = scmp.ne.s32.totalorder %s346, %s348
    %p352 = scmp.eq.s32.totalorder %s34, 0
    %p353 = por %p351, %p352
    %p354 = scmp.ne.s32.totalorder %s346, %s348
    %p355 = scmp.eq.s32.totalorder %s39, 1
    %p356 = por %p354, %p355
    %p357 = scmp.ne.s32.totalorder %s348, %s349
    %p358 = scmp.eq.s32.totalorder %s39, 0
    %p359 = por %p357, %p358
    %p360 = scmp.ne.s32.totalorder %s348, %s349
    %p361 = scmp.eq.s32.totalorder %s40, 1
    %p362 = por %p360, %p361
    %p364 = scmp.ne.s32.totalorder %s349, %s363
    %p365 = scmp.eq.s32.totalorder %s40, 0
    %p366 = por %p364, %p365
    %s368 = sadd.s32 %s367, 1
    %p371 = scmp.eq.s32.totalorder %s34, 1
    %p372 = scmp.ne.s32.totalorder %s367, %s369
    %p373 = scmp.eq.s32.totalorder %s34, 0
    %p374 = por %p372, %p373
    %p375 = scmp.ne.s32.totalorder %s367, %s369
    %p376 = scmp.eq.s32.totalorder %s39, 1
    %p377 = por %p375, %p376
    %p378 = scmp.ne.s32.totalorder %s369, %s370
    %p379 = scmp.eq.s32.totalorder %s39, 0
    %p380 = por %p378, %p379
    %p381 = scmp.ne.s32.totalorder %s369, %s370
    %p382 = scmp.eq.s32.totalorder %s40, 1
    %p383 = por %p381, %p382
    %p385 = scmp.ne.s32.totalorder %s370, %s384
    %p386 = scmp.eq.s32.totalorder %s40, 0
    %p387 = por %p385, %p386
    %s389 = sadd.s32 %s388, 1
    %p392 = scmp.eq.s32.totalorder %s34, 1
    %p393 = scmp.ne.s32.totalorder %s388, %s390
    %p394 = scmp.eq.s32.totalorder %s34, 0
    %p395 = por %p393, %p394
    %p396 = scmp.ne.s32.totalorder %s388, %s390
    %p397 = scmp.eq.s32.totalorder %s39, 1
    %p398 = por %p396, %p397
    %p399 = scmp.ne.s32.totalorder %s390, %s391
    %p400 = scmp.eq.s32.totalorder %s39, 0
    %p401 = por %p399, %p400
    %p402 = scmp.ne.s32.totalorder %s390, %s391
    %p403 = scmp.eq.s32.totalorder %s40, 1
    %p404 = por %p402, %p403
    %p406 = scmp.ne.s32.totalorder %s391, %s405
    %p407 = scmp.eq.s32.totalorder %s40, 0
    %p408 = por %p406, %p407
    %s410 = sadd.s32 %s409, 1
    %p413 = scmp.eq.s32.totalorder %s34, 1
    %p414 = scmp.ne.s32.totalorder %s409, %s411
    %p415 = scmp.eq.s32.totalorder %s34, 0
    %p416 = por %p414, %p415
    %p417 = scmp.ne.s32.totalorder %s409, %s411
    %p418 = scmp.eq.s32.totalorder %s39, 1
    %p419 = por %p417, %p418
    %p420 = scmp.ne.s32.totalorder %s411, %s412
    %p421 = scmp.eq.s32.totalorder %s39, 0
    %p422 = por %p420, %p421
    %p423 = scmp.ne.s32.totalorder %s411, %s412
    %p424 = scmp.eq.s32.totalorder %s40, 1
    %p425 = por %p423, %p424
    %p427 = scmp.ne.s32.totalorder %s412, %s426
    %p428 = scmp.eq.s32.totalorder %s40, 0
    %p429 = por %p427, %p428
    %s431 = sadd.s32 %s430, 1
    %p434 = scmp.eq.s32.totalorder %s34, 1
    %p435 = scmp.ne.s32.totalorder %s430, %s432
    %p436 = scmp.eq.s32.totalorder %s34, 0
    %p437 = por %p435, %p436
    %p438 = scmp.ne.s32.totalorder %s430, %s432
    %p439 = scmp.eq.s32.totalorder %s39, 1
    %p440 = por %p438, %p439
    %p441 = scmp.ne.s32.totalorder %s432, %s433
    %p442 = scmp.eq.s32.totalorder %s39, 0
    %p443 = por %p441, %p442
    %p444 = scmp.ne.s32.totalorder %s432, %s433
    %p445 = scmp.eq.s32.totalorder %s40, 1
    %p446 = por %p444, %p445
    %p448 = scmp.ne.s32.totalorder %s433, %s447
    %p449 = scmp.eq.s32.totalorder %s40, 0
    %p450 = por %p448, %p449
    %s452 = sadd.s32 %s451, 1
    %p455 = scmp.eq.s32.totalorder %s34, 1
    %p456 = scmp.ne.s32.totalorder %s451, %s453
    %p457 = scmp.eq.s32.totalorder %s34, 0
    %p458 = por %p456, %p457
    %p459 = scmp.ne.s32.totalorder %s451, %s453
    %p460 = scmp.eq.s32.totalorder %s39, 1
    %p461 = por %p459, %p460
    %p462 = scmp.ne.s32.totalorder %s453, %s454
    %p463 = scmp.eq.s32.totalorder %s39, 0
    %p464 = por %p462, %p463
    %p465 = scmp.ne.s32.totalorder %s453, %s454
    %p466 = scmp.eq.s32.totalorder %s40, 1
    %p467 = por %p465, %p466
    %p469 = scmp.ne.s32.totalorder %s454, %s468
    %p470 = scmp.eq.s32.totalorder %s40, 0
    %p471 = por %p469, %p470
    %s473 = sadd.s32 %s472, 1
    %p476 = scmp.eq.s32.totalorder %s34, 1
    %p477 = scmp.ne.s32.totalorder %s472, %s474
    %p478 = scmp.eq.s32.totalorder %s34, 0
    %p479 = por %p477, %p478
    %p480 = scmp.ne.s32.totalorder %s472, %s474
    %p481 = scmp.eq.s32.totalorder %s39, 1
    %p482 = por %p480, %p481
    %p483 = scmp.ne.s32.totalorder %s474, %s475
    %p484 = scmp.eq.s32.totalorder %s39, 0
    %p485 = por %p483, %p484
    %p486 = scmp.ne.s32.totalorder %s474, %s475
    %p487 = scmp.eq.s32.totalorder %s40, 1
    %p488 = por %p486, %p487
    %p490 = scmp.ne.s32.totalorder %s475, %s489
    %p491 = scmp.eq.s32.totalorder %s40, 0
    %p492 = por %p490, %p491
    %s494 = sadd.s32 %s493, 1
    %p497 = scmp.eq.s32.totalorder %s34, 1
    %p498 = scmp.ne.s32.totalorder %s493, %s495
    %p499 = scmp.eq.s32.totalorder %s34, 0
    %p500 = por %p498, %p499
    %p501 = scmp.ne.s32.totalorder %s493, %s495
    %p502 = scmp.eq.s32.totalorder %s39, 1
    %p503 = por %p501, %p502
    %p504 = scmp.ne.s32.totalorder %s495, %s496
    %p505 = scmp.eq.s32.totalorder %s39, 0
    %p506 = por %p504, %p505
    %p507 = scmp.ne.s32.totalorder %s495, %s496
    %p508 = scmp.eq.s32.totalorder %s40, 1
    %p509 = por %p507, %p508
    %p511 = scmp.ne.s32.totalorder %s496, %s510
    %p512 = scmp.eq.s32.totalorder %s40, 0
    %p513 = por %p511, %p512
    %s515 = sadd.s32 %s514, 1
    %p518 = scmp.eq.s32.totalorder %s34, 1
    %p519 = scmp.ne.s32.totalorder %s514, %s516
    %p520 = scmp.eq.s32.totalorder %s34, 0
    %p521 = por %p519, %p520
    %p522 = scmp.ne.s32.totalorder %s514, %s516
    %p523 = scmp.eq.s32.totalorder %s39, 1
    %p524 = por %p522, %p523
    %p525 = scmp.ne.s32.totalorder %s516, %s517
    %p526 = scmp.eq.s32.totalorder %s39, 0
    %p527 = por %p525, %p526
    %p528 = scmp.ne.s32.totalorder %s516, %s517
    %p529 = scmp.eq.s32.totalorder %s40, 1
    %p530 = por %p528, %p529
    %p532 = scmp.ne.s32.totalorder %s517, %s531
    %p533 = scmp.eq.s32.totalorder %s40, 0
    %p534 = por %p532, %p533
    %s536 = sadd.s32 %s535, 1
    %p539 = scmp.eq.s32.totalorder %s34, 1
    %p540 = scmp.ne.s32.totalorder %s535, %s537
    %p541 = scmp.eq.s32.totalorder %s34, 0
    %p542 = por %p540, %p541
    %p543 = scmp.ne.s32.totalorder %s535, %s537
    %p544 = scmp.eq.s32.totalorder %s39, 1
    %p545 = por %p543, %p544
    %p546 = scmp.ne.s32.totalorder %s537, %s538
    %p547 = scmp.eq.s32.totalorder %s39, 0
    %p548 = por %p546, %p547
    %p549 = scmp.ne.s32.totalorder %s537, %s538
    %p550 = scmp.eq.s32.totalorder %s40, 1
    %p551 = por %p549, %p550
    %p553 = scmp.ne.s32.totalorder %s538, %s552
    %p554 = scmp.eq.s32.totalorder %s40, 0
    %p555 = por %p553, %p554
    %s557 = sadd.s32 %s556, 1
    %p560 = scmp.eq.s32.totalorder %s34, 1
    %p561 = scmp.ne.s32.totalorder %s556, %s558
    %p562 = scmp.eq.s32.totalorder %s34, 0
    %p563 = por %p561, %p562
    %p564 = scmp.ne.s32.totalorder %s556, %s558
    %p565 = scmp.eq.s32.totalorder %s39, 1
    %p566 = por %p564, %p565
    %p567 = scmp.ne.s32.totalorder %s558, %s559
    %p568 = scmp.eq.s32.totalorder %s39, 0
    %p569 = por %p567, %p568
    %p570 = scmp.ne.s32.totalorder %s558, %s559
    %p571 = scmp.eq.s32.totalorder %s40, 1
    %p572 = por %p570, %p571
    %p574 = scmp.ne.s32.totalorder %s559, %s573
    %p575 = scmp.eq.s32.totalorder %s40, 0
    %p576 = por %p574, %p575
    %s578 = sadd.s32 %s577, 1
    %p581 = scmp.eq.s32.totalorder %s34, 1
    %p582 = scmp.ne.s32.totalorder %s577, %s579
    %p583 = scmp.eq.s32.totalorder %s34, 0
    %p584 = por %p582, %p583
    %p585 = scmp.ne.s32.totalorder %s577, %s579
    %p586 = scmp.eq.s32.totalorder %s39, 1
    %p587 = por %p585, %p586
    %p588 = scmp.ne.s32.totalorder %s579, %s580
    %p589 = scmp.eq.s32.totalorder %s39, 0
    %p590 = por %p588, %p589
    %p591 = scmp.ne.s32.totalorder %s579, %s580
    %p592 = scmp.eq.s32.totalorder %s40, 1
    %p593 = por %p591, %p592
    %p595 = scmp.ne.s32.totalorder %s580, %s594
    %p596 = scmp.eq.s32.totalorder %s40, 0
    %p597 = por %p595, %p596
    %s599 = sadd.s32 %s598, 1
    %p602 = scmp.eq.s32.totalorder %s34, 1
    %p603 = scmp.ne.s32.totalorder %s598, %s600
    %p604 = scmp.eq.s32.totalorder %s34, 0
    %p605 = por %p603, %p604
    %p606 = scmp.ne.s32.totalorder %s598, %s600
    %p607 = scmp.eq.s32.totalorder %s39, 1
    %p608 = por %p606, %p607
    %p609 = scmp.ne.s32.totalorder %s600, %s601
    %p610 = scmp.eq.s32.totalorder %s39, 0
    %p611 = por %p609, %p610
    %p612 = scmp.ne.s32.totalorder %s600, %s601
    %p613 = scmp.eq.s32.totalorder %s40, 1
    %p614 = por %p612, %p613
    %p616 = scmp.ne.s32.totalorder %s601, %s615
    %p617 = scmp.eq.s32.totalorder %s40, 0
    %p618 = por %p616, %p617
    %s620 = sadd.s32 %s619, 1
    %p623 = scmp.eq.s32.totalorder %s34, 1
    %p624 = scmp.ne.s32.totalorder %s619, %s621
    %p625 = scmp.eq.s32.totalorder %s34, 0
    %p626 = por %p624, %p625
    %p627 = scmp.ne.s32.totalorder %s619, %s621
    %p628 = scmp.eq.s32.totalorder %s39, 1
    %p629 = por %p627, %p628
    %p630 = scmp.ne.s32.totalorder %s621, %s622
    %p631 = scmp.eq.s32.totalorder %s39, 0
    %p632 = por %p630, %p631
    %p633 = scmp.ne.s32.totalorder %s621, %s622
    %p634 = scmp.eq.s32.totalorder %s40, 1
    %p635 = por %p633, %p634
    %p637 = scmp.ne.s32.totalorder %s622, %s636
    %p638 = scmp.eq.s32.totalorder %s40, 0
    %p639 = por %p637, %p638
    %s640 = ssub.s32 %s34, %s41
    %p641 = scmp.eq.s32.totalorder %s640, 0
    %s643 = sadd.s32 %s642, 1
    %s644 = scalar_select %p641, %s642, %s643
    %p647 = pneg %p641
    %p648 = scmp.eq.s32.totalorder %s34, 1
    %p649 = por %p647, %p648
    %p650 = scmp.ne.s32.totalorder %s642, %s645
    %p651 = scmp.eq.s32.totalorder %s34, 0
    %p652 = por %p650, %p651
    %p653 = scmp.ne.s32.totalorder %s642, %s645
    %p654 = scmp.eq.s32.totalorder %s39, 1
    %p655 = por %p653, %p654
    %p656 = scmp.ne.s32.totalorder %s645, %s646
    %p657 = scmp.eq.s32.totalorder %s39, 0
    %p658 = por %p656, %p657
    %p659 = scmp.ne.s32.totalorder %s645, %s646
    %p660 = scmp.eq.s32.totalorder %s40, 1
    %p661 = por %p659, %p660
    %p663 = scmp.ne.s32.totalorder %s646, %s662
    %p664 = scmp.eq.s32.totalorder %s40, 0
    %p665 = por %p663, %p664
    %p666 = scmp.le.s32.totalorder 1, %s34
    %p667 = scmp.lt.s32.totalorder %s34, 3
    %p668 = pnand %p666, %p667
    %p669 = pneg %p668
    // Predicated region
    $region9: #{tpu_custom_call.1} parent=5 // pred_check
      _
    $region10: #{tpu_custom_call.1} parent=5 // pred_check_branch
      %671 = sbr.rel (%p668) target = $region12
    $region11: #{tpu_custom_call.1} parent=5 // pred_region
      %s672 = ssub.s32 %s34, 1
      // Predicated region
      $region13: #{tpu_custom_call.1} parent=11 // pred_check
        %p673 = pneg %p107
      $region14: #{tpu_custom_call.1} parent=11 // pred_check_branch
        %675 = sbr.rel (%p673) target = $region16
      $region15: #{tpu_custom_call.1} parent=11 // pred_region
        _
      $region16: #{tpu_custom_call.1} parent=11 // pred_fallthru
        _
      // Predicated region
      $region17: #{tpu_custom_call.1} parent=11 // pred_check
        %p676 = pneg %p128
      $region18: #{tpu_custom_call.1} parent=11 // pred_check_branch
        %678 = sbr.rel (%p676) target = $region20
      $region19: #{tpu_custom_call.1} parent=11 // pred_region
        _
      $region20: #{tpu_custom_call.1} parent=11 // pred_fallthru
        _
      // Predicated region
      $region21: #{tpu_custom_call.1} parent=11 // pred_check
        %p679 = pneg %p149
      $region22: #{tpu_custom_call.1} parent=11 // pred_check_branch
        %681 = sbr.rel (%p679) target = $region24
      $region23: #{tpu_custom_call.1} parent=11 // pred_region
        _
      $region24: #{tpu_custom_call.1} parent=11 // pred_fallthru
        _
      // Predicated region
      $region25: #{tpu_custom_call.1} parent=11 // pred_check
        %p682 = pneg %p170
      $region26: #{tpu_custom_call.1} parent=11 // pred_check_branch
        %684 = sbr.rel (%p682) target = $region28
      $region27: #{tpu_custom_call.1} parent=11 // pred_region
        _
      $region28: #{tpu_custom_call.1} parent=11 // pred_fallthru
        _
      // Predicated region
      $region29: #{tpu_custom_call.1} parent=11 // pred_check
        %p685 = pneg %p191
      $region30: #{tpu_custom_call.1} parent=11 // pred_check_branch
        %687 = sbr.rel (%p685) target = $region32
      $region31: #{tpu_custom_call.1} parent=11 // pred_region
        _
      $region32: #{tpu_custom_call.1} parent=11 // pred_fallthru
        _
      // Predicated region
      $region33: #{tpu_custom_call.1} parent=11 // pred_check
        %p688 = pneg %p212
      $region34: #{tpu_custom_call.1} parent=11 // pred_check_branch
        %690 = sbr.rel (%p688) target = $region36
      $region35: #{tpu_custom_call.1} parent=11 // pred_region
        _
      $region36: #{tpu_custom_call.1} parent=11 // pred_fallthru
        _
      // Predicated region
      $region37: #{tpu_custom_call.1} parent=11 // pred_check
        %p691 = pneg %p233
      $region38: #{tpu_custom_call.1} parent=11 // pred_check_branch
        %693 = sbr.rel (%p691) target = $region40
      $region39: #{tpu_custom_call.1} parent=11 // pred_region
        _
      $region40: #{tpu_custom_call.1} parent=11 // pred_fallthru
        _
      // Predicated region
      $region41: #{tpu_custom_call.1} parent=11 // pred_check
        %p694 = pneg %p254
      $region42: #{tpu_custom_call.1} parent=11 // pred_check_branch
        %696 = sbr.rel (%p694) target = $region44
      $region43: #{tpu_custom_call.1} parent=11 // pred_region
        _
      $region44: #{tpu_custom_call.1} parent=11 // pred_fallthru
        _
      // Predicated region
      $region45: #{tpu_custom_call.1} parent=11 // pred_check
        %p697 = pneg %p275
      $region46: #{tpu_custom_call.1} parent=11 // pred_check_branch
        %699 = sbr.rel (%p697) target = $region48
      $region47: #{tpu_custom_call.1} parent=11 // pred_region
        _
      $region48: #{tpu_custom_call.1} parent=11 // pred_fallthru
        _
      // Predicated region
      $region49: #{tpu_custom_call.1} parent=11 // pred_check
        %p700 = pneg %p296
      $region50: #{tpu_custom_call.1} parent=11 // pred_check_branch
        %702 = sbr.rel (%p700) target = $region52
      $region51: #{tpu_custom_call.1} parent=11 // pred_region
        _
      $region52: #{tpu_custom_call.1} parent=11 // pred_fallthru
        _
      // Predicated region
      $region53: #{tpu_custom_call.1} parent=11 // pred_check
        %p703 = pneg %p317
      $region54: #{tpu_custom_call.1} parent=11 // pred_check_branch
        %705 = sbr.rel (%p703) target = $region56
      $region55: #{tpu_custom_call.1} parent=11 // pred_region
        _
      $region56: #{tpu_custom_call.1} parent=11 // pred_fallthru
        _
      // Predicated region
      $region57: #{tpu_custom_call.1} parent=11 // pred_check
        %p706 = pneg %p338
      $region58: #{tpu_custom_call.1} parent=11 // pred_check_branch
        %708 = sbr.rel (%p706) target = $region60
      $region59: #{tpu_custom_call.1} parent=11 // pred_region
        _
      $region60: #{tpu_custom_call.1} parent=11 // pred_fallthru
        _
      // Predicated region
      $region61: #{tpu_custom_call.1} parent=11 // pred_check
        %p709 = pneg %p359
      $region62: #{tpu_custom_call.1} parent=11 // pred_check_branch
        %711 = sbr.rel (%p709) target = $region64
      $region63: #{tpu_custom_call.1} parent=11 // pred_region
        _
      $region64: #{tpu_custom_call.1} parent=11 // pred_fallthru
        _
      // Predicated region
      $region65: #{tpu_custom_call.1} parent=11 // pred_check
        %p712 = pneg %p380
      $region66: #{tpu_custom_call.1} parent=11 // pred_check_branch
        %714 = sbr.rel (%p712) target = $region68
      $region67: #{tpu_custom_call.1} parent=11 // pred_region
        _
      $region68: #{tpu_custom_call.1} parent=11 // pred_fallthru
        _
      // Predicated region
      $region69: #{tpu_custom_call.1} parent=11 // pred_check
        %p715 = pneg %p401
      $region70: #{tpu_custom_call.1} parent=11 // pred_check_branch
        %717 = sbr.rel (%p715) target = $region72
      $region71: #{tpu_custom_call.1} parent=11 // pred_region
        _
      $region72: #{tpu_custom_call.1} parent=11 // pred_fallthru
        _
      // Predicated region
      $region73: #{tpu_custom_call.1} parent=11 // pred_check
        %p718 = pneg %p422
      $region74: #{tpu_custom_call.1} parent=11 // pred_check_branch
        %720 = sbr.rel (%p718) target = $region76
      $region75: #{tpu_custom_call.1} parent=11 // pred_region
        _
      $region76: #{tpu_custom_call.1} parent=11 // pred_fallthru
        _
      // Predicated region
      $region77: #{tpu_custom_call.1} parent=11 // pred_check
        %p721 = pneg %p443
      $region78: #{tpu_custom_call.1} parent=11 // pred_check_branch
        %723 = sbr.rel (%p721) target = $region80
      $region79: #{tpu_custom_call.1} parent=11 // pred_region
        _
      $region80: #{tpu_custom_call.1} parent=11 // pred_fallthru
        _
      // Predicated region
      $region81: #{tpu_custom_call.1} parent=11 // pred_check
        %p724 = pneg %p464
      $region82: #{tpu_custom_call.1} parent=11 // pred_check_branch
        %726 = sbr.rel (%p724) target = $region84
      $region83: #{tpu_custom_call.1} parent=11 // pred_region
        _
      $region84: #{tpu_custom_call.1} parent=11 // pred_fallthru
        _
      // Predicated region
      $region85: #{tpu_custom_call.1} parent=11 // pred_check
        %p727 = pneg %p485
      $region86: #{tpu_custom_call.1} parent=11 // pred_check_branch
        %729 = sbr.rel (%p727) target = $region88
      $region87: #{tpu_custom_call.1} parent=11 // pred_region
        _
      $region88: #{tpu_custom_call.1} parent=11 // pred_fallthru
        _
      // Predicated region
      $region89: #{tpu_custom_call.1} parent=11 // pred_check
        %p730 = pneg %p506
      $region90: #{tpu_custom_call.1} parent=11 // pred_check_branch
        %732 = sbr.rel (%p730) target = $region92
      $region91: #{tpu_custom_call.1} parent=11 // pred_region
        _
      $region92: #{tpu_custom_call.1} parent=11 // pred_fallthru
        _
      // Predicated region
      $region93: #{tpu_custom_call.1} parent=11 // pred_check
        %p733 = pneg %p527
      $region94: #{tpu_custom_call.1} parent=11 // pred_check_branch
        %735 = sbr.rel (%p733) target = $region96
      $region95: #{tpu_custom_call.1} parent=11 // pred_region
        _
      $region96: #{tpu_custom_call.1} parent=11 // pred_fallthru
        _
      // Predicated region
      $region97: #{tpu_custom_call.1} parent=11 // pred_check
        %p736 = pneg %p548
      $region98: #{tpu_custom_call.1} parent=11 // pred_check_branch
        %738 = sbr.rel (%p736) target = $region100
      $region99: #{tpu_custom_call.1} parent=11 // pred_region
        _
      $region100: #{tpu_custom_call.1} parent=11 // pred_fallthru
        _
      // Predicated region
      $region101: #{tpu_custom_call.1} parent=11 // pred_check
        %p739 = pneg %p569
      $region102: #{tpu_custom_call.1} parent=11 // pred_check_branch
        %741 = sbr.rel (%p739) target = $region104
      $region103: #{tpu_custom_call.1} parent=11 // pred_region
        _
      $region104: #{tpu_custom_call.1} parent=11 // pred_fallthru
        _
      // Predicated region
      $region105: #{tpu_custom_call.1} parent=11 // pred_check
        %p742 = pneg %p590
      $region106: #{tpu_custom_call.1} parent=11 // pred_check_branch
        %744 = sbr.rel (%p742) target = $region108
      $region107: #{tpu_custom_call.1} parent=11 // pred_region
        _
      $region108: #{tpu_custom_call.1} parent=11 // pred_fallthru
        _
      // Predicated region
      $region109: #{tpu_custom_call.1} parent=11 // pred_check
        %p745 = pneg %p611
      $region110: #{tpu_custom_call.1} parent=11 // pred_check_branch
        %747 = sbr.rel (%p745) target = $region112
      $region111: #{tpu_custom_call.1} parent=11 // pred_region
        _
      $region112: #{tpu_custom_call.1} parent=11 // pred_fallthru
        _
      // Predicated region
      $region113: #{tpu_custom_call.1} parent=11 // pred_check
        %p748 = pneg %p632
      $region114: #{tpu_custom_call.1} parent=11 // pred_check_branch
        %750 = sbr.rel (%p748) target = $region116
      $region115: #{tpu_custom_call.1} parent=11 // pred_region
        _
      $region116: #{tpu_custom_call.1} parent=11 // pred_fallthru
        _
    $region12: #{tpu_custom_call.1} parent=5 // pred_fallthru
      _
    %p751 = scmp.lt.s32.totalorder %s34, 2
    // Predicated region
    $region117: #{tpu_custom_call.1} parent=5 // pred_check
      %p752 = pneg %p751
    $region118: #{tpu_custom_call.1} parent=5 // pred_check_branch
      %754 = sbr.rel (%p752) target = $region120
    $region119: #{tpu_custom_call.1} parent=5 // pred_region
      // Predicated region
      $region121: #{tpu_custom_call.1} parent=119 // pred_check
        %p755 = pneg %p54
      $region122: #{tpu_custom_call.1} parent=119 // pred_check_branch
        %757 = sbr.rel (%p755) target = $region124
      $region123: #{tpu_custom_call.1} parent=119 // pred_region
        %s758 = smul.u32 16, %s34
        %p759 = scmp.lt.s32.totalorder %s758, 31
        %s760 = scalar_select %p759, %s758, 31
        %s761 = smul.addr %s760, 8
        %s762 = scalar_lea.vmem %s0, %s761
        %s763 = smul.u32 16, %s34
      $region124: #{tpu_custom_call.1} parent=119 // pred_fallthru
        _
      // Predicated region
      $region125: #{tpu_custom_call.1} parent=119 // pred_check
        %p764 = pneg %p80
      $region126: #{tpu_custom_call.1} parent=119 // pred_check_branch
        %766 = sbr.rel (%p764) target = $region128
      $region127: #{tpu_custom_call.1} parent=119 // pred_region
        %p767 = scmp.lt.s32.totalorder %s34, 1
        %s768 = scalar_select %p767, %s34, 1
        %s769 = smul.addr %s768, 16
        %s770 = smul.addr %s769, 8
        %s771 = scalar_lea.vmem %s1, %s770
      $region128: #{tpu_custom_call.1} parent=119 // pred_fallthru
        _
    $region120: #{tpu_custom_call.1} parent=5 // pred_fallthru
      _
    %p772 = scmp.le.s32.totalorder 1, %s34
    %p773 = scmp.lt.s32.totalorder %s34, 3
    %p774 = pnand %p772, %p773
    %p775 = pneg %p774
    // Predicated region
    $region129: #{tpu_custom_call.1} parent=5 // pred_check
      _
    $region130: #{tpu_custom_call.1} parent=5 // pred_check_branch
      %777 = sbr.rel (%p774) target = $region132
    $region131: #{tpu_custom_call.1} parent=5 // pred_region
      %s778 = ssub.s32 %s34, 1
      %s779 = smul.u32 16, %s39
      %p780 = scmp.lt.s32.totalorder %s779, 31
      %s781 = scalar_select %p780, %s779, 31
      %s782 = smul.addr %s781, 8
      %s783 = scalar_lea.vmem %s0, %s782
      %p784 = pneg %p60
      %p785 = pneg %p57
      %p786 = scmp.lt.s32.totalorder %s39, 1
      %s787 = scalar_select %p786, %s39, 1
      %s788 = smul.addr %s787, 16
      %s789 = smul.addr %s788, 8
      %s790 = scalar_lea.vmem %s1, %s789
      %p791 = pneg %p86
      %p792 = pneg %p83
      %p793 = pneg %p107
      %p794 = pneg %p104
      %p795 = pneg %p128
      %p796 = pneg %p125
      %p797 = pneg %p149
      %p798 = pneg %p146
      %p799 = pneg %p170
      %p800 = pneg %p167
      %p801 = pneg %p191
      %p802 = pneg %p188
      %p803 = pneg %p212
      %p804 = pneg %p209
      %p805 = pneg %p233
      %p806 = pneg %p230
      %p807 = pneg %p254
      %p808 = pneg %p251
      %p809 = pneg %p275
      %p810 = pneg %p272
      %p811 = pneg %p296
      %p812 = pneg %p293
      %p813 = pneg %p317
      %p814 = pneg %p314
      %p815 = pneg %p338
      %p816 = pneg %p335
      %p817 = pneg %p359
      %p818 = pneg %p356
      %p819 = pneg %p380
      %p820 = pneg %p377
      %p821 = pneg %p401
      %p822 = pneg %p398
      %p823 = pneg %p422
      %p824 = pneg %p419
      %p825 = pneg %p443
      %p826 = pneg %p440
      %p827 = pneg %p464
      %p828 = pneg %p461
      %p829 = pneg %p485
      %p830 = pneg %p482
      %p831 = pneg %p506
      %p832 = pneg %p503
      %p833 = pneg %p527
      %p834 = pneg %p524
      %p835 = pneg %p548
      %p836 = pneg %p545
      %p837 = pneg %p569
      %p838 = pneg %p566
      %p839 = pneg %p590
      %p840 = pneg %p587
      %p841 = pneg %p611
      %p842 = pneg %p608
      %p843 = pneg %p632
      %p844 = pneg %p629
      %p845 = pneg %p658
      %p846 = pneg %p655
      %s847 = smul.u32 16, %s39
      %p848 = scmp.lt.s32.totalorder %s847, 31
      %s849 = scalar_select %p848, %s847, 31
      %s850 = smul.addr %s849, 8
      %s851 = scalar_lea.vmem %s28, %s850
      %s852 = smul.u32 16, %s39
      %p853 = scmp.lt.s32.totalorder %s852, 31
      %s854 = scalar_select %p853, %s852, 31
      %s855 = smul.addr %s854, 8
      %s856 = scalar_lea.vmem %s0, %s855
      %s857 = smul.u32 16, %s39
      %p858 = scmp.lt.s32.totalorder %s39, 1
      %s859 = scalar_select %p858, %s39, 1
      %s860 = smul.addr %s859, 16
      %s861 = smul.addr %s860, 8
      %s862 = scalar_lea.vmem %s1, %s861
      %s863 = smul.u32 16, %s39
      %p864 = scmp.lt.s32.totalorder %s863, 31
      %s865 = scalar_select %p864, %s863, 31
      %s866 = smul.addr %s865, 8
      %s867 = scalar_lea.vmem %s28, %s866
      %s868 = smul.u32 16, %s39
      %v870 = vld [vmem:[%s856] sm:$0xff]
      %v871 = vld [vmem:[%s856 + $0x8] sm:$0xff]
      %v872 = vld [vmem:[%s856 + $0x10] sm:$0xff]
      %v873 = vld [vmem:[%s856 + $0x18] sm:$0xff]
      %v874 = vld [vmem:[%s856 + $0x20] sm:$0xff]
      %v875 = vld [vmem:[%s856 + $0x28] sm:$0xff]
      %v876 = vld [vmem:[%s856 + $0x30] sm:$0xff]
      %v877 = vld [vmem:[%s856 + $0x38] sm:$0xff]
      %v878 = vld [vmem:[%s856 + $0x40] sm:$0xff]
      %v879 = vld [vmem:[%s856 + $0x48] sm:$0xff]
      %v880 = vld [vmem:[%s856 + $0x50] sm:$0xff]
      %v881 = vld [vmem:[%s856 + $0x58] sm:$0xff]
      %v882 = vld [vmem:[%s856 + $0x60] sm:$0xff]
      %v883 = vld [vmem:[%s856 + $0x68] sm:$0xff]
      %v884 = vld [vmem:[%s856 + $0x70] sm:$0xff]
      %v885 = vld [vmem:[%s856 + $0x78] sm:$0xff]
      %v886 = vld [vmem:[%s2] sm:$0xff]
      %v887 = vld [vmem:[%s2 + $0x8] sm:$0xff]
      %v888 = vld [vmem:[%s2 + $0x10] sm:$0xff]
      %v889 = vld [vmem:[%s2 + $0x18] sm:$0xff]
      %v890 = vld [vmem:[%s2 + $0x20] sm:$0xff]
      %v891 = vld [vmem:[%s2 + $0x28] sm:$0xff]
      %v892 = vld [vmem:[%s2 + $0x30] sm:$0xff]
      %v893 = vld [vmem:[%s2 + $0x38] sm:$0xff]
      %v894 = vld [vmem:[%s2 + $0x40] sm:$0xff]
      %v895 = vld [vmem:[%s2 + $0x48] sm:$0xff]
      %v896 = vld [vmem:[%s2 + $0x50] sm:$0xff]
      %v897 = vld [vmem:[%s2 + $0x58] sm:$0xff]
      %v898 = vld [vmem:[%s2 + $0x60] sm:$0xff]
      %v899 = vld [vmem:[%s2 + $0x68] sm:$0xff]
      %v900 = vld [vmem:[%s2 + $0x70] sm:$0xff]
      %v901 = vld [vmem:[%s2 + $0x78] sm:$0xff]
      %v902 = vadd.f32 %v870, %v886
      %v903 = vadd.f32 %v871, %v887
      %v904 = vadd.f32 %v872, %v888
      %v905 = vadd.f32 %v873, %v889
      %v906 = vadd.f32 %v874, %v890
      %v907 = vadd.f32 %v875, %v891
      %v908 = vadd.f32 %v876, %v892
      %v909 = vadd.f32 %v877, %v893
      %v910 = vadd.f32 %v878, %v894
      %v911 = vadd.f32 %v879, %v895
      %v912 = vadd.f32 %v880, %v896
      %v913 = vadd.f32 %v881, %v897
      %v914 = vadd.f32 %v882, %v898
      %v915 = vadd.f32 %v883, %v899
      %v916 = vadd.f32 %v884, %v900
      %v917 = vadd.f32 %v885, %v901
      %vm918 = vcmask 261120
      %v919 = vsel %vm918, %v902, 0.0
      %920 = vadd.xlane.f32.xlu0 %v919
      %v921 = vpop.xlane.xlu0 %920
      %v922 = vsel %vm918, %v903, 0.0
      %923 = vadd.xlane.f32.xlu0 %v922
      %v924 = vpop.xlane.xlu0 %923
      %v925 = vsel %vm918, %v904, 0.0
      %926 = vadd.xlane.f32.xlu0 %v925
      %v927 = vpop.xlane.xlu0 %926
      %v928 = vsel %vm918, %v905, 0.0
      %929 = vadd.xlane.f32.xlu0 %v928
      %v930 = vpop.xlane.xlu0 %929
      %v931 = vsel %vm918, %v906, 0.0
      %932 = vadd.xlane.f32.xlu0 %v931
      %v933 = vpop.xlane.xlu0 %932
      %v934 = vsel %vm918, %v907, 0.0
      %935 = vadd.xlane.f32.xlu0 %v934
      %v936 = vpop.xlane.xlu0 %935
      %v937 = vsel %vm918, %v908, 0.0
      %938 = vadd.xlane.f32.xlu0 %v937
      %v939 = vpop.xlane.xlu0 %938
      %v940 = vsel %vm918, %v909, 0.0
      %941 = vadd.xlane.f32.xlu0 %v940
      %v942 = vpop.xlane.xlu0 %941
      %v943 = vsel %vm918, %v910, 0.0
      %944 = vadd.xlane.f32.xlu0 %v943
      %v945 = vpop.xlane.xlu0 %944
      %v946 = vsel %vm918, %v911, 0.0
      %947 = vadd.xlane.f32.xlu0 %v946
      %v948 = vpop.xlane.xlu0 %947
      %v949 = vsel %vm918, %v912, 0.0
      %950 = vadd.xlane.f32.xlu0 %v949
      %v951 = vpop.xlane.xlu0 %950
      %v952 = vsel %vm918, %v913, 0.0
      %953 = vadd.xlane.f32.xlu0 %v952
      %v954 = vpop.xlane.xlu0 %953
      %v955 = vsel %vm918, %v914, 0.0
      %956 = vadd.xlane.f32.xlu0 %v955
      %v957 = vpop.xlane.xlu0 %956
      %v958 = vsel %vm918, %v915, 0.0
      %959 = vadd.xlane.f32.xlu0 %v958
      %v960 = vpop.xlane.xlu0 %959
      %v961 = vsel %vm918, %v916, 0.0
      %962 = vadd.xlane.f32.xlu0 %v961
      %v963 = vpop.xlane.xlu0 %962
      %v964 = vsel %vm918, %v917, 0.0
      %965 = vadd.xlane.f32.xlu0 %v964
      %v966 = vpop.xlane.xlu0 %965
      %v967 = vrcp.pop 32.0
      %v968 = vmul.f32 32.0, %v967
      %v969 = vsub.f32 1.0, %v968
      %v970 = vmul.f32 %v967, %v969
      %v971 = vadd.f32 %v967, %v970
      %vm972 = vweird.f32 %v967
      %v973 = vsel %vm972, %v967, %v971
      %v974 = vmul.f32 %v921, %v973
      %v975 = vmul.f32 %v924, %v973
      %v976 = vmul.f32 %v927, %v973
      %v977 = vmul.f32 %v930, %v973
      %v978 = vmul.f32 %v933, %v973
      %v979 = vmul.f32 %v936, %v973
      %v980 = vmul.f32 %v939, %v973
      %v981 = vmul.f32 %v942, %v973
      %v982 = vmul.f32 %v945, %v973
      %v983 = vmul.f32 %v948, %v973
      %v984 = vmul.f32 %v951, %v973
      %v985 = vmul.f32 %v954, %v973
      %v986 = vmul.f32 %v957, %v973
      %v987 = vmul.f32 %v960, %v973
      %v988 = vmul.f32 %v963, %v973
      %v989 = vmul.f32 %v966, %v973
      %v990 = vsub.f32 %v902, %v974
      %v991 = vsub.f32 %v903, %v975
      %v992 = vsub.f32 %v904, %v976
      %v993 = vsub.f32 %v905, %v977
      %v994 = vsub.f32 %v906, %v978
      %v995 = vsub.f32 %v907, %v979
      %v996 = vsub.f32 %v908, %v980
      %v997 = vsub.f32 %v909, %v981
      %v998 = vsub.f32 %v910, %v982
      %v999 = vsub.f32 %v911, %v983
      %v1000 = vsub.f32 %v912, %v984
      %v1001 = vsub.f32 %v913, %v985
      %v1002 = vsub.f32 %v914, %v986
      %v1003 = vsub.f32 %v915, %v987
      %v1004 = vsub.f32 %v916, %v988
      %v1005 = vsub.f32 %v917, %v989
      %v1006 = vmul.f32 %v990, %v990
      %v1007 = vmul.f32 %v991, %v991
      %v1008 = vmul.f32 %v992, %v992
      %v1009 = vmul.f32 %v993, %v993
      %v1010 = vmul.f32 %v994, %v994
      %v1011 = vmul.f32 %v995, %v995
      %v1012 = vmul.f32 %v996, %v996
      %v1013 = vmul.f32 %v997, %v997
      %v1014 = vmul.f32 %v998, %v998
      %v1015 = vmul.f32 %v999, %v999
      %v1016 = vmul.f32 %v1000, %v1000
      %v1017 = vmul.f32 %v1001, %v1001
      %v1018 = vmul.f32 %v1002, %v1002
      %v1019 = vmul.f32 %v1003, %v1003
      %v1020 = vmul.f32 %v1004, %v1004
      %v1021 = vmul.f32 %v1005, %v1005
      %v1022 = vsel %vm918, %v1006, 0.0
      %1023 = vadd.xlane.f32.xlu0 %v1022
      %v1024 = vpop.xlane.xlu0 %1023
      %v1025 = vsel %vm918, %v1007, 0.0
      %1026 = vadd.xlane.f32.xlu0 %v1025
      %v1027 = vpop.xlane.xlu0 %1026
      %v1028 = vsel %vm918, %v1008, 0.0
      %1029 = vadd.xlane.f32.xlu0 %v1028
      %v1030 = vpop.xlane.xlu0 %1029
      %v1031 = vsel %vm918, %v1009, 0.0
      %1032 = vadd.xlane.f32.xlu0 %v1031
      %v1033 = vpop.xlane.xlu0 %1032
      %v1034 = vsel %vm918, %v1010, 0.0
      %1035 = vadd.xlane.f32.xlu0 %v1034
      %v1036 = vpop.xlane.xlu0 %1035
      %v1037 = vsel %vm918, %v1011, 0.0
      %1038 = vadd.xlane.f32.xlu0 %v1037
      %v1039 = vpop.xlane.xlu0 %1038
      %v1040 = vsel %vm918, %v1012, 0.0
      %1041 = vadd.xlane.f32.xlu0 %v1040
      %v1042 = vpop.xlane.xlu0 %1041
      %v1043 = vsel %vm918, %v1013, 0.0
      %1044 = vadd.xlane.f32.xlu0 %v1043
      %v1045 = vpop.xlane.xlu0 %1044
      %v1046 = vsel %vm918, %v1014, 0.0
      %1047 = vadd.xlane.f32.xlu0 %v1046
      %v1048 = vpop.xlane.xlu0 %1047
      %v1049 = vsel %vm918, %v1015, 0.0
      %1050 = vadd.xlane.f32.xlu0 %v1049
      %v1051 = vpop.xlane.xlu0 %1050
      %v1052 = vsel %vm918, %v1016, 0.0
      %1053 = vadd.xlane.f32.xlu0 %v1052
      %v1054 = vpop.xlane.xlu0 %1053
      %v1055 = vsel %vm918, %v1017, 0.0
      %1056 = vadd.xlane.f32.xlu0 %v1055
      %v1057 = vpop.xlane.xlu0 %1056
      %v1058 = vsel %vm918, %v1018, 0.0
      %1059 = vadd.xlane.f32.xlu0 %v1058
      %v1060 = vpop.xlane.xlu0 %1059
      %v1061 = vsel %vm918, %v1019, 0.0
      %1062 = vadd.xlane.f32.xlu0 %v1061
      %v1063 = vpop.xlane.xlu0 %1062
      %v1064 = vsel %vm918, %v1020, 0.0
      %1065 = vadd.xlane.f32.xlu0 %v1064
      %v1066 = vpop.xlane.xlu0 %1065
      %v1067 = vsel %vm918, %v1021, 0.0
      %1068 = vadd.xlane.f32.xlu0 %v1067
      %v1069 = vpop.xlane.xlu0 %1068
      %v1070 = vmul.f32 %v1024, %v973
      %v1071 = vmul.f32 %v1027, %v973
      %v1072 = vmul.f32 %v1030, %v973
      %v1073 = vmul.f32 %v1033, %v973
      %v1074 = vmul.f32 %v1036, %v973
      %v1075 = vmul.f32 %v1039, %v973
      %v1076 = vmul.f32 %v1042, %v973
      %v1077 = vmul.f32 %v1045, %v973
      %v1078 = vmul.f32 %v1048, %v973
      %v1079 = vmul.f32 %v1051, %v973
      %v1080 = vmul.f32 %v1054, %v973
      %v1081 = vmul.f32 %v1057, %v973
      %v1082 = vmul.f32 %v1060, %v973
      %v1083 = vmul.f32 %v1063, %v973
      %v1084 = vmul.f32 %v1066, %v973
      %v1085 = vmul.f32 %v1069, %v973
      %v1086 = vadd.f32 %v1070, 1e-05
      %v1087 = vadd.f32 %v1071, 1e-05
      %v1088 = vadd.f32 %v1072, 1e-05
      %v1089 = vadd.f32 %v1073, 1e-05
      %v1090 = vadd.f32 %v1074, 1e-05
      %v1091 = vadd.f32 %v1075, 1e-05
      %v1092 = vadd.f32 %v1076, 1e-05
      %v1093 = vadd.f32 %v1077, 1e-05
      %v1094 = vadd.f32 %v1078, 1e-05
      %v1095 = vadd.f32 %v1079, 1e-05
      %v1096 = vadd.f32 %v1080, 1e-05
      %v1097 = vadd.f32 %v1081, 1e-05
      %v1098 = vadd.f32 %v1082, 1e-05
      %v1099 = vadd.f32 %v1083, 1e-05
      %v1100 = vadd.f32 %v1084, 1e-05
      %v1101 = vadd.f32 %v1085, 1e-05
      %v1102 = vrsqrt.pop %v1086
      %v1103 = vmul.f32 %v1102, %v1086
      %v1104 = vmul.f32 %v1103, %v1102
      %v1105 = vmul.f32 0.5, %v1104
      %v1106 = vsub.f32 1.5, %v1105
      %v1107 = vmul.f32 %v1102, %v1106
      %vm1108 = vweird.f32 %v1086
      %vm1109 = vweird.f32 %v1102
      %vm1110 = vmor %vm1108, %vm1109
      %v1111 = vsel %vm1110, %v1102, %v1107
      %v1112 = vrsqrt.pop %v1087
      %v1113 = vmul.f32 %v1112, %v1087
      %v1114 = vmul.f32 %v1113, %v1112
      %v1115 = vmul.f32 0.5, %v1114
      %v1116 = vsub.f32 1.5, %v1115
      %v1117 = vmul.f32 %v1112, %v1116
      %vm1118 = vweird.f32 %v1087
      %vm1119 = vweird.f32 %v1112
      %vm1120 = vmor %vm1118, %vm1119
      %v1121 = vsel %vm1120, %v1112, %v1117
      %v1122 = vrsqrt.pop %v1088
      %v1123 = vmul.f32 %v1122, %v1088
      %v1124 = vmul.f32 %v1123, %v1122
      %v1125 = vmul.f32 0.5, %v1124
      %v1126 = vsub.f32 1.5, %v1125
      %v1127 = vmul.f32 %v1122, %v1126
      %vm1128 = vweird.f32 %v1088
      %vm1129 = vweird.f32 %v1122
      %vm1130 = vmor %vm1128, %vm1129
      %v1131 = vsel %vm1130, %v1122, %v1127
      %v1132 = vrsqrt.pop %v1089
      %v1133 = vmul.f32 %v1132, %v1089
      %v1134 = vmul.f32 %v1133, %v1132
      %v1135 = vmul.f32 0.5, %v1134
      %v1136 = vsub.f32 1.5, %v1135
      %v1137 = vmul.f32 %v1132, %v1136
      %vm1138 = vweird.f32 %v1089
      %vm1139 = vweird.f32 %v1132
      %vm1140 = vmor %vm1138, %vm1139
      %v1141 = vsel %vm1140, %v1132, %v1137
      %v1142 = vrsqrt.pop %v1090
      %v1143 = vmul.f32 %v1142, %v1090
      %v1144 = vmul.f32 %v1143, %v1142
      %v1145 = vmul.f32 0.5, %v1144
      %v1146 = vsub.f32 1.5, %v1145
      %v1147 = vmul.f32 %v1142, %v1146
      %vm1148 = vweird.f32 %v1090
      %vm1149 = vweird.f32 %v1142
      %vm1150 = vmor %vm1148, %vm1149
      %v1151 = vsel %vm1150, %v1142, %v1147
      %v1152 = vrsqrt.pop %v1091
      %v1153 = vmul.f32 %v1152, %v1091
      %v1154 = vmul.f32 %v1153, %v1152
      %v1155 = vmul.f32 0.5, %v1154
      %v1156 = vsub.f32 1.5, %v1155
      %v1157 = vmul.f32 %v1152, %v1156
      %vm1158 = vweird.f32 %v1091
      %vm1159 = vweird.f32 %v1152
      %vm1160 = vmor %vm1158, %vm1159
      %v1161 = vsel %vm1160, %v1152, %v1157
      %v1162 = vrsqrt.pop %v1092
      %v1163 = vmul.f32 %v1162, %v1092
      %v1164 = vmul.f32 %v1163, %v1162
      %v1165 = vmul.f32 0.5, %v1164
      %v1166 = vsub.f32 1.5, %v1165
      %v1167 = vmul.f32 %v1162, %v1166
      %vm1168 = vweird.f32 %v1092
      %vm1169 = vweird.f32 %v1162
      %vm1170 = vmor %vm1168, %vm1169
      %v1171 = vsel %vm1170, %v1162, %v1167
      %v1172 = vrsqrt.pop %v1093
      %v1173 = vmul.f32 %v1172, %v1093
      %v1174 = vmul.f32 %v1173, %v1172
      %v1175 = vmul.f32 0.5, %v1174
      %v1176 = vsub.f32 1.5, %v1175
      %v1177 = vmul.f32 %v1172, %v1176
      %vm1178 = vweird.f32 %v1093
      %vm1179 = vweird.f32 %v1172
      %vm1180 = vmor %vm1178, %vm1179
      %v1181 = vsel %vm1180, %v1172, %v1177
      %v1182 = vrsqrt.pop %v1094
      %v1183 = vmul.f32 %v1182, %v1094
      %v1184 = vmul.f32 %v1183, %v1182
      %v1185 = vmul.f32 0.5, %v1184
      %v1186 = vsub.f32 1.5, %v1185
      %v1187 = vmul.f32 %v1182, %v1186
      %vm1188 = vweird.f32 %v1094
      %vm1189 = vweird.f32 %v1182
      %vm1190 = vmor %vm1188, %vm1189
      %v1191 = vsel %vm1190, %v1182, %v1187
      %v1192 = vrsqrt.pop %v1095
      %v1193 = vmul.f32 %v1192, %v1095
      %v1194 = vmul.f32 %v1193, %v1192
      %v1195 = vmul.f32 0.5, %v1194
      %v1196 = vsub.f32 1.5, %v1195
      %v1197 = vmul.f32 %v1192, %v1196
      %vm1198 = vweird.f32 %v1095
      %vm1199 = vweird.f32 %v1192
      %vm1200 = vmor %vm1198, %vm1199
      %v1201 = vsel %vm1200, %v1192, %v1197
      %v1202 = vrsqrt.pop %v1096
      %v1203 = vmul.f32 %v1202, %v1096
      %v1204 = vmul.f32 %v1203, %v1202
      %v1205 = vmul.f32 0.5, %v1204
      %v1206 = vsub.f32 1.5, %v1205
      %v1207 = vmul.f32 %v1202, %v1206
      %vm1208 = vweird.f32 %v1096
      %vm1209 = vweird.f32 %v1202
      %vm1210 = vmor %vm1208, %vm1209
      %v1211 = vsel %vm1210, %v1202, %v1207
      %v1212 = vrsqrt.pop %v1097
      %v1213 = vmul.f32 %v1212, %v1097
      %v1214 = vmul.f32 %v1213, %v1212
      %v1215 = vmul.f32 0.5, %v1214
      %v1216 = vsub.f32 1.5, %v1215
      %v1217 = vmul.f32 %v1212, %v1216
      %vm1218 = vweird.f32 %v1097
      %vm1219 = vweird.f32 %v1212
      %vm1220 = vmor %vm1218, %vm1219
      %v1221 = vsel %vm1220, %v1212, %v1217
      %v1222 = vrsqrt.pop %v1098
      %v1223 = vmul.f32 %v1222, %v1098
      %v1224 = vmul.f32 %v1223, %v1222
      %v1225 = vmul.f32 0.5, %v1224
      %v1226 = vsub.f32 1.5, %v1225
      %v1227 = vmul.f32 %v1222, %v1226
      %vm1228 = vweird.f32 %v1098
      %vm1229 = vweird.f32 %v1222
      %vm1230 = vmor %vm1228, %vm1229
      %v1231 = vsel %vm1230, %v1222, %v1227
      %v1232 = vrsqrt.pop %v1099
      %v1233 = vmul.f32 %v1232, %v1099
      %v1234 = vmul.f32 %v1233, %v1232
      %v1235 = vmul.f32 0.5, %v1234
      %v1236 = vsub.f32 1.5, %v1235
      %v1237 = vmul.f32 %v1232, %v1236
      %vm1238 = vweird.f32 %v1099
      %vm1239 = vweird.f32 %v1232
      %vm1240 = vmor %vm1238, %vm1239
      %v1241 = vsel %vm1240, %v1232, %v1237
      %v1242 = vrsqrt.pop %v1100
      %v1243 = vmul.f32 %v1242, %v1100
      %v1244 = vmul.f32 %v1243, %v1242
      %v1245 = vmul.f32 0.5, %v1244
      %v1246 = vsub.f32 1.5, %v1245
      %v1247 = vmul.f32 %v1242, %v1246
      %vm1248 = vweird.f32 %v1100
      %vm1249 = vweird.f32 %v1242
      %vm1250 = vmor %vm1248, %vm1249
      %v1251 = vsel %vm1250, %v1242, %v1247
      %v1252 = vrsqrt.pop %v1101
      %v1253 = vmul.f32 %v1252, %v1101
      %v1254 = vmul.f32 %v1253, %v1252
      %v1255 = vmul.f32 0.5, %v1254
      %v1256 = vsub.f32 1.5, %v1255
      %v1257 = vmul.f32 %v1252, %v1256
      %vm1258 = vweird.f32 %v1101
      %vm1259 = vweird.f32 %v1252
      %vm1260 = vmor %vm1258, %vm1259
      %v1261 = vsel %vm1260, %v1252, %v1257
      %v1262 = vmul.f32 %v990, %v1111
      %v1263 = vmul.f32 %v991, %v1121
      %v1264 = vmul.f32 %v992, %v1131
      %v1265 = vmul.f32 %v993, %v1141
      %v1266 = vmul.f32 %v994, %v1151
      %v1267 = vmul.f32 %v995, %v1161
      %v1268 = vmul.f32 %v996, %v1171
      %v1269 = vmul.f32 %v997, %v1181
      %v1270 = vmul.f32 %v998, %v1191
      %v1271 = vmul.f32 %v999, %v1201
      %v1272 = vmul.f32 %v1000, %v1211
      %v1273 = vmul.f32 %v1001, %v1221
      %v1274 = vmul.f32 %v1002, %v1231
      %v1275 = vmul.f32 %v1003, %v1241
      %v1276 = vmul.f32 %v1004, %v1251
      %v1277 = vmul.f32 %v1005, %v1261
      %v1278 = vld [vmem:[%s12] sm:$0x1]
      %v1280 = vperm.slane %v1278, 0
      %v1282 = vmul.f32 %v1262, %v1280
      %v1283 = vmul.f32 %v1263, %v1280
      %v1284 = vmul.f32 %v1264, %v1280
      %v1285 = vmul.f32 %v1265, %v1280
      %v1286 = vmul.f32 %v1266, %v1280
      %v1287 = vmul.f32 %v1267, %v1280
      %v1288 = vmul.f32 %v1268, %v1280
      %v1289 = vmul.f32 %v1269, %v1280
      %v1290 = vmul.f32 %v1270, %v1280
      %v1291 = vmul.f32 %v1271, %v1280
      %v1292 = vmul.f32 %v1272, %v1280
      %v1293 = vmul.f32 %v1273, %v1280
      %v1294 = vmul.f32 %v1274, %v1280
      %v1295 = vmul.f32 %v1275, %v1280
      %v1296 = vmul.f32 %v1276, %v1280
      %v1297 = vmul.f32 %v1277, %v1280
      %v1298 = vld [vmem:[%s13] sm:$0x1]
      %v1300 = vperm.slane %v1298, 0
      %v1302 = vadd.f32 %v1282, %v1300
      %v1303 = vadd.f32 %v1283, %v1300
      %v1304 = vadd.f32 %v1284, %v1300
      %v1305 = vadd.f32 %v1285, %v1300
      %v1306 = vadd.f32 %v1286, %v1300
      %v1307 = vadd.f32 %v1287, %v1300
      %v1308 = vadd.f32 %v1288, %v1300
      %v1309 = vadd.f32 %v1289, %v1300
      %v1310 = vadd.f32 %v1290, %v1300
      %v1311 = vadd.f32 %v1291, %v1300
      %v1312 = vadd.f32 %v1292, %v1300
      %v1313 = vadd.f32 %v1293, %v1300
      %v1314 = vadd.f32 %v1294, %v1300
      %v1315 = vadd.f32 %v1295, %v1300
      %v1316 = vadd.f32 %v1296, %v1300
      %v1317 = vadd.f32 %v1297, %v1300
      %vm1334 = vcmask 1041408
      %v1335 = vrot.slane %v1302, 6
      %v1336 = vrot.slane %v1303, 6
      %v1337 = vsel %vm1334, %v1335, %v1336
      %v1338 = vrot.slane %v1304, 6
      %v1339 = vsel %vm1334, %v1336, %v1338
      %v1340 = vrot.slane %v1305, 6
      %v1341 = vsel %vm1334, %v1338, %v1340
      %v1342 = vrot.slane %v1306, 6
      %v1343 = vsel %vm1334, %v1340, %v1342
      %v1344 = vrot.slane %v1307, 6
      %v1345 = vsel %vm1334, %v1342, %v1344
      %v1346 = vrot.slane %v1308, 6
      %v1347 = vsel %vm1334, %v1344, %v1346
      %v1348 = vrot.slane %v1309, 6
      %v1349 = vsel %vm1334, %v1346, %v1348
      %v1350 = vrot.slane %v1310, 6
      %v1351 = vsel %vm1334, %v1348, %v1350
      %v1352 = vrot.slane %v1311, 6
      %v1353 = vsel %vm1334, %v1350, %v1352
      %v1354 = vrot.slane %v1312, 6
      %v1355 = vsel %vm1334, %v1352, %v1354
      %v1356 = vrot.slane %v1313, 6
      %v1357 = vsel %vm1334, %v1354, %v1356
      %v1358 = vrot.slane %v1314, 6
      %v1359 = vsel %vm1334, %v1356, %v1358
      %v1360 = vrot.slane %v1315, 6
      %v1361 = vsel %vm1334, %v1358, %v1360
      %v1362 = vrot.slane %v1316, 6
      %v1363 = vsel %vm1334, %v1360, %v1362
      %v1364 = vrot.slane %v1317, 6
      %v1365 = vsel %vm1334, %v1362, %v1364
      %v1383 = vsel %vm1334, 0.0, %v1335
      %v1384 = vsel %vm1334, %v1364, 0.0
      %v1385 = vld [vmem:[%s4] sm:$0x1f]
      %v1386 = vld [vmem:[%s3] sm:$0xff]
      %v1387 = vld [vmem:[%s3 + $0x8] sm:$0xff]
      %v1388 = vld [vmem:[%s3 + $0x10] sm:$0xff]
      %v1389 = vld [vmem:[%s3 + $0x18] sm:$0xff]
      %v1390 = vld [vmem:[%s3 + $0x20] sm:$0xff]
      %v1391 = vld [vmem:[%s3 + $0x28] sm:$0xff]
      %v1392 = vld [vmem:[%s3 + $0x30] sm:$0xff]
      %v1393 = vld [vmem:[%s3 + $0x38] sm:$0xff]
      %v1394 = vld [vmem:[%s3 + $0x40] sm:$0xff]
      %v1395 = vld [vmem:[%s3 + $0x48] sm:$0xff]
      %v1396 = vld [vmem:[%s3 + $0x50] sm:$0xff]
      %v1397 = vld [vmem:[%s3 + $0x58] sm:$0xff]
      %v1398 = vld [vmem:[%s3 + $0x60] sm:$0xff]
      %v1399 = vld [vmem:[%s3 + $0x68] sm:$0xff]
      %v1400 = vld [vmem:[%s3 + $0x70] sm:$0xff]
      %v1401 = vld [vmem:[%s3 + $0x78] sm:$0xff]
      %1403 = vset.pattern.permute.xlu0 0
      %1404 = vperm.xlu0 %1403, %v1386
      %v1405 = vpop.permute.xlu0 %1404
      %1408 = vset.pattern.permute.xlu0 0
      %1409 = vperm.xlu0 %1408, %v1387
      %v1410 = vpop.permute.xlu0 %1409
      %1413 = vset.pattern.permute.xlu0 0
      %1414 = vperm.xlu0 %1413, %v1388
      %v1415 = vpop.permute.xlu0 %1414
      %1418 = vset.pattern.permute.xlu0 0
      %1419 = vperm.xlu0 %1418, %v1389
      %v1420 = vpop.permute.xlu0 %1419
      %1423 = vset.pattern.permute.xlu0 0
      %1424 = vperm.xlu0 %1423, %v1390
      %v1425 = vpop.permute.xlu0 %1424
      %1428 = vset.pattern.permute.xlu0 0
      %1429 = vperm.xlu0 %1428, %v1391
      %v1430 = vpop.permute.xlu0 %1429
      %1433 = vset.pattern.permute.xlu0 0
      %1434 = vperm.xlu0 %1433, %v1392
      %v1435 = vpop.permute.xlu0 %1434
      %1438 = vset.pattern.permute.xlu0 0
      %1439 = vperm.xlu0 %1438, %v1393
      %v1440 = vpop.permute.xlu0 %1439
      %1443 = vset.pattern.permute.xlu0 0
      %1444 = vperm.xlu0 %1443, %v1394
      %v1445 = vpop.permute.xlu0 %1444
      %1448 = vset.pattern.permute.xlu0 0
      %1449 = vperm.xlu0 %1448, %v1395
      %v1450 = vpop.permute.xlu0 %1449
      %1453 = vset.pattern.permute.xlu0 0
      %1454 = vperm.xlu0 %1453, %v1396
      %v1455 = vpop.permute.xlu0 %1454
      %1458 = vset.pattern.permute.xlu0 0
      %1459 = vperm.xlu0 %1458, %v1397
      %v1460 = vpop.permute.xlu0 %1459
      %1463 = vset.pattern.permute.xlu0 0
      %1464 = vperm.xlu0 %1463, %v1398
      %v1465 = vpop.permute.xlu0 %1464
      %1468 = vset.pattern.permute.xlu0 0
      %1469 = vperm.xlu0 %1468, %v1399
      %v1470 = vpop.permute.xlu0 %1469
      %1473 = vset.pattern.permute.xlu0 0
      %1474 = vperm.xlu0 %1473, %v1400
      %v1475 = vpop.permute.xlu0 %1474
      %1478 = vset.pattern.permute.xlu0 0
      %1479 = vperm.xlu0 %1478, %v1401
      %v1480 = vpop.permute.xlu0 %1479
      %v1482 = vmul.f32 %v1383, %v1405
      %v1483 = vmul.f32 %v1337, %v1410
      %v1484 = vmul.f32 %v1339, %v1415
      %v1485 = vmul.f32 %v1341, %v1420
      %v1486 = vmul.f32 %v1343, %v1425
      %v1487 = vmul.f32 %v1345, %v1430
      %v1488 = vmul.f32 %v1347, %v1435
      %v1489 = vmul.f32 %v1349, %v1440
      %v1490 = vmul.f32 %v1351, %v1445
      %v1491 = vmul.f32 %v1353, %v1450
      %v1492 = vmul.f32 %v1355, %v1455
      %v1493 = vmul.f32 %v1357, %v1460
      %v1494 = vmul.f32 %v1359, %v1465
      %v1495 = vmul.f32 %v1361, %v1470
      %v1496 = vmul.f32 %v1363, %v1475
      %v1497 = vmul.f32 %v1365, %v1480
      %v1498 = vperm.slane %v1385, 0
      %v1499 = vmul.f32 %v1482, %v1498
      %v1500 = vmul.f32 %v1483, %v1498
      %v1501 = vmul.f32 %v1484, %v1498
      %v1502 = vmul.f32 %v1485, %v1498
      %v1503 = vmul.f32 %v1486, %v1498
      %v1504 = vmul.f32 %v1487, %v1498
      %v1505 = vmul.f32 %v1488, %v1498
      %v1506 = vmul.f32 %v1489, %v1498
      %v1507 = vmul.f32 %v1490, %v1498
      %v1508 = vmul.f32 %v1491, %v1498
      %v1509 = vmul.f32 %v1492, %v1498
      %v1510 = vmul.f32 %v1493, %v1498
      %v1511 = vmul.f32 %v1494, %v1498
      %v1512 = vmul.f32 %v1495, %v1498
      %v1513 = vmul.f32 %v1496, %v1498
      %v1514 = vmul.f32 %v1497, %v1498
      %v1515 = vadd.f32 %v1499, 0.0
      %v1516 = vadd.f32 %v1500, 0.0
      %v1517 = vadd.f32 %v1501, 0.0
      %v1518 = vadd.f32 %v1502, 0.0
      %v1519 = vadd.f32 %v1503, 0.0
      %v1520 = vadd.f32 %v1504, 0.0
      %v1521 = vadd.f32 %v1505, 0.0
      %v1522 = vadd.f32 %v1506, 0.0
      %v1523 = vadd.f32 %v1507, 0.0
      %v1524 = vadd.f32 %v1508, 0.0
      %v1525 = vadd.f32 %v1509, 0.0
      %v1526 = vadd.f32 %v1510, 0.0
      %v1527 = vadd.f32 %v1511, 0.0
      %v1528 = vadd.f32 %v1512, 0.0
      %v1529 = vadd.f32 %v1513, 0.0
      %v1530 = vadd.f32 %v1514, 0.0
      %s1531 = scalar_lea.vmem %s3, 128
      %v1532 = vld [vmem:[%s1531] sm:$0xff]
      %v1533 = vld [vmem:[%s1531 + $0x8] sm:$0xff]
      %v1534 = vld [vmem:[%s1531 + $0x10] sm:$0xff]
      %v1535 = vld [vmem:[%s1531 + $0x18] sm:$0xff]
      %v1536 = vld [vmem:[%s1531 + $0x20] sm:$0xff]
      %v1537 = vld [vmem:[%s1531 + $0x28] sm:$0xff]
      %v1538 = vld [vmem:[%s1531 + $0x30] sm:$0xff]
      %v1539 = vld [vmem:[%s1531 + $0x38] sm:$0xff]
      %v1540 = vld [vmem:[%s1531 + $0x40] sm:$0xff]
      %v1541 = vld [vmem:[%s1531 + $0x48] sm:$0xff]
      %v1542 = vld [vmem:[%s1531 + $0x50] sm:$0xff]
      %v1543 = vld [vmem:[%s1531 + $0x58] sm:$0xff]
      %v1544 = vld [vmem:[%s1531 + $0x60] sm:$0xff]
      %v1545 = vld [vmem:[%s1531 + $0x68] sm:$0xff]
      %v1546 = vld [vmem:[%s1531 + $0x70] sm:$0xff]
      %v1547 = vld [vmem:[%s1531 + $0x78] sm:$0xff]
      %1549 = vset.pattern.permute.xlu0 0
      %1550 = vperm.xlu0 %1549, %v1532
      %v1551 = vpop.permute.xlu0 %1550
      %1553 = vset.pattern.permute.xlu0 0
      %1554 = vperm.xlu0 %1553, %v1533
      %v1555 = vpop.permute.xlu0 %1554
      %1557 = vset.pattern.permute.xlu0 0
      %1558 = vperm.xlu0 %1557, %v1534
      %v1559 = vpop.permute.xlu0 %1558
      %1561 = vset.pattern.permute.xlu0 0
      %1562 = vperm.xlu0 %1561, %v1535
      %v1563 = vpop.permute.xlu0 %1562
      %1565 = vset.pattern.permute.xlu0 0
      %1566 = vperm.xlu0 %1565, %v1536
      %v1567 = vpop.permute.xlu0 %1566
      %1569 = vset.pattern.permute.xlu0 0
      %1570 = vperm.xlu0 %1569, %v1537
      %v1571 = vpop.permute.xlu0 %1570
      %1573 = vset.pattern.permute.xlu0 0
      %1574 = vperm.xlu0 %1573, %v1538
      %v1575 = vpop.permute.xlu0 %1574
      %1577 = vset.pattern.permute.xlu0 0
      %1578 = vperm.xlu0 %1577, %v1539
      %v1579 = vpop.permute.xlu0 %1578
      %1581 = vset.pattern.permute.xlu0 0
      %1582 = vperm.xlu0 %1581, %v1540
      %v1583 = vpop.permute.xlu0 %1582
      %1585 = vset.pattern.permute.xlu0 0
      %1586 = vperm.xlu0 %1585, %v1541
      %v1587 = vpop.permute.xlu0 %1586
      %1589 = vset.pattern.permute.xlu0 0
      %1590 = vperm.xlu0 %1589, %v1542
      %v1591 = vpop.permute.xlu0 %1590
      %1593 = vset.pattern.permute.xlu0 0
      %1594 = vperm.xlu0 %1593, %v1543
      %v1595 = vpop.permute.xlu0 %1594
      %1597 = vset.pattern.permute.xlu0 0
      %1598 = vperm.xlu0 %1597, %v1544
      %v1599 = vpop.permute.xlu0 %1598
      %1601 = vset.pattern.permute.xlu0 0
      %1602 = vperm.xlu0 %1601, %v1545
      %v1603 = vpop.permute.xlu0 %1602
      %1605 = vset.pattern.permute.xlu0 0
      %1606 = vperm.xlu0 %1605, %v1546
      %v1607 = vpop.permute.xlu0 %1606
      %1609 = vset.pattern.permute.xlu0 0
      %1610 = vperm.xlu0 %1609, %v1547
      %v1611 = vpop.permute.xlu0 %1610
      %vm1612 = vcmask 1040384
      %v1613 = vrot.slane %v1551, 7
      %v1614 = vrot.slane %v1555, 7
      %v1615 = vsel %vm1612, %v1613, %v1614
      %v1616 = vrot.slane %v1559, 7
      %v1617 = vsel %vm1612, %v1614, %v1616
      %v1618 = vrot.slane %v1563, 7
      %v1619 = vsel %vm1612, %v1616, %v1618
      %v1620 = vrot.slane %v1567, 7
      %v1621 = vsel %vm1612, %v1618, %v1620
      %v1622 = vrot.slane %v1571, 7
      %v1623 = vsel %vm1612, %v1620, %v1622
      %v1624 = vrot.slane %v1575, 7
      %v1625 = vsel %vm1612, %v1622, %v1624
      %v1626 = vrot.slane %v1579, 7
      %v1627 = vsel %vm1612, %v1624, %v1626
      %v1628 = vrot.slane %v1583, 7
      %v1629 = vsel %vm1612, %v1626, %v1628
      %v1630 = vrot.slane %v1587, 7
      %v1631 = vsel %vm1612, %v1628, %v1630
      %v1632 = vrot.slane %v1591, 7
      %v1633 = vsel %vm1612, %v1630, %v1632
      %v1634 = vrot.slane %v1595, 7
      %v1635 = vsel %vm1612, %v1632, %v1634
      %v1636 = vrot.slane %v1599, 7
      %v1637 = vsel %vm1612, %v1634, %v1636
      %v1638 = vrot.slane %v1603, 7
      %v1639 = vsel %vm1612, %v1636, %v1638
      %v1640 = vrot.slane %v1607, 7
      %v1641 = vsel %vm1612, %v1638, %v1640
      %v1642 = vrot.slane %v1611, 7
      %v1643 = vsel %vm1612, %v1640, %v1642
      %v1661 = vmul.f32 %v1383, %v1613
      %v1662 = vmul.f32 %v1337, %v1615
      %v1663 = vmul.f32 %v1339, %v1617
      %v1664 = vmul.f32 %v1341, %v1619
      %v1665 = vmul.f32 %v1343, %v1621
      %v1666 = vmul.f32 %v1345, %v1623
      %v1667 = vmul.f32 %v1347, %v1625
      %v1668 = vmul.f32 %v1349, %v1627
      %v1669 = vmul.f32 %v1351, %v1629
      %v1670 = vmul.f32 %v1353, %v1631
      %v1671 = vmul.f32 %v1355, %v1633
      %v1672 = vmul.f32 %v1357, %v1635
      %v1673 = vmul.f32 %v1359, %v1637
      %v1674 = vmul.f32 %v1361, %v1639
      %v1675 = vmul.f32 %v1363, %v1641
      %v1676 = vmul.f32 %v1365, %v1643
      %v1677 = vmul.f32 %v1384, %v1642
      %v1678 = vperm.slane %v1385, 1
      %v1679 = vmul.f32 %v1661, %v1678
      %v1680 = vmul.f32 %v1662, %v1678
      %v1681 = vmul.f32 %v1663, %v1678
      %v1682 = vmul.f32 %v1664, %v1678
      %v1683 = vmul.f32 %v1665, %v1678
      %v1684 = vmul.f32 %v1666, %v1678
      %v1685 = vmul.f32 %v1667, %v1678
      %v1686 = vmul.f32 %v1668, %v1678
      %v1687 = vmul.f32 %v1669, %v1678
      %v1688 = vmul.f32 %v1670, %v1678
      %v1689 = vmul.f32 %v1671, %v1678
      %v1690 = vmul.f32 %v1672, %v1678
      %v1691 = vmul.f32 %v1673, %v1678
      %v1692 = vmul.f32 %v1674, %v1678
      %v1693 = vmul.f32 %v1675, %v1678
      %v1694 = vmul.f32 %v1676, %v1678
      %v1695 = vmul.f32 %v1677, %v1678
      %vm1713 = vcmask 1046528
      %v1714 = vrot.slane %v1679, 1
      %v1715 = vrot.slane %v1680, 1
      %v1716 = vsel %vm1713, %v1714, %v1715
      %v1717 = vrot.slane %v1681, 1
      %v1718 = vsel %vm1713, %v1715, %v1717
      %v1719 = vrot.slane %v1682, 1
      %v1720 = vsel %vm1713, %v1717, %v1719
      %v1721 = vrot.slane %v1683, 1
      %v1722 = vsel %vm1713, %v1719, %v1721
      %v1723 = vrot.slane %v1684, 1
      %v1724 = vsel %vm1713, %v1721, %v1723
      %v1725 = vrot.slane %v1685, 1
      %v1726 = vsel %vm1713, %v1723, %v1725
      %v1727 = vrot.slane %v1686, 1
      %v1728 = vsel %vm1713, %v1725, %v1727
      %v1729 = vrot.slane %v1687, 1
      %v1730 = vsel %vm1713, %v1727, %v1729
      %v1731 = vrot.slane %v1688, 1
      %v1732 = vsel %vm1713, %v1729, %v1731
      %v1733 = vrot.slane %v1689, 1
      %v1734 = vsel %vm1713, %v1731, %v1733
      %v1735 = vrot.slane %v1690, 1
      %v1736 = vsel %vm1713, %v1733, %v1735
      %v1737 = vrot.slane %v1691, 1
      %v1738 = vsel %vm1713, %v1735, %v1737
      %v1739 = vrot.slane %v1692, 1
      %v1740 = vsel %vm1713, %v1737, %v1739
      %v1741 = vrot.slane %v1693, 1
      %v1742 = vsel %vm1713, %v1739, %v1741
      %v1743 = vrot.slane %v1694, 1
      %v1744 = vsel %vm1713, %v1741, %v1743
      %v1745 = vrot.slane %v1695, 1
      %v1746 = vsel %vm1713, %v1743, %v1745
      %v1763 = vadd.f32 %v1515, %v1716
      %v1764 = vadd.f32 %v1516, %v1718
      %v1765 = vadd.f32 %v1517, %v1720
      %v1766 = vadd.f32 %v1518, %v1722
      %v1767 = vadd.f32 %v1519, %v1724
      %v1768 = vadd.f32 %v1520, %v1726
      %v1769 = vadd.f32 %v1521, %v1728
      %v1770 = vadd.f32 %v1522, %v1730
      %v1771 = vadd.f32 %v1523, %v1732
      %v1772 = vadd.f32 %v1524, %v1734
      %v1773 = vadd.f32 %v1525, %v1736
      %v1774 = vadd.f32 %v1526, %v1738
      %v1775 = vadd.f32 %v1527, %v1740
      %v1776 = vadd.f32 %v1528, %v1742
      %v1777 = vadd.f32 %v1529, %v1744
      %v1778 = vadd.f32 %v1530, %v1746
      %s1779 = scalar_lea.vmem %s3, 256
      %v1780 = vld [vmem:[%s1779] sm:$0xff]
      %v1781 = vld [vmem:[%s1779 + $0x8] sm:$0xff]
      %v1782 = vld [vmem:[%s1779 + $0x10] sm:$0xff]
      %v1783 = vld [vmem:[%s1779 + $0x18] sm:$0xff]
      %v1784 = vld [vmem:[%s1779 + $0x20] sm:$0xff]
      %v1785 = vld [vmem:[%s1779 + $0x28] sm:$0xff]
      %v1786 = vld [vmem:[%s1779 + $0x30] sm:$0xff]
      %v1787 = vld [vmem:[%s1779 + $0x38] sm:$0xff]
      %v1788 = vld [vmem:[%s1779 + $0x40] sm:$0xff]
      %v1789 = vld [vmem:[%s1779 + $0x48] sm:$0xff]
      %v1790 = vld [vmem:[%s1779 + $0x50] sm:$0xff]
      %v1791 = vld [vmem:[%s1779 + $0x58] sm:$0xff]
      %v1792 = vld [vmem:[%s1779 + $0x60] sm:$0xff]
      %v1793 = vld [vmem:[%s1779 + $0x68] sm:$0xff]
      %v1794 = vld [vmem:[%s1779 + $0x70] sm:$0xff]
      %v1795 = vld [vmem:[%s1779 + $0x78] sm:$0xff]
      %1797 = vset.pattern.permute.xlu0 0
      %1798 = vperm.xlu0 %1797, %v1780
      %v1799 = vpop.permute.xlu0 %1798
      %1801 = vset.pattern.permute.xlu0 0
      %1802 = vperm.xlu0 %1801, %v1781
      %v1803 = vpop.permute.xlu0 %1802
      %1805 = vset.pattern.permute.xlu0 0
      %1806 = vperm.xlu0 %1805, %v1782
      %v1807 = vpop.permute.xlu0 %1806
      %1809 = vset.pattern.permute.xlu0 0
      %1810 = vperm.xlu0 %1809, %v1783
      %v1811 = vpop.permute.xlu0 %1810
      %1813 = vset.pattern.permute.xlu0 0
      %1814 = vperm.xlu0 %1813, %v1784
      %v1815 = vpop.permute.xlu0 %1814
      %1817 = vset.pattern.permute.xlu0 0
      %1818 = vperm.xlu0 %1817, %v1785
      %v1819 = vpop.permute.xlu0 %1818
      %1821 = vset.pattern.permute.xlu0 0
      %1822 = vperm.xlu0 %1821, %v1786
      %v1823 = vpop.permute.xlu0 %1822
      %1825 = vset.pattern.permute.xlu0 0
      %1826 = vperm.xlu0 %1825, %v1787
      %v1827 = vpop.permute.xlu0 %1826
      %1829 = vset.pattern.permute.xlu0 0
      %1830 = vperm.xlu0 %1829, %v1788
      %v1831 = vpop.permute.xlu0 %1830
      %1833 = vset.pattern.permute.xlu0 0
      %1834 = vperm.xlu0 %1833, %v1789
      %v1835 = vpop.permute.xlu0 %1834
      %1837 = vset.pattern.permute.xlu0 0
      %1838 = vperm.xlu0 %1837, %v1790
      %v1839 = vpop.permute.xlu0 %1838
      %1841 = vset.pattern.permute.xlu0 0
      %1842 = vperm.xlu0 %1841, %v1791
      %v1843 = vpop.permute.xlu0 %1842
      %1845 = vset.pattern.permute.xlu0 0
      %1846 = vperm.xlu0 %1845, %v1792
      %v1847 = vpop.permute.xlu0 %1846
      %1849 = vset.pattern.permute.xlu0 0
      %1850 = vperm.xlu0 %1849, %v1793
      %v1851 = vpop.permute.xlu0 %1850
      %1853 = vset.pattern.permute.xlu0 0
      %1854 = vperm.xlu0 %1853, %v1794
      %v1855 = vpop.permute.xlu0 %1854
      %1857 = vset.pattern.permute.xlu0 0
      %1858 = vperm.xlu0 %1857, %v1795
      %v1859 = vpop.permute.xlu0 %1858
      %v1860 = vrot.slane %v1799, 6
      %v1861 = vrot.slane %v1803, 6
      %v1862 = vsel %vm1334, %v1860, %v1861
      %v1863 = vrot.slane %v1807, 6
      %v1864 = vsel %vm1334, %v1861, %v1863
      %v1865 = vrot.slane %v1811, 6
      %v1866 = vsel %vm1334, %v1863, %v1865
      %v1867 = vrot.slane %v1815, 6
      %v1868 = vsel %vm1334, %v1865, %v1867
      %v1869 = vrot.slane %v1819, 6
      %v1870 = vsel %vm1334, %v1867, %v1869
      %v1871 = vrot.slane %v1823, 6
      %v1872 = vsel %vm1334, %v1869, %v1871
      %v1873 = vrot.slane %v1827, 6
      %v1874 = vsel %vm1334, %v1871, %v1873
      %v1875 = vrot.slane %v1831, 6
      %v1876 = vsel %vm1334, %v1873, %v1875
      %v1877 = vrot.slane %v1835, 6
      %v1878 = vsel %vm1334, %v1875, %v1877
      %v1879 = vrot.slane %v1839, 6
      %v1880 = vsel %vm1334, %v1877, %v1879
      %v1881 = vrot.slane %v1843, 6
      %v1882 = vsel %vm1334, %v1879, %v1881
      %v1883 = vrot.slane %v1847, 6
      %v1884 = vsel %vm1334, %v1881, %v1883
      %v1885 = vrot.slane %v1851, 6
      %v1886 = vsel %vm1334, %v1883, %v1885
      %v1887 = vrot.slane %v1855, 6
      %v1888 = vsel %vm1334, %v1885, %v1887
      %v1889 = vrot.slane %v1859, 6
      %v1890 = vsel %vm1334, %v1887, %v1889
      %v1908 = vmul.f32 %v1383, %v1860
      %v1909 = vmul.f32 %v1337, %v1862
      %v1910 = vmul.f32 %v1339, %v1864
      %v1911 = vmul.f32 %v1341, %v1866
      %v1912 = vmul.f32 %v1343, %v1868
      %v1913 = vmul.f32 %v1345, %v1870
      %v1914 = vmul.f32 %v1347, %v1872
      %v1915 = vmul.f32 %v1349, %v1874
      %v1916 = vmul.f32 %v1351, %v1876
      %v1917 = vmul.f32 %v1353, %v1878
      %v1918 = vmul.f32 %v1355, %v1880
      %v1919 = vmul.f32 %v1357, %v1882
      %v1920 = vmul.f32 %v1359, %v1884
      %v1921 = vmul.f32 %v1361, %v1886
      %v1922 = vmul.f32 %v1363, %v1888
      %v1923 = vmul.f32 %v1365, %v1890
      %v1924 = vmul.f32 %v1384, %v1889
      %v1925 = vperm.slane %v1385, 2
      %v1926 = vmul.f32 %v1908, %v1925
      %v1927 = vmul.f32 %v1909, %v1925
      %v1928 = vmul.f32 %v1910, %v1925
      %v1929 = vmul.f32 %v1911, %v1925
      %v1930 = vmul.f32 %v1912, %v1925
      %v1931 = vmul.f32 %v1913, %v1925
      %v1932 = vmul.f32 %v1914, %v1925
      %v1933 = vmul.f32 %v1915, %v1925
      %v1934 = vmul.f32 %v1916, %v1925
      %v1935 = vmul.f32 %v1917, %v1925
      %v1936 = vmul.f32 %v1918, %v1925
      %v1937 = vmul.f32 %v1919, %v1925
      %v1938 = vmul.f32 %v1920, %v1925
      %v1939 = vmul.f32 %v1921, %v1925
      %v1940 = vmul.f32 %v1922, %v1925
      %v1941 = vmul.f32 %v1923, %v1925
      %v1942 = vmul.f32 %v1924, %v1925
      %vm1960 = vcmask 1045504
      %v1961 = vrot.slane %v1926, 2
      %v1962 = vrot.slane %v1927, 2
      %v1963 = vsel %vm1960, %v1961, %v1962
      %v1964 = vrot.slane %v1928, 2
      %v1965 = vsel %vm1960, %v1962, %v1964
      %v1966 = vrot.slane %v1929, 2
      %v1967 = vsel %vm1960, %v1964, %v1966
      %v1968 = vrot.slane %v1930, 2
      %v1969 = vsel %vm1960, %v1966, %v1968
      %v1970 = vrot.slane %v1931, 2
      %v1971 = vsel %vm1960, %v1968, %v1970
      %v1972 = vrot.slane %v1932, 2
      %v1973 = vsel %vm1960, %v1970, %v1972
      %v1974 = vrot.slane %v1933, 2
      %v1975 = vsel %vm1960, %v1972, %v1974
      %v1976 = vrot.slane %v1934, 2
      %v1977 = vsel %vm1960, %v1974, %v1976
      %v1978 = vrot.slane %v1935, 2
      %v1979 = vsel %vm1960, %v1976, %v1978
      %v1980 = vrot.slane %v1936, 2
      %v1981 = vsel %vm1960, %v1978, %v1980
      %v1982 = vrot.slane %v1937, 2
      %v1983 = vsel %vm1960, %v1980, %v1982
      %v1984 = vrot.slane %v1938, 2
      %v1985 = vsel %vm1960, %v1982, %v1984
      %v1986 = vrot.slane %v1939, 2
      %v1987 = vsel %vm1960, %v1984, %v1986
      %v1988 = vrot.slane %v1940, 2
      %v1989 = vsel %vm1960, %v1986, %v1988
      %v1990 = vrot.slane %v1941, 2
      %v1991 = vsel %vm1960, %v1988, %v1990
      %v1992 = vrot.slane %v1942, 2
      %v1993 = vsel %vm1960, %v1990, %v1992
      %v2010 = vadd.f32 %v1763, %v1963
      %v2011 = vadd.f32 %v1764, %v1965
      %v2012 = vadd.f32 %v1765, %v1967
      %v2013 = vadd.f32 %v1766, %v1969
      %v2014 = vadd.f32 %v1767, %v1971
      %v2015 = vadd.f32 %v1768, %v1973
      %v2016 = vadd.f32 %v1769, %v1975
      %v2017 = vadd.f32 %v1770, %v1977
      %v2018 = vadd.f32 %v1771, %v1979
      %v2019 = vadd.f32 %v1772, %v1981
      %v2020 = vadd.f32 %v1773, %v1983
      %v2021 = vadd.f32 %v1774, %v1985
      %v2022 = vadd.f32 %v1775, %v1987
      %v2023 = vadd.f32 %v1776, %v1989
      %v2024 = vadd.f32 %v1777, %v1991
      %v2025 = vadd.f32 %v1778, %v1993
      %s2026 = scalar_lea.vmem %s3, 384
      %v2027 = vld [vmem:[%s2026] sm:$0xff]
      %v2028 = vld [vmem:[%s2026 + $0x8] sm:$0xff]
      %v2029 = vld [vmem:[%s2026 + $0x10] sm:$0xff]
      %v2030 = vld [vmem:[%s2026 + $0x18] sm:$0xff]
      %v2031 = vld [vmem:[%s2026 + $0x20] sm:$0xff]
      %v2032 = vld [vmem:[%s2026 + $0x28] sm:$0xff]
      %v2033 = vld [vmem:[%s2026 + $0x30] sm:$0xff]
      %v2034 = vld [vmem:[%s2026 + $0x38] sm:$0xff]
      %v2035 = vld [vmem:[%s2026 + $0x40] sm:$0xff]
      %v2036 = vld [vmem:[%s2026 + $0x48] sm:$0xff]
      %v2037 = vld [vmem:[%s2026 + $0x50] sm:$0xff]
      %v2038 = vld [vmem:[%s2026 + $0x58] sm:$0xff]
      %v2039 = vld [vmem:[%s2026 + $0x60] sm:$0xff]
      %v2040 = vld [vmem:[%s2026 + $0x68] sm:$0xff]
      %v2041 = vld [vmem:[%s2026 + $0x70] sm:$0xff]
      %v2042 = vld [vmem:[%s2026 + $0x78] sm:$0xff]
      %2044 = vset.pattern.permute.xlu0 0
      %2045 = vperm.xlu0 %2044, %v2027
      %v2046 = vpop.permute.xlu0 %2045
      %2048 = vset.pattern.permute.xlu0 0
      %2049 = vperm.xlu0 %2048, %v2028
      %v2050 = vpop.permute.xlu0 %2049
      %2052 = vset.pattern.permute.xlu0 0
      %2053 = vperm.xlu0 %2052, %v2029
      %v2054 = vpop.permute.xlu0 %2053
      %2056 = vset.pattern.permute.xlu0 0
      %2057 = vperm.xlu0 %2056, %v2030
      %v2058 = vpop.permute.xlu0 %2057
      %2060 = vset.pattern.permute.xlu0 0
      %2061 = vperm.xlu0 %2060, %v2031
      %v2062 = vpop.permute.xlu0 %2061
      %2064 = vset.pattern.permute.xlu0 0
      %2065 = vperm.xlu0 %2064, %v2032
      %v2066 = vpop.permute.xlu0 %2065
      %2068 = vset.pattern.permute.xlu0 0
      %2069 = vperm.xlu0 %2068, %v2033
      %v2070 = vpop.permute.xlu0 %2069
      %2072 = vset.pattern.permute.xlu0 0
      %2073 = vperm.xlu0 %2072, %v2034
      %v2074 = vpop.permute.xlu0 %2073
      %2076 = vset.pattern.permute.xlu0 0
      %2077 = vperm.xlu0 %2076, %v2035
      %v2078 = vpop.permute.xlu0 %2077
      %2080 = vset.pattern.permute.xlu0 0
      %2081 = vperm.xlu0 %2080, %v2036
      %v2082 = vpop.permute.xlu0 %2081
      %2084 = vset.pattern.permute.xlu0 0
      %2085 = vperm.xlu0 %2084, %v2037
      %v2086 = vpop.permute.xlu0 %2085
      %2088 = vset.pattern.permute.xlu0 0
      %2089 = vperm.xlu0 %2088, %v2038
      %v2090 = vpop.permute.xlu0 %2089
      %2092 = vset.pattern.permute.xlu0 0
      %2093 = vperm.xlu0 %2092, %v2039
      %v2094 = vpop.permute.xlu0 %2093
      %2096 = vset.pattern.permute.xlu0 0
      %2097 = vperm.xlu0 %2096, %v2040
      %v2098 = vpop.permute.xlu0 %2097
      %2100 = vset.pattern.permute.xlu0 0
      %2101 = vperm.xlu0 %2100, %v2041
      %v2102 = vpop.permute.xlu0 %2101
      %2104 = vset.pattern.permute.xlu0 0
      %2105 = vperm.xlu0 %2104, %v2042
      %v2106 = vpop.permute.xlu0 %2105
      %vm2107 = vcmask 1042432
      %v2108 = vrot.slane %v2046, 5
      %v2109 = vrot.slane %v2050, 5
      %v2110 = vsel %vm2107, %v2108, %v2109
      %v2111 = vrot.slane %v2054, 5
      %v2112 = vsel %vm2107, %v2109, %v2111
      %v2113 = vrot.slane %v2058, 5
      %v2114 = vsel %vm2107, %v2111, %v2113
      %v2115 = vrot.slane %v2062, 5
      %v2116 = vsel %vm2107, %v2113, %v2115
      %v2117 = vrot.slane %v2066, 5
      %v2118 = vsel %vm2107, %v2115, %v2117
      %v2119 = vrot.slane %v2070, 5
      %v2120 = vsel %vm2107, %v2117, %v2119
      %v2121 = vrot.slane %v2074, 5
      %v2122 = vsel %vm2107, %v2119, %v2121
      %v2123 = vrot.slane %v2078, 5
      %v2124 = vsel %vm2107, %v2121, %v2123
      %v2125 = vrot.slane %v2082, 5
      %v2126 = vsel %vm2107, %v2123, %v2125
      %v2127 = vrot.slane %v2086, 5
      %v2128 = vsel %vm2107, %v2125, %v2127
      %v2129 = vrot.slane %v2090, 5
      %v2130 = vsel %vm2107, %v2127, %v2129
      %v2131 = vrot.slane %v2094, 5
      %v2132 = vsel %vm2107, %v2129, %v2131
      %v2133 = vrot.slane %v2098, 5
      %v2134 = vsel %vm2107, %v2131, %v2133
      %v2135 = vrot.slane %v2102, 5
      %v2136 = vsel %vm2107, %v2133, %v2135
      %v2137 = vrot.slane %v2106, 5
      %v2138 = vsel %vm2107, %v2135, %v2137
      %v2156 = vmul.f32 %v1383, %v2108
      %v2157 = vmul.f32 %v1337, %v2110
      %v2158 = vmul.f32 %v1339, %v2112
      %v2159 = vmul.f32 %v1341, %v2114
      %v2160 = vmul.f32 %v1343, %v2116
      %v2161 = vmul.f32 %v1345, %v2118
      %v2162 = vmul.f32 %v1347, %v2120
      %v2163 = vmul.f32 %v1349, %v2122
      %v2164 = vmul.f32 %v1351, %v2124
      %v2165 = vmul.f32 %v1353, %v2126
      %v2166 = vmul.f32 %v1355, %v2128
      %v2167 = vmul.f32 %v1357, %v2130
      %v2168 = vmul.f32 %v1359, %v2132
      %v2169 = vmul.f32 %v1361, %v2134
      %v2170 = vmul.f32 %v1363, %v2136
      %v2171 = vmul.f32 %v1365, %v2138
      %v2172 = vmul.f32 %v1384, %v2137
      %v2173 = vperm.slane %v1385, 3
      %v2174 = vmul.f32 %v2156, %v2173
      %v2175 = vmul.f32 %v2157, %v2173
      %v2176 = vmul.f32 %v2158, %v2173
      %v2177 = vmul.f32 %v2159, %v2173
      %v2178 = vmul.f32 %v2160, %v2173
      %v2179 = vmul.f32 %v2161, %v2173
      %v2180 = vmul.f32 %v2162, %v2173
      %v2181 = vmul.f32 %v2163, %v2173
      %v2182 = vmul.f32 %v2164, %v2173
      %v2183 = vmul.f32 %v2165, %v2173
      %v2184 = vmul.f32 %v2166, %v2173
      %v2185 = vmul.f32 %v2167, %v2173
      %v2186 = vmul.f32 %v2168, %v2173
      %v2187 = vmul.f32 %v2169, %v2173
      %v2188 = vmul.f32 %v2170, %v2173
      %v2189 = vmul.f32 %v2171, %v2173
      %v2190 = vmul.f32 %v2172, %v2173
      %vm2208 = vcmask 1044480
      %v2209 = vrot.slane %v2174, 3
      %v2210 = vrot.slane %v2175, 3
      %v2211 = vsel %vm2208, %v2209, %v2210
      %v2212 = vrot.slane %v2176, 3
      %v2213 = vsel %vm2208, %v2210, %v2212
      %v2214 = vrot.slane %v2177, 3
      %v2215 = vsel %vm2208, %v2212, %v2214
      %v2216 = vrot.slane %v2178, 3
      %v2217 = vsel %vm2208, %v2214, %v2216
      %v2218 = vrot.slane %v2179, 3
      %v2219 = vsel %vm2208, %v2216, %v2218
      %v2220 = vrot.slane %v2180, 3
      %v2221 = vsel %vm2208, %v2218, %v2220
      %v2222 = vrot.slane %v2181, 3
      %v2223 = vsel %vm2208, %v2220, %v2222
      %v2224 = vrot.slane %v2182, 3
      %v2225 = vsel %vm2208, %v2222, %v2224
      %v2226 = vrot.slane %v2183, 3
      %v2227 = vsel %vm2208, %v2224, %v2226
      %v2228 = vrot.slane %v2184, 3
      %v2229 = vsel %vm2208, %v2226, %v2228
      %v2230 = vrot.slane %v2185, 3
      %v2231 = vsel %vm2208, %v2228, %v2230
      %v2232 = vrot.slane %v2186, 3
      %v2233 = vsel %vm2208, %v2230, %v2232
      %v2234 = vrot.slane %v2187, 3
      %v2235 = vsel %vm2208, %v2232, %v2234
      %v2236 = vrot.slane %v2188, 3
      %v2237 = vsel %vm2208, %v2234, %v2236
      %v2238 = vrot.slane %v2189, 3
      %v2239 = vsel %vm2208, %v2236, %v2238
      %v2240 = vrot.slane %v2190, 3
      %v2241 = vsel %vm2208, %v2238, %v2240
      %v2258 = vadd.f32 %v2010, %v2211
      %v2259 = vadd.f32 %v2011, %v2213
      %v2260 = vadd.f32 %v2012, %v2215
      %v2261 = vadd.f32 %v2013, %v2217
      %v2262 = vadd.f32 %v2014, %v2219
      %v2263 = vadd.f32 %v2015, %v2221
      %v2264 = vadd.f32 %v2016, %v2223
      %v2265 = vadd.f32 %v2017, %v2225
      %v2266 = vadd.f32 %v2018, %v2227
      %v2267 = vadd.f32 %v2019, %v2229
      %v2268 = vadd.f32 %v2020, %v2231
      %v2269 = vadd.f32 %v2021, %v2233
      %v2270 = vadd.f32 %v2022, %v2235
      %v2271 = vadd.f32 %v2023, %v2237
      %v2272 = vadd.f32 %v2024, %v2239
      %v2273 = vadd.f32 %v2025, %v2241
      %s2274 = scalar_lea.vmem %s3, 512
      %v2275 = vld [vmem:[%s2274] sm:$0xff]
      %v2276 = vld [vmem:[%s2274 + $0x8] sm:$0xff]
      %v2277 = vld [vmem:[%s2274 + $0x10] sm:$0xff]
      %v2278 = vld [vmem:[%s2274 + $0x18] sm:$0xff]
      %v2279 = vld [vmem:[%s2274 + $0x20] sm:$0xff]
      %v2280 = vld [vmem:[%s2274 + $0x28] sm:$0xff]
      %v2281 = vld [vmem:[%s2274 + $0x30] sm:$0xff]
      %v2282 = vld [vmem:[%s2274 + $0x38] sm:$0xff]
      %v2283 = vld [vmem:[%s2274 + $0x40] sm:$0xff]
      %v2284 = vld [vmem:[%s2274 + $0x48] sm:$0xff]
      %v2285 = vld [vmem:[%s2274 + $0x50] sm:$0xff]
      %v2286 = vld [vmem:[%s2274 + $0x58] sm:$0xff]
      %v2287 = vld [vmem:[%s2274 + $0x60] sm:$0xff]
      %v2288 = vld [vmem:[%s2274 + $0x68] sm:$0xff]
      %v2289 = vld [vmem:[%s2274 + $0x70] sm:$0xff]
      %v2290 = vld [vmem:[%s2274 + $0x78] sm:$0xff]
      %2292 = vset.pattern.permute.xlu0 0
      %2293 = vperm.xlu0 %2292, %v2275
      %v2294 = vpop.permute.xlu0 %2293
      %2296 = vset.pattern.permute.xlu0 0
      %2297 = vperm.xlu0 %2296, %v2276
      %v2298 = vpop.permute.xlu0 %2297
      %2300 = vset.pattern.permute.xlu0 0
      %2301 = vperm.xlu0 %2300, %v2277
      %v2302 = vpop.permute.xlu0 %2301
      %2304 = vset.pattern.permute.xlu0 0
      %2305 = vperm.xlu0 %2304, %v2278
      %v2306 = vpop.permute.xlu0 %2305
      %2308 = vset.pattern.permute.xlu0 0
      %2309 = vperm.xlu0 %2308, %v2279
      %v2310 = vpop.permute.xlu0 %2309
      %2312 = vset.pattern.permute.xlu0 0
      %2313 = vperm.xlu0 %2312, %v2280
      %v2314 = vpop.permute.xlu0 %2313
      %2316 = vset.pattern.permute.xlu0 0
      %2317 = vperm.xlu0 %2316, %v2281
      %v2318 = vpop.permute.xlu0 %2317
      %2320 = vset.pattern.permute.xlu0 0
      %2321 = vperm.xlu0 %2320, %v2282
      %v2322 = vpop.permute.xlu0 %2321
      %2324 = vset.pattern.permute.xlu0 0
      %2325 = vperm.xlu0 %2324, %v2283
      %v2326 = vpop.permute.xlu0 %2325
      %2328 = vset.pattern.permute.xlu0 0
      %2329 = vperm.xlu0 %2328, %v2284
      %v2330 = vpop.permute.xlu0 %2329
      %2332 = vset.pattern.permute.xlu0 0
      %2333 = vperm.xlu0 %2332, %v2285
      %v2334 = vpop.permute.xlu0 %2333
      %2336 = vset.pattern.permute.xlu0 0
      %2337 = vperm.xlu0 %2336, %v2286
      %v2338 = vpop.permute.xlu0 %2337
      %2340 = vset.pattern.permute.xlu0 0
      %2341 = vperm.xlu0 %2340, %v2287
      %v2342 = vpop.permute.xlu0 %2341
      %2344 = vset.pattern.permute.xlu0 0
      %2345 = vperm.xlu0 %2344, %v2288
      %v2346 = vpop.permute.xlu0 %2345
      %2348 = vset.pattern.permute.xlu0 0
      %2349 = vperm.xlu0 %2348, %v2289
      %v2350 = vpop.permute.xlu0 %2349
      %2352 = vset.pattern.permute.xlu0 0
      %2353 = vperm.xlu0 %2352, %v2290
      %v2354 = vpop.permute.xlu0 %2353
      %vm2355 = vcmask 1043456
      %v2356 = vrot.slane %v2294, 4
      %v2357 = vrot.slane %v2298, 4
      %v2358 = vsel %vm2355, %v2356, %v2357
      %v2359 = vrot.slane %v2302, 4
      %v2360 = vsel %vm2355, %v2357, %v2359
      %v2361 = vrot.slane %v2306, 4
      %v2362 = vsel %vm2355, %v2359, %v2361
      %v2363 = vrot.slane %v2310, 4
      %v2364 = vsel %vm2355, %v2361, %v2363
      %v2365 = vrot.slane %v2314, 4
      %v2366 = vsel %vm2355, %v2363, %v2365
      %v2367 = vrot.slane %v2318, 4
      %v2368 = vsel %vm2355, %v2365, %v2367
      %v2369 = vrot.slane %v2322, 4
      %v2370 = vsel %vm2355, %v2367, %v2369
      %v2371 = vrot.slane %v2326, 4
      %v2372 = vsel %vm2355, %v2369, %v2371
      %v2373 = vrot.slane %v2330, 4
      %v2374 = vsel %vm2355, %v2371, %v2373
      %v2375 = vrot.slane %v2334, 4
      %v2376 = vsel %vm2355, %v2373, %v2375
      %v2377 = vrot.slane %v2338, 4
      %v2378 = vsel %vm2355, %v2375, %v2377
      %v2379 = vrot.slane %v2342, 4
      %v2380 = vsel %vm2355, %v2377, %v2379
      %v2381 = vrot.slane %v2346, 4
      %v2382 = vsel %vm2355, %v2379, %v2381
      %v2383 = vrot.slane %v2350, 4
      %v2384 = vsel %vm2355, %v2381, %v2383
      %v2385 = vrot.slane %v2354, 4
      %v2386 = vsel %vm2355, %v2383, %v2385
      %v2404 = vmul.f32 %v1383, %v2356
      %v2405 = vmul.f32 %v1337, %v2358
      %v2406 = vmul.f32 %v1339, %v2360
      %v2407 = vmul.f32 %v1341, %v2362
      %v2408 = vmul.f32 %v1343, %v2364
      %v2409 = vmul.f32 %v1345, %v2366
      %v2410 = vmul.f32 %v1347, %v2368
      %v2411 = vmul.f32 %v1349, %v2370
      %v2412 = vmul.f32 %v1351, %v2372
      %v2413 = vmul.f32 %v1353, %v2374
      %v2414 = vmul.f32 %v1355, %v2376
      %v2415 = vmul.f32 %v1357, %v2378
      %v2416 = vmul.f32 %v1359, %v2380
      %v2417 = vmul.f32 %v1361, %v2382
      %v2418 = vmul.f32 %v1363, %v2384
      %v2419 = vmul.f32 %v1365, %v2386
      %v2420 = vmul.f32 %v1384, %v2385
      %v2421 = vperm.slane %v1385, 4
      %v2422 = vmul.f32 %v2404, %v2421
      %v2423 = vmul.f32 %v2405, %v2421
      %v2424 = vmul.f32 %v2406, %v2421
      %v2425 = vmul.f32 %v2407, %v2421
      %v2426 = vmul.f32 %v2408, %v2421
      %v2427 = vmul.f32 %v2409, %v2421
      %v2428 = vmul.f32 %v2410, %v2421
      %v2429 = vmul.f32 %v2411, %v2421
      %v2430 = vmul.f32 %v2412, %v2421
      %v2431 = vmul.f32 %v2413, %v2421
      %v2432 = vmul.f32 %v2414, %v2421
      %v2433 = vmul.f32 %v2415, %v2421
      %v2434 = vmul.f32 %v2416, %v2421
      %v2435 = vmul.f32 %v2417, %v2421
      %v2436 = vmul.f32 %v2418, %v2421
      %v2437 = vmul.f32 %v2419, %v2421
      %v2438 = vmul.f32 %v2420, %v2421
      %v2456 = vrot.slane %v2422, 4
      %v2457 = vrot.slane %v2423, 4
      %v2458 = vsel %vm2355, %v2456, %v2457
      %v2459 = vrot.slane %v2424, 4
      %v2460 = vsel %vm2355, %v2457, %v2459
      %v2461 = vrot.slane %v2425, 4
      %v2462 = vsel %vm2355, %v2459, %v2461
      %v2463 = vrot.slane %v2426, 4
      %v2464 = vsel %vm2355, %v2461, %v2463
      %v2465 = vrot.slane %v2427, 4
      %v2466 = vsel %vm2355, %v2463, %v2465
      %v2467 = vrot.slane %v2428, 4
      %v2468 = vsel %vm2355, %v2465, %v2467
      %v2469 = vrot.slane %v2429, 4
      %v2470 = vsel %vm2355, %v2467, %v2469
      %v2471 = vrot.slane %v2430, 4
      %v2472 = vsel %vm2355, %v2469, %v2471
      %v2473 = vrot.slane %v2431, 4
      %v2474 = vsel %vm2355, %v2471, %v2473
      %v2475 = vrot.slane %v2432, 4
      %v2476 = vsel %vm2355, %v2473, %v2475
      %v2477 = vrot.slane %v2433, 4
      %v2478 = vsel %vm2355, %v2475, %v2477
      %v2479 = vrot.slane %v2434, 4
      %v2480 = vsel %vm2355, %v2477, %v2479
      %v2481 = vrot.slane %v2435, 4
      %v2482 = vsel %vm2355, %v2479, %v2481
      %v2483 = vrot.slane %v2436, 4
      %v2484 = vsel %vm2355, %v2481, %v2483
      %v2485 = vrot.slane %v2437, 4
      %v2486 = vsel %vm2355, %v2483, %v2485
      %v2487 = vrot.slane %v2438, 4
      %v2488 = vsel %vm2355, %v2485, %v2487
      %v2505 = vadd.f32 %v2258, %v2458
      %v2506 = vadd.f32 %v2259, %v2460
      %v2507 = vadd.f32 %v2260, %v2462
      %v2508 = vadd.f32 %v2261, %v2464
      %v2509 = vadd.f32 %v2262, %v2466
      %v2510 = vadd.f32 %v2263, %v2468
      %v2511 = vadd.f32 %v2264, %v2470
      %v2512 = vadd.f32 %v2265, %v2472
      %v2513 = vadd.f32 %v2266, %v2474
      %v2514 = vadd.f32 %v2267, %v2476
      %v2515 = vadd.f32 %v2268, %v2478
      %v2516 = vadd.f32 %v2269, %v2480
      %v2517 = vadd.f32 %v2270, %v2482
      %v2518 = vadd.f32 %v2271, %v2484
      %v2519 = vadd.f32 %v2272, %v2486
      %v2520 = vadd.f32 %v2273, %v2488
      %v2521 = vld [vmem:[%s5] sm:$0x1]
      %v2523 = vperm.slane %v2521, 0
      %v2525 = vadd.f32 %v2505, %v2523
      %v2526 = vadd.f32 %v2506, %v2523
      %v2527 = vadd.f32 %v2507, %v2523
      %v2528 = vadd.f32 %v2508, %v2523
      %v2529 = vadd.f32 %v2509, %v2523
      %v2530 = vadd.f32 %v2510, %v2523
      %v2531 = vadd.f32 %v2511, %v2523
      %v2532 = vadd.f32 %v2512, %v2523
      %v2533 = vadd.f32 %v2513, %v2523
      %v2534 = vadd.f32 %v2514, %v2523
      %v2535 = vadd.f32 %v2515, %v2523
      %v2536 = vadd.f32 %v2516, %v2523
      %v2537 = vadd.f32 %v2517, %v2523
      %v2538 = vadd.f32 %v2518, %v2523
      %v2539 = vadd.f32 %v2519, %v2523
      %v2540 = vadd.f32 %v2520, %v2523
      %v2541 = vpack.c.bf16 %v2526, %v2525
      %v2542 = vpack.c.bf16 %v2528, %v2527
      %v2543 = vpack.c.bf16 %v2530, %v2529
      %v2544 = vpack.c.bf16 %v2532, %v2531
      %v2545 = vpack.c.bf16 %v2534, %v2533
      %v2546 = vpack.c.bf16 %v2536, %v2535
      %v2547 = vpack.c.bf16 %v2538, %v2537
      %v2548 = vpack.c.bf16 %v2540, %v2539
      %v2549 = vld [vmem:[%s6] sm:$0xf]
      %v2550 = vld [vmem:[%s6 + $0x4] sm:$0xf]
      %v2551 = vld [vmem:[%s6 + $0x8] sm:$0xf]
      %v2552 = vld [vmem:[%s6 + $0xc] sm:$0xf]
      %v2553 = vld [vmem:[%s7] sm:$0x1]
      %v2555 = vperm.slane %v2553, 0
      %v2561 = vunpack.c.l.b16 %v2549
      %v2562 = vunpack.c.l.b16 %v2550
      %v2563 = vunpack.c.l.b16 %v2551
      %v2564 = vunpack.c.l.b16 %v2552
      %v2565 = vpack.c.b16 %v2562, %v2561
      %v2566 = vpack.c.b16 %v2564, %v2563
      %v2570 = vsel %vm918, %v2541, 0
      %v2573 = vsel %vm918, %v2542, 0
      %v2576 = vsel %vm918, %v2543, 0
      %v2579 = vsel %vm918, %v2544, 0
      %v2582 = vsel %vm918, %v2545, 0
      %v2585 = vsel %vm918, %v2546, 0
      %v2588 = vsel %vm918, %v2547, 0
      %v2591 = vsel %vm918, %v2548, 0
      %2593 = vmatpush.bf16.msra.mxu0 0
      %2594 = vmatpush.bf16.msra.mxu0 0
      %2595 = vmatpush.bf16.msra.mxu0 0
      %2596 = vmatpush.bf16.msra.mxu0 0
      %2597 = vmatpush.bf16.msra.mxu0 0
      %2598 = vmatpush.bf16.msra.mxu0 0
      %2599 = vmatpush.bf16.msra.mxu0 %v2566
      %2600 = vmatpush.bf16.msra.mxu0 %v2565
      %2601 = vmatmul.bf16.gmra.mxu0 %v2570
      %v2602 = vpop.f32.mrf.mxu0
      %v2603 = vadd.f32 %v2555, %v2602
      %v2604 = vpop.f32.mrf.mxu0
      %v2605 = vadd.f32 %v2555, %v2604
      %2606 = vmatmul.bf16.gmra.mxu0 %v2573
      %v2607 = vpop.f32.mrf.mxu0
      %v2608 = vadd.f32 %v2555, %v2607
      %v2609 = vpop.f32.mrf.mxu0
      %v2610 = vadd.f32 %v2555, %v2609
      %2611 = vmatmul.bf16.gmra.mxu0 %v2576
      %v2612 = vpop.f32.mrf.mxu0
      %v2613 = vadd.f32 %v2555, %v2612
      %v2614 = vpop.f32.mrf.mxu0
      %v2615 = vadd.f32 %v2555, %v2614
      %2616 = vmatmul.bf16.gmra.mxu0 %v2579
      %v2617 = vpop.f32.mrf.mxu0
      %v2618 = vadd.f32 %v2555, %v2617
      %v2619 = vpop.f32.mrf.mxu0
      %v2620 = vadd.f32 %v2555, %v2619
      %2621 = vmatmul.bf16.gmra.mxu0 %v2582
      %v2622 = vpop.f32.mrf.mxu0
      %v2623 = vadd.f32 %v2555, %v2622
      %v2624 = vpop.f32.mrf.mxu0
      %v2625 = vadd.f32 %v2555, %v2624
      %2626 = vmatmul.bf16.gmra.mxu0 %v2585
      %v2627 = vpop.f32.mrf.mxu0
      %v2628 = vadd.f32 %v2555, %v2627
      %v2629 = vpop.f32.mrf.mxu0
      %v2630 = vadd.f32 %v2555, %v2629
      %2631 = vmatmul.bf16.gmra.mxu0 %v2588
      %v2632 = vpop.f32.mrf.mxu0
      %v2633 = vadd.f32 %v2555, %v2632
      %v2634 = vpop.f32.mrf.mxu0
      %v2635 = vadd.f32 %v2555, %v2634
      %2636 = vmatmul.bf16.gmra.mxu0 %v2591
      %v2637 = vpop.f32.mrf.mxu0
      %v2638 = vadd.f32 %v2555, %v2637
      %v2639 = vpop.f32.mrf.mxu0
      %v2640 = vadd.f32 %v2555, %v2639
      %2641 = vdwg.mxu0
      %v2642 = vmax.f32 %v2603, 0.0
      %v2643 = vmax.f32 %v2605, 0.0
      %v2644 = vmax.f32 %v2608, 0.0
      %v2645 = vmax.f32 %v2610, 0.0
      %v2646 = vmax.f32 %v2613, 0.0
      %v2647 = vmax.f32 %v2615, 0.0
      %v2648 = vmax.f32 %v2618, 0.0
      %v2649 = vmax.f32 %v2620, 0.0
      %v2650 = vmax.f32 %v2623, 0.0
      %v2651 = vmax.f32 %v2625, 0.0
      %v2652 = vmax.f32 %v2628, 0.0
      %v2653 = vmax.f32 %v2630, 0.0
      %v2654 = vmax.f32 %v2633, 0.0
      %v2655 = vmax.f32 %v2635, 0.0
      %v2656 = vmax.f32 %v2638, 0.0
      %v2657 = vmax.f32 %v2640, 0.0
      %v2658 = vadd.f32 %v2642, %v902
      %v2659 = vadd.f32 %v2643, %v903
      %v2660 = vadd.f32 %v2644, %v904
      %v2661 = vadd.f32 %v2645, %v905
      %v2662 = vadd.f32 %v2646, %v906
      %v2663 = vadd.f32 %v2647, %v907
      %v2664 = vadd.f32 %v2648, %v908
      %v2665 = vadd.f32 %v2649, %v909
      %v2666 = vadd.f32 %v2650, %v910
      %v2667 = vadd.f32 %v2651, %v911
      %v2668 = vadd.f32 %v2652, %v912
      %v2669 = vadd.f32 %v2653, %v913
      %v2670 = vadd.f32 %v2654, %v914
      %v2671 = vadd.f32 %v2655, %v915
      %v2672 = vadd.f32 %v2656, %v916
      %v2673 = vadd.f32 %v2657, %v917
      %v2674 = vsel %vm918, %v2658, 0.0
      %2675 = vadd.xlane.f32.xlu0 %v2674
      %v2676 = vpop.xlane.xlu0 %2675
      %v2677 = vsel %vm918, %v2659, 0.0
      %2678 = vadd.xlane.f32.xlu0 %v2677
      %v2679 = vpop.xlane.xlu0 %2678
      %v2680 = vsel %vm918, %v2660, 0.0
      %2681 = vadd.xlane.f32.xlu0 %v2680
      %v2682 = vpop.xlane.xlu0 %2681
      %v2683 = vsel %vm918, %v2661, 0.0
      %2684 = vadd.xlane.f32.xlu0 %v2683
      %v2685 = vpop.xlane.xlu0 %2684
      %v2686 = vsel %vm918, %v2662, 0.0
      %2687 = vadd.xlane.f32.xlu0 %v2686
      %v2688 = vpop.xlane.xlu0 %2687
      %v2689 = vsel %vm918, %v2663, 0.0
      %2690 = vadd.xlane.f32.xlu0 %v2689
      %v2691 = vpop.xlane.xlu0 %2690
      %v2692 = vsel %vm918, %v2664, 0.0
      %2693 = vadd.xlane.f32.xlu0 %v2692
      %v2694 = vpop.xlane.xlu0 %2693
      %v2695 = vsel %vm918, %v2665, 0.0
      %2696 = vadd.xlane.f32.xlu0 %v2695
      %v2697 = vpop.xlane.xlu0 %2696
      %v2698 = vsel %vm918, %v2666, 0.0
      %2699 = vadd.xlane.f32.xlu0 %v2698
      %v2700 = vpop.xlane.xlu0 %2699
      %v2701 = vsel %vm918, %v2667, 0.0
      %2702 = vadd.xlane.f32.xlu0 %v2701
      %v2703 = vpop.xlane.xlu0 %2702
      %v2704 = vsel %vm918, %v2668, 0.0
      %2705 = vadd.xlane.f32.xlu0 %v2704
      %v2706 = vpop.xlane.xlu0 %2705
      %v2707 = vsel %vm918, %v2669, 0.0
      %2708 = vadd.xlane.f32.xlu0 %v2707
      %v2709 = vpop.xlane.xlu0 %2708
      %v2710 = vsel %vm918, %v2670, 0.0
      %2711 = vadd.xlane.f32.xlu0 %v2710
      %v2712 = vpop.xlane.xlu0 %2711
      %v2713 = vsel %vm918, %v2671, 0.0
      %2714 = vadd.xlane.f32.xlu0 %v2713
      %v2715 = vpop.xlane.xlu0 %2714
      %v2716 = vsel %vm918, %v2672, 0.0
      %2717 = vadd.xlane.f32.xlu0 %v2716
      %v2718 = vpop.xlane.xlu0 %2717
      %v2719 = vsel %vm918, %v2673, 0.0
      %2720 = vadd.xlane.f32.xlu0 %v2719
      %v2721 = vpop.xlane.xlu0 %2720
      %v2722 = vmul.f32 %v2676, %v973
      %v2723 = vmul.f32 %v2679, %v973
      %v2724 = vmul.f32 %v2682, %v973
      %v2725 = vmul.f32 %v2685, %v973
      %v2726 = vmul.f32 %v2688, %v973
      %v2727 = vmul.f32 %v2691, %v973
      %v2728 = vmul.f32 %v2694, %v973
      %v2729 = vmul.f32 %v2697, %v973
      %v2730 = vmul.f32 %v2700, %v973
      %v2731 = vmul.f32 %v2703, %v973
      %v2732 = vmul.f32 %v2706, %v973
      %v2733 = vmul.f32 %v2709, %v973
      %v2734 = vmul.f32 %v2712, %v973
      %v2735 = vmul.f32 %v2715, %v973
      %v2736 = vmul.f32 %v2718, %v973
      %v2737 = vmul.f32 %v2721, %v973
      %v2738 = vsub.f32 %v2658, %v2722
      %v2739 = vsub.f32 %v2659, %v2723
      %v2740 = vsub.f32 %v2660, %v2724
      %v2741 = vsub.f32 %v2661, %v2725
      %v2742 = vsub.f32 %v2662, %v2726
      %v2743 = vsub.f32 %v2663, %v2727
      %v2744 = vsub.f32 %v2664, %v2728
      %v2745 = vsub.f32 %v2665, %v2729
      %v2746 = vsub.f32 %v2666, %v2730
      %v2747 = vsub.f32 %v2667, %v2731
      %v2748 = vsub.f32 %v2668, %v2732
      %v2749 = vsub.f32 %v2669, %v2733
      %v2750 = vsub.f32 %v2670, %v2734
      %v2751 = vsub.f32 %v2671, %v2735
      %v2752 = vsub.f32 %v2672, %v2736
      %v2753 = vsub.f32 %v2673, %v2737
      %v2754 = vmul.f32 %v2738, %v2738
      %v2755 = vmul.f32 %v2739, %v2739
      %v2756 = vmul.f32 %v2740, %v2740
      %v2757 = vmul.f32 %v2741, %v2741
      %v2758 = vmul.f32 %v2742, %v2742
      %v2759 = vmul.f32 %v2743, %v2743
      %v2760 = vmul.f32 %v2744, %v2744
      %v2761 = vmul.f32 %v2745, %v2745
      %v2762 = vmul.f32 %v2746, %v2746
      %v2763 = vmul.f32 %v2747, %v2747
      %v2764 = vmul.f32 %v2748, %v2748
      %v2765 = vmul.f32 %v2749, %v2749
      %v2766 = vmul.f32 %v2750, %v2750
      %v2767 = vmul.f32 %v2751, %v2751
      %v2768 = vmul.f32 %v2752, %v2752
      %v2769 = vmul.f32 %v2753, %v2753
      %v2770 = vsel %vm918, %v2754, 0.0
      %2771 = vadd.xlane.f32.xlu0 %v2770
      %v2772 = vpop.xlane.xlu0 %2771
      %v2773 = vsel %vm918, %v2755, 0.0
      %2774 = vadd.xlane.f32.xlu0 %v2773
      %v2775 = vpop.xlane.xlu0 %2774
      %v2776 = vsel %vm918, %v2756, 0.0
      %2777 = vadd.xlane.f32.xlu0 %v2776
      %v2778 = vpop.xlane.xlu0 %2777
      %v2779 = vsel %vm918, %v2757, 0.0
      %2780 = vadd.xlane.f32.xlu0 %v2779
      %v2781 = vpop.xlane.xlu0 %2780
      %v2782 = vsel %vm918, %v2758, 0.0
      %2783 = vadd.xlane.f32.xlu0 %v2782
      %v2784 = vpop.xlane.xlu0 %2783
      %v2785 = vsel %vm918, %v2759, 0.0
      %2786 = vadd.xlane.f32.xlu0 %v2785
      %v2787 = vpop.xlane.xlu0 %2786
      %v2788 = vsel %vm918, %v2760, 0.0
      %2789 = vadd.xlane.f32.xlu0 %v2788
      %v2790 = vpop.xlane.xlu0 %2789
      %v2791 = vsel %vm918, %v2761, 0.0
      %2792 = vadd.xlane.f32.xlu0 %v2791
      %v2793 = vpop.xlane.xlu0 %2792
      %v2794 = vsel %vm918, %v2762, 0.0
      %2795 = vadd.xlane.f32.xlu0 %v2794
      %v2796 = vpop.xlane.xlu0 %2795
      %v2797 = vsel %vm918, %v2763, 0.0
      %2798 = vadd.xlane.f32.xlu0 %v2797
      %v2799 = vpop.xlane.xlu0 %2798
      %v2800 = vsel %vm918, %v2764, 0.0
      %2801 = vadd.xlane.f32.xlu0 %v2800
      %v2802 = vpop.xlane.xlu0 %2801
      %v2803 = vsel %vm918, %v2765, 0.0
      %2804 = vadd.xlane.f32.xlu0 %v2803
      %v2805 = vpop.xlane.xlu0 %2804
      %v2806 = vsel %vm918, %v2766, 0.0
      %2807 = vadd.xlane.f32.xlu0 %v2806
      %v2808 = vpop.xlane.xlu0 %2807
      %v2809 = vsel %vm918, %v2767, 0.0
      %2810 = vadd.xlane.f32.xlu0 %v2809
      %v2811 = vpop.xlane.xlu0 %2810
      %v2812 = vsel %vm918, %v2768, 0.0
      %2813 = vadd.xlane.f32.xlu0 %v2812
      %v2814 = vpop.xlane.xlu0 %2813
      %v2815 = vsel %vm918, %v2769, 0.0
      %2816 = vadd.xlane.f32.xlu0 %v2815
      %v2817 = vpop.xlane.xlu0 %2816
      %v2818 = vmul.f32 %v2772, %v973
      %v2819 = vmul.f32 %v2775, %v973
      %v2820 = vmul.f32 %v2778, %v973
      %v2821 = vmul.f32 %v2781, %v973
      %v2822 = vmul.f32 %v2784, %v973
      %v2823 = vmul.f32 %v2787, %v973
      %v2824 = vmul.f32 %v2790, %v973
      %v2825 = vmul.f32 %v2793, %v973
      %v2826 = vmul.f32 %v2796, %v973
      %v2827 = vmul.f32 %v2799, %v973
      %v2828 = vmul.f32 %v2802, %v973
      %v2829 = vmul.f32 %v2805, %v973
      %v2830 = vmul.f32 %v2808, %v973
      %v2831 = vmul.f32 %v2811, %v973
      %v2832 = vmul.f32 %v2814, %v973
      %v2833 = vmul.f32 %v2817, %v973
      %v2834 = vadd.f32 %v2818, 1e-05
      %v2835 = vadd.f32 %v2819, 1e-05
      %v2836 = vadd.f32 %v2820, 1e-05
      %v2837 = vadd.f32 %v2821, 1e-05
      %v2838 = vadd.f32 %v2822, 1e-05
      %v2839 = vadd.f32 %v2823, 1e-05
      %v2840 = vadd.f32 %v2824, 1e-05
      %v2841 = vadd.f32 %v2825, 1e-05
      %v2842 = vadd.f32 %v2826, 1e-05
      %v2843 = vadd.f32 %v2827, 1e-05
      %v2844 = vadd.f32 %v2828, 1e-05
      %v2845 = vadd.f32 %v2829, 1e-05
      %v2846 = vadd.f32 %v2830, 1e-05
      %v2847 = vadd.f32 %v2831, 1e-05
      %v2848 = vadd.f32 %v2832, 1e-05
      %v2849 = vadd.f32 %v2833, 1e-05
      %v2850 = vrsqrt.pop %v2834
      %v2851 = vmul.f32 %v2850, %v2834
      %v2852 = vmul.f32 %v2851, %v2850
      %v2853 = vmul.f32 0.5, %v2852
      %v2854 = vsub.f32 1.5, %v2853
      %v2855 = vmul.f32 %v2850, %v2854
      %vm2856 = vweird.f32 %v2834
      %vm2857 = vweird.f32 %v2850
      %vm2858 = vmor %vm2856, %vm2857
      %v2859 = vsel %vm2858, %v2850, %v2855
      %v2860 = vrsqrt.pop %v2835
      %v2861 = vmul.f32 %v2860, %v2835
      %v2862 = vmul.f32 %v2861, %v2860
      %v2863 = vmul.f32 0.5, %v2862
      %v2864 = vsub.f32 1.5, %v2863
      %v2865 = vmul.f32 %v2860, %v2864
      %vm2866 = vweird.f32 %v2835
      %vm2867 = vweird.f32 %v2860
      %vm2868 = vmor %vm2866, %vm2867
      %v2869 = vsel %vm2868, %v2860, %v2865
      %v2870 = vrsqrt.pop %v2836
      %v2871 = vmul.f32 %v2870, %v2836
      %v2872 = vmul.f32 %v2871, %v2870
      %v2873 = vmul.f32 0.5, %v2872
      %v2874 = vsub.f32 1.5, %v2873
      %v2875 = vmul.f32 %v2870, %v2874
      %vm2876 = vweird.f32 %v2836
      %vm2877 = vweird.f32 %v2870
      %vm2878 = vmor %vm2876, %vm2877
      %v2879 = vsel %vm2878, %v2870, %v2875
      %v2880 = vrsqrt.pop %v2837
      %v2881 = vmul.f32 %v2880, %v2837
      %v2882 = vmul.f32 %v2881, %v2880
      %v2883 = vmul.f32 0.5, %v2882
      %v2884 = vsub.f32 1.5, %v2883
      %v2885 = vmul.f32 %v2880, %v2884
      %vm2886 = vweird.f32 %v2837
      %vm2887 = vweird.f32 %v2880
      %vm2888 = vmor %vm2886, %vm2887
      %v2889 = vsel %vm2888, %v2880, %v2885
      %v2890 = vrsqrt.pop %v2838
      %v2891 = vmul.f32 %v2890, %v2838
      %v2892 = vmul.f32 %v2891, %v2890
      %v2893 = vmul.f32 0.5, %v2892
      %v2894 = vsub.f32 1.5, %v2893
      %v2895 = vmul.f32 %v2890, %v2894
      %vm2896 = vweird.f32 %v2838
      %vm2897 = vweird.f32 %v2890
      %vm2898 = vmor %vm2896, %vm2897
      %v2899 = vsel %vm2898, %v2890, %v2895
      %v2900 = vrsqrt.pop %v2839
      %v2901 = vmul.f32 %v2900, %v2839
      %v2902 = vmul.f32 %v2901, %v2900
      %v2903 = vmul.f32 0.5, %v2902
      %v2904 = vsub.f32 1.5, %v2903
      %v2905 = vmul.f32 %v2900, %v2904
      %vm2906 = vweird.f32 %v2839
      %vm2907 = vweird.f32 %v2900
      %vm2908 = vmor %vm2906, %vm2907
      %v2909 = vsel %vm2908, %v2900, %v2905
      %v2910 = vrsqrt.pop %v2840
      %v2911 = vmul.f32 %v2910, %v2840
      %v2912 = vmul.f32 %v2911, %v2910
      %v2913 = vmul.f32 0.5, %v2912
      %v2914 = vsub.f32 1.5, %v2913
      %v2915 = vmul.f32 %v2910, %v2914
      %vm2916 = vweird.f32 %v2840
      %vm2917 = vweird.f32 %v2910
      %vm2918 = vmor %vm2916, %vm2917
      %v2919 = vsel %vm2918, %v2910, %v2915
      %v2920 = vrsqrt.pop %v2841
      %v2921 = vmul.f32 %v2920, %v2841
      %v2922 = vmul.f32 %v2921, %v2920
      %v2923 = vmul.f32 0.5, %v2922
      %v2924 = vsub.f32 1.5, %v2923
      %v2925 = vmul.f32 %v2920, %v2924
      %vm2926 = vweird.f32 %v2841
      %vm2927 = vweird.f32 %v2920
      %vm2928 = vmor %vm2926, %vm2927
      %v2929 = vsel %vm2928, %v2920, %v2925
      %v2930 = vrsqrt.pop %v2842
      %v2931 = vmul.f32 %v2930, %v2842
      %v2932 = vmul.f32 %v2931, %v2930
      %v2933 = vmul.f32 0.5, %v2932
      %v2934 = vsub.f32 1.5, %v2933
      %v2935 = vmul.f32 %v2930, %v2934
      %vm2936 = vweird.f32 %v2842
      %vm2937 = vweird.f32 %v2930
      %vm2938 = vmor %vm2936, %vm2937
      %v2939 = vsel %vm2938, %v2930, %v2935
      %v2940 = vrsqrt.pop %v2843
      %v2941 = vmul.f32 %v2940, %v2843
      %v2942 = vmul.f32 %v2941, %v2940
      %v2943 = vmul.f32 0.5, %v2942
      %v2944 = vsub.f32 1.5, %v2943
      %v2945 = vmul.f32 %v2940, %v2944
      %vm2946 = vweird.f32 %v2843
      %vm2947 = vweird.f32 %v2940
      %vm2948 = vmor %vm2946, %vm2947
      %v2949 = vsel %vm2948, %v2940, %v2945
      %v2950 = vrsqrt.pop %v2844
      %v2951 = vmul.f32 %v2950, %v2844
      %v2952 = vmul.f32 %v2951, %v2950
      %v2953 = vmul.f32 0.5, %v2952
      %v2954 = vsub.f32 1.5, %v2953
      %v2955 = vmul.f32 %v2950, %v2954
      %vm2956 = vweird.f32 %v2844
      %vm2957 = vweird.f32 %v2950
      %vm2958 = vmor %vm2956, %vm2957
      %v2959 = vsel %vm2958, %v2950, %v2955
      %v2960 = vrsqrt.pop %v2845
      %v2961 = vmul.f32 %v2960, %v2845
      %v2962 = vmul.f32 %v2961, %v2960
      %v2963 = vmul.f32 0.5, %v2962
      %v2964 = vsub.f32 1.5, %v2963
      %v2965 = vmul.f32 %v2960, %v2964
      %vm2966 = vweird.f32 %v2845
      %vm2967 = vweird.f32 %v2960
      %vm2968 = vmor %vm2966, %vm2967
      %v2969 = vsel %vm2968, %v2960, %v2965
      %v2970 = vrsqrt.pop %v2846
      %v2971 = vmul.f32 %v2970, %v2846
      %v2972 = vmul.f32 %v2971, %v2970
      %v2973 = vmul.f32 0.5, %v2972
      %v2974 = vsub.f32 1.5, %v2973
      %v2975 = vmul.f32 %v2970, %v2974
      %vm2976 = vweird.f32 %v2846
      %vm2977 = vweird.f32 %v2970
      %vm2978 = vmor %vm2976, %vm2977
      %v2979 = vsel %vm2978, %v2970, %v2975
      %v2980 = vrsqrt.pop %v2847
      %v2981 = vmul.f32 %v2980, %v2847
      %v2982 = vmul.f32 %v2981, %v2980
      %v2983 = vmul.f32 0.5, %v2982
      %v2984 = vsub.f32 1.5, %v2983
      %v2985 = vmul.f32 %v2980, %v2984
      %vm2986 = vweird.f32 %v2847
      %vm2987 = vweird.f32 %v2980
      %vm2988 = vmor %vm2986, %vm2987
      %v2989 = vsel %vm2988, %v2980, %v2985
      %v2990 = vrsqrt.pop %v2848
      %v2991 = vmul.f32 %v2990, %v2848
      %v2992 = vmul.f32 %v2991, %v2990
      %v2993 = vmul.f32 0.5, %v2992
      %v2994 = vsub.f32 1.5, %v2993
      %v2995 = vmul.f32 %v2990, %v2994
      %vm2996 = vweird.f32 %v2848
      %vm2997 = vweird.f32 %v2990
      %vm2998 = vmor %vm2996, %vm2997
      %v2999 = vsel %vm2998, %v2990, %v2995
      %v3000 = vrsqrt.pop %v2849
      %v3001 = vmul.f32 %v3000, %v2849
      %v3002 = vmul.f32 %v3001, %v3000
      %v3003 = vmul.f32 0.5, %v3002
      %v3004 = vsub.f32 1.5, %v3003
      %v3005 = vmul.f32 %v3000, %v3004
      %vm3006 = vweird.f32 %v2849
      %vm3007 = vweird.f32 %v3000
      %vm3008 = vmor %vm3006, %vm3007
      %v3009 = vsel %vm3008, %v3000, %v3005
      %v3010 = vmul.f32 %v2738, %v2859
      %v3011 = vmul.f32 %v2739, %v2869
      %v3012 = vmul.f32 %v2740, %v2879
      %v3013 = vmul.f32 %v2741, %v2889
      %v3014 = vmul.f32 %v2742, %v2899
      %v3015 = vmul.f32 %v2743, %v2909
      %v3016 = vmul.f32 %v2744, %v2919
      %v3017 = vmul.f32 %v2745, %v2929
      %v3018 = vmul.f32 %v2746, %v2939
      %v3019 = vmul.f32 %v2747, %v2949
      %v3020 = vmul.f32 %v2748, %v2959
      %v3021 = vmul.f32 %v2749, %v2969
      %v3022 = vmul.f32 %v2750, %v2979
      %v3023 = vmul.f32 %v2751, %v2989
      %v3024 = vmul.f32 %v2752, %v2999
      %v3025 = vmul.f32 %v2753, %v3009
      %v3026 = vld [vmem:[%s14] sm:$0x1]
      %v3028 = vperm.slane %v3026, 0
      %v3030 = vmul.f32 %v3010, %v3028
      %v3031 = vmul.f32 %v3011, %v3028
      %v3032 = vmul.f32 %v3012, %v3028
      %v3033 = vmul.f32 %v3013, %v3028
      %v3034 = vmul.f32 %v3014, %v3028
      %v3035 = vmul.f32 %v3015, %v3028
      %v3036 = vmul.f32 %v3016, %v3028
      %v3037 = vmul.f32 %v3017, %v3028
      %v3038 = vmul.f32 %v3018, %v3028
      %v3039 = vmul.f32 %v3019, %v3028
      %v3040 = vmul.f32 %v3020, %v3028
      %v3041 = vmul.f32 %v3021, %v3028
      %v3042 = vmul.f32 %v3022, %v3028
      %v3043 = vmul.f32 %v3023, %v3028
      %v3044 = vmul.f32 %v3024, %v3028
      %v3045 = vmul.f32 %v3025, %v3028
      %v3046 = vld [vmem:[%s15] sm:$0x1]
      %v3048 = vperm.slane %v3046, 0
      %v3050 = vadd.f32 %v3030, %v3048
      %v3051 = vadd.f32 %v3031, %v3048
      %v3052 = vadd.f32 %v3032, %v3048
      %v3053 = vadd.f32 %v3033, %v3048
      %v3054 = vadd.f32 %v3034, %v3048
      %v3055 = vadd.f32 %v3035, %v3048
      %v3056 = vadd.f32 %v3036, %v3048
      %v3057 = vadd.f32 %v3037, %v3048
      %v3058 = vadd.f32 %v3038, %v3048
      %v3059 = vadd.f32 %v3039, %v3048
      %v3060 = vadd.f32 %v3040, %v3048
      %v3061 = vadd.f32 %v3041, %v3048
      %v3062 = vadd.f32 %v3042, %v3048
      %v3063 = vadd.f32 %v3043, %v3048
      %v3064 = vadd.f32 %v3044, %v3048
      %v3065 = vadd.f32 %v3045, %v3048
      %v3082 = vrot.slane %v3050, 6
      %v3083 = vrot.slane %v3051, 6
      %v3084 = vsel %vm1334, %v3082, %v3083
      %v3085 = vrot.slane %v3052, 6
      %v3086 = vsel %vm1334, %v3083, %v3085
      %v3087 = vrot.slane %v3053, 6
      %v3088 = vsel %vm1334, %v3085, %v3087
      %v3089 = vrot.slane %v3054, 6
      %v3090 = vsel %vm1334, %v3087, %v3089
      %v3091 = vrot.slane %v3055, 6
      %v3092 = vsel %vm1334, %v3089, %v3091
      %v3093 = vrot.slane %v3056, 6
      %v3094 = vsel %vm1334, %v3091, %v3093
      %v3095 = vrot.slane %v3057, 6
      %v3096 = vsel %vm1334, %v3093, %v3095
      %v3097 = vrot.slane %v3058, 6
      %v3098 = vsel %vm1334, %v3095, %v3097
      %v3099 = vrot.slane %v3059, 6
      %v3100 = vsel %vm1334, %v3097, %v3099
      %v3101 = vrot.slane %v3060, 6
      %v3102 = vsel %vm1334, %v3099, %v3101
      %v3103 = vrot.slane %v3061, 6
      %v3104 = vsel %vm1334, %v3101, %v3103
      %v3105 = vrot.slane %v3062, 6
      %v3106 = vsel %vm1334, %v3103, %v3105
      %v3107 = vrot.slane %v3063, 6
      %v3108 = vsel %vm1334, %v3105, %v3107
      %v3109 = vrot.slane %v3064, 6
      %v3110 = vsel %vm1334, %v3107, %v3109
      %v3111 = vrot.slane %v3065, 6
      %v3112 = vsel %vm1334, %v3109, %v3111
      %v3130 = vsel %vm1334, 0.0, %v3082
      %v3131 = vsel %vm1334, %v3111, 0.0
      %v3132 = vld [vmem:[%s8] sm:$0x1f]
      %v3133 = vmul.f32 %v3130, %v1405
      %v3134 = vmul.f32 %v3084, %v1410
      %v3135 = vmul.f32 %v3086, %v1415
      %v3136 = vmul.f32 %v3088, %v1420
      %v3137 = vmul.f32 %v3090, %v1425
      %v3138 = vmul.f32 %v3092, %v1430
      %v3139 = vmul.f32 %v3094, %v1435
      %v3140 = vmul.f32 %v3096, %v1440
      %v3141 = vmul.f32 %v3098, %v1445
      %v3142 = vmul.f32 %v3100, %v1450
      %v3143 = vmul.f32 %v3102, %v1455
      %v3144 = vmul.f32 %v3104, %v1460
      %v3145 = vmul.f32 %v3106, %v1465
      %v3146 = vmul.f32 %v3108, %v1470
      %v3147 = vmul.f32 %v3110, %v1475
      %v3148 = vmul.f32 %v3112, %v1480
      %v3149 = vperm.slane %v3132, 0
      %v3150 = vmul.f32 %v3133, %v3149
      %v3151 = vmul.f32 %v3134, %v3149
      %v3152 = vmul.f32 %v3135, %v3149
      %v3153 = vmul.f32 %v3136, %v3149
      %v3154 = vmul.f32 %v3137, %v3149
      %v3155 = vmul.f32 %v3138, %v3149
      %v3156 = vmul.f32 %v3139, %v3149
      %v3157 = vmul.f32 %v3140, %v3149
      %v3158 = vmul.f32 %v3141, %v3149
      %v3159 = vmul.f32 %v3142, %v3149
      %v3160 = vmul.f32 %v3143, %v3149
      %v3161 = vmul.f32 %v3144, %v3149
      %v3162 = vmul.f32 %v3145, %v3149
      %v3163 = vmul.f32 %v3146, %v3149
      %v3164 = vmul.f32 %v3147, %v3149
      %v3165 = vmul.f32 %v3148, %v3149
      %v3166 = vadd.f32 %v3150, 0.0
      %v3167 = vadd.f32 %v3151, 0.0
      %v3168 = vadd.f32 %v3152, 0.0
      %v3169 = vadd.f32 %v3153, 0.0
      %v3170 = vadd.f32 %v3154, 0.0
      %v3171 = vadd.f32 %v3155, 0.0
      %v3172 = vadd.f32 %v3156, 0.0
      %v3173 = vadd.f32 %v3157, 0.0
      %v3174 = vadd.f32 %v3158, 0.0
      %v3175 = vadd.f32 %v3159, 0.0
      %v3176 = vadd.f32 %v3160, 0.0
      %v3177 = vadd.f32 %v3161, 0.0
      %v3178 = vadd.f32 %v3162, 0.0
      %v3179 = vadd.f32 %v3163, 0.0
      %v3180 = vadd.f32 %v3164, 0.0
      %v3181 = vadd.f32 %v3165, 0.0
      %v3182 = vmul.f32 %v3130, %v1613
      %v3183 = vmul.f32 %v3084, %v1615
      %v3184 = vmul.f32 %v3086, %v1617
      %v3185 = vmul.f32 %v3088, %v1619
      %v3186 = vmul.f32 %v3090, %v1621
      %v3187 = vmul.f32 %v3092, %v1623
      %v3188 = vmul.f32 %v3094, %v1625
      %v3189 = vmul.f32 %v3096, %v1627
      %v3190 = vmul.f32 %v3098, %v1629
      %v3191 = vmul.f32 %v3100, %v1631
      %v3192 = vmul.f32 %v3102, %v1633
      %v3193 = vmul.f32 %v3104, %v1635
      %v3194 = vmul.f32 %v3106, %v1637
      %v3195 = vmul.f32 %v3108, %v1639
      %v3196 = vmul.f32 %v3110, %v1641
      %v3197 = vmul.f32 %v3112, %v1643
      %v3198 = vmul.f32 %v3131, %v1642
      %v3199 = vperm.slane %v3132, 1
      %v3200 = vmul.f32 %v3182, %v3199
      %v3201 = vmul.f32 %v3183, %v3199
      %v3202 = vmul.f32 %v3184, %v3199
      %v3203 = vmul.f32 %v3185, %v3199
      %v3204 = vmul.f32 %v3186, %v3199
      %v3205 = vmul.f32 %v3187, %v3199
      %v3206 = vmul.f32 %v3188, %v3199
      %v3207 = vmul.f32 %v3189, %v3199
      %v3208 = vmul.f32 %v3190, %v3199
      %v3209 = vmul.f32 %v3191, %v3199
      %v3210 = vmul.f32 %v3192, %v3199
      %v3211 = vmul.f32 %v3193, %v3199
      %v3212 = vmul.f32 %v3194, %v3199
      %v3213 = vmul.f32 %v3195, %v3199
      %v3214 = vmul.f32 %v3196, %v3199
      %v3215 = vmul.f32 %v3197, %v3199
      %v3216 = vmul.f32 %v3198, %v3199
      %v3234 = vrot.slane %v3200, 1
      %v3235 = vrot.slane %v3201, 1
      %v3236 = vsel %vm1713, %v3234, %v3235
      %v3237 = vrot.slane %v3202, 1
      %v3238 = vsel %vm1713, %v3235, %v3237
      %v3239 = vrot.slane %v3203, 1
      %v3240 = vsel %vm1713, %v3237, %v3239
      %v3241 = vrot.slane %v3204, 1
      %v3242 = vsel %vm1713, %v3239, %v3241
      %v3243 = vrot.slane %v3205, 1
      %v3244 = vsel %vm1713, %v3241, %v3243
      %v3245 = vrot.slane %v3206, 1
      %v3246 = vsel %vm1713, %v3243, %v3245
      %v3247 = vrot.slane %v3207, 1
      %v3248 = vsel %vm1713, %v3245, %v3247
      %v3249 = vrot.slane %v3208, 1
      %v3250 = vsel %vm1713, %v3247, %v3249
      %v3251 = vrot.slane %v3209, 1
      %v3252 = vsel %vm1713, %v3249, %v3251
      %v3253 = vrot.slane %v3210, 1
      %v3254 = vsel %vm1713, %v3251, %v3253
      %v3255 = vrot.slane %v3211, 1
      %v3256 = vsel %vm1713, %v3253, %v3255
      %v3257 = vrot.slane %v3212, 1
      %v3258 = vsel %vm1713, %v3255, %v3257
      %v3259 = vrot.slane %v3213, 1
      %v3260 = vsel %vm1713, %v3257, %v3259
      %v3261 = vrot.slane %v3214, 1
      %v3262 = vsel %vm1713, %v3259, %v3261
      %v3263 = vrot.slane %v3215, 1
      %v3264 = vsel %vm1713, %v3261, %v3263
      %v3265 = vrot.slane %v3216, 1
      %v3266 = vsel %vm1713, %v3263, %v3265
      %v3283 = vadd.f32 %v3166, %v3236
      %v3284 = vadd.f32 %v3167, %v3238
      %v3285 = vadd.f32 %v3168, %v3240
      %v3286 = vadd.f32 %v3169, %v3242
      %v3287 = vadd.f32 %v3170, %v3244
      %v3288 = vadd.f32 %v3171, %v3246
      %v3289 = vadd.f32 %v3172, %v3248
      %v3290 = vadd.f32 %v3173, %v3250
      %v3291 = vadd.f32 %v3174, %v3252
      %v3292 = vadd.f32 %v3175, %v3254
      %v3293 = vadd.f32 %v3176, %v3256
      %v3294 = vadd.f32 %v3177, %v3258
      %v3295 = vadd.f32 %v3178, %v3260
      %v3296 = vadd.f32 %v3179, %v3262
      %v3297 = vadd.f32 %v3180, %v3264
      %v3298 = vadd.f32 %v3181, %v3266
      %v3299 = vmul.f32 %v3130, %v1860
      %v3300 = vmul.f32 %v3084, %v1862
      %v3301 = vmul.f32 %v3086, %v1864
      %v3302 = vmul.f32 %v3088, %v1866
      %v3303 = vmul.f32 %v3090, %v1868
      %v3304 = vmul.f32 %v3092, %v1870
      %v3305 = vmul.f32 %v3094, %v1872
      %v3306 = vmul.f32 %v3096, %v1874
      %v3307 = vmul.f32 %v3098, %v1876
      %v3308 = vmul.f32 %v3100, %v1878
      %v3309 = vmul.f32 %v3102, %v1880
      %v3310 = vmul.f32 %v3104, %v1882
      %v3311 = vmul.f32 %v3106, %v1884
      %v3312 = vmul.f32 %v3108, %v1886
      %v3313 = vmul.f32 %v3110, %v1888
      %v3314 = vmul.f32 %v3112, %v1890
      %v3315 = vmul.f32 %v3131, %v1889
      %v3316 = vperm.slane %v3132, 2
      %v3317 = vmul.f32 %v3299, %v3316
      %v3318 = vmul.f32 %v3300, %v3316
      %v3319 = vmul.f32 %v3301, %v3316
      %v3320 = vmul.f32 %v3302, %v3316
      %v3321 = vmul.f32 %v3303, %v3316
      %v3322 = vmul.f32 %v3304, %v3316
      %v3323 = vmul.f32 %v3305, %v3316
      %v3324 = vmul.f32 %v3306, %v3316
      %v3325 = vmul.f32 %v3307, %v3316
      %v3326 = vmul.f32 %v3308, %v3316
      %v3327 = vmul.f32 %v3309, %v3316
      %v3328 = vmul.f32 %v3310, %v3316
      %v3329 = vmul.f32 %v3311, %v3316
      %v3330 = vmul.f32 %v3312, %v3316
      %v3331 = vmul.f32 %v3313, %v3316
      %v3332 = vmul.f32 %v3314, %v3316
      %v3333 = vmul.f32 %v3315, %v3316
      %v3351 = vrot.slane %v3317, 2
      %v3352 = vrot.slane %v3318, 2
      %v3353 = vsel %vm1960, %v3351, %v3352
      %v3354 = vrot.slane %v3319, 2
      %v3355 = vsel %vm1960, %v3352, %v3354
      %v3356 = vrot.slane %v3320, 2
      %v3357 = vsel %vm1960, %v3354, %v3356
      %v3358 = vrot.slane %v3321, 2
      %v3359 = vsel %vm1960, %v3356, %v3358
      %v3360 = vrot.slane %v3322, 2
      %v3361 = vsel %vm1960, %v3358, %v3360
      %v3362 = vrot.slane %v3323, 2
      %v3363 = vsel %vm1960, %v3360, %v3362
      %v3364 = vrot.slane %v3324, 2
      %v3365 = vsel %vm1960, %v3362, %v3364
      %v3366 = vrot.slane %v3325, 2
      %v3367 = vsel %vm1960, %v3364, %v3366
      %v3368 = vrot.slane %v3326, 2
      %v3369 = vsel %vm1960, %v3366, %v3368
      %v3370 = vrot.slane %v3327, 2
      %v3371 = vsel %vm1960, %v3368, %v3370
      %v3372 = vrot.slane %v3328, 2
      %v3373 = vsel %vm1960, %v3370, %v3372
      %v3374 = vrot.slane %v3329, 2
      %v3375 = vsel %vm1960, %v3372, %v3374
      %v3376 = vrot.slane %v3330, 2
      %v3377 = vsel %vm1960, %v3374, %v3376
      %v3378 = vrot.slane %v3331, 2
      %v3379 = vsel %vm1960, %v3376, %v3378
      %v3380 = vrot.slane %v3332, 2
      %v3381 = vsel %vm1960, %v3378, %v3380
      %v3382 = vrot.slane %v3333, 2
      %v3383 = vsel %vm1960, %v3380, %v3382
      %v3400 = vadd.f32 %v3283, %v3353
      %v3401 = vadd.f32 %v3284, %v3355
      %v3402 = vadd.f32 %v3285, %v3357
      %v3403 = vadd.f32 %v3286, %v3359
      %v3404 = vadd.f32 %v3287, %v3361
      %v3405 = vadd.f32 %v3288, %v3363
      %v3406 = vadd.f32 %v3289, %v3365
      %v3407 = vadd.f32 %v3290, %v3367
      %v3408 = vadd.f32 %v3291, %v3369
      %v3409 = vadd.f32 %v3292, %v3371
      %v3410 = vadd.f32 %v3293, %v3373
      %v3411 = vadd.f32 %v3294, %v3375
      %v3412 = vadd.f32 %v3295, %v3377
      %v3413 = vadd.f32 %v3296, %v3379
      %v3414 = vadd.f32 %v3297, %v3381
      %v3415 = vadd.f32 %v3298, %v3383
      %v3416 = vmul.f32 %v3130, %v2108
      %v3417 = vmul.f32 %v3084, %v2110
      %v3418 = vmul.f32 %v3086, %v2112
      %v3419 = vmul.f32 %v3088, %v2114
      %v3420 = vmul.f32 %v3090, %v2116
      %v3421 = vmul.f32 %v3092, %v2118
      %v3422 = vmul.f32 %v3094, %v2120
      %v3423 = vmul.f32 %v3096, %v2122
      %v3424 = vmul.f32 %v3098, %v2124
      %v3425 = vmul.f32 %v3100, %v2126
      %v3426 = vmul.f32 %v3102, %v2128
      %v3427 = vmul.f32 %v3104, %v2130
      %v3428 = vmul.f32 %v3106, %v2132
      %v3429 = vmul.f32 %v3108, %v2134
      %v3430 = vmul.f32 %v3110, %v2136
      %v3431 = vmul.f32 %v3112, %v2138
      %v3432 = vmul.f32 %v3131, %v2137
      %v3433 = vperm.slane %v3132, 3
      %v3434 = vmul.f32 %v3416, %v3433
      %v3435 = vmul.f32 %v3417, %v3433
      %v3436 = vmul.f32 %v3418, %v3433
      %v3437 = vmul.f32 %v3419, %v3433
      %v3438 = vmul.f32 %v3420, %v3433
      %v3439 = vmul.f32 %v3421, %v3433
      %v3440 = vmul.f32 %v3422, %v3433
      %v3441 = vmul.f32 %v3423, %v3433
      %v3442 = vmul.f32 %v3424, %v3433
      %v3443 = vmul.f32 %v3425, %v3433
      %v3444 = vmul.f32 %v3426, %v3433
      %v3445 = vmul.f32 %v3427, %v3433
      %v3446 = vmul.f32 %v3428, %v3433
      %v3447 = vmul.f32 %v3429, %v3433
      %v3448 = vmul.f32 %v3430, %v3433
      %v3449 = vmul.f32 %v3431, %v3433
      %v3450 = vmul.f32 %v3432, %v3433
      %v3468 = vrot.slane %v3434, 3
      %v3469 = vrot.slane %v3435, 3
      %v3470 = vsel %vm2208, %v3468, %v3469
      %v3471 = vrot.slane %v3436, 3
      %v3472 = vsel %vm2208, %v3469, %v3471
      %v3473 = vrot.slane %v3437, 3
      %v3474 = vsel %vm2208, %v3471, %v3473
      %v3475 = vrot.slane %v3438, 3
      %v3476 = vsel %vm2208, %v3473, %v3475
      %v3477 = vrot.slane %v3439, 3
      %v3478 = vsel %vm2208, %v3475, %v3477
      %v3479 = vrot.slane %v3440, 3
      %v3480 = vsel %vm2208, %v3477, %v3479
      %v3481 = vrot.slane %v3441, 3
      %v3482 = vsel %vm2208, %v3479, %v3481
      %v3483 = vrot.slane %v3442, 3
      %v3484 = vsel %vm2208, %v3481, %v3483
      %v3485 = vrot.slane %v3443, 3
      %v3486 = vsel %vm2208, %v3483, %v3485
      %v3487 = vrot.slane %v3444, 3
      %v3488 = vsel %vm2208, %v3485, %v3487
      %v3489 = vrot.slane %v3445, 3
      %v3490 = vsel %vm2208, %v3487, %v3489
      %v3491 = vrot.slane %v3446, 3
      %v3492 = vsel %vm2208, %v3489, %v3491
      %v3493 = vrot.slane %v3447, 3
      %v3494 = vsel %vm2208, %v3491, %v3493
      %v3495 = vrot.slane %v3448, 3
      %v3496 = vsel %vm2208, %v3493, %v3495
      %v3497 = vrot.slane %v3449, 3
      %v3498 = vsel %vm2208, %v3495, %v3497
      %v3499 = vrot.slane %v3450, 3
      %v3500 = vsel %vm2208, %v3497, %v3499
      %v3517 = vadd.f32 %v3400, %v3470
      %v3518 = vadd.f32 %v3401, %v3472
      %v3519 = vadd.f32 %v3402, %v3474
      %v3520 = vadd.f32 %v3403, %v3476
      %v3521 = vadd.f32 %v3404, %v3478
      %v3522 = vadd.f32 %v3405, %v3480
      %v3523 = vadd.f32 %v3406, %v3482
      %v3524 = vadd.f32 %v3407, %v3484
      %v3525 = vadd.f32 %v3408, %v3486
      %v3526 = vadd.f32 %v3409, %v3488
      %v3527 = vadd.f32 %v3410, %v3490
      %v3528 = vadd.f32 %v3411, %v3492
      %v3529 = vadd.f32 %v3412, %v3494
      %v3530 = vadd.f32 %v3413, %v3496
      %v3531 = vadd.f32 %v3414, %v3498
      %v3532 = vadd.f32 %v3415, %v3500
      %v3533 = vmul.f32 %v3130, %v2356
      %v3534 = vmul.f32 %v3084, %v2358
      %v3535 = vmul.f32 %v3086, %v2360
      %v3536 = vmul.f32 %v3088, %v2362
      %v3537 = vmul.f32 %v3090, %v2364
      %v3538 = vmul.f32 %v3092, %v2366
      %v3539 = vmul.f32 %v3094, %v2368
      %v3540 = vmul.f32 %v3096, %v2370
      %v3541 = vmul.f32 %v3098, %v2372
      %v3542 = vmul.f32 %v3100, %v2374
      %v3543 = vmul.f32 %v3102, %v2376
      %v3544 = vmul.f32 %v3104, %v2378
      %v3545 = vmul.f32 %v3106, %v2380
      %v3546 = vmul.f32 %v3108, %v2382
      %v3547 = vmul.f32 %v3110, %v2384
      %v3548 = vmul.f32 %v3112, %v2386
      %v3549 = vmul.f32 %v3131, %v2385
      %v3550 = vperm.slane %v3132, 4
      %v3551 = vmul.f32 %v3533, %v3550
      %v3552 = vmul.f32 %v3534, %v3550
      %v3553 = vmul.f32 %v3535, %v3550
      %v3554 = vmul.f32 %v3536, %v3550
      %v3555 = vmul.f32 %v3537, %v3550
      %v3556 = vmul.f32 %v3538, %v3550
      %v3557 = vmul.f32 %v3539, %v3550
      %v3558 = vmul.f32 %v3540, %v3550
      %v3559 = vmul.f32 %v3541, %v3550
      %v3560 = vmul.f32 %v3542, %v3550
      %v3561 = vmul.f32 %v3543, %v3550
      %v3562 = vmul.f32 %v3544, %v3550
      %v3563 = vmul.f32 %v3545, %v3550
      %v3564 = vmul.f32 %v3546, %v3550
      %v3565 = vmul.f32 %v3547, %v3550
      %v3566 = vmul.f32 %v3548, %v3550
      %v3567 = vmul.f32 %v3549, %v3550
      %v3585 = vrot.slane %v3551, 4
      %v3586 = vrot.slane %v3552, 4
      %v3587 = vsel %vm2355, %v3585, %v3586
      %v3588 = vrot.slane %v3553, 4
      %v3589 = vsel %vm2355, %v3586, %v3588
      %v3590 = vrot.slane %v3554, 4
      %v3591 = vsel %vm2355, %v3588, %v3590
      %v3592 = vrot.slane %v3555, 4
      %v3593 = vsel %vm2355, %v3590, %v3592
      %v3594 = vrot.slane %v3556, 4
      %v3595 = vsel %vm2355, %v3592, %v3594
      %v3596 = vrot.slane %v3557, 4
      %v3597 = vsel %vm2355, %v3594, %v3596
      %v3598 = vrot.slane %v3558, 4
      %v3599 = vsel %vm2355, %v3596, %v3598
      %v3600 = vrot.slane %v3559, 4
      %v3601 = vsel %vm2355, %v3598, %v3600
      %v3602 = vrot.slane %v3560, 4
      %v3603 = vsel %vm2355, %v3600, %v3602
      %v3604 = vrot.slane %v3561, 4
      %v3605 = vsel %vm2355, %v3602, %v3604
      %v3606 = vrot.slane %v3562, 4
      %v3607 = vsel %vm2355, %v3604, %v3606
      %v3608 = vrot.slane %v3563, 4
      %v3609 = vsel %vm2355, %v3606, %v3608
      %v3610 = vrot.slane %v3564, 4
      %v3611 = vsel %vm2355, %v3608, %v3610
      %v3612 = vrot.slane %v3565, 4
      %v3613 = vsel %vm2355, %v3610, %v3612
      %v3614 = vrot.slane %v3566, 4
      %v3615 = vsel %vm2355, %v3612, %v3614
      %v3616 = vrot.slane %v3567, 4
      %v3617 = vsel %vm2355, %v3614, %v3616
      %v3634 = vadd.f32 %v3517, %v3587
      %v3635 = vadd.f32 %v3518, %v3589
      %v3636 = vadd.f32 %v3519, %v3591
      %v3637 = vadd.f32 %v3520, %v3593
      %v3638 = vadd.f32 %v3521, %v3595
      %v3639 = vadd.f32 %v3522, %v3597
      %v3640 = vadd.f32 %v3523, %v3599
      %v3641 = vadd.f32 %v3524, %v3601
      %v3642 = vadd.f32 %v3525, %v3603
      %v3643 = vadd.f32 %v3526, %v3605
      %v3644 = vadd.f32 %v3527, %v3607
      %v3645 = vadd.f32 %v3528, %v3609
      %v3646 = vadd.f32 %v3529, %v3611
      %v3647 = vadd.f32 %v3530, %v3613
      %v3648 = vadd.f32 %v3531, %v3615
      %v3649 = vadd.f32 %v3532, %v3617
      %v3650 = vld [vmem:[%s9] sm:$0x1]
      %v3652 = vperm.slane %v3650, 0
      %v3654 = vadd.f32 %v3634, %v3652
      %v3655 = vadd.f32 %v3635, %v3652
      %v3656 = vadd.f32 %v3636, %v3652
      %v3657 = vadd.f32 %v3637, %v3652
      %v3658 = vadd.f32 %v3638, %v3652
      %v3659 = vadd.f32 %v3639, %v3652
      %v3660 = vadd.f32 %v3640, %v3652
      %v3661 = vadd.f32 %v3641, %v3652
      %v3662 = vadd.f32 %v3642, %v3652
      %v3663 = vadd.f32 %v3643, %v3652
      %v3664 = vadd.f32 %v3644, %v3652
      %v3665 = vadd.f32 %v3645, %v3652
      %v3666 = vadd.f32 %v3646, %v3652
      %v3667 = vadd.f32 %v3647, %v3652
      %v3668 = vadd.f32 %v3648, %v3652
      %v3669 = vadd.f32 %v3649, %v3652
      %v3670 = vpack.c.bf16 %v3655, %v3654
      %v3671 = vpack.c.bf16 %v3657, %v3656
      %v3672 = vpack.c.bf16 %v3659, %v3658
      %v3673 = vpack.c.bf16 %v3661, %v3660
      %v3674 = vpack.c.bf16 %v3663, %v3662
      %v3675 = vpack.c.bf16 %v3665, %v3664
      %v3676 = vpack.c.bf16 %v3667, %v3666
      %v3677 = vpack.c.bf16 %v3669, %v3668
      %v3678 = vld [vmem:[%s10] sm:$0xf]
      %v3679 = vld [vmem:[%s10 + $0x4] sm:$0xf]
      %v3680 = vld [vmem:[%s10 + $0x8] sm:$0xf]
      %v3681 = vld [vmem:[%s10 + $0xc] sm:$0xf]
      %v3682 = vld [vmem:[%s11] sm:$0x1]
      %v3684 = vperm.slane %v3682, 0
      %v3690 = vunpack.c.l.b16 %v3678
      %v3691 = vunpack.c.l.b16 %v3679
      %v3692 = vunpack.c.l.b16 %v3680
      %v3693 = vunpack.c.l.b16 %v3681
      %v3694 = vpack.c.b16 %v3691, %v3690
      %v3695 = vpack.c.b16 %v3693, %v3692
      %v3699 = vsel %vm918, %v3670, 0
      %v3702 = vsel %vm918, %v3671, 0
      %v3705 = vsel %vm918, %v3672, 0
      %v3708 = vsel %vm918, %v3673, 0
      %v3711 = vsel %vm918, %v3674, 0
      %v3714 = vsel %vm918, %v3675, 0
      %v3717 = vsel %vm918, %v3676, 0
      %v3720 = vsel %vm918, %v3677, 0
      %3722 = vmatpush.bf16.msra.mxu0 0
      %3723 = vmatpush.bf16.msra.mxu0 0
      %3724 = vmatpush.bf16.msra.mxu0 0
      %3725 = vmatpush.bf16.msra.mxu0 0
      %3726 = vmatpush.bf16.msra.mxu0 0
      %3727 = vmatpush.bf16.msra.mxu0 0
      %3728 = vmatpush.bf16.msra.mxu0 %v3695
      %3729 = vmatpush.bf16.msra.mxu0 %v3694
      %3730 = vmatmul.bf16.gmra.mxu0 %v3699
      %v3731 = vpop.f32.mrf.mxu0
      %v3732 = vadd.f32 %v3684, %v3731
      %v3733 = vpop.f32.mrf.mxu0
      %v3734 = vadd.f32 %v3684, %v3733
      %3735 = vmatmul.bf16.gmra.mxu0 %v3702
      %v3736 = vpop.f32.mrf.mxu0
      %v3737 = vadd.f32 %v3684, %v3736
      %v3738 = vpop.f32.mrf.mxu0
      %v3739 = vadd.f32 %v3684, %v3738
      %3740 = vmatmul.bf16.gmra.mxu0 %v3705
      %v3741 = vpop.f32.mrf.mxu0
      %v3742 = vadd.f32 %v3684, %v3741
      %v3743 = vpop.f32.mrf.mxu0
      %v3744 = vadd.f32 %v3684, %v3743
      %3745 = vmatmul.bf16.gmra.mxu0 %v3708
      %v3746 = vpop.f32.mrf.mxu0
      %v3747 = vadd.f32 %v3684, %v3746
      %v3748 = vpop.f32.mrf.mxu0
      %v3749 = vadd.f32 %v3684, %v3748
      %3750 = vmatmul.bf16.gmra.mxu0 %v3711
      %v3751 = vpop.f32.mrf.mxu0
      %v3752 = vadd.f32 %v3684, %v3751
      %v3753 = vpop.f32.mrf.mxu0
      %v3754 = vadd.f32 %v3684, %v3753
      %3755 = vmatmul.bf16.gmra.mxu0 %v3714
      %v3756 = vpop.f32.mrf.mxu0
      %v3757 = vadd.f32 %v3684, %v3756
      %v3758 = vpop.f32.mrf.mxu0
      %v3759 = vadd.f32 %v3684, %v3758
      %3760 = vmatmul.bf16.gmra.mxu0 %v3717
      %v3761 = vpop.f32.mrf.mxu0
      %v3762 = vadd.f32 %v3684, %v3761
      %v3763 = vpop.f32.mrf.mxu0
      %v3764 = vadd.f32 %v3684, %v3763
      %3765 = vmatmul.bf16.gmra.mxu0 %v3720
      %v3766 = vpop.f32.mrf.mxu0
      %v3767 = vadd.f32 %v3684, %v3766
      %v3768 = vpop.f32.mrf.mxu0
      %v3769 = vadd.f32 %v3684, %v3768
      %3770 = vdwg.mxu0
      %v3771 = vmax.f32 %v3732, 0.0
      %v3772 = vmax.f32 %v3734, 0.0
      %v3773 = vmax.f32 %v3737, 0.0
      %v3774 = vmax.f32 %v3739, 0.0
      %v3775 = vmax.f32 %v3742, 0.0
      %v3776 = vmax.f32 %v3744, 0.0
      %v3777 = vmax.f32 %v3747, 0.0
      %v3778 = vmax.f32 %v3749, 0.0
      %v3779 = vmax.f32 %v3752, 0.0
      %v3780 = vmax.f32 %v3754, 0.0
      %v3781 = vmax.f32 %v3757, 0.0
      %v3782 = vmax.f32 %v3759, 0.0
      %v3783 = vmax.f32 %v3762, 0.0
      %v3784 = vmax.f32 %v3764, 0.0
      %v3785 = vmax.f32 %v3767, 0.0
      %v3786 = vmax.f32 %v3769, 0.0
      %v3787 = vadd.f32 %v3771, %v2658
      %v3788 = vadd.f32 %v3772, %v2659
      %v3789 = vadd.f32 %v3773, %v2660
      %v3790 = vadd.f32 %v3774, %v2661
      %v3791 = vadd.f32 %v3775, %v2662
      %v3792 = vadd.f32 %v3776, %v2663
      %v3793 = vadd.f32 %v3777, %v2664
      %v3794 = vadd.f32 %v3778, %v2665
      %v3795 = vadd.f32 %v3779, %v2666
      %v3796 = vadd.f32 %v3780, %v2667
      %v3797 = vadd.f32 %v3781, %v2668
      %v3798 = vadd.f32 %v3782, %v2669
      %v3799 = vadd.f32 %v3783, %v2670
      %v3800 = vadd.f32 %v3784, %v2671
      %v3801 = vadd.f32 %v3785, %v2672
      %v3802 = vadd.f32 %v3786, %v2673
      %v3803 = vsel %vm918, %v3787, 0.0
      %3804 = vadd.xlane.f32.xlu0 %v3803
      %v3805 = vpop.xlane.xlu0 %3804
      %v3806 = vsel %vm918, %v3788, 0.0
      %3807 = vadd.xlane.f32.xlu0 %v3806
      %v3808 = vpop.xlane.xlu0 %3807
      %v3809 = vsel %vm918, %v3789, 0.0
      %3810 = vadd.xlane.f32.xlu0 %v3809
      %v3811 = vpop.xlane.xlu0 %3810
      %v3812 = vsel %vm918, %v3790, 0.0
      %3813 = vadd.xlane.f32.xlu0 %v3812
      %v3814 = vpop.xlane.xlu0 %3813
      %v3815 = vsel %vm918, %v3791, 0.0
      %3816 = vadd.xlane.f32.xlu0 %v3815
      %v3817 = vpop.xlane.xlu0 %3816
      %v3818 = vsel %vm918, %v3792, 0.0
      %3819 = vadd.xlane.f32.xlu0 %v3818
      %v3820 = vpop.xlane.xlu0 %3819
      %v3821 = vsel %vm918, %v3793, 0.0
      %3822 = vadd.xlane.f32.xlu0 %v3821
      %v3823 = vpop.xlane.xlu0 %3822
      %v3824 = vsel %vm918, %v3794, 0.0
      %3825 = vadd.xlane.f32.xlu0 %v3824
      %v3826 = vpop.xlane.xlu0 %3825
      %v3827 = vsel %vm918, %v3795, 0.0
      %3828 = vadd.xlane.f32.xlu0 %v3827
      %v3829 = vpop.xlane.xlu0 %3828
      %v3830 = vsel %vm918, %v3796, 0.0
      %3831 = vadd.xlane.f32.xlu0 %v3830
      %v3832 = vpop.xlane.xlu0 %3831
      %v3833 = vsel %vm918, %v3797, 0.0
      %3834 = vadd.xlane.f32.xlu0 %v3833
      %v3835 = vpop.xlane.xlu0 %3834
      %v3836 = vsel %vm918, %v3798, 0.0
      %3837 = vadd.xlane.f32.xlu0 %v3836
      %v3838 = vpop.xlane.xlu0 %3837
      %v3839 = vsel %vm918, %v3799, 0.0
      %3840 = vadd.xlane.f32.xlu0 %v3839
      %v3841 = vpop.xlane.xlu0 %3840
      %v3842 = vsel %vm918, %v3800, 0.0
      %3843 = vadd.xlane.f32.xlu0 %v3842
      %v3844 = vpop.xlane.xlu0 %3843
      %v3845 = vsel %vm918, %v3801, 0.0
      %3846 = vadd.xlane.f32.xlu0 %v3845
      %v3847 = vpop.xlane.xlu0 %3846
      %v3848 = vsel %vm918, %v3802, 0.0
      %3849 = vadd.xlane.f32.xlu0 %v3848
      %v3850 = vpop.xlane.xlu0 %3849
      %v3851 = vmul.f32 %v3805, %v973
      %v3852 = vmul.f32 %v3808, %v973
      %v3853 = vmul.f32 %v3811, %v973
      %v3854 = vmul.f32 %v3814, %v973
      %v3855 = vmul.f32 %v3817, %v973
      %v3856 = vmul.f32 %v3820, %v973
      %v3857 = vmul.f32 %v3823, %v973
      %v3858 = vmul.f32 %v3826, %v973
      %v3859 = vmul.f32 %v3829, %v973
      %v3860 = vmul.f32 %v3832, %v973
      %v3861 = vmul.f32 %v3835, %v973
      %v3862 = vmul.f32 %v3838, %v973
      %v3863 = vmul.f32 %v3841, %v973
      %v3864 = vmul.f32 %v3844, %v973
      %v3865 = vmul.f32 %v3847, %v973
      %v3866 = vmul.f32 %v3850, %v973
      %v3867 = vsub.f32 %v3787, %v3851
      %v3868 = vsub.f32 %v3788, %v3852
      %v3869 = vsub.f32 %v3789, %v3853
      %v3870 = vsub.f32 %v3790, %v3854
      %v3871 = vsub.f32 %v3791, %v3855
      %v3872 = vsub.f32 %v3792, %v3856
      %v3873 = vsub.f32 %v3793, %v3857
      %v3874 = vsub.f32 %v3794, %v3858
      %v3875 = vsub.f32 %v3795, %v3859
      %v3876 = vsub.f32 %v3796, %v3860
      %v3877 = vsub.f32 %v3797, %v3861
      %v3878 = vsub.f32 %v3798, %v3862
      %v3879 = vsub.f32 %v3799, %v3863
      %v3880 = vsub.f32 %v3800, %v3864
      %v3881 = vsub.f32 %v3801, %v3865
      %v3882 = vsub.f32 %v3802, %v3866
      %v3883 = vmul.f32 %v3867, %v3867
      %v3884 = vmul.f32 %v3868, %v3868
      %v3885 = vmul.f32 %v3869, %v3869
      %v3886 = vmul.f32 %v3870, %v3870
      %v3887 = vmul.f32 %v3871, %v3871
      %v3888 = vmul.f32 %v3872, %v3872
      %v3889 = vmul.f32 %v3873, %v3873
      %v3890 = vmul.f32 %v3874, %v3874
      %v3891 = vmul.f32 %v3875, %v3875
      %v3892 = vmul.f32 %v3876, %v3876
      %v3893 = vmul.f32 %v3877, %v3877
      %v3894 = vmul.f32 %v3878, %v3878
      %v3895 = vmul.f32 %v3879, %v3879
      %v3896 = vmul.f32 %v3880, %v3880
      %v3897 = vmul.f32 %v3881, %v3881
      %v3898 = vmul.f32 %v3882, %v3882
      %v3899 = vsel %vm918, %v3883, 0.0
      %3900 = vadd.xlane.f32.xlu0 %v3899
      %v3901 = vpop.xlane.xlu0 %3900
      %v3902 = vsel %vm918, %v3884, 0.0
      %3903 = vadd.xlane.f32.xlu0 %v3902
      %v3904 = vpop.xlane.xlu0 %3903
      %v3905 = vsel %vm918, %v3885, 0.0
      %3906 = vadd.xlane.f32.xlu0 %v3905
      %v3907 = vpop.xlane.xlu0 %3906
      %v3908 = vsel %vm918, %v3886, 0.0
      %3909 = vadd.xlane.f32.xlu0 %v3908
      %v3910 = vpop.xlane.xlu0 %3909
      %v3911 = vsel %vm918, %v3887, 0.0
      %3912 = vadd.xlane.f32.xlu0 %v3911
      %v3913 = vpop.xlane.xlu0 %3912
      %v3914 = vsel %vm918, %v3888, 0.0
      %3915 = vadd.xlane.f32.xlu0 %v3914
      %v3916 = vpop.xlane.xlu0 %3915
      %v3917 = vsel %vm918, %v3889, 0.0
      %3918 = vadd.xlane.f32.xlu0 %v3917
      %v3919 = vpop.xlane.xlu0 %3918
      %v3920 = vsel %vm918, %v3890, 0.0
      %3921 = vadd.xlane.f32.xlu0 %v3920
      %v3922 = vpop.xlane.xlu0 %3921
      %v3923 = vsel %vm918, %v3891, 0.0
      %3924 = vadd.xlane.f32.xlu0 %v3923
      %v3925 = vpop.xlane.xlu0 %3924
      %v3926 = vsel %vm918, %v3892, 0.0
      %3927 = vadd.xlane.f32.xlu0 %v3926
      %v3928 = vpop.xlane.xlu0 %3927
      %v3929 = vsel %vm918, %v3893, 0.0
      %3930 = vadd.xlane.f32.xlu0 %v3929
      %v3931 = vpop.xlane.xlu0 %3930
      %v3932 = vsel %vm918, %v3894, 0.0
      %3933 = vadd.xlane.f32.xlu0 %v3932
      %v3934 = vpop.xlane.xlu0 %3933
      %v3935 = vsel %vm918, %v3895, 0.0
      %3936 = vadd.xlane.f32.xlu0 %v3935
      %v3937 = vpop.xlane.xlu0 %3936
      %v3938 = vsel %vm918, %v3896, 0.0
      %3939 = vadd.xlane.f32.xlu0 %v3938
      %v3940 = vpop.xlane.xlu0 %3939
      %v3941 = vsel %vm918, %v3897, 0.0
      %3942 = vadd.xlane.f32.xlu0 %v3941
      %v3943 = vpop.xlane.xlu0 %3942
      %v3944 = vsel %vm918, %v3898, 0.0
      %3945 = vadd.xlane.f32.xlu0 %v3944
      %v3946 = vpop.xlane.xlu0 %3945
      %v3947 = vmul.f32 %v3901, %v973
      %v3948 = vmul.f32 %v3904, %v973
      %v3949 = vmul.f32 %v3907, %v973
      %v3950 = vmul.f32 %v3910, %v973
      %v3951 = vmul.f32 %v3913, %v973
      %v3952 = vmul.f32 %v3916, %v973
      %v3953 = vmul.f32 %v3919, %v973
      %v3954 = vmul.f32 %v3922, %v973
      %v3955 = vmul.f32 %v3925, %v973
      %v3956 = vmul.f32 %v3928, %v973
      %v3957 = vmul.f32 %v3931, %v973
      %v3958 = vmul.f32 %v3934, %v973
      %v3959 = vmul.f32 %v3937, %v973
      %v3960 = vmul.f32 %v3940, %v973
      %v3961 = vmul.f32 %v3943, %v973
      %v3962 = vmul.f32 %v3946, %v973
      %v3963 = vadd.f32 %v3947, 1e-05
      %v3964 = vadd.f32 %v3948, 1e-05
      %v3965 = vadd.f32 %v3949, 1e-05
      %v3966 = vadd.f32 %v3950, 1e-05
      %v3967 = vadd.f32 %v3951, 1e-05
      %v3968 = vadd.f32 %v3952, 1e-05
      %v3969 = vadd.f32 %v3953, 1e-05
      %v3970 = vadd.f32 %v3954, 1e-05
      %v3971 = vadd.f32 %v3955, 1e-05
      %v3972 = vadd.f32 %v3956, 1e-05
      %v3973 = vadd.f32 %v3957, 1e-05
      %v3974 = vadd.f32 %v3958, 1e-05
      %v3975 = vadd.f32 %v3959, 1e-05
      %v3976 = vadd.f32 %v3960, 1e-05
      %v3977 = vadd.f32 %v3961, 1e-05
      %v3978 = vadd.f32 %v3962, 1e-05
      %v3979 = vrsqrt.pop %v3963
      %v3980 = vmul.f32 %v3979, %v3963
      %v3981 = vmul.f32 %v3980, %v3979
      %v3982 = vmul.f32 0.5, %v3981
      %v3983 = vsub.f32 1.5, %v3982
      %v3984 = vmul.f32 %v3979, %v3983
      %vm3985 = vweird.f32 %v3963
      %vm3986 = vweird.f32 %v3979
      %vm3987 = vmor %vm3985, %vm3986
      %v3988 = vsel %vm3987, %v3979, %v3984
      %v3989 = vrsqrt.pop %v3964
      %v3990 = vmul.f32 %v3989, %v3964
      %v3991 = vmul.f32 %v3990, %v3989
      %v3992 = vmul.f32 0.5, %v3991
      %v3993 = vsub.f32 1.5, %v3992
      %v3994 = vmul.f32 %v3989, %v3993
      %vm3995 = vweird.f32 %v3964
      %vm3996 = vweird.f32 %v3989
      %vm3997 = vmor %vm3995, %vm3996
      %v3998 = vsel %vm3997, %v3989, %v3994
      %v3999 = vrsqrt.pop %v3965
      %v4000 = vmul.f32 %v3999, %v3965
      %v4001 = vmul.f32 %v4000, %v3999
      %v4002 = vmul.f32 0.5, %v4001
      %v4003 = vsub.f32 1.5, %v4002
      %v4004 = vmul.f32 %v3999, %v4003
      %vm4005 = vweird.f32 %v3965
      %vm4006 = vweird.f32 %v3999
      %vm4007 = vmor %vm4005, %vm4006
      %v4008 = vsel %vm4007, %v3999, %v4004
      %v4009 = vrsqrt.pop %v3966
      %v4010 = vmul.f32 %v4009, %v3966
      %v4011 = vmul.f32 %v4010, %v4009
      %v4012 = vmul.f32 0.5, %v4011
      %v4013 = vsub.f32 1.5, %v4012
      %v4014 = vmul.f32 %v4009, %v4013
      %vm4015 = vweird.f32 %v3966
      %vm4016 = vweird.f32 %v4009
      %vm4017 = vmor %vm4015, %vm4016
      %v4018 = vsel %vm4017, %v4009, %v4014
      %v4019 = vrsqrt.pop %v3967
      %v4020 = vmul.f32 %v4019, %v3967
      %v4021 = vmul.f32 %v4020, %v4019
      %v4022 = vmul.f32 0.5, %v4021
      %v4023 = vsub.f32 1.5, %v4022
      %v4024 = vmul.f32 %v4019, %v4023
      %vm4025 = vweird.f32 %v3967
      %vm4026 = vweird.f32 %v4019
      %vm4027 = vmor %vm4025, %vm4026
      %v4028 = vsel %vm4027, %v4019, %v4024
      %v4029 = vrsqrt.pop %v3968
      %v4030 = vmul.f32 %v4029, %v3968
      %v4031 = vmul.f32 %v4030, %v4029
      %v4032 = vmul.f32 0.5, %v4031
      %v4033 = vsub.f32 1.5, %v4032
      %v4034 = vmul.f32 %v4029, %v4033
      %vm4035 = vweird.f32 %v3968
      %vm4036 = vweird.f32 %v4029
      %vm4037 = vmor %vm4035, %vm4036
      %v4038 = vsel %vm4037, %v4029, %v4034
      %v4039 = vrsqrt.pop %v3969
      %v4040 = vmul.f32 %v4039, %v3969
      %v4041 = vmul.f32 %v4040, %v4039
      %v4042 = vmul.f32 0.5, %v4041
      %v4043 = vsub.f32 1.5, %v4042
      %v4044 = vmul.f32 %v4039, %v4043
      %vm4045 = vweird.f32 %v3969
      %vm4046 = vweird.f32 %v4039
      %vm4047 = vmor %vm4045, %vm4046
      %v4048 = vsel %vm4047, %v4039, %v4044
      %v4049 = vrsqrt.pop %v3970
      %v4050 = vmul.f32 %v4049, %v3970
      %v4051 = vmul.f32 %v4050, %v4049
      %v4052 = vmul.f32 0.5, %v4051
      %v4053 = vsub.f32 1.5, %v4052
      %v4054 = vmul.f32 %v4049, %v4053
      %vm4055 = vweird.f32 %v3970
      %vm4056 = vweird.f32 %v4049
      %vm4057 = vmor %vm4055, %vm4056
      %v4058 = vsel %vm4057, %v4049, %v4054
      %v4059 = vrsqrt.pop %v3971
      %v4060 = vmul.f32 %v4059, %v3971
      %v4061 = vmul.f32 %v4060, %v4059
      %v4062 = vmul.f32 0.5, %v4061
      %v4063 = vsub.f32 1.5, %v4062
      %v4064 = vmul.f32 %v4059, %v4063
      %vm4065 = vweird.f32 %v3971
      %vm4066 = vweird.f32 %v4059
      %vm4067 = vmor %vm4065, %vm4066
      %v4068 = vsel %vm4067, %v4059, %v4064
      %v4069 = vrsqrt.pop %v3972
      %v4070 = vmul.f32 %v4069, %v3972
      %v4071 = vmul.f32 %v4070, %v4069
      %v4072 = vmul.f32 0.5, %v4071
      %v4073 = vsub.f32 1.5, %v4072
      %v4074 = vmul.f32 %v4069, %v4073
      %vm4075 = vweird.f32 %v3972
      %vm4076 = vweird.f32 %v4069
      %vm4077 = vmor %vm4075, %vm4076
      %v4078 = vsel %vm4077, %v4069, %v4074
      %v4079 = vrsqrt.pop %v3973
      %v4080 = vmul.f32 %v4079, %v3973
      %v4081 = vmul.f32 %v4080, %v4079
      %v4082 = vmul.f32 0.5, %v4081
      %v4083 = vsub.f32 1.5, %v4082
      %v4084 = vmul.f32 %v4079, %v4083
      %vm4085 = vweird.f32 %v3973
      %vm4086 = vweird.f32 %v4079
      %vm4087 = vmor %vm4085, %vm4086
      %v4088 = vsel %vm4087, %v4079, %v4084
      %v4089 = vrsqrt.pop %v3974
      %v4090 = vmul.f32 %v4089, %v3974
      %v4091 = vmul.f32 %v4090, %v4089
      %v4092 = vmul.f32 0.5, %v4091
      %v4093 = vsub.f32 1.5, %v4092
      %v4094 = vmul.f32 %v4089, %v4093
      %vm4095 = vweird.f32 %v3974
      %vm4096 = vweird.f32 %v4089
      %vm4097 = vmor %vm4095, %vm4096
      %v4098 = vsel %vm4097, %v4089, %v4094
      %v4099 = vrsqrt.pop %v3975
      %v4100 = vmul.f32 %v4099, %v3975
      %v4101 = vmul.f32 %v4100, %v4099
      %v4102 = vmul.f32 0.5, %v4101
      %v4103 = vsub.f32 1.5, %v4102
      %v4104 = vmul.f32 %v4099, %v4103
      %vm4105 = vweird.f32 %v3975
      %vm4106 = vweird.f32 %v4099
      %vm4107 = vmor %vm4105, %vm4106
      %v4108 = vsel %vm4107, %v4099, %v4104
      %v4109 = vrsqrt.pop %v3976
      %v4110 = vmul.f32 %v4109, %v3976
      %v4111 = vmul.f32 %v4110, %v4109
      %v4112 = vmul.f32 0.5, %v4111
      %v4113 = vsub.f32 1.5, %v4112
      %v4114 = vmul.f32 %v4109, %v4113
      %vm4115 = vweird.f32 %v3976
      %vm4116 = vweird.f32 %v4109
      %vm4117 = vmor %vm4115, %vm4116
      %v4118 = vsel %vm4117, %v4109, %v4114
      %v4119 = vrsqrt.pop %v3977
      %v4120 = vmul.f32 %v4119, %v3977
      %v4121 = vmul.f32 %v4120, %v4119
      %v4122 = vmul.f32 0.5, %v4121
      %v4123 = vsub.f32 1.5, %v4122
      %v4124 = vmul.f32 %v4119, %v4123
      %vm4125 = vweird.f32 %v3977
      %vm4126 = vweird.f32 %v4119
      %vm4127 = vmor %vm4125, %vm4126
      %v4128 = vsel %vm4127, %v4119, %v4124
      %v4129 = vrsqrt.pop %v3978
      %v4130 = vmul.f32 %v4129, %v3978
      %v4131 = vmul.f32 %v4130, %v4129
      %v4132 = vmul.f32 0.5, %v4131
      %v4133 = vsub.f32 1.5, %v4132
      %v4134 = vmul.f32 %v4129, %v4133
      %vm4135 = vweird.f32 %v3978
      %vm4136 = vweird.f32 %v4129
      %vm4137 = vmor %vm4135, %vm4136
      %v4138 = vsel %vm4137, %v4129, %v4134
      %v4139 = vmul.f32 %v3867, %v3988
      %v4140 = vmul.f32 %v3868, %v3998
      %v4141 = vmul.f32 %v3869, %v4008
      %v4142 = vmul.f32 %v3870, %v4018
      %v4143 = vmul.f32 %v3871, %v4028
      %v4144 = vmul.f32 %v3872, %v4038
      %v4145 = vmul.f32 %v3873, %v4048
      %v4146 = vmul.f32 %v3874, %v4058
      %v4147 = vmul.f32 %v3875, %v4068
      %v4148 = vmul.f32 %v3876, %v4078
      %v4149 = vmul.f32 %v3877, %v4088
      %v4150 = vmul.f32 %v3878, %v4098
      %v4151 = vmul.f32 %v3879, %v4108
      %v4152 = vmul.f32 %v3880, %v4118
      %v4153 = vmul.f32 %v3881, %v4128
      %v4154 = vmul.f32 %v3882, %v4138
      %v4155 = vld [vmem:[%s16] sm:$0x1]
      %v4157 = vperm.slane %v4155, 0
      %v4159 = vmul.f32 %v4139, %v4157
      %v4160 = vmul.f32 %v4140, %v4157
      %v4161 = vmul.f32 %v4141, %v4157
      %v4162 = vmul.f32 %v4142, %v4157
      %v4163 = vmul.f32 %v4143, %v4157
      %v4164 = vmul.f32 %v4144, %v4157
      %v4165 = vmul.f32 %v4145, %v4157
      %v4166 = vmul.f32 %v4146, %v4157
      %v4167 = vmul.f32 %v4147, %v4157
      %v4168 = vmul.f32 %v4148, %v4157
      %v4169 = vmul.f32 %v4149, %v4157
      %v4170 = vmul.f32 %v4150, %v4157
      %v4171 = vmul.f32 %v4151, %v4157
      %v4172 = vmul.f32 %v4152, %v4157
      %v4173 = vmul.f32 %v4153, %v4157
      %v4174 = vmul.f32 %v4154, %v4157
      %v4175 = vld [vmem:[%s17] sm:$0x1]
      %v4177 = vperm.slane %v4175, 0
      %v4179 = vadd.f32 %v4159, %v4177
      %v4180 = vadd.f32 %v4160, %v4177
      %v4181 = vadd.f32 %v4161, %v4177
      %v4182 = vadd.f32 %v4162, %v4177
      %v4183 = vadd.f32 %v4163, %v4177
      %v4184 = vadd.f32 %v4164, %v4177
      %v4185 = vadd.f32 %v4165, %v4177
      %v4186 = vadd.f32 %v4166, %v4177
      %v4187 = vadd.f32 %v4167, %v4177
      %v4188 = vadd.f32 %v4168, %v4177
      %v4189 = vadd.f32 %v4169, %v4177
      %v4190 = vadd.f32 %v4170, %v4177
      %v4191 = vadd.f32 %v4171, %v4177
      %v4192 = vadd.f32 %v4172, %v4177
      %v4193 = vadd.f32 %v4173, %v4177
      %v4194 = vadd.f32 %v4174, %v4177
      %v4195 = vpack.c.bf16 %v4179, %v4179
      %v4196 = vpack.c.bf16 %v4180, %v4180
      %v4197 = vpack.c.bf16 %v4181, %v4181
      %v4198 = vpack.c.bf16 %v4182, %v4182
      %v4199 = vpack.c.bf16 %v4183, %v4183
      %v4200 = vpack.c.bf16 %v4184, %v4184
      %v4201 = vpack.c.bf16 %v4185, %v4185
      %v4202 = vpack.c.bf16 %v4186, %v4186
      %v4203 = vpack.c.bf16 %v4187, %v4187
      %v4204 = vpack.c.bf16 %v4188, %v4188
      %v4205 = vpack.c.bf16 %v4189, %v4189
      %v4206 = vpack.c.bf16 %v4190, %v4190
      %v4207 = vpack.c.bf16 %v4191, %v4191
      %v4208 = vpack.c.bf16 %v4192, %v4192
      %v4209 = vpack.c.bf16 %v4193, %v4193
      %v4210 = vpack.c.bf16 %v4194, %v4194
      %v4211 = vld [vmem:[%s20] sm:$0xf]
      %v4212 = vld [vmem:[%s20 + $0x4] sm:$0xf]
      %v4213 = vld [vmem:[%s20 + $0x8] sm:$0xf]
      %v4214 = vld [vmem:[%s20 + $0xc] sm:$0xf]
      %v4215 = vld [vmem:[%s20 + $0x10] sm:$0xf]
      %v4216 = vld [vmem:[%s20 + $0x14] sm:$0xf]
      %v4217 = vld [vmem:[%s20 + $0x18] sm:$0xf]
      %v4218 = vld [vmem:[%s20 + $0x1c] sm:$0xf]
      %v4219 = vld [vmem:[%s20 + $0x20] sm:$0xf]
      %v4220 = vld [vmem:[%s20 + $0x24] sm:$0xf]
      %v4221 = vld [vmem:[%s20 + $0x28] sm:$0xf]
      %v4222 = vld [vmem:[%s20 + $0x2c] sm:$0xf]
      %v4223 = vld [vmem:[%s20 + $0x30] sm:$0xf]
      %v4224 = vld [vmem:[%s20 + $0x34] sm:$0xf]
      %v4225 = vld [vmem:[%s20 + $0x38] sm:$0xf]
      %v4226 = vld [vmem:[%s20 + $0x3c] sm:$0xf]
      %v4243 = vunpack.c.l.b16 %v4195
      %v4244 = vunpack.c.l.b16 %v4196
      %v4245 = vunpack.c.l.b16 %v4197
      %v4246 = vunpack.c.l.b16 %v4198
      %v4247 = vunpack.c.l.b16 %v4199
      %v4248 = vunpack.c.l.b16 %v4200
      %v4249 = vunpack.c.l.b16 %v4201
      %v4250 = vunpack.c.l.b16 %v4202
      %v4251 = vunpack.c.l.b16 %v4203
      %v4252 = vunpack.c.l.b16 %v4204
      %v4253 = vunpack.c.l.b16 %v4205
      %v4254 = vunpack.c.l.b16 %v4206
      %v4255 = vunpack.c.l.b16 %v4207
      %v4256 = vunpack.c.l.b16 %v4208
      %v4257 = vunpack.c.l.b16 %v4209
      %v4258 = vunpack.c.l.b16 %v4210
      %v4259 = vpack.c.b16 %v4244, %v4243
      %v4260 = vpack.c.b16 %v4246, %v4245
      %v4261 = vpack.c.b16 %v4248, %v4247
      %v4262 = vpack.c.b16 %v4250, %v4249
      %v4263 = vpack.c.b16 %v4252, %v4251
      %v4264 = vpack.c.b16 %v4254, %v4253
      %v4265 = vpack.c.b16 %v4256, %v4255
      %v4266 = vpack.c.b16 %v4258, %v4257
      %v4271 = vunpack.c.l.b16 %v4211
      %v4272 = vunpack.c.l.b16 %v4212
      %v4273 = vunpack.c.l.b16 %v4213
      %v4274 = vunpack.c.l.b16 %v4214
      %v4275 = vpack.c.b16 %v4272, %v4271
      %v4276 = vpack.c.b16 %v4274, %v4273
      %v4280 = vsel %vm918, %v4259, 0
      %v4283 = vsel %vm918, %v4260, 0
      %v4286 = vsel %vm918, %v4261, 0
      %v4289 = vsel %vm918, %v4262, 0
      %v4292 = vsel %vm918, %v4263, 0
      %v4295 = vsel %vm918, %v4264, 0
      %v4298 = vsel %vm918, %v4265, 0
      %v4301 = vsel %vm918, %v4266, 0
      %4303 = vmatpush.bf16.msra.mxu0 0
      %4304 = vmatpush.bf16.msra.mxu0 0
      %4305 = vmatpush.bf16.msra.mxu0 0
      %4306 = vmatpush.bf16.msra.mxu0 0
      %4307 = vmatpush.bf16.msra.mxu0 0
      %4308 = vmatpush.bf16.msra.mxu0 0
      %4309 = vmatpush.bf16.msra.mxu0 %v4276
      %4310 = vmatpush.bf16.msra.mxu0 %v4275
      %4311 = vmatmul.bf16.gmra.mxu0 %v4280
      %v4312 = vpop.f32.mrf.mxu0
      %v4313 = vadd.f32 0.0, %v4312
      %v4314 = vpop.f32.mrf.mxu0
      %v4315 = vadd.f32 0.0, %v4314
      %4316 = vmatmul.bf16.gmra.mxu0 %v4283
      %v4317 = vpop.f32.mrf.mxu0
      %v4318 = vadd.f32 0.0, %v4317
      %v4319 = vpop.f32.mrf.mxu0
      %v4320 = vadd.f32 0.0, %v4319
      %4321 = vmatmul.bf16.gmra.mxu0 %v4286
      %v4322 = vpop.f32.mrf.mxu0
      %v4323 = vadd.f32 0.0, %v4322
      %v4324 = vpop.f32.mrf.mxu0
      %v4325 = vadd.f32 0.0, %v4324
      %4326 = vmatmul.bf16.gmra.mxu0 %v4289
      %v4327 = vpop.f32.mrf.mxu0
      %v4328 = vadd.f32 0.0, %v4327
      %v4329 = vpop.f32.mrf.mxu0
      %v4330 = vadd.f32 0.0, %v4329
      %4331 = vmatmul.bf16.gmra.mxu0 %v4292
      %v4332 = vpop.f32.mrf.mxu0
      %v4333 = vadd.f32 0.0, %v4332
      %v4334 = vpop.f32.mrf.mxu0
      %v4335 = vadd.f32 0.0, %v4334
      %4336 = vmatmul.bf16.gmra.mxu0 %v4295
      %v4337 = vpop.f32.mrf.mxu0
      %v4338 = vadd.f32 0.0, %v4337
      %v4339 = vpop.f32.mrf.mxu0
      %v4340 = vadd.f32 0.0, %v4339
      %4341 = vmatmul.bf16.gmra.mxu0 %v4298
      %v4342 = vpop.f32.mrf.mxu0
      %v4343 = vadd.f32 0.0, %v4342
      %v4344 = vpop.f32.mrf.mxu0
      %v4345 = vadd.f32 0.0, %v4344
      %4346 = vmatmul.bf16.gmra.mxu0 %v4301
      %v4347 = vpop.f32.mrf.mxu0
      %v4348 = vadd.f32 0.0, %v4347
      %v4349 = vpop.f32.mrf.mxu0
      %v4350 = vadd.f32 0.0, %v4349
      %4351 = vdwg.mxu0
      %v4356 = vunpack.c.l.b16 %v4215
      %v4357 = vunpack.c.l.b16 %v4216
      %v4358 = vunpack.c.l.b16 %v4217
      %v4359 = vunpack.c.l.b16 %v4218
      %v4360 = vpack.c.b16 %v4357, %v4356
      %v4361 = vpack.c.b16 %v4359, %v4358
      %4364 = vmatpush.bf16.msra.mxu0 0
      %4365 = vmatpush.bf16.msra.mxu0 0
      %4366 = vmatpush.bf16.msra.mxu0 0
      %4367 = vmatpush.bf16.msra.mxu0 0
      %4368 = vmatpush.bf16.msra.mxu0 0
      %4369 = vmatpush.bf16.msra.mxu0 0
      %4370 = vmatpush.bf16.msra.mxu0 %v4361
      %4371 = vmatpush.bf16.msra.mxu0 %v4360
      %4372 = vmatmul.bf16.gmra.mxu0 %v4280
      %v4373 = vpop.f32.mrf.mxu0
      %v4374 = vadd.f32 0.0, %v4373
      %v4375 = vpop.f32.mrf.mxu0
      %v4376 = vadd.f32 0.0, %v4375
      %4377 = vmatmul.bf16.gmra.mxu0 %v4283
      %v4378 = vpop.f32.mrf.mxu0
      %v4379 = vadd.f32 0.0, %v4378
      %v4380 = vpop.f32.mrf.mxu0
      %v4381 = vadd.f32 0.0, %v4380
      %4382 = vmatmul.bf16.gmra.mxu0 %v4286
      %v4383 = vpop.f32.mrf.mxu0
      %v4384 = vadd.f32 0.0, %v4383
      %v4385 = vpop.f32.mrf.mxu0
      %v4386 = vadd.f32 0.0, %v4385
      %4387 = vmatmul.bf16.gmra.mxu0 %v4289
      %v4388 = vpop.f32.mrf.mxu0
      %v4389 = vadd.f32 0.0, %v4388
      %v4390 = vpop.f32.mrf.mxu0
      %v4391 = vadd.f32 0.0, %v4390
      %4392 = vmatmul.bf16.gmra.mxu0 %v4292
      %v4393 = vpop.f32.mrf.mxu0
      %v4394 = vadd.f32 0.0, %v4393
      %v4395 = vpop.f32.mrf.mxu0
      %v4396 = vadd.f32 0.0, %v4395
      %4397 = vmatmul.bf16.gmra.mxu0 %v4295
      %v4398 = vpop.f32.mrf.mxu0
      %v4399 = vadd.f32 0.0, %v4398
      %v4400 = vpop.f32.mrf.mxu0
      %v4401 = vadd.f32 0.0, %v4400
      %4402 = vmatmul.bf16.gmra.mxu0 %v4298
      %v4403 = vpop.f32.mrf.mxu0
      %v4404 = vadd.f32 0.0, %v4403
      %v4405 = vpop.f32.mrf.mxu0
      %v4406 = vadd.f32 0.0, %v4405
      %4407 = vmatmul.bf16.gmra.mxu0 %v4301
      %v4408 = vpop.f32.mrf.mxu0
      %v4409 = vadd.f32 0.0, %v4408
      %v4410 = vpop.f32.mrf.mxu0
      %v4411 = vadd.f32 0.0, %v4410
      %4412 = vdwg.mxu0
      %v4417 = vunpack.c.l.b16 %v4219
      %v4418 = vunpack.c.l.b16 %v4220
      %v4419 = vunpack.c.l.b16 %v4221
      %v4420 = vunpack.c.l.b16 %v4222
      %v4421 = vpack.c.b16 %v4418, %v4417
      %v4422 = vpack.c.b16 %v4420, %v4419
      %4425 = vmatpush.bf16.msra.mxu0 0
      %4426 = vmatpush.bf16.msra.mxu0 0
      %4427 = vmatpush.bf16.msra.mxu0 0
      %4428 = vmatpush.bf16.msra.mxu0 0
      %4429 = vmatpush.bf16.msra.mxu0 0
      %4430 = vmatpush.bf16.msra.mxu0 0
      %4431 = vmatpush.bf16.msra.mxu0 %v4422
      %4432 = vmatpush.bf16.msra.mxu0 %v4421
      %4433 = vmatmul.bf16.gmra.mxu0 %v4280
      %v4434 = vpop.f32.mrf.mxu0
      %v4435 = vadd.f32 0.0, %v4434
      %v4436 = vpop.f32.mrf.mxu0
      %v4437 = vadd.f32 0.0, %v4436
      %4438 = vmatmul.bf16.gmra.mxu0 %v4283
      %v4439 = vpop.f32.mrf.mxu0
      %v4440 = vadd.f32 0.0, %v4439
      %v4441 = vpop.f32.mrf.mxu0
      %v4442 = vadd.f32 0.0, %v4441
      %4443 = vmatmul.bf16.gmra.mxu0 %v4286
      %v4444 = vpop.f32.mrf.mxu0
      %v4445 = vadd.f32 0.0, %v4444
      %v4446 = vpop.f32.mrf.mxu0
      %v4447 = vadd.f32 0.0, %v4446
      %4448 = vmatmul.bf16.gmra.mxu0 %v4289
      %v4449 = vpop.f32.mrf.mxu0
      %v4450 = vadd.f32 0.0, %v4449
      %v4451 = vpop.f32.mrf.mxu0
      %v4452 = vadd.f32 0.0, %v4451
      %4453 = vmatmul.bf16.gmra.mxu0 %v4292
      %v4454 = vpop.f32.mrf.mxu0
      %v4455 = vadd.f32 0.0, %v4454
      %v4456 = vpop.f32.mrf.mxu0
      %v4457 = vadd.f32 0.0, %v4456
      %4458 = vmatmul.bf16.gmra.mxu0 %v4295
      %v4459 = vpop.f32.mrf.mxu0
      %v4460 = vadd.f32 0.0, %v4459
      %v4461 = vpop.f32.mrf.mxu0
      %v4462 = vadd.f32 0.0, %v4461
      %4463 = vmatmul.bf16.gmra.mxu0 %v4298
      %v4464 = vpop.f32.mrf.mxu0
      %v4465 = vadd.f32 0.0, %v4464
      %v4466 = vpop.f32.mrf.mxu0
      %v4467 = vadd.f32 0.0, %v4466
      %4468 = vmatmul.bf16.gmra.mxu0 %v4301
      %v4469 = vpop.f32.mrf.mxu0
      %v4470 = vadd.f32 0.0, %v4469
      %v4471 = vpop.f32.mrf.mxu0
      %v4472 = vadd.f32 0.0, %v4471
      %4473 = vdwg.mxu0
      %v4478 = vunpack.c.l.b16 %v4223
      %v4479 = vunpack.c.l.b16 %v4224
      %v4480 = vunpack.c.l.b16 %v4225
      %v4481 = vunpack.c.l.b16 %v4226
      %v4482 = vpack.c.b16 %v4479, %v4478
      %v4483 = vpack.c.b16 %v4481, %v4480
      %4486 = vmatpush.bf16.msra.mxu0 0
      %4487 = vmatpush.bf16.msra.mxu0 0
      %4488 = vmatpush.bf16.msra.mxu0 0
      %4489 = vmatpush.bf16.msra.mxu0 0
      %4490 = vmatpush.bf16.msra.mxu0 0
      %4491 = vmatpush.bf16.msra.mxu0 0
      %4492 = vmatpush.bf16.msra.mxu0 %v4483
      %4493 = vmatpush.bf16.msra.mxu0 %v4482
      %4494 = vmatmul.bf16.gmra.mxu0 %v4280
      %v4495 = vpop.f32.mrf.mxu0
      %v4496 = vadd.f32 0.0, %v4495
      %v4497 = vpop.f32.mrf.mxu0
      %v4498 = vadd.f32 0.0, %v4497
      %4499 = vmatmul.bf16.gmra.mxu0 %v4283
      %v4500 = vpop.f32.mrf.mxu0
      %v4501 = vadd.f32 0.0, %v4500
      %v4502 = vpop.f32.mrf.mxu0
      %v4503 = vadd.f32 0.0, %v4502
      %4504 = vmatmul.bf16.gmra.mxu0 %v4286
      %v4505 = vpop.f32.mrf.mxu0
      %v4506 = vadd.f32 0.0, %v4505
      %v4507 = vpop.f32.mrf.mxu0
      %v4508 = vadd.f32 0.0, %v4507
      %4509 = vmatmul.bf16.gmra.mxu0 %v4289
      %v4510 = vpop.f32.mrf.mxu0
      %v4511 = vadd.f32 0.0, %v4510
      %v4512 = vpop.f32.mrf.mxu0
      %v4513 = vadd.f32 0.0, %v4512
      %4514 = vmatmul.bf16.gmra.mxu0 %v4292
      %v4515 = vpop.f32.mrf.mxu0
      %v4516 = vadd.f32 0.0, %v4515
      %v4517 = vpop.f32.mrf.mxu0
      %v4518 = vadd.f32 0.0, %v4517
      %4519 = vmatmul.bf16.gmra.mxu0 %v4295
      %v4520 = vpop.f32.mrf.mxu0
      %v4521 = vadd.f32 0.0, %v4520
      %v4522 = vpop.f32.mrf.mxu0
      %v4523 = vadd.f32 0.0, %v4522
      %4524 = vmatmul.bf16.gmra.mxu0 %v4298
      %v4525 = vpop.f32.mrf.mxu0
      %v4526 = vadd.f32 0.0, %v4525
      %v4527 = vpop.f32.mrf.mxu0
      %v4528 = vadd.f32 0.0, %v4527
      %4529 = vmatmul.bf16.gmra.mxu0 %v4301
      %v4530 = vpop.f32.mrf.mxu0
      %v4531 = vadd.f32 0.0, %v4530
      %v4532 = vpop.f32.mrf.mxu0
      %v4533 = vadd.f32 0.0, %v4532
      %4534 = vdwg.mxu0
      %v4535 = vpack.c.bf16 %v4313, %v4313
      %v4536 = vpack.c.bf16 %v4315, %v4315
      %v4537 = vpack.c.bf16 %v4318, %v4318
      %v4538 = vpack.c.bf16 %v4320, %v4320
      %v4539 = vpack.c.bf16 %v4323, %v4323
      %v4540 = vpack.c.bf16 %v4325, %v4325
      %v4541 = vpack.c.bf16 %v4328, %v4328
      %v4542 = vpack.c.bf16 %v4330, %v4330
      %v4543 = vpack.c.bf16 %v4333, %v4333
      %v4544 = vpack.c.bf16 %v4335, %v4335
      %v4545 = vpack.c.bf16 %v4338, %v4338
      %v4546 = vpack.c.bf16 %v4340, %v4340
      %v4547 = vpack.c.bf16 %v4343, %v4343
      %v4548 = vpack.c.bf16 %v4345, %v4345
      %v4549 = vpack.c.bf16 %v4348, %v4348
      %v4550 = vpack.c.bf16 %v4350, %v4350
      %v4551 = vpack.c.bf16 %v4374, %v4374
      %v4552 = vpack.c.bf16 %v4376, %v4376
      %v4553 = vpack.c.bf16 %v4379, %v4379
      %v4554 = vpack.c.bf16 %v4381, %v4381
      %v4555 = vpack.c.bf16 %v4384, %v4384
      %v4556 = vpack.c.bf16 %v4386, %v4386
      %v4557 = vpack.c.bf16 %v4389, %v4389
      %v4558 = vpack.c.bf16 %v4391, %v4391
      %v4559 = vpack.c.bf16 %v4394, %v4394
      %v4560 = vpack.c.bf16 %v4396, %v4396
      %v4561 = vpack.c.bf16 %v4399, %v4399
      %v4562 = vpack.c.bf16 %v4401, %v4401
      %v4563 = vpack.c.bf16 %v4404, %v4404
      %v4564 = vpack.c.bf16 %v4406, %v4406
      %v4565 = vpack.c.bf16 %v4409, %v4409
      %v4566 = vpack.c.bf16 %v4411, %v4411
      %v4567 = vpack.c.bf16 %v4435, %v4435
      %v4568 = vpack.c.bf16 %v4437, %v4437
      %v4569 = vpack.c.bf16 %v4440, %v4440
      %v4570 = vpack.c.bf16 %v4442, %v4442
      %v4571 = vpack.c.bf16 %v4445, %v4445
      %v4572 = vpack.c.bf16 %v4447, %v4447
      %v4573 = vpack.c.bf16 %v4450, %v4450
      %v4574 = vpack.c.bf16 %v4452, %v4452
      %v4575 = vpack.c.bf16 %v4455, %v4455
      %v4576 = vpack.c.bf16 %v4457, %v4457
      %v4577 = vpack.c.bf16 %v4460, %v4460
      %v4578 = vpack.c.bf16 %v4462, %v4462
      %v4579 = vpack.c.bf16 %v4465, %v4465
      %v4580 = vpack.c.bf16 %v4467, %v4467
      %v4581 = vpack.c.bf16 %v4470, %v4470
      %v4582 = vpack.c.bf16 %v4472, %v4472
      %v4583 = vpack.c.bf16 %v4496, %v4496
      %v4584 = vpack.c.bf16 %v4498, %v4498
      %v4585 = vpack.c.bf16 %v4501, %v4501
      %v4586 = vpack.c.bf16 %v4503, %v4503
      %v4587 = vpack.c.bf16 %v4506, %v4506
      %v4588 = vpack.c.bf16 %v4508, %v4508
      %v4589 = vpack.c.bf16 %v4511, %v4511
      %v4590 = vpack.c.bf16 %v4513, %v4513
      %v4591 = vpack.c.bf16 %v4516, %v4516
      %v4592 = vpack.c.bf16 %v4518, %v4518
      %v4593 = vpack.c.bf16 %v4521, %v4521
      %v4594 = vpack.c.bf16 %v4523, %v4523
      %v4595 = vpack.c.bf16 %v4526, %v4526
      %v4596 = vpack.c.bf16 %v4528, %v4528
      %v4597 = vpack.c.bf16 %v4531, %v4531
      %v4598 = vpack.c.bf16 %v4533, %v4533
      %v4599 = vld [vmem:[%s21] sm:$0xf]
      %v4600 = vld [vmem:[%s21 + $0x4] sm:$0xf]
      %v4601 = vld [vmem:[%s21 + $0x8] sm:$0xf]
      %v4602 = vld [vmem:[%s21 + $0xc] sm:$0xf]
      %v4603 = vld [vmem:[%s21 + $0x10] sm:$0xf]
      %v4604 = vld [vmem:[%s21 + $0x14] sm:$0xf]
      %v4605 = vld [vmem:[%s21 + $0x18] sm:$0xf]
      %v4606 = vld [vmem:[%s21 + $0x1c] sm:$0xf]
      %v4607 = vld [vmem:[%s21 + $0x20] sm:$0xf]
      %v4608 = vld [vmem:[%s21 + $0x24] sm:$0xf]
      %v4609 = vld [vmem:[%s21 + $0x28] sm:$0xf]
      %v4610 = vld [vmem:[%s21 + $0x2c] sm:$0xf]
      %v4611 = vld [vmem:[%s21 + $0x30] sm:$0xf]
      %v4612 = vld [vmem:[%s21 + $0x34] sm:$0xf]
      %v4613 = vld [vmem:[%s21 + $0x38] sm:$0xf]
      %v4614 = vld [vmem:[%s21 + $0x3c] sm:$0xf]
      %v4619 = vunpack.c.l.b16 %v4599
      %v4620 = vunpack.c.l.b16 %v4600
      %v4621 = vunpack.c.l.b16 %v4601
      %v4622 = vunpack.c.l.b16 %v4602
      %v4623 = vpack.c.b16 %v4620, %v4619
      %v4624 = vpack.c.b16 %v4622, %v4621
      %4627 = vmatpush.bf16.msra.mxu0 0
      %4628 = vmatpush.bf16.msra.mxu0 0
      %4629 = vmatpush.bf16.msra.mxu0 0
      %4630 = vmatpush.bf16.msra.mxu0 0
      %4631 = vmatpush.bf16.msra.mxu0 0
      %4632 = vmatpush.bf16.msra.mxu0 0
      %4633 = vmatpush.bf16.msra.mxu0 %v4624
      %4634 = vmatpush.bf16.msra.mxu0 %v4623
      %4635 = vmatmul.bf16.gmra.mxu0 %v4280
      %v4636 = vpop.f32.mrf.mxu0
      %v4637 = vadd.f32 0.0, %v4636
      %v4638 = vpop.f32.mrf.mxu0
      %v4639 = vadd.f32 0.0, %v4638
      %4640 = vmatmul.bf16.gmra.mxu0 %v4283
      %v4641 = vpop.f32.mrf.mxu0
      %v4642 = vadd.f32 0.0, %v4641
      %v4643 = vpop.f32.mrf.mxu0
      %v4644 = vadd.f32 0.0, %v4643
      %4645 = vmatmul.bf16.gmra.mxu0 %v4286
      %v4646 = vpop.f32.mrf.mxu0
      %v4647 = vadd.f32 0.0, %v4646
      %v4648 = vpop.f32.mrf.mxu0
      %v4649 = vadd.f32 0.0, %v4648
      %4650 = vmatmul.bf16.gmra.mxu0 %v4289
      %v4651 = vpop.f32.mrf.mxu0
      %v4652 = vadd.f32 0.0, %v4651
      %v4653 = vpop.f32.mrf.mxu0
      %v4654 = vadd.f32 0.0, %v4653
      %4655 = vmatmul.bf16.gmra.mxu0 %v4292
      %v4656 = vpop.f32.mrf.mxu0
      %v4657 = vadd.f32 0.0, %v4656
      %v4658 = vpop.f32.mrf.mxu0
      %v4659 = vadd.f32 0.0, %v4658
      %4660 = vmatmul.bf16.gmra.mxu0 %v4295
      %v4661 = vpop.f32.mrf.mxu0
      %v4662 = vadd.f32 0.0, %v4661
      %v4663 = vpop.f32.mrf.mxu0
      %v4664 = vadd.f32 0.0, %v4663
      %4665 = vmatmul.bf16.gmra.mxu0 %v4298
      %v4666 = vpop.f32.mrf.mxu0
      %v4667 = vadd.f32 0.0, %v4666
      %v4668 = vpop.f32.mrf.mxu0
      %v4669 = vadd.f32 0.0, %v4668
      %4670 = vmatmul.bf16.gmra.mxu0 %v4301
      %v4671 = vpop.f32.mrf.mxu0
      %v4672 = vadd.f32 0.0, %v4671
      %v4673 = vpop.f32.mrf.mxu0
      %v4674 = vadd.f32 0.0, %v4673
      %4675 = vdwg.mxu0
      %v4680 = vunpack.c.l.b16 %v4603
      %v4681 = vunpack.c.l.b16 %v4604
      %v4682 = vunpack.c.l.b16 %v4605
      %v4683 = vunpack.c.l.b16 %v4606
      %v4684 = vpack.c.b16 %v4681, %v4680
      %v4685 = vpack.c.b16 %v4683, %v4682
      %4688 = vmatpush.bf16.msra.mxu0 0
      %4689 = vmatpush.bf16.msra.mxu0 0
      %4690 = vmatpush.bf16.msra.mxu0 0
      %4691 = vmatpush.bf16.msra.mxu0 0
      %4692 = vmatpush.bf16.msra.mxu0 0
      %4693 = vmatpush.bf16.msra.mxu0 0
      %4694 = vmatpush.bf16.msra.mxu0 %v4685
      %4695 = vmatpush.bf16.msra.mxu0 %v4684
      %4696 = vmatmul.bf16.gmra.mxu0 %v4280
      %v4697 = vpop.f32.mrf.mxu0
      %v4698 = vadd.f32 0.0, %v4697
      %v4699 = vpop.f32.mrf.mxu0
      %v4700 = vadd.f32 0.0, %v4699
      %4701 = vmatmul.bf16.gmra.mxu0 %v4283
      %v4702 = vpop.f32.mrf.mxu0
      %v4703 = vadd.f32 0.0, %v4702
      %v4704 = vpop.f32.mrf.mxu0
      %v4705 = vadd.f32 0.0, %v4704
      %4706 = vmatmul.bf16.gmra.mxu0 %v4286
      %v4707 = vpop.f32.mrf.mxu0
      %v4708 = vadd.f32 0.0, %v4707
      %v4709 = vpop.f32.mrf.mxu0
      %v4710 = vadd.f32 0.0, %v4709
      %4711 = vmatmul.bf16.gmra.mxu0 %v4289
      %v4712 = vpop.f32.mrf.mxu0
      %v4713 = vadd.f32 0.0, %v4712
      %v4714 = vpop.f32.mrf.mxu0
      %v4715 = vadd.f32 0.0, %v4714
      %4716 = vmatmul.bf16.gmra.mxu0 %v4292
      %v4717 = vpop.f32.mrf.mxu0
      %v4718 = vadd.f32 0.0, %v4717
      %v4719 = vpop.f32.mrf.mxu0
      %v4720 = vadd.f32 0.0, %v4719
      %4721 = vmatmul.bf16.gmra.mxu0 %v4295
      %v4722 = vpop.f32.mrf.mxu0
      %v4723 = vadd.f32 0.0, %v4722
      %v4724 = vpop.f32.mrf.mxu0
      %v4725 = vadd.f32 0.0, %v4724
      %4726 = vmatmul.bf16.gmra.mxu0 %v4298
      %v4727 = vpop.f32.mrf.mxu0
      %v4728 = vadd.f32 0.0, %v4727
      %v4729 = vpop.f32.mrf.mxu0
      %v4730 = vadd.f32 0.0, %v4729
      %4731 = vmatmul.bf16.gmra.mxu0 %v4301
      %v4732 = vpop.f32.mrf.mxu0
      %v4733 = vadd.f32 0.0, %v4732
      %v4734 = vpop.f32.mrf.mxu0
      %v4735 = vadd.f32 0.0, %v4734
      %4736 = vdwg.mxu0
      %v4741 = vunpack.c.l.b16 %v4607
      %v4742 = vunpack.c.l.b16 %v4608
      %v4743 = vunpack.c.l.b16 %v4609
      %v4744 = vunpack.c.l.b16 %v4610
      %v4745 = vpack.c.b16 %v4742, %v4741
      %v4746 = vpack.c.b16 %v4744, %v4743
      %4749 = vmatpush.bf16.msra.mxu0 0
      %4750 = vmatpush.bf16.msra.mxu0 0
      %4751 = vmatpush.bf16.msra.mxu0 0
      %4752 = vmatpush.bf16.msra.mxu0 0
      %4753 = vmatpush.bf16.msra.mxu0 0
      %4754 = vmatpush.bf16.msra.mxu0 0
      %4755 = vmatpush.bf16.msra.mxu0 %v4746
      %4756 = vmatpush.bf16.msra.mxu0 %v4745
      %4757 = vmatmul.bf16.gmra.mxu0 %v4280
      %v4758 = vpop.f32.mrf.mxu0
      %v4759 = vadd.f32 0.0, %v4758
      %v4760 = vpop.f32.mrf.mxu0
      %v4761 = vadd.f32 0.0, %v4760
      %4762 = vmatmul.bf16.gmra.mxu0 %v4283
      %v4763 = vpop.f32.mrf.mxu0
      %v4764 = vadd.f32 0.0, %v4763
      %v4765 = vpop.f32.mrf.mxu0
      %v4766 = vadd.f32 0.0, %v4765
      %4767 = vmatmul.bf16.gmra.mxu0 %v4286
      %v4768 = vpop.f32.mrf.mxu0
      %v4769 = vadd.f32 0.0, %v4768
      %v4770 = vpop.f32.mrf.mxu0
      %v4771 = vadd.f32 0.0, %v4770
      %4772 = vmatmul.bf16.gmra.mxu0 %v4289
      %v4773 = vpop.f32.mrf.mxu0
      %v4774 = vadd.f32 0.0, %v4773
      %v4775 = vpop.f32.mrf.mxu0
      %v4776 = vadd.f32 0.0, %v4775
      %4777 = vmatmul.bf16.gmra.mxu0 %v4292
      %v4778 = vpop.f32.mrf.mxu0
      %v4779 = vadd.f32 0.0, %v4778
      %v4780 = vpop.f32.mrf.mxu0
      %v4781 = vadd.f32 0.0, %v4780
      %4782 = vmatmul.bf16.gmra.mxu0 %v4295
      %v4783 = vpop.f32.mrf.mxu0
      %v4784 = vadd.f32 0.0, %v4783
      %v4785 = vpop.f32.mrf.mxu0
      %v4786 = vadd.f32 0.0, %v4785
      %4787 = vmatmul.bf16.gmra.mxu0 %v4298
      %v4788 = vpop.f32.mrf.mxu0
      %v4789 = vadd.f32 0.0, %v4788
      %v4790 = vpop.f32.mrf.mxu0
      %v4791 = vadd.f32 0.0, %v4790
      %4792 = vmatmul.bf16.gmra.mxu0 %v4301
      %v4793 = vpop.f32.mrf.mxu0
      %v4794 = vadd.f32 0.0, %v4793
      %v4795 = vpop.f32.mrf.mxu0
      %v4796 = vadd.f32 0.0, %v4795
      %4797 = vdwg.mxu0
      %v4802 = vunpack.c.l.b16 %v4611
      %v4803 = vunpack.c.l.b16 %v4612
      %v4804 = vunpack.c.l.b16 %v4613
      %v4805 = vunpack.c.l.b16 %v4614
      %v4806 = vpack.c.b16 %v4803, %v4802
      %v4807 = vpack.c.b16 %v4805, %v4804
      %4810 = vmatpush.bf16.msra.mxu0 0
      %4811 = vmatpush.bf16.msra.mxu0 0
      %4812 = vmatpush.bf16.msra.mxu0 0
      %4813 = vmatpush.bf16.msra.mxu0 0
      %4814 = vmatpush.bf16.msra.mxu0 0
      %4815 = vmatpush.bf16.msra.mxu0 0
      %4816 = vmatpush.bf16.msra.mxu0 %v4807
      %4817 = vmatpush.bf16.msra.mxu0 %v4806
      %4818 = vmatmul.bf16.gmra.mxu0 %v4280
      %v4819 = vpop.f32.mrf.mxu0
      %v4820 = vadd.f32 0.0, %v4819
      %v4821 = vpop.f32.mrf.mxu0
      %v4822 = vadd.f32 0.0, %v4821
      %4823 = vmatmul.bf16.gmra.mxu0 %v4283
      %v4824 = vpop.f32.mrf.mxu0
      %v4825 = vadd.f32 0.0, %v4824
      %v4826 = vpop.f32.mrf.mxu0
      %v4827 = vadd.f32 0.0, %v4826
      %4828 = vmatmul.bf16.gmra.mxu0 %v4286
      %v4829 = vpop.f32.mrf.mxu0
      %v4830 = vadd.f32 0.0, %v4829
      %v4831 = vpop.f32.mrf.mxu0
      %v4832 = vadd.f32 0.0, %v4831
      %4833 = vmatmul.bf16.gmra.mxu0 %v4289
      %v4834 = vpop.f32.mrf.mxu0
      %v4835 = vadd.f32 0.0, %v4834
      %v4836 = vpop.f32.mrf.mxu0
      %v4837 = vadd.f32 0.0, %v4836
      %4838 = vmatmul.bf16.gmra.mxu0 %v4292
      %v4839 = vpop.f32.mrf.mxu0
      %v4840 = vadd.f32 0.0, %v4839
      %v4841 = vpop.f32.mrf.mxu0
      %v4842 = vadd.f32 0.0, %v4841
      %4843 = vmatmul.bf16.gmra.mxu0 %v4295
      %v4844 = vpop.f32.mrf.mxu0
      %v4845 = vadd.f32 0.0, %v4844
      %v4846 = vpop.f32.mrf.mxu0
      %v4847 = vadd.f32 0.0, %v4846
      %4848 = vmatmul.bf16.gmra.mxu0 %v4298
      %v4849 = vpop.f32.mrf.mxu0
      %v4850 = vadd.f32 0.0, %v4849
      %v4851 = vpop.f32.mrf.mxu0
      %v4852 = vadd.f32 0.0, %v4851
      %4853 = vmatmul.bf16.gmra.mxu0 %v4301
      %v4854 = vpop.f32.mrf.mxu0
      %v4855 = vadd.f32 0.0, %v4854
      %v4856 = vpop.f32.mrf.mxu0
      %v4857 = vadd.f32 0.0, %v4856
      %4858 = vdwg.mxu0
      %v4859 = vpack.c.bf16 %v4637, %v4637
      %v4860 = vpack.c.bf16 %v4639, %v4639
      %v4861 = vpack.c.bf16 %v4642, %v4642
      %v4862 = vpack.c.bf16 %v4644, %v4644
      %v4863 = vpack.c.bf16 %v4647, %v4647
      %v4864 = vpack.c.bf16 %v4649, %v4649
      %v4865 = vpack.c.bf16 %v4652, %v4652
      %v4866 = vpack.c.bf16 %v4654, %v4654
      %v4867 = vpack.c.bf16 %v4657, %v4657
      %v4868 = vpack.c.bf16 %v4659, %v4659
      %v4869 = vpack.c.bf16 %v4662, %v4662
      %v4870 = vpack.c.bf16 %v4664, %v4664
      %v4871 = vpack.c.bf16 %v4667, %v4667
      %v4872 = vpack.c.bf16 %v4669, %v4669
      %v4873 = vpack.c.bf16 %v4672, %v4672
      %v4874 = vpack.c.bf16 %v4674, %v4674
      %v4875 = vpack.c.bf16 %v4698, %v4698
      %v4876 = vpack.c.bf16 %v4700, %v4700
      %v4877 = vpack.c.bf16 %v4703, %v4703
      %v4878 = vpack.c.bf16 %v4705, %v4705
      %v4879 = vpack.c.bf16 %v4708, %v4708
      %v4880 = vpack.c.bf16 %v4710, %v4710
      %v4881 = vpack.c.bf16 %v4713, %v4713
      %v4882 = vpack.c.bf16 %v4715, %v4715
      %v4883 = vpack.c.bf16 %v4718, %v4718
      %v4884 = vpack.c.bf16 %v4720, %v4720
      %v4885 = vpack.c.bf16 %v4723, %v4723
      %v4886 = vpack.c.bf16 %v4725, %v4725
      %v4887 = vpack.c.bf16 %v4728, %v4728
      %v4888 = vpack.c.bf16 %v4730, %v4730
      %v4889 = vpack.c.bf16 %v4733, %v4733
      %v4890 = vpack.c.bf16 %v4735, %v4735
      %v4891 = vpack.c.bf16 %v4759, %v4759
      %v4892 = vpack.c.bf16 %v4761, %v4761
      %v4893 = vpack.c.bf16 %v4764, %v4764
      %v4894 = vpack.c.bf16 %v4766, %v4766
      %v4895 = vpack.c.bf16 %v4769, %v4769
      %v4896 = vpack.c.bf16 %v4771, %v4771
      %v4897 = vpack.c.bf16 %v4774, %v4774
      %v4898 = vpack.c.bf16 %v4776, %v4776
      %v4899 = vpack.c.bf16 %v4779, %v4779
      %v4900 = vpack.c.bf16 %v4781, %v4781
      %v4901 = vpack.c.bf16 %v4784, %v4784
      %v4902 = vpack.c.bf16 %v4786, %v4786
      %v4903 = vpack.c.bf16 %v4789, %v4789
      %v4904 = vpack.c.bf16 %v4791, %v4791
      %v4905 = vpack.c.bf16 %v4794, %v4794
      %v4906 = vpack.c.bf16 %v4796, %v4796
      %v4907 = vpack.c.bf16 %v4820, %v4820
      %v4908 = vpack.c.bf16 %v4822, %v4822
      %v4909 = vpack.c.bf16 %v4825, %v4825
      %v4910 = vpack.c.bf16 %v4827, %v4827
      %v4911 = vpack.c.bf16 %v4830, %v4830
      %v4912 = vpack.c.bf16 %v4832, %v4832
      %v4913 = vpack.c.bf16 %v4835, %v4835
      %v4914 = vpack.c.bf16 %v4837, %v4837
      %v4915 = vpack.c.bf16 %v4840, %v4840
      %v4916 = vpack.c.bf16 %v4842, %v4842
      %v4917 = vpack.c.bf16 %v4845, %v4845
      %v4918 = vpack.c.bf16 %v4847, %v4847
      %v4919 = vpack.c.bf16 %v4850, %v4850
      %v4920 = vpack.c.bf16 %v4852, %v4852
      %v4921 = vpack.c.bf16 %v4855, %v4855
      %v4922 = vpack.c.bf16 %v4857, %v4857
      %v4923 = vld [vmem:[%s22] sm:$0xf]
      %v4924 = vld [vmem:[%s22 + $0x4] sm:$0xf]
      %v4925 = vld [vmem:[%s22 + $0x8] sm:$0xf]
      %v4926 = vld [vmem:[%s22 + $0xc] sm:$0xf]
      %v4927 = vld [vmem:[%s22 + $0x10] sm:$0xf]
      %v4928 = vld [vmem:[%s22 + $0x14] sm:$0xf]
      %v4929 = vld [vmem:[%s22 + $0x18] sm:$0xf]
      %v4930 = vld [vmem:[%s22 + $0x1c] sm:$0xf]
      %v4931 = vld [vmem:[%s22 + $0x20] sm:$0xf]
      %v4932 = vld [vmem:[%s22 + $0x24] sm:$0xf]
      %v4933 = vld [vmem:[%s22 + $0x28] sm:$0xf]
      %v4934 = vld [vmem:[%s22 + $0x2c] sm:$0xf]
      %v4935 = vld [vmem:[%s22 + $0x30] sm:$0xf]
      %v4936 = vld [vmem:[%s22 + $0x34] sm:$0xf]
      %v4937 = vld [vmem:[%s22 + $0x38] sm:$0xf]
      %v4938 = vld [vmem:[%s22 + $0x3c] sm:$0xf]
      %v4943 = vunpack.c.l.b16 %v4923
      %v4944 = vunpack.c.l.b16 %v4924
      %v4945 = vunpack.c.l.b16 %v4925
      %v4946 = vunpack.c.l.b16 %v4926
      %v4947 = vpack.c.b16 %v4944, %v4943
      %v4948 = vpack.c.b16 %v4946, %v4945
      %4951 = vmatpush.bf16.msra.mxu0 0
      %4952 = vmatpush.bf16.msra.mxu0 0
      %4953 = vmatpush.bf16.msra.mxu0 0
      %4954 = vmatpush.bf16.msra.mxu0 0
      %4955 = vmatpush.bf16.msra.mxu0 0
      %4956 = vmatpush.bf16.msra.mxu0 0
      %4957 = vmatpush.bf16.msra.mxu0 %v4948
      %4958 = vmatpush.bf16.msra.mxu0 %v4947
      %4959 = vmatmul.bf16.gmra.mxu0 %v4280
      %v4960 = vpop.f32.mrf.mxu0
      %v4961 = vadd.f32 0.0, %v4960
      %v4962 = vpop.f32.mrf.mxu0
      %v4963 = vadd.f32 0.0, %v4962
      %4964 = vmatmul.bf16.gmra.mxu0 %v4283
      %v4965 = vpop.f32.mrf.mxu0
      %v4966 = vadd.f32 0.0, %v4965
      %v4967 = vpop.f32.mrf.mxu0
      %v4968 = vadd.f32 0.0, %v4967
      %4969 = vmatmul.bf16.gmra.mxu0 %v4286
      %v4970 = vpop.f32.mrf.mxu0
      %v4971 = vadd.f32 0.0, %v4970
      %v4972 = vpop.f32.mrf.mxu0
      %v4973 = vadd.f32 0.0, %v4972
      %4974 = vmatmul.bf16.gmra.mxu0 %v4289
      %v4975 = vpop.f32.mrf.mxu0
      %v4976 = vadd.f32 0.0, %v4975
      %v4977 = vpop.f32.mrf.mxu0
      %v4978 = vadd.f32 0.0, %v4977
      %4979 = vmatmul.bf16.gmra.mxu0 %v4292
      %v4980 = vpop.f32.mrf.mxu0
      %v4981 = vadd.f32 0.0, %v4980
      %v4982 = vpop.f32.mrf.mxu0
      %v4983 = vadd.f32 0.0, %v4982
      %4984 = vmatmul.bf16.gmra.mxu0 %v4295
      %v4985 = vpop.f32.mrf.mxu0
      %v4986 = vadd.f32 0.0, %v4985
      %v4987 = vpop.f32.mrf.mxu0
      %v4988 = vadd.f32 0.0, %v4987
      %4989 = vmatmul.bf16.gmra.mxu0 %v4298
      %v4990 = vpop.f32.mrf.mxu0
      %v4991 = vadd.f32 0.0, %v4990
      %v4992 = vpop.f32.mrf.mxu0
      %v4993 = vadd.f32 0.0, %v4992
      %4994 = vmatmul.bf16.gmra.mxu0 %v4301
      %v4995 = vpop.f32.mrf.mxu0
      %v4996 = vadd.f32 0.0, %v4995
      %v4997 = vpop.f32.mrf.mxu0
      %v4998 = vadd.f32 0.0, %v4997
      %4999 = vdwg.mxu0
      %v5004 = vunpack.c.l.b16 %v4927
      %v5005 = vunpack.c.l.b16 %v4928
      %v5006 = vunpack.c.l.b16 %v4929
      %v5007 = vunpack.c.l.b16 %v4930
      %v5008 = vpack.c.b16 %v5005, %v5004
      %v5009 = vpack.c.b16 %v5007, %v5006
      %5012 = vmatpush.bf16.msra.mxu0 0
      %5013 = vmatpush.bf16.msra.mxu0 0
      %5014 = vmatpush.bf16.msra.mxu0 0
      %5015 = vmatpush.bf16.msra.mxu0 0
      %5016 = vmatpush.bf16.msra.mxu0 0
      %5017 = vmatpush.bf16.msra.mxu0 0
      %5018 = vmatpush.bf16.msra.mxu0 %v5009
      %5019 = vmatpush.bf16.msra.mxu0 %v5008
      %5020 = vmatmul.bf16.gmra.mxu0 %v4280
      %v5021 = vpop.f32.mrf.mxu0
      %v5022 = vadd.f32 0.0, %v5021
      %v5023 = vpop.f32.mrf.mxu0
      %v5024 = vadd.f32 0.0, %v5023
      %5025 = vmatmul.bf16.gmra.mxu0 %v4283
      %v5026 = vpop.f32.mrf.mxu0
      %v5027 = vadd.f32 0.0, %v5026
      %v5028 = vpop.f32.mrf.mxu0
      %v5029 = vadd.f32 0.0, %v5028
      %5030 = vmatmul.bf16.gmra.mxu0 %v4286
      %v5031 = vpop.f32.mrf.mxu0
      %v5032 = vadd.f32 0.0, %v5031
      %v5033 = vpop.f32.mrf.mxu0
      %v5034 = vadd.f32 0.0, %v5033
      %5035 = vmatmul.bf16.gmra.mxu0 %v4289
      %v5036 = vpop.f32.mrf.mxu0
      %v5037 = vadd.f32 0.0, %v5036
      %v5038 = vpop.f32.mrf.mxu0
      %v5039 = vadd.f32 0.0, %v5038
      %5040 = vmatmul.bf16.gmra.mxu0 %v4292
      %v5041 = vpop.f32.mrf.mxu0
      %v5042 = vadd.f32 0.0, %v5041
      %v5043 = vpop.f32.mrf.mxu0
      %v5044 = vadd.f32 0.0, %v5043
      %5045 = vmatmul.bf16.gmra.mxu0 %v4295
      %v5046 = vpop.f32.mrf.mxu0
      %v5047 = vadd.f32 0.0, %v5046
      %v5048 = vpop.f32.mrf.mxu0
      %v5049 = vadd.f32 0.0, %v5048
      %5050 = vmatmul.bf16.gmra.mxu0 %v4298
      %v5051 = vpop.f32.mrf.mxu0
      %v5052 = vadd.f32 0.0, %v5051
      %v5053 = vpop.f32.mrf.mxu0
      %v5054 = vadd.f32 0.0, %v5053
      %5055 = vmatmul.bf16.gmra.mxu0 %v4301
      %v5056 = vpop.f32.mrf.mxu0
      %v5057 = vadd.f32 0.0, %v5056
      %v5058 = vpop.f32.mrf.mxu0
      %v5059 = vadd.f32 0.0, %v5058
      %5060 = vdwg.mxu0
      %v5065 = vunpack.c.l.b16 %v4931
      %v5066 = vunpack.c.l.b16 %v4932
      %v5067 = vunpack.c.l.b16 %v4933
      %v5068 = vunpack.c.l.b16 %v4934
      %v5069 = vpack.c.b16 %v5066, %v5065
      %v5070 = vpack.c.b16 %v5068, %v5067
      %5073 = vmatpush.bf16.msra.mxu0 0
      %5074 = vmatpush.bf16.msra.mxu0 0
      %5075 = vmatpush.bf16.msra.mxu0 0
      %5076 = vmatpush.bf16.msra.mxu0 0
      %5077 = vmatpush.bf16.msra.mxu0 0
      %5078 = vmatpush.bf16.msra.mxu0 0
      %5079 = vmatpush.bf16.msra.mxu0 %v5070
      %5080 = vmatpush.bf16.msra.mxu0 %v5069
      %5081 = vmatmul.bf16.gmra.mxu0 %v4280
      %v5082 = vpop.f32.mrf.mxu0
      %v5083 = vadd.f32 0.0, %v5082
      %v5084 = vpop.f32.mrf.mxu0
      %v5085 = vadd.f32 0.0, %v5084
      %5086 = vmatmul.bf16.gmra.mxu0 %v4283
      %v5087 = vpop.f32.mrf.mxu0
      %v5088 = vadd.f32 0.0, %v5087
      %v5089 = vpop.f32.mrf.mxu0
      %v5090 = vadd.f32 0.0, %v5089
      %5091 = vmatmul.bf16.gmra.mxu0 %v4286
      %v5092 = vpop.f32.mrf.mxu0
      %v5093 = vadd.f32 0.0, %v5092
      %v5094 = vpop.f32.mrf.mxu0
      %v5095 = vadd.f32 0.0, %v5094
      %5096 = vmatmul.bf16.gmra.mxu0 %v4289
      %v5097 = vpop.f32.mrf.mxu0
      %v5098 = vadd.f32 0.0, %v5097
      %v5099 = vpop.f32.mrf.mxu0
      %v5100 = vadd.f32 0.0, %v5099
      %5101 = vmatmul.bf16.gmra.mxu0 %v4292
      %v5102 = vpop.f32.mrf.mxu0
      %v5103 = vadd.f32 0.0, %v5102
      %v5104 = vpop.f32.mrf.mxu0
      %v5105 = vadd.f32 0.0, %v5104
      %5106 = vmatmul.bf16.gmra.mxu0 %v4295
      %v5107 = vpop.f32.mrf.mxu0
      %v5108 = vadd.f32 0.0, %v5107
      %v5109 = vpop.f32.mrf.mxu0
      %v5110 = vadd.f32 0.0, %v5109
      %5111 = vmatmul.bf16.gmra.mxu0 %v4298
      %v5112 = vpop.f32.mrf.mxu0
      %v5113 = vadd.f32 0.0, %v5112
      %v5114 = vpop.f32.mrf.mxu0
      %v5115 = vadd.f32 0.0, %v5114
      %5116 = vmatmul.bf16.gmra.mxu0 %v4301
      %v5117 = vpop.f32.mrf.mxu0
      %v5118 = vadd.f32 0.0, %v5117
      %v5119 = vpop.f32.mrf.mxu0
      %v5120 = vadd.f32 0.0, %v5119
      %5121 = vdwg.mxu0
      %v5126 = vunpack.c.l.b16 %v4935
      %v5127 = vunpack.c.l.b16 %v4936
      %v5128 = vunpack.c.l.b16 %v4937
      %v5129 = vunpack.c.l.b16 %v4938
      %v5130 = vpack.c.b16 %v5127, %v5126
      %v5131 = vpack.c.b16 %v5129, %v5128
      %5134 = vmatpush.bf16.msra.mxu0 0
      %5135 = vmatpush.bf16.msra.mxu0 0
      %5136 = vmatpush.bf16.msra.mxu0 0
      %5137 = vmatpush.bf16.msra.mxu0 0
      %5138 = vmatpush.bf16.msra.mxu0 0
      %5139 = vmatpush.bf16.msra.mxu0 0
      %5140 = vmatpush.bf16.msra.mxu0 %v5131
      %5141 = vmatpush.bf16.msra.mxu0 %v5130
      %5142 = vmatmul.bf16.gmra.mxu0 %v4280
      %v5143 = vpop.f32.mrf.mxu0
      %v5144 = vadd.f32 0.0, %v5143
      %v5145 = vpop.f32.mrf.mxu0
      %v5146 = vadd.f32 0.0, %v5145
      %5147 = vmatmul.bf16.gmra.mxu0 %v4283
      %v5148 = vpop.f32.mrf.mxu0
      %v5149 = vadd.f32 0.0, %v5148
      %v5150 = vpop.f32.mrf.mxu0
      %v5151 = vadd.f32 0.0, %v5150
      %5152 = vmatmul.bf16.gmra.mxu0 %v4286
      %v5153 = vpop.f32.mrf.mxu0
      %v5154 = vadd.f32 0.0, %v5153
      %v5155 = vpop.f32.mrf.mxu0
      %v5156 = vadd.f32 0.0, %v5155
      %5157 = vmatmul.bf16.gmra.mxu0 %v4289
      %v5158 = vpop.f32.mrf.mxu0
      %v5159 = vadd.f32 0.0, %v5158
      %v5160 = vpop.f32.mrf.mxu0
      %v5161 = vadd.f32 0.0, %v5160
      %5162 = vmatmul.bf16.gmra.mxu0 %v4292
      %v5163 = vpop.f32.mrf.mxu0
      %v5164 = vadd.f32 0.0, %v5163
      %v5165 = vpop.f32.mrf.mxu0
      %v5166 = vadd.f32 0.0, %v5165
      %5167 = vmatmul.bf16.gmra.mxu0 %v4295
      %v5168 = vpop.f32.mrf.mxu0
      %v5169 = vadd.f32 0.0, %v5168
      %v5170 = vpop.f32.mrf.mxu0
      %v5171 = vadd.f32 0.0, %v5170
      %5172 = vmatmul.bf16.gmra.mxu0 %v4298
      %v5173 = vpop.f32.mrf.mxu0
      %v5174 = vadd.f32 0.0, %v5173
      %v5175 = vpop.f32.mrf.mxu0
      %v5176 = vadd.f32 0.0, %v5175
      %5177 = vmatmul.bf16.gmra.mxu0 %v4301
      %v5178 = vpop.f32.mrf.mxu0
      %v5179 = vadd.f32 0.0, %v5178
      %v5180 = vpop.f32.mrf.mxu0
      %v5181 = vadd.f32 0.0, %v5180
      %5182 = vdwg.mxu0
      %v5183 = vpack.c.bf16 %v4961, %v4961
      %v5184 = vpack.c.bf16 %v4963, %v4963
      %v5185 = vpack.c.bf16 %v4966, %v4966
      %v5186 = vpack.c.bf16 %v4968, %v4968
      %v5187 = vpack.c.bf16 %v4971, %v4971
      %v5188 = vpack.c.bf16 %v4973, %v4973
      %v5189 = vpack.c.bf16 %v4976, %v4976
      %v5190 = vpack.c.bf16 %v4978, %v4978
      %v5191 = vpack.c.bf16 %v4981, %v4981
      %v5192 = vpack.c.bf16 %v4983, %v4983
      %v5193 = vpack.c.bf16 %v4986, %v4986
      %v5194 = vpack.c.bf16 %v4988, %v4988
      %v5195 = vpack.c.bf16 %v4991, %v4991
      %v5196 = vpack.c.bf16 %v4993, %v4993
      %v5197 = vpack.c.bf16 %v4996, %v4996
      %v5198 = vpack.c.bf16 %v4998, %v4998
      %v5199 = vpack.c.bf16 %v5022, %v5022
      %v5200 = vpack.c.bf16 %v5024, %v5024
      %v5201 = vpack.c.bf16 %v5027, %v5027
      %v5202 = vpack.c.bf16 %v5029, %v5029
      %v5203 = vpack.c.bf16 %v5032, %v5032
      %v5204 = vpack.c.bf16 %v5034, %v5034
      %v5205 = vpack.c.bf16 %v5037, %v5037
      %v5206 = vpack.c.bf16 %v5039, %v5039
      %v5207 = vpack.c.bf16 %v5042, %v5042
      %v5208 = vpack.c.bf16 %v5044, %v5044
      %v5209 = vpack.c.bf16 %v5047, %v5047
      %v5210 = vpack.c.bf16 %v5049, %v5049
      %v5211 = vpack.c.bf16 %v5052, %v5052
      %v5212 = vpack.c.bf16 %v5054, %v5054
      %v5213 = vpack.c.bf16 %v5057, %v5057
      %v5214 = vpack.c.bf16 %v5059, %v5059
      %v5215 = vpack.c.bf16 %v5083, %v5083
      %v5216 = vpack.c.bf16 %v5085, %v5085
      %v5217 = vpack.c.bf16 %v5088, %v5088
      %v5218 = vpack.c.bf16 %v5090, %v5090
      %v5219 = vpack.c.bf16 %v5093, %v5093
      %v5220 = vpack.c.bf16 %v5095, %v5095
      %v5221 = vpack.c.bf16 %v5098, %v5098
      %v5222 = vpack.c.bf16 %v5100, %v5100
      %v5223 = vpack.c.bf16 %v5103, %v5103
      %v5224 = vpack.c.bf16 %v5105, %v5105
      %v5225 = vpack.c.bf16 %v5108, %v5108
      %v5226 = vpack.c.bf16 %v5110, %v5110
      %v5227 = vpack.c.bf16 %v5113, %v5113
      %v5228 = vpack.c.bf16 %v5115, %v5115
      %v5229 = vpack.c.bf16 %v5118, %v5118
      %v5230 = vpack.c.bf16 %v5120, %v5120
      %v5231 = vpack.c.bf16 %v5144, %v5144
      %v5232 = vpack.c.bf16 %v5146, %v5146
      %v5233 = vpack.c.bf16 %v5149, %v5149
      %v5234 = vpack.c.bf16 %v5151, %v5151
      %v5235 = vpack.c.bf16 %v5154, %v5154
      %v5236 = vpack.c.bf16 %v5156, %v5156
      %v5237 = vpack.c.bf16 %v5159, %v5159
      %v5238 = vpack.c.bf16 %v5161, %v5161
      %v5239 = vpack.c.bf16 %v5164, %v5164
      %v5240 = vpack.c.bf16 %v5166, %v5166
      %v5241 = vpack.c.bf16 %v5169, %v5169
      %v5242 = vpack.c.bf16 %v5171, %v5171
      %v5243 = vpack.c.bf16 %v5174, %v5174
      %v5244 = vpack.c.bf16 %v5176, %v5176
      %v5245 = vpack.c.bf16 %v5179, %v5179
      %v5246 = vpack.c.bf16 %v5181, %v5181
      %v5247 = vld [vmem:[%s862] sm:$0xff]
      %v5248 = vld [vmem:[%s862 + $0x8] sm:$0xff]
      %v5249 = vld [vmem:[%s862 + $0x10] sm:$0xff]
      %v5250 = vld [vmem:[%s862 + $0x18] sm:$0xff]
      %v5251 = vld [vmem:[%s862 + $0x20] sm:$0xff]
      %v5252 = vld [vmem:[%s862 + $0x28] sm:$0xff]
      %v5253 = vld [vmem:[%s862 + $0x30] sm:$0xff]
      %v5254 = vld [vmem:[%s862 + $0x38] sm:$0xff]
      %v5255 = vld [vmem:[%s862 + $0x40] sm:$0xff]
      %v5256 = vld [vmem:[%s862 + $0x48] sm:$0xff]
      %v5257 = vld [vmem:[%s862 + $0x50] sm:$0xff]
      %v5258 = vld [vmem:[%s862 + $0x58] sm:$0xff]
      %v5259 = vld [vmem:[%s862 + $0x60] sm:$0xff]
      %v5260 = vld [vmem:[%s862 + $0x68] sm:$0xff]
      %v5261 = vld [vmem:[%s862 + $0x70] sm:$0xff]
      %v5262 = vld [vmem:[%s862 + $0x78] sm:$0xff]
      %v5279 = vunpack.c.l.b16 %v4535
      %v5280 = vunpack.c.l.b16 %v4536
      %v5281 = vunpack.c.l.b16 %v4537
      %v5282 = vunpack.c.l.b16 %v4538
      %v5283 = vunpack.c.l.b16 %v4539
      %v5284 = vunpack.c.l.b16 %v4540
      %v5285 = vunpack.c.l.b16 %v4541
      %v5286 = vunpack.c.l.b16 %v4542
      %v5287 = vunpack.c.l.b16 %v4543
      %v5288 = vunpack.c.l.b16 %v4544
      %v5289 = vunpack.c.l.b16 %v4545
      %v5290 = vunpack.c.l.b16 %v4546
      %v5291 = vunpack.c.l.b16 %v4547
      %v5292 = vunpack.c.l.b16 %v4548
      %v5293 = vunpack.c.l.b16 %v4549
      %v5294 = vunpack.c.l.b16 %v4550
      %v5295 = vpack.c.b16 %v5280, %v5279
      %v5296 = vpack.c.b16 %v5282, %v5281
      %v5297 = vpack.c.b16 %v5284, %v5283
      %v5298 = vpack.c.b16 %v5286, %v5285
      %v5299 = vpack.c.b16 %v5288, %v5287
      %v5300 = vpack.c.b16 %v5290, %v5289
      %v5301 = vpack.c.b16 %v5292, %v5291
      %v5302 = vpack.c.b16 %v5294, %v5293
      %v5319 = vunpack.c.l.b16 %v4859
      %v5320 = vunpack.c.l.b16 %v4860
      %v5321 = vunpack.c.l.b16 %v4861
      %v5322 = vunpack.c.l.b16 %v4862
      %v5323 = vunpack.c.l.b16 %v4863
      %v5324 = vunpack.c.l.b16 %v4864
      %v5325 = vunpack.c.l.b16 %v4865
      %v5326 = vunpack.c.l.b16 %v4866
      %v5327 = vunpack.c.l.b16 %v4867
      %v5328 = vunpack.c.l.b16 %v4868
      %v5329 = vunpack.c.l.b16 %v4869
      %v5330 = vunpack.c.l.b16 %v4870
      %v5331 = vunpack.c.l.b16 %v4871
      %v5332 = vunpack.c.l.b16 %v4872
      %v5333 = vunpack.c.l.b16 %v4873
      %v5334 = vunpack.c.l.b16 %v4874
      %v5335 = vpack.c.b16 %v5320, %v5319
      %v5336 = vpack.c.b16 %v5322, %v5321
      %v5337 = vpack.c.b16 %v5324, %v5323
      %v5338 = vpack.c.b16 %v5326, %v5325
      %v5339 = vpack.c.b16 %v5328, %v5327
      %v5340 = vpack.c.b16 %v5330, %v5329
      %v5341 = vpack.c.b16 %v5332, %v5331
      %v5342 = vpack.c.b16 %v5334, %v5333
      %vm5343 = vcmask 64512
      %v5345 = vsel %vm5343, %v5295, 0
      %v5348 = vsel %vm5343, %v5296, 0
      %v5351 = vsel %vm5343, %v5297, 0
      %v5354 = vsel %vm5343, %v5298, 0
      %v5357 = vsel %vm5343, %v5299, 0
      %v5360 = vsel %vm5343, %v5300, 0
      %v5363 = vsel %vm5343, %v5301, 0
      %v5366 = vsel %vm5343, %v5302, 0
      %v5369 = vsel %vm5343, %v5335, 0
      %v5372 = vsel %vm5343, %v5336, 0
      %v5375 = vsel %vm5343, %v5337, 0
      %v5378 = vsel %vm5343, %v5338, 0
      %v5381 = vsel %vm5343, %v5339, 0
      %v5384 = vsel %vm5343, %v5340, 0
      %v5387 = vsel %vm5343, %v5341, 0
      %v5390 = vsel %vm5343, %v5342, 0
      %5392 = vmatpush.bf16.xpose.msra.mxu0 %v5390
      %5393 = vmatpush.bf16.xpose.msra.mxu0 %v5387
      %5394 = vmatpush.bf16.xpose.msra.mxu0 %v5384
      %5395 = vmatpush.bf16.xpose.msra.mxu0 %v5381
      %5396 = vmatpush.bf16.xpose.msra.mxu0 %v5378
      %5397 = vmatpush.bf16.xpose.msra.mxu0 %v5375
      %5398 = vmatpush.bf16.xpose.msra.mxu0 %v5372
      %5399 = vmatpush.bf16.xpose.msra.mxu0 %v5369
      %5400 = vmatmul.bf16.gmra.mxu0 %v5345
      %v5401 = vpop.f32.mrf.mxu0
      %v5402 = vadd.f32 %v5247, %v5401
      %v5403 = vpop.f32.mrf.mxu0
      %v5404 = vadd.f32 %v5248, %v5403
      %5405 = vmatmul.bf16.gmra.mxu0 %v5348
      %v5406 = vpop.f32.mrf.mxu0
      %v5407 = vadd.f32 %v5249, %v5406
      %v5408 = vpop.f32.mrf.mxu0
      %v5409 = vadd.f32 %v5250, %v5408
      %5410 = vmatmul.bf16.gmra.mxu0 %v5351
      %v5411 = vpop.f32.mrf.mxu0
      %v5412 = vadd.f32 %v5251, %v5411
      %v5413 = vpop.f32.mrf.mxu0
      %v5414 = vadd.f32 %v5252, %v5413
      %5415 = vmatmul.bf16.gmra.mxu0 %v5354
      %v5416 = vpop.f32.mrf.mxu0
      %v5417 = vadd.f32 %v5253, %v5416
      %v5418 = vpop.f32.mrf.mxu0
      %v5419 = vadd.f32 %v5254, %v5418
      %5420 = vmatmul.bf16.gmra.mxu0 %v5357
      %v5421 = vpop.f32.mrf.mxu0
      %v5422 = vadd.f32 %v5255, %v5421
      %v5423 = vpop.f32.mrf.mxu0
      %v5424 = vadd.f32 %v5256, %v5423
      %5425 = vmatmul.bf16.gmra.mxu0 %v5360
      %v5426 = vpop.f32.mrf.mxu0
      %v5427 = vadd.f32 %v5257, %v5426
      %v5428 = vpop.f32.mrf.mxu0
      %v5429 = vadd.f32 %v5258, %v5428
      %5430 = vmatmul.bf16.gmra.mxu0 %v5363
      %v5431 = vpop.f32.mrf.mxu0
      %v5432 = vadd.f32 %v5259, %v5431
      %v5433 = vpop.f32.mrf.mxu0
      %v5434 = vadd.f32 %v5260, %v5433
      %5435 = vmatmul.bf16.gmra.mxu0 %v5366
      %v5436 = vpop.f32.mrf.mxu0
      %v5437 = vadd.f32 %v5261, %v5436
      %v5438 = vpop.f32.mrf.mxu0
      %v5439 = vadd.f32 %v5262, %v5438
      %5440 = vdwg.mxu0
      %v5457 = vunpack.c.l.b16 %v4551
      %v5458 = vunpack.c.l.b16 %v4552
      %v5459 = vunpack.c.l.b16 %v4553
      %v5460 = vunpack.c.l.b16 %v4554
      %v5461 = vunpack.c.l.b16 %v4555
      %v5462 = vunpack.c.l.b16 %v4556
      %v5463 = vunpack.c.l.b16 %v4557
      %v5464 = vunpack.c.l.b16 %v4558
      %v5465 = vunpack.c.l.b16 %v4559
      %v5466 = vunpack.c.l.b16 %v4560
      %v5467 = vunpack.c.l.b16 %v4561
      %v5468 = vunpack.c.l.b16 %v4562
      %v5469 = vunpack.c.l.b16 %v4563
      %v5470 = vunpack.c.l.b16 %v4564
      %v5471 = vunpack.c.l.b16 %v4565
      %v5472 = vunpack.c.l.b16 %v4566
      %v5473 = vpack.c.b16 %v5458, %v5457
      %v5474 = vpack.c.b16 %v5460, %v5459
      %v5475 = vpack.c.b16 %v5462, %v5461
      %v5476 = vpack.c.b16 %v5464, %v5463
      %v5477 = vpack.c.b16 %v5466, %v5465
      %v5478 = vpack.c.b16 %v5468, %v5467
      %v5479 = vpack.c.b16 %v5470, %v5469
      %v5480 = vpack.c.b16 %v5472, %v5471
      %v5497 = vunpack.c.l.b16 %v4875
      %v5498 = vunpack.c.l.b16 %v4876
      %v5499 = vunpack.c.l.b16 %v4877
      %v5500 = vunpack.c.l.b16 %v4878
      %v5501 = vunpack.c.l.b16 %v4879
      %v5502 = vunpack.c.l.b16 %v4880
      %v5503 = vunpack.c.l.b16 %v4881
      %v5504 = vunpack.c.l.b16 %v4882
      %v5505 = vunpack.c.l.b16 %v4883
      %v5506 = vunpack.c.l.b16 %v4884
      %v5507 = vunpack.c.l.b16 %v4885
      %v5508 = vunpack.c.l.b16 %v4886
      %v5509 = vunpack.c.l.b16 %v4887
      %v5510 = vunpack.c.l.b16 %v4888
      %v5511 = vunpack.c.l.b16 %v4889
      %v5512 = vunpack.c.l.b16 %v4890
      %v5513 = vpack.c.b16 %v5498, %v5497
      %v5514 = vpack.c.b16 %v5500, %v5499
      %v5515 = vpack.c.b16 %v5502, %v5501
      %v5516 = vpack.c.b16 %v5504, %v5503
      %v5517 = vpack.c.b16 %v5506, %v5505
      %v5518 = vpack.c.b16 %v5508, %v5507
      %v5519 = vpack.c.b16 %v5510, %v5509
      %v5520 = vpack.c.b16 %v5512, %v5511
      %v5522 = vsel %vm5343, %v5473, 0
      %v5525 = vsel %vm5343, %v5474, 0
      %v5528 = vsel %vm5343, %v5475, 0
      %v5531 = vsel %vm5343, %v5476, 0
      %v5534 = vsel %vm5343, %v5477, 0
      %v5537 = vsel %vm5343, %v5478, 0
      %v5540 = vsel %vm5343, %v5479, 0
      %v5543 = vsel %vm5343, %v5480, 0
      %v5546 = vsel %vm5343, %v5513, 0
      %v5549 = vsel %vm5343, %v5514, 0
      %v5552 = vsel %vm5343, %v5515, 0
      %v5555 = vsel %vm5343, %v5516, 0
      %v5558 = vsel %vm5343, %v5517, 0
      %v5561 = vsel %vm5343, %v5518, 0
      %v5564 = vsel %vm5343, %v5519, 0
      %v5567 = vsel %vm5343, %v5520, 0
      %5569 = vmatpush.bf16.xpose.msra.mxu0 %v5567
      %5570 = vmatpush.bf16.xpose.msra.mxu0 %v5564
      %5571 = vmatpush.bf16.xpose.msra.mxu0 %v5561
      %5572 = vmatpush.bf16.xpose.msra.mxu0 %v5558
      %5573 = vmatpush.bf16.xpose.msra.mxu0 %v5555
      %5574 = vmatpush.bf16.xpose.msra.mxu0 %v5552
      %5575 = vmatpush.bf16.xpose.msra.mxu0 %v5549
      %5576 = vmatpush.bf16.xpose.msra.mxu0 %v5546
      %5577 = vmatmul.bf16.gmra.mxu0 %v5522
      %v5578 = vpop.f32.mrf.mxu0
      %v5579 = vadd.f32 %v5247, %v5578
      %v5580 = vpop.f32.mrf.mxu0
      %v5581 = vadd.f32 %v5248, %v5580
      %5582 = vmatmul.bf16.gmra.mxu0 %v5525
      %v5583 = vpop.f32.mrf.mxu0
      %v5584 = vadd.f32 %v5249, %v5583
      %v5585 = vpop.f32.mrf.mxu0
      %v5586 = vadd.f32 %v5250, %v5585
      %5587 = vmatmul.bf16.gmra.mxu0 %v5528
      %v5588 = vpop.f32.mrf.mxu0
      %v5589 = vadd.f32 %v5251, %v5588
      %v5590 = vpop.f32.mrf.mxu0
      %v5591 = vadd.f32 %v5252, %v5590
      %5592 = vmatmul.bf16.gmra.mxu0 %v5531
      %v5593 = vpop.f32.mrf.mxu0
      %v5594 = vadd.f32 %v5253, %v5593
      %v5595 = vpop.f32.mrf.mxu0
      %v5596 = vadd.f32 %v5254, %v5595
      %5597 = vmatmul.bf16.gmra.mxu0 %v5534
      %v5598 = vpop.f32.mrf.mxu0
      %v5599 = vadd.f32 %v5255, %v5598
      %v5600 = vpop.f32.mrf.mxu0
      %v5601 = vadd.f32 %v5256, %v5600
      %5602 = vmatmul.bf16.gmra.mxu0 %v5537
      %v5603 = vpop.f32.mrf.mxu0
      %v5604 = vadd.f32 %v5257, %v5603
      %v5605 = vpop.f32.mrf.mxu0
      %v5606 = vadd.f32 %v5258, %v5605
      %5607 = vmatmul.bf16.gmra.mxu0 %v5540
      %v5608 = vpop.f32.mrf.mxu0
      %v5609 = vadd.f32 %v5259, %v5608
      %v5610 = vpop.f32.mrf.mxu0
      %v5611 = vadd.f32 %v5260, %v5610
      %5612 = vmatmul.bf16.gmra.mxu0 %v5543
      %v5613 = vpop.f32.mrf.mxu0
      %v5614 = vadd.f32 %v5261, %v5613
      %v5615 = vpop.f32.mrf.mxu0
      %v5616 = vadd.f32 %v5262, %v5615
      %5617 = vdwg.mxu0
      %v5634 = vunpack.c.l.b16 %v4567
      %v5635 = vunpack.c.l.b16 %v4568
      %v5636 = vunpack.c.l.b16 %v4569
      %v5637 = vunpack.c.l.b16 %v4570
      %v5638 = vunpack.c.l.b16 %v4571
      %v5639 = vunpack.c.l.b16 %v4572
      %v5640 = vunpack.c.l.b16 %v4573
      %v5641 = vunpack.c.l.b16 %v4574
      %v5642 = vunpack.c.l.b16 %v4575
      %v5643 = vunpack.c.l.b16 %v4576
      %v5644 = vunpack.c.l.b16 %v4577
      %v5645 = vunpack.c.l.b16 %v4578
      %v5646 = vunpack.c.l.b16 %v4579
      %v5647 = vunpack.c.l.b16 %v4580
      %v5648 = vunpack.c.l.b16 %v4581
      %v5649 = vunpack.c.l.b16 %v4582
      %v5650 = vpack.c.b16 %v5635, %v5634
      %v5651 = vpack.c.b16 %v5637, %v5636
      %v5652 = vpack.c.b16 %v5639, %v5638
      %v5653 = vpack.c.b16 %v5641, %v5640
      %v5654 = vpack.c.b16 %v5643, %v5642
      %v5655 = vpack.c.b16 %v5645, %v5644
      %v5656 = vpack.c.b16 %v5647, %v5646
      %v5657 = vpack.c.b16 %v5649, %v5648
      %v5674 = vunpack.c.l.b16 %v4891
      %v5675 = vunpack.c.l.b16 %v4892
      %v5676 = vunpack.c.l.b16 %v4893
      %v5677 = vunpack.c.l.b16 %v4894
      %v5678 = vunpack.c.l.b16 %v4895
      %v5679 = vunpack.c.l.b16 %v4896
      %v5680 = vunpack.c.l.b16 %v4897
      %v5681 = vunpack.c.l.b16 %v4898
      %v5682 = vunpack.c.l.b16 %v4899
      %v5683 = vunpack.c.l.b16 %v4900
      %v5684 = vunpack.c.l.b16 %v4901
      %v5685 = vunpack.c.l.b16 %v4902
      %v5686 = vunpack.c.l.b16 %v4903
      %v5687 = vunpack.c.l.b16 %v4904
      %v5688 = vunpack.c.l.b16 %v4905
      %v5689 = vunpack.c.l.b16 %v4906
      %v5690 = vpack.c.b16 %v5675, %v5674
      %v5691 = vpack.c.b16 %v5677, %v5676
      %v5692 = vpack.c.b16 %v5679, %v5678
      %v5693 = vpack.c.b16 %v5681, %v5680
      %v5694 = vpack.c.b16 %v5683, %v5682
      %v5695 = vpack.c.b16 %v5685, %v5684
      %v5696 = vpack.c.b16 %v5687, %v5686
      %v5697 = vpack.c.b16 %v5689, %v5688
      %v5699 = vsel %vm5343, %v5650, 0
      %v5702 = vsel %vm5343, %v5651, 0
      %v5705 = vsel %vm5343, %v5652, 0
      %v5708 = vsel %vm5343, %v5653, 0
      %v5711 = vsel %vm5343, %v5654, 0
      %v5714 = vsel %vm5343, %v5655, 0
      %v5717 = vsel %vm5343, %v5656, 0
      %v5720 = vsel %vm5343, %v5657, 0
      %v5723 = vsel %vm5343, %v5690, 0
      %v5726 = vsel %vm5343, %v5691, 0
      %v5729 = vsel %vm5343, %v5692, 0
      %v5732 = vsel %vm5343, %v5693, 0
      %v5735 = vsel %vm5343, %v5694, 0
      %v5738 = vsel %vm5343, %v5695, 0
      %v5741 = vsel %vm5343, %v5696, 0
      %v5744 = vsel %vm5343, %v5697, 0
      %5746 = vmatpush.bf16.xpose.msra.mxu0 %v5744
      %5747 = vmatpush.bf16.xpose.msra.mxu0 %v5741
      %5748 = vmatpush.bf16.xpose.msra.mxu0 %v5738
      %5749 = vmatpush.bf16.xpose.msra.mxu0 %v5735
      %5750 = vmatpush.bf16.xpose.msra.mxu0 %v5732
      %5751 = vmatpush.bf16.xpose.msra.mxu0 %v5729
      %5752 = vmatpush.bf16.xpose.msra.mxu0 %v5726
      %5753 = vmatpush.bf16.xpose.msra.mxu0 %v5723
      %5754 = vmatmul.bf16.gmra.mxu0 %v5699
      %v5755 = vpop.f32.mrf.mxu0
      %v5756 = vadd.f32 %v5247, %v5755
      %v5757 = vpop.f32.mrf.mxu0
      %v5758 = vadd.f32 %v5248, %v5757
      %5759 = vmatmul.bf16.gmra.mxu0 %v5702
      %v5760 = vpop.f32.mrf.mxu0
      %v5761 = vadd.f32 %v5249, %v5760
      %v5762 = vpop.f32.mrf.mxu0
      %v5763 = vadd.f32 %v5250, %v5762
      %5764 = vmatmul.bf16.gmra.mxu0 %v5705
      %v5765 = vpop.f32.mrf.mxu0
      %v5766 = vadd.f32 %v5251, %v5765
      %v5767 = vpop.f32.mrf.mxu0
      %v5768 = vadd.f32 %v5252, %v5767
      %5769 = vmatmul.bf16.gmra.mxu0 %v5708
      %v5770 = vpop.f32.mrf.mxu0
      %v5771 = vadd.f32 %v5253, %v5770
      %v5772 = vpop.f32.mrf.mxu0
      %v5773 = vadd.f32 %v5254, %v5772
      %5774 = vmatmul.bf16.gmra.mxu0 %v5711
      %v5775 = vpop.f32.mrf.mxu0
      %v5776 = vadd.f32 %v5255, %v5775
      %v5777 = vpop.f32.mrf.mxu0
      %v5778 = vadd.f32 %v5256, %v5777
      %5779 = vmatmul.bf16.gmra.mxu0 %v5714
      %v5780 = vpop.f32.mrf.mxu0
      %v5781 = vadd.f32 %v5257, %v5780
      %v5782 = vpop.f32.mrf.mxu0
      %v5783 = vadd.f32 %v5258, %v5782
      %5784 = vmatmul.bf16.gmra.mxu0 %v5717
      %v5785 = vpop.f32.mrf.mxu0
      %v5786 = vadd.f32 %v5259, %v5785
      %v5787 = vpop.f32.mrf.mxu0
      %v5788 = vadd.f32 %v5260, %v5787
      %5789 = vmatmul.bf16.gmra.mxu0 %v5720
      %v5790 = vpop.f32.mrf.mxu0
      %v5791 = vadd.f32 %v5261, %v5790
      %v5792 = vpop.f32.mrf.mxu0
      %v5793 = vadd.f32 %v5262, %v5792
      %5794 = vdwg.mxu0
      %v5811 = vunpack.c.l.b16 %v4583
      %v5812 = vunpack.c.l.b16 %v4584
      %v5813 = vunpack.c.l.b16 %v4585
      %v5814 = vunpack.c.l.b16 %v4586
      %v5815 = vunpack.c.l.b16 %v4587
      %v5816 = vunpack.c.l.b16 %v4588
      %v5817 = vunpack.c.l.b16 %v4589
      %v5818 = vunpack.c.l.b16 %v4590
      %v5819 = vunpack.c.l.b16 %v4591
      %v5820 = vunpack.c.l.b16 %v4592
      %v5821 = vunpack.c.l.b16 %v4593
      %v5822 = vunpack.c.l.b16 %v4594
      %v5823 = vunpack.c.l.b16 %v4595
      %v5824 = vunpack.c.l.b16 %v4596
      %v5825 = vunpack.c.l.b16 %v4597
      %v5826 = vunpack.c.l.b16 %v4598
      %v5827 = vpack.c.b16 %v5812, %v5811
      %v5828 = vpack.c.b16 %v5814, %v5813
      %v5829 = vpack.c.b16 %v5816, %v5815
      %v5830 = vpack.c.b16 %v5818, %v5817
      %v5831 = vpack.c.b16 %v5820, %v5819
      %v5832 = vpack.c.b16 %v5822, %v5821
      %v5833 = vpack.c.b16 %v5824, %v5823
      %v5834 = vpack.c.b16 %v5826, %v5825
      %v5851 = vunpack.c.l.b16 %v4907
      %v5852 = vunpack.c.l.b16 %v4908
      %v5853 = vunpack.c.l.b16 %v4909
      %v5854 = vunpack.c.l.b16 %v4910
      %v5855 = vunpack.c.l.b16 %v4911
      %v5856 = vunpack.c.l.b16 %v4912
      %v5857 = vunpack.c.l.b16 %v4913
      %v5858 = vunpack.c.l.b16 %v4914
      %v5859 = vunpack.c.l.b16 %v4915
      %v5860 = vunpack.c.l.b16 %v4916
      %v5861 = vunpack.c.l.b16 %v4917
      %v5862 = vunpack.c.l.b16 %v4918
      %v5863 = vunpack.c.l.b16 %v4919
      %v5864 = vunpack.c.l.b16 %v4920
      %v5865 = vunpack.c.l.b16 %v4921
      %v5866 = vunpack.c.l.b16 %v4922
      %v5867 = vpack.c.b16 %v5852, %v5851
      %v5868 = vpack.c.b16 %v5854, %v5853
      %v5869 = vpack.c.b16 %v5856, %v5855
      %v5870 = vpack.c.b16 %v5858, %v5857
      %v5871 = vpack.c.b16 %v5860, %v5859
      %v5872 = vpack.c.b16 %v5862, %v5861
      %v5873 = vpack.c.b16 %v5864, %v5863
      %v5874 = vpack.c.b16 %v5866, %v5865
      %v5876 = vsel %vm5343, %v5827, 0
      %v5879 = vsel %vm5343, %v5828, 0
      %v5882 = vsel %vm5343, %v5829, 0
      %v5885 = vsel %vm5343, %v5830, 0
      %v5888 = vsel %vm5343, %v5831, 0
      %v5891 = vsel %vm5343, %v5832, 0
      %v5894 = vsel %vm5343, %v5833, 0
      %v5897 = vsel %vm5343, %v5834, 0
      %v5900 = vsel %vm5343, %v5867, 0
      %v5903 = vsel %vm5343, %v5868, 0
      %v5906 = vsel %vm5343, %v5869, 0
      %v5909 = vsel %vm5343, %v5870, 0
      %v5912 = vsel %vm5343, %v5871, 0
      %v5915 = vsel %vm5343, %v5872, 0
      %v5918 = vsel %vm5343, %v5873, 0
      %v5921 = vsel %vm5343, %v5874, 0
      %5923 = vmatpush.bf16.xpose.msra.mxu0 %v5921
      %5924 = vmatpush.bf16.xpose.msra.mxu0 %v5918
      %5925 = vmatpush.bf16.xpose.msra.mxu0 %v5915
      %5926 = vmatpush.bf16.xpose.msra.mxu0 %v5912
      %5927 = vmatpush.bf16.xpose.msra.mxu0 %v5909
      %5928 = vmatpush.bf16.xpose.msra.mxu0 %v5906
      %5929 = vmatpush.bf16.xpose.msra.mxu0 %v5903
      %5930 = vmatpush.bf16.xpose.msra.mxu0 %v5900
      %5931 = vmatmul.bf16.gmra.mxu0 %v5876
      %v5932 = vpop.f32.mrf.mxu0
      %v5933 = vadd.f32 %v5247, %v5932
      %v5934 = vpop.f32.mrf.mxu0
      %v5935 = vadd.f32 %v5248, %v5934
      %5936 = vmatmul.bf16.gmra.mxu0 %v5879
      %v5937 = vpop.f32.mrf.mxu0
      %v5938 = vadd.f32 %v5249, %v5937
      %v5939 = vpop.f32.mrf.mxu0
      %v5940 = vadd.f32 %v5250, %v5939
      %5941 = vmatmul.bf16.gmra.mxu0 %v5882
      %v5942 = vpop.f32.mrf.mxu0
      %v5943 = vadd.f32 %v5251, %v5942
      %v5944 = vpop.f32.mrf.mxu0
      %v5945 = vadd.f32 %v5252, %v5944
      %5946 = vmatmul.bf16.gmra.mxu0 %v5885
      %v5947 = vpop.f32.mrf.mxu0
      %v5948 = vadd.f32 %v5253, %v5947
      %v5949 = vpop.f32.mrf.mxu0
      %v5950 = vadd.f32 %v5254, %v5949
      %5951 = vmatmul.bf16.gmra.mxu0 %v5888
      %v5952 = vpop.f32.mrf.mxu0
      %v5953 = vadd.f32 %v5255, %v5952
      %v5954 = vpop.f32.mrf.mxu0
      %v5955 = vadd.f32 %v5256, %v5954
      %5956 = vmatmul.bf16.gmra.mxu0 %v5891
      %v5957 = vpop.f32.mrf.mxu0
      %v5958 = vadd.f32 %v5257, %v5957
      %v5959 = vpop.f32.mrf.mxu0
      %v5960 = vadd.f32 %v5258, %v5959
      %5961 = vmatmul.bf16.gmra.mxu0 %v5894
      %v5962 = vpop.f32.mrf.mxu0
      %v5963 = vadd.f32 %v5259, %v5962
      %v5964 = vpop.f32.mrf.mxu0
      %v5965 = vadd.f32 %v5260, %v5964
      %5966 = vmatmul.bf16.gmra.mxu0 %v5897
      %v5967 = vpop.f32.mrf.mxu0
      %v5968 = vadd.f32 %v5261, %v5967
      %v5969 = vpop.f32.mrf.mxu0
      %v5970 = vadd.f32 %v5262, %v5969
      %5971 = vdwg.mxu0
      %5972 = vmax.xlane.f32.xlu0 %v5402
      %v5973 = vpop.xlane.xlu0 %5972
      %5974 = vmax.xlane.f32.xlu0 %v5404
      %v5975 = vpop.xlane.xlu0 %5974
      %5976 = vmax.xlane.f32.xlu0 %v5407
      %v5977 = vpop.xlane.xlu0 %5976
      %5978 = vmax.xlane.f32.xlu0 %v5409
      %v5979 = vpop.xlane.xlu0 %5978
      %5980 = vmax.xlane.f32.xlu0 %v5412
      %v5981 = vpop.xlane.xlu0 %5980
      %5982 = vmax.xlane.f32.xlu0 %v5414
      %v5983 = vpop.xlane.xlu0 %5982
      %5984 = vmax.xlane.f32.xlu0 %v5417
      %v5985 = vpop.xlane.xlu0 %5984
      %5986 = vmax.xlane.f32.xlu0 %v5419
      %v5987 = vpop.xlane.xlu0 %5986
      %5988 = vmax.xlane.f32.xlu0 %v5422
      %v5989 = vpop.xlane.xlu0 %5988
      %5990 = vmax.xlane.f32.xlu0 %v5424
      %v5991 = vpop.xlane.xlu0 %5990
      %5992 = vmax.xlane.f32.xlu0 %v5427
      %v5993 = vpop.xlane.xlu0 %5992
      %5994 = vmax.xlane.f32.xlu0 %v5429
      %v5995 = vpop.xlane.xlu0 %5994
      %5996 = vmax.xlane.f32.xlu0 %v5432
      %v5997 = vpop.xlane.xlu0 %5996
      %5998 = vmax.xlane.f32.xlu0 %v5434
      %v5999 = vpop.xlane.xlu0 %5998
      %6000 = vmax.xlane.f32.xlu0 %v5437
      %v6001 = vpop.xlane.xlu0 %6000
      %6002 = vmax.xlane.f32.xlu0 %v5439
      %v6003 = vpop.xlane.xlu0 %6002
      %6004 = vmax.xlane.f32.xlu0 %v5579
      %v6005 = vpop.xlane.xlu0 %6004
      %6006 = vmax.xlane.f32.xlu0 %v5581
      %v6007 = vpop.xlane.xlu0 %6006
      %6008 = vmax.xlane.f32.xlu0 %v5584
      %v6009 = vpop.xlane.xlu0 %6008
      %6010 = vmax.xlane.f32.xlu0 %v5586
      %v6011 = vpop.xlane.xlu0 %6010
      %6012 = vmax.xlane.f32.xlu0 %v5589
      %v6013 = vpop.xlane.xlu0 %6012
      %6014 = vmax.xlane.f32.xlu0 %v5591
      %v6015 = vpop.xlane.xlu0 %6014
      %6016 = vmax.xlane.f32.xlu0 %v5594
      %v6017 = vpop.xlane.xlu0 %6016
      %6018 = vmax.xlane.f32.xlu0 %v5596
      %v6019 = vpop.xlane.xlu0 %6018
      %6020 = vmax.xlane.f32.xlu0 %v5599
      %v6021 = vpop.xlane.xlu0 %6020
      %6022 = vmax.xlane.f32.xlu0 %v5601
      %v6023 = vpop.xlane.xlu0 %6022
      %6024 = vmax.xlane.f32.xlu0 %v5604
      %v6025 = vpop.xlane.xlu0 %6024
      %6026 = vmax.xlane.f32.xlu0 %v5606
      %v6027 = vpop.xlane.xlu0 %6026
      %6028 = vmax.xlane.f32.xlu0 %v5609
      %v6029 = vpop.xlane.xlu0 %6028
      %6030 = vmax.xlane.f32.xlu0 %v5611
      %v6031 = vpop.xlane.xlu0 %6030
      %6032 = vmax.xlane.f32.xlu0 %v5614
      %v6033 = vpop.xlane.xlu0 %6032
      %6034 = vmax.xlane.f32.xlu0 %v5616
      %v6035 = vpop.xlane.xlu0 %6034
      %6036 = vmax.xlane.f32.xlu0 %v5756
      %v6037 = vpop.xlane.xlu0 %6036
      %6038 = vmax.xlane.f32.xlu0 %v5758
      %v6039 = vpop.xlane.xlu0 %6038
      %6040 = vmax.xlane.f32.xlu0 %v5761
      %v6041 = vpop.xlane.xlu0 %6040
      %6042 = vmax.xlane.f32.xlu0 %v5763
      %v6043 = vpop.xlane.xlu0 %6042
      %6044 = vmax.xlane.f32.xlu0 %v5766
      %v6045 = vpop.xlane.xlu0 %6044
      %6046 = vmax.xlane.f32.xlu0 %v5768
      %v6047 = vpop.xlane.xlu0 %6046
      %6048 = vmax.xlane.f32.xlu0 %v5771
      %v6049 = vpop.xlane.xlu0 %6048
      %6050 = vmax.xlane.f32.xlu0 %v5773
      %v6051 = vpop.xlane.xlu0 %6050
      %6052 = vmax.xlane.f32.xlu0 %v5776
      %v6053 = vpop.xlane.xlu0 %6052
      %6054 = vmax.xlane.f32.xlu0 %v5778
      %v6055 = vpop.xlane.xlu0 %6054
      %6056 = vmax.xlane.f32.xlu0 %v5781
      %v6057 = vpop.xlane.xlu0 %6056
      %6058 = vmax.xlane.f32.xlu0 %v5783
      %v6059 = vpop.xlane.xlu0 %6058
      %6060 = vmax.xlane.f32.xlu0 %v5786
      %v6061 = vpop.xlane.xlu0 %6060
      %6062 = vmax.xlane.f32.xlu0 %v5788
      %v6063 = vpop.xlane.xlu0 %6062
      %6064 = vmax.xlane.f32.xlu0 %v5791
      %v6065 = vpop.xlane.xlu0 %6064
      %6066 = vmax.xlane.f32.xlu0 %v5793
      %v6067 = vpop.xlane.xlu0 %6066
      %6068 = vmax.xlane.f32.xlu0 %v5933
      %v6069 = vpop.xlane.xlu0 %6068
      %6070 = vmax.xlane.f32.xlu0 %v5935
      %v6071 = vpop.xlane.xlu0 %6070
      %6072 = vmax.xlane.f32.xlu0 %v5938
      %v6073 = vpop.xlane.xlu0 %6072
      %6074 = vmax.xlane.f32.xlu0 %v5940
      %v6075 = vpop.xlane.xlu0 %6074
      %6076 = vmax.xlane.f32.xlu0 %v5943
      %v6077 = vpop.xlane.xlu0 %6076
      %6078 = vmax.xlane.f32.xlu0 %v5945
      %v6079 = vpop.xlane.xlu0 %6078
      %6080 = vmax.xlane.f32.xlu0 %v5948
      %v6081 = vpop.xlane.xlu0 %6080
      %6082 = vmax.xlane.f32.xlu0 %v5950
      %v6083 = vpop.xlane.xlu0 %6082
      %6084 = vmax.xlane.f32.xlu0 %v5953
      %v6085 = vpop.xlane.xlu0 %6084
      %6086 = vmax.xlane.f32.xlu0 %v5955
      %v6087 = vpop.xlane.xlu0 %6086
      %6088 = vmax.xlane.f32.xlu0 %v5958
      %v6089 = vpop.xlane.xlu0 %6088
      %6090 = vmax.xlane.f32.xlu0 %v5960
      %v6091 = vpop.xlane.xlu0 %6090
      %6092 = vmax.xlane.f32.xlu0 %v5963
      %v6093 = vpop.xlane.xlu0 %6092
      %6094 = vmax.xlane.f32.xlu0 %v5965
      %v6095 = vpop.xlane.xlu0 %6094
      %6096 = vmax.xlane.f32.xlu0 %v5968
      %v6097 = vpop.xlane.xlu0 %6096
      %6098 = vmax.xlane.f32.xlu0 %v5970
      %v6099 = vpop.xlane.xlu0 %6098
      %v6100 = vsub.f32 %v5402, %v5973
      %v6101 = vsub.f32 %v5404, %v5975
      %v6102 = vsub.f32 %v5407, %v5977
      %v6103 = vsub.f32 %v5409, %v5979
      %v6104 = vsub.f32 %v5412, %v5981
      %v6105 = vsub.f32 %v5414, %v5983
      %v6106 = vsub.f32 %v5417, %v5985
      %v6107 = vsub.f32 %v5419, %v5987
      %v6108 = vsub.f32 %v5422, %v5989
      %v6109 = vsub.f32 %v5424, %v5991
      %v6110 = vsub.f32 %v5427, %v5993
      %v6111 = vsub.f32 %v5429, %v5995
      %v6112 = vsub.f32 %v5432, %v5997
      %v6113 = vsub.f32 %v5434, %v5999
      %v6114 = vsub.f32 %v5437, %v6001
      %v6115 = vsub.f32 %v5439, %v6003
      %v6116 = vsub.f32 %v5579, %v6005
      %v6117 = vsub.f32 %v5581, %v6007
      %v6118 = vsub.f32 %v5584, %v6009
      %v6119 = vsub.f32 %v5586, %v6011
      %v6120 = vsub.f32 %v5589, %v6013
      %v6121 = vsub.f32 %v5591, %v6015
      %v6122 = vsub.f32 %v5594, %v6017
      %v6123 = vsub.f32 %v5596, %v6019
      %v6124 = vsub.f32 %v5599, %v6021
      %v6125 = vsub.f32 %v5601, %v6023
      %v6126 = vsub.f32 %v5604, %v6025
      %v6127 = vsub.f32 %v5606, %v6027
      %v6128 = vsub.f32 %v5609, %v6029
      %v6129 = vsub.f32 %v5611, %v6031
      %v6130 = vsub.f32 %v5614, %v6033
      %v6131 = vsub.f32 %v5616, %v6035
      %v6132 = vsub.f32 %v5756, %v6037
      %v6133 = vsub.f32 %v5758, %v6039
      %v6134 = vsub.f32 %v5761, %v6041
      %v6135 = vsub.f32 %v5763, %v6043
      %v6136 = vsub.f32 %v5766, %v6045
      %v6137 = vsub.f32 %v5768, %v6047
      %v6138 = vsub.f32 %v5771, %v6049
      %v6139 = vsub.f32 %v5773, %v6051
      %v6140 = vsub.f32 %v5776, %v6053
      %v6141 = vsub.f32 %v5778, %v6055
      %v6142 = vsub.f32 %v5781, %v6057
      %v6143 = vsub.f32 %v5783, %v6059
      %v6144 = vsub.f32 %v5786, %v6061
      %v6145 = vsub.f32 %v5788, %v6063
      %v6146 = vsub.f32 %v5791, %v6065
      %v6147 = vsub.f32 %v5793, %v6067
      %v6148 = vsub.f32 %v5933, %v6069
      %v6149 = vsub.f32 %v5935, %v6071
      %v6150 = vsub.f32 %v5938, %v6073
      %v6151 = vsub.f32 %v5940, %v6075
      %v6152 = vsub.f32 %v5943, %v6077
      %v6153 = vsub.f32 %v5945, %v6079
      %v6154 = vsub.f32 %v5948, %v6081
      %v6155 = vsub.f32 %v5950, %v6083
      %v6156 = vsub.f32 %v5953, %v6085
      %v6157 = vsub.f32 %v5955, %v6087
      %v6158 = vsub.f32 %v5958, %v6089
      %v6159 = vsub.f32 %v5960, %v6091
      %v6160 = vsub.f32 %v5963, %v6093
      %v6161 = vsub.f32 %v5965, %v6095
      %v6162 = vsub.f32 %v5968, %v6097
      %v6163 = vsub.f32 %v5970, %v6099
      %v6164 = vmul.f32 %v6100, 1.442695
      %v6165 = vpow.pop %v6164
      %v6166 = vmul.f32 %v6101, 1.442695
      %v6167 = vpow.pop %v6166
      %v6168 = vmul.f32 %v6102, 1.442695
      %v6169 = vpow.pop %v6168
      %v6170 = vmul.f32 %v6103, 1.442695
      %v6171 = vpow.pop %v6170
      %v6172 = vmul.f32 %v6104, 1.442695
      %v6173 = vpow.pop %v6172
      %v6174 = vmul.f32 %v6105, 1.442695
      %v6175 = vpow.pop %v6174
      %v6176 = vmul.f32 %v6106, 1.442695
      %v6177 = vpow.pop %v6176
      %v6178 = vmul.f32 %v6107, 1.442695
      %v6179 = vpow.pop %v6178
      %v6180 = vmul.f32 %v6108, 1.442695
      %v6181 = vpow.pop %v6180
      %v6182 = vmul.f32 %v6109, 1.442695
      %v6183 = vpow.pop %v6182
      %v6184 = vmul.f32 %v6110, 1.442695
      %v6185 = vpow.pop %v6184
      %v6186 = vmul.f32 %v6111, 1.442695
      %v6187 = vpow.pop %v6186
      %v6188 = vmul.f32 %v6112, 1.442695
      %v6189 = vpow.pop %v6188
      %v6190 = vmul.f32 %v6113, 1.442695
      %v6191 = vpow.pop %v6190
      %v6192 = vmul.f32 %v6114, 1.442695
      %v6193 = vpow.pop %v6192
      %v6194 = vmul.f32 %v6115, 1.442695
      %v6195 = vpow.pop %v6194
      %v6196 = vmul.f32 %v6116, 1.442695
      %v6197 = vpow.pop %v6196
      %v6198 = vmul.f32 %v6117, 1.442695
      %v6199 = vpow.pop %v6198
      %v6200 = vmul.f32 %v6118, 1.442695
      %v6201 = vpow.pop %v6200
      %v6202 = vmul.f32 %v6119, 1.442695
      %v6203 = vpow.pop %v6202
      %v6204 = vmul.f32 %v6120, 1.442695
      %v6205 = vpow.pop %v6204
      %v6206 = vmul.f32 %v6121, 1.442695
      %v6207 = vpow.pop %v6206
      %v6208 = vmul.f32 %v6122, 1.442695
      %v6209 = vpow.pop %v6208
      %v6210 = vmul.f32 %v6123, 1.442695
      %v6211 = vpow.pop %v6210
      %v6212 = vmul.f32 %v6124, 1.442695
      %v6213 = vpow.pop %v6212
      %v6214 = vmul.f32 %v6125, 1.442695
      %v6215 = vpow.pop %v6214
      %v6216 = vmul.f32 %v6126, 1.442695
      %v6217 = vpow.pop %v6216
      %v6218 = vmul.f32 %v6127, 1.442695
      %v6219 = vpow.pop %v6218
      %v6220 = vmul.f32 %v6128, 1.442695
      %v6221 = vpow.pop %v6220
      %v6222 = vmul.f32 %v6129, 1.442695
      %v6223 = vpow.pop %v6222
      %v6224 = vmul.f32 %v6130, 1.442695
      %v6225 = vpow.pop %v6224
      %v6226 = vmul.f32 %v6131, 1.442695
      %v6227 = vpow.pop %v6226
      %v6228 = vmul.f32 %v6132, 1.442695
      %v6229 = vpow.pop %v6228
      %v6230 = vmul.f32 %v6133, 1.442695
      %v6231 = vpow.pop %v6230
      %v6232 = vmul.f32 %v6134, 1.442695
      %v6233 = vpow.pop %v6232
      %v6234 = vmul.f32 %v6135, 1.442695
      %v6235 = vpow.pop %v6234
      %v6236 = vmul.f32 %v6136, 1.442695
      %v6237 = vpow.pop %v6236
      %v6238 = vmul.f32 %v6137, 1.442695
      %v6239 = vpow.pop %v6238
      %v6240 = vmul.f32 %v6138, 1.442695
      %v6241 = vpow.pop %v6240
      %v6242 = vmul.f32 %v6139, 1.442695
      %v6243 = vpow.pop %v6242
      %v6244 = vmul.f32 %v6140, 1.442695
      %v6245 = vpow.pop %v6244
      %v6246 = vmul.f32 %v6141, 1.442695
      %v6247 = vpow.pop %v6246
      %v6248 = vmul.f32 %v6142, 1.442695
      %v6249 = vpow.pop %v6248
      %v6250 = vmul.f32 %v6143, 1.442695
      %v6251 = vpow.pop %v6250
      %v6252 = vmul.f32 %v6144, 1.442695
      %v6253 = vpow.pop %v6252
      %v6254 = vmul.f32 %v6145, 1.442695
      %v6255 = vpow.pop %v6254
      %v6256 = vmul.f32 %v6146, 1.442695
      %v6257 = vpow.pop %v6256
      %v6258 = vmul.f32 %v6147, 1.442695
      %v6259 = vpow.pop %v6258
      %v6260 = vmul.f32 %v6148, 1.442695
      %v6261 = vpow.pop %v6260
      %v6262 = vmul.f32 %v6149, 1.442695
      %v6263 = vpow.pop %v6262
      %v6264 = vmul.f32 %v6150, 1.442695
      %v6265 = vpow.pop %v6264
      %v6266 = vmul.f32 %v6151, 1.442695
      %v6267 = vpow.pop %v6266
      %v6268 = vmul.f32 %v6152, 1.442695
      %v6269 = vpow.pop %v6268
      %v6270 = vmul.f32 %v6153, 1.442695
      %v6271 = vpow.pop %v6270
      %v6272 = vmul.f32 %v6154, 1.442695
      %v6273 = vpow.pop %v6272
      %v6274 = vmul.f32 %v6155, 1.442695
      %v6275 = vpow.pop %v6274
      %v6276 = vmul.f32 %v6156, 1.442695
      %v6277 = vpow.pop %v6276
      %v6278 = vmul.f32 %v6157, 1.442695
      %v6279 = vpow.pop %v6278
      %v6280 = vmul.f32 %v6158, 1.442695
      %v6281 = vpow.pop %v6280
      %v6282 = vmul.f32 %v6159, 1.442695
      %v6283 = vpow.pop %v6282
      %v6284 = vmul.f32 %v6160, 1.442695
      %v6285 = vpow.pop %v6284
      %v6286 = vmul.f32 %v6161, 1.442695
      %v6287 = vpow.pop %v6286
      %v6288 = vmul.f32 %v6162, 1.442695
      %v6289 = vpow.pop %v6288
      %v6290 = vmul.f32 %v6163, 1.442695
      %v6291 = vpow.pop %v6290
      %6292 = vadd.xlane.f32.xlu0 %v6165
      %v6293 = vpop.xlane.xlu0 %6292
      %6294 = vadd.xlane.f32.xlu0 %v6167
      %v6295 = vpop.xlane.xlu0 %6294
      %6296 = vadd.xlane.f32.xlu0 %v6169
      %v6297 = vpop.xlane.xlu0 %6296
      %6298 = vadd.xlane.f32.xlu0 %v6171
      %v6299 = vpop.xlane.xlu0 %6298
      %6300 = vadd.xlane.f32.xlu0 %v6173
      %v6301 = vpop.xlane.xlu0 %6300
      %6302 = vadd.xlane.f32.xlu0 %v6175
      %v6303 = vpop.xlane.xlu0 %6302
      %6304 = vadd.xlane.f32.xlu0 %v6177
      %v6305 = vpop.xlane.xlu0 %6304
      %6306 = vadd.xlane.f32.xlu0 %v6179
      %v6307 = vpop.xlane.xlu0 %6306
      %6308 = vadd.xlane.f32.xlu0 %v6181
      %v6309 = vpop.xlane.xlu0 %6308
      %6310 = vadd.xlane.f32.xlu0 %v6183
      %v6311 = vpop.xlane.xlu0 %6310
      %6312 = vadd.xlane.f32.xlu0 %v6185
      %v6313 = vpop.xlane.xlu0 %6312
      %6314 = vadd.xlane.f32.xlu0 %v6187
      %v6315 = vpop.xlane.xlu0 %6314
      %6316 = vadd.xlane.f32.xlu0 %v6189
      %v6317 = vpop.xlane.xlu0 %6316
      %6318 = vadd.xlane.f32.xlu0 %v6191
      %v6319 = vpop.xlane.xlu0 %6318
      %6320 = vadd.xlane.f32.xlu0 %v6193
      %v6321 = vpop.xlane.xlu0 %6320
      %6322 = vadd.xlane.f32.xlu0 %v6195
      %v6323 = vpop.xlane.xlu0 %6322
      %6324 = vadd.xlane.f32.xlu0 %v6197
      %v6325 = vpop.xlane.xlu0 %6324
      %6326 = vadd.xlane.f32.xlu0 %v6199
      %v6327 = vpop.xlane.xlu0 %6326
      %6328 = vadd.xlane.f32.xlu0 %v6201
      %v6329 = vpop.xlane.xlu0 %6328
      %6330 = vadd.xlane.f32.xlu0 %v6203
      %v6331 = vpop.xlane.xlu0 %6330
      %6332 = vadd.xlane.f32.xlu0 %v6205
      %v6333 = vpop.xlane.xlu0 %6332
      %6334 = vadd.xlane.f32.xlu0 %v6207
      %v6335 = vpop.xlane.xlu0 %6334
      %6336 = vadd.xlane.f32.xlu0 %v6209
      %v6337 = vpop.xlane.xlu0 %6336
      %6338 = vadd.xlane.f32.xlu0 %v6211
      %v6339 = vpop.xlane.xlu0 %6338
      %6340 = vadd.xlane.f32.xlu0 %v6213
      %v6341 = vpop.xlane.xlu0 %6340
      %6342 = vadd.xlane.f32.xlu0 %v6215
      %v6343 = vpop.xlane.xlu0 %6342
      %6344 = vadd.xlane.f32.xlu0 %v6217
      %v6345 = vpop.xlane.xlu0 %6344
      %6346 = vadd.xlane.f32.xlu0 %v6219
      %v6347 = vpop.xlane.xlu0 %6346
      %6348 = vadd.xlane.f32.xlu0 %v6221
      %v6349 = vpop.xlane.xlu0 %6348
      %6350 = vadd.xlane.f32.xlu0 %v6223
      %v6351 = vpop.xlane.xlu0 %6350
      %6352 = vadd.xlane.f32.xlu0 %v6225
      %v6353 = vpop.xlane.xlu0 %6352
      %6354 = vadd.xlane.f32.xlu0 %v6227
      %v6355 = vpop.xlane.xlu0 %6354
      %6356 = vadd.xlane.f32.xlu0 %v6229
      %v6357 = vpop.xlane.xlu0 %6356
      %6358 = vadd.xlane.f32.xlu0 %v6231
      %v6359 = vpop.xlane.xlu0 %6358
      %6360 = vadd.xlane.f32.xlu0 %v6233
      %v6361 = vpop.xlane.xlu0 %6360
      %6362 = vadd.xlane.f32.xlu0 %v6235
      %v6363 = vpop.xlane.xlu0 %6362
      %6364 = vadd.xlane.f32.xlu0 %v6237
      %v6365 = vpop.xlane.xlu0 %6364
      %6366 = vadd.xlane.f32.xlu0 %v6239
      %v6367 = vpop.xlane.xlu0 %6366
      %6368 = vadd.xlane.f32.xlu0 %v6241
      %v6369 = vpop.xlane.xlu0 %6368
      %6370 = vadd.xlane.f32.xlu0 %v6243
      %v6371 = vpop.xlane.xlu0 %6370
      %6372 = vadd.xlane.f32.xlu0 %v6245
      %v6373 = vpop.xlane.xlu0 %6372
      %6374 = vadd.xlane.f32.xlu0 %v6247
      %v6375 = vpop.xlane.xlu0 %6374
      %6376 = vadd.xlane.f32.xlu0 %v6249
      %v6377 = vpop.xlane.xlu0 %6376
      %6378 = vadd.xlane.f32.xlu0 %v6251
      %v6379 = vpop.xlane.xlu0 %6378
      %6380 = vadd.xlane.f32.xlu0 %v6253
      %v6381 = vpop.xlane.xlu0 %6380
      %6382 = vadd.xlane.f32.xlu0 %v6255
      %v6383 = vpop.xlane.xlu0 %6382
      %6384 = vadd.xlane.f32.xlu0 %v6257
      %v6385 = vpop.xlane.xlu0 %6384
      %6386 = vadd.xlane.f32.xlu0 %v6259
      %v6387 = vpop.xlane.xlu0 %6386
      %6388 = vadd.xlane.f32.xlu0 %v6261
      %v6389 = vpop.xlane.xlu0 %6388
      %6390 = vadd.xlane.f32.xlu0 %v6263
      %v6391 = vpop.xlane.xlu0 %6390
      %6392 = vadd.xlane.f32.xlu0 %v6265
      %v6393 = vpop.xlane.xlu0 %6392
      %6394 = vadd.xlane.f32.xlu0 %v6267
      %v6395 = vpop.xlane.xlu0 %6394
      %6396 = vadd.xlane.f32.xlu0 %v6269
      %v6397 = vpop.xlane.xlu0 %6396
      %6398 = vadd.xlane.f32.xlu0 %v6271
      %v6399 = vpop.xlane.xlu0 %6398
      %6400 = vadd.xlane.f32.xlu0 %v6273
      %v6401 = vpop.xlane.xlu0 %6400
      %6402 = vadd.xlane.f32.xlu0 %v6275
      %v6403 = vpop.xlane.xlu0 %6402
      %6404 = vadd.xlane.f32.xlu0 %v6277
      %v6405 = vpop.xlane.xlu0 %6404
      %6406 = vadd.xlane.f32.xlu0 %v6279
      %v6407 = vpop.xlane.xlu0 %6406
      %6408 = vadd.xlane.f32.xlu0 %v6281
      %v6409 = vpop.xlane.xlu0 %6408
      %6410 = vadd.xlane.f32.xlu0 %v6283
      %v6411 = vpop.xlane.xlu0 %6410
      %6412 = vadd.xlane.f32.xlu0 %v6285
      %v6413 = vpop.xlane.xlu0 %6412
      %6414 = vadd.xlane.f32.xlu0 %v6287
      %v6415 = vpop.xlane.xlu0 %6414
      %6416 = vadd.xlane.f32.xlu0 %v6289
      %v6417 = vpop.xlane.xlu0 %6416
      %6418 = vadd.xlane.f32.xlu0 %v6291
      %v6419 = vpop.xlane.xlu0 %6418
      %v6420 = vrcp.pop %v6293
      %v6421 = vrcp.pop %v6295
      %v6422 = vrcp.pop %v6297
      %v6423 = vrcp.pop %v6299
      %v6424 = vrcp.pop %v6301
      %v6425 = vrcp.pop %v6303
      %v6426 = vrcp.pop %v6305
      %v6427 = vrcp.pop %v6307
      %v6428 = vrcp.pop %v6309
      %v6429 = vrcp.pop %v6311
      %v6430 = vrcp.pop %v6313
      %v6431 = vrcp.pop %v6315
      %v6432 = vrcp.pop %v6317
      %v6433 = vrcp.pop %v6319
      %v6434 = vrcp.pop %v6321
      %v6435 = vrcp.pop %v6323
      %v6436 = vrcp.pop %v6325
      %v6437 = vrcp.pop %v6327
      %v6438 = vrcp.pop %v6329
      %v6439 = vrcp.pop %v6331
      %v6440 = vrcp.pop %v6333
      %v6441 = vrcp.pop %v6335
      %v6442 = vrcp.pop %v6337
      %v6443 = vrcp.pop %v6339
      %v6444 = vrcp.pop %v6341
      %v6445 = vrcp.pop %v6343
      %v6446 = vrcp.pop %v6345
      %v6447 = vrcp.pop %v6347
      %v6448 = vrcp.pop %v6349
      %v6449 = vrcp.pop %v6351
      %v6450 = vrcp.pop %v6353
      %v6451 = vrcp.pop %v6355
      %v6452 = vrcp.pop %v6357
      %v6453 = vrcp.pop %v6359
      %v6454 = vrcp.pop %v6361
      %v6455 = vrcp.pop %v6363
      %v6456 = vrcp.pop %v6365
      %v6457 = vrcp.pop %v6367
      %v6458 = vrcp.pop %v6369
      %v6459 = vrcp.pop %v6371
      %v6460 = vrcp.pop %v6373
      %v6461 = vrcp.pop %v6375
      %v6462 = vrcp.pop %v6377
      %v6463 = vrcp.pop %v6379
      %v6464 = vrcp.pop %v6381
      %v6465 = vrcp.pop %v6383
      %v6466 = vrcp.pop %v6385
      %v6467 = vrcp.pop %v6387
      %v6468 = vrcp.pop %v6389
      %v6469 = vrcp.pop %v6391
      %v6470 = vrcp.pop %v6393
      %v6471 = vrcp.pop %v6395
      %v6472 = vrcp.pop %v6397
      %v6473 = vrcp.pop %v6399
      %v6474 = vrcp.pop %v6401
      %v6475 = vrcp.pop %v6403
      %v6476 = vrcp.pop %v6405
      %v6477 = vrcp.pop %v6407
      %v6478 = vrcp.pop %v6409
      %v6479 = vrcp.pop %v6411
      %v6480 = vrcp.pop %v6413
      %v6481 = vrcp.pop %v6415
      %v6482 = vrcp.pop %v6417
      %v6483 = vrcp.pop %v6419
      %v6484 = vmul.f32 %v6165, %v6420
      %v6485 = vmul.f32 %v6167, %v6421
      %v6486 = vmul.f32 %v6169, %v6422
      %v6487 = vmul.f32 %v6171, %v6423
      %v6488 = vmul.f32 %v6173, %v6424
      %v6489 = vmul.f32 %v6175, %v6425
      %v6490 = vmul.f32 %v6177, %v6426
      %v6491 = vmul.f32 %v6179, %v6427
      %v6492 = vmul.f32 %v6181, %v6428
      %v6493 = vmul.f32 %v6183, %v6429
      %v6494 = vmul.f32 %v6185, %v6430
      %v6495 = vmul.f32 %v6187, %v6431
      %v6496 = vmul.f32 %v6189, %v6432
      %v6497 = vmul.f32 %v6191, %v6433
      %v6498 = vmul.f32 %v6193, %v6434
      %v6499 = vmul.f32 %v6195, %v6435
      %v6500 = vmul.f32 %v6197, %v6436
      %v6501 = vmul.f32 %v6199, %v6437
      %v6502 = vmul.f32 %v6201, %v6438
      %v6503 = vmul.f32 %v6203, %v6439
      %v6504 = vmul.f32 %v6205, %v6440
      %v6505 = vmul.f32 %v6207, %v6441
      %v6506 = vmul.f32 %v6209, %v6442
      %v6507 = vmul.f32 %v6211, %v6443
      %v6508 = vmul.f32 %v6213, %v6444
      %v6509 = vmul.f32 %v6215, %v6445
      %v6510 = vmul.f32 %v6217, %v6446
      %v6511 = vmul.f32 %v6219, %v6447
      %v6512 = vmul.f32 %v6221, %v6448
      %v6513 = vmul.f32 %v6223, %v6449
      %v6514 = vmul.f32 %v6225, %v6450
      %v6515 = vmul.f32 %v6227, %v6451
      %v6516 = vmul.f32 %v6229, %v6452
      %v6517 = vmul.f32 %v6231, %v6453
      %v6518 = vmul.f32 %v6233, %v6454
      %v6519 = vmul.f32 %v6235, %v6455
      %v6520 = vmul.f32 %v6237, %v6456
      %v6521 = vmul.f32 %v6239, %v6457
      %v6522 = vmul.f32 %v6241, %v6458
      %v6523 = vmul.f32 %v6243, %v6459
      %v6524 = vmul.f32 %v6245, %v6460
      %v6525 = vmul.f32 %v6247, %v6461
      %v6526 = vmul.f32 %v6249, %v6462
      %v6527 = vmul.f32 %v6251, %v6463
      %v6528 = vmul.f32 %v6253, %v6464
      %v6529 = vmul.f32 %v6255, %v6465
      %v6530 = vmul.f32 %v6257, %v6466
      %v6531 = vmul.f32 %v6259, %v6467
      %v6532 = vmul.f32 %v6261, %v6468
      %v6533 = vmul.f32 %v6263, %v6469
      %v6534 = vmul.f32 %v6265, %v6470
      %v6535 = vmul.f32 %v6267, %v6471
      %v6536 = vmul.f32 %v6269, %v6472
      %v6537 = vmul.f32 %v6271, %v6473
      %v6538 = vmul.f32 %v6273, %v6474
      %v6539 = vmul.f32 %v6275, %v6475
      %v6540 = vmul.f32 %v6277, %v6476
      %v6541 = vmul.f32 %v6279, %v6477
      %v6542 = vmul.f32 %v6281, %v6478
      %v6543 = vmul.f32 %v6283, %v6479
      %v6544 = vmul.f32 %v6285, %v6480
      %v6545 = vmul.f32 %v6287, %v6481
      %v6546 = vmul.f32 %v6289, %v6482
      %v6547 = vmul.f32 %v6291, %v6483
      %v6548 = vpack.c.bf16 %v6484, %v6484
      %v6549 = vpack.c.bf16 %v6485, %v6485
      %v6550 = vpack.c.bf16 %v6486, %v6486
      %v6551 = vpack.c.bf16 %v6487, %v6487
      %v6552 = vpack.c.bf16 %v6488, %v6488
      %v6553 = vpack.c.bf16 %v6489, %v6489
      %v6554 = vpack.c.bf16 %v6490, %v6490
      %v6555 = vpack.c.bf16 %v6491, %v6491
      %v6556 = vpack.c.bf16 %v6492, %v6492
      %v6557 = vpack.c.bf16 %v6493, %v6493
      %v6558 = vpack.c.bf16 %v6494, %v6494
      %v6559 = vpack.c.bf16 %v6495, %v6495
      %v6560 = vpack.c.bf16 %v6496, %v6496
      %v6561 = vpack.c.bf16 %v6497, %v6497
      %v6562 = vpack.c.bf16 %v6498, %v6498
      %v6563 = vpack.c.bf16 %v6499, %v6499
      %v6564 = vpack.c.bf16 %v6500, %v6500
      %v6565 = vpack.c.bf16 %v6501, %v6501
      %v6566 = vpack.c.bf16 %v6502, %v6502
      %v6567 = vpack.c.bf16 %v6503, %v6503
      %v6568 = vpack.c.bf16 %v6504, %v6504
      %v6569 = vpack.c.bf16 %v6505, %v6505
      %v6570 = vpack.c.bf16 %v6506, %v6506
      %v6571 = vpack.c.bf16 %v6507, %v6507
      %v6572 = vpack.c.bf16 %v6508, %v6508
      %v6573 = vpack.c.bf16 %v6509, %v6509
      %v6574 = vpack.c.bf16 %v6510, %v6510
      %v6575 = vpack.c.bf16 %v6511, %v6511
      %v6576 = vpack.c.bf16 %v6512, %v6512
      %v6577 = vpack.c.bf16 %v6513, %v6513
      %v6578 = vpack.c.bf16 %v6514, %v6514
      %v6579 = vpack.c.bf16 %v6515, %v6515
      %v6580 = vpack.c.bf16 %v6516, %v6516
      %v6581 = vpack.c.bf16 %v6517, %v6517
      %v6582 = vpack.c.bf16 %v6518, %v6518
      %v6583 = vpack.c.bf16 %v6519, %v6519
      %v6584 = vpack.c.bf16 %v6520, %v6520
      %v6585 = vpack.c.bf16 %v6521, %v6521
      %v6586 = vpack.c.bf16 %v6522, %v6522
      %v6587 = vpack.c.bf16 %v6523, %v6523
      %v6588 = vpack.c.bf16 %v6524, %v6524
      %v6589 = vpack.c.bf16 %v6525, %v6525
      %v6590 = vpack.c.bf16 %v6526, %v6526
      %v6591 = vpack.c.bf16 %v6527, %v6527
      %v6592 = vpack.c.bf16 %v6528, %v6528
      %v6593 = vpack.c.bf16 %v6529, %v6529
      %v6594 = vpack.c.bf16 %v6530, %v6530
      %v6595 = vpack.c.bf16 %v6531, %v6531
      %v6596 = vpack.c.bf16 %v6532, %v6532
      %v6597 = vpack.c.bf16 %v6533, %v6533
      %v6598 = vpack.c.bf16 %v6534, %v6534
      %v6599 = vpack.c.bf16 %v6535, %v6535
      %v6600 = vpack.c.bf16 %v6536, %v6536
      %v6601 = vpack.c.bf16 %v6537, %v6537
      %v6602 = vpack.c.bf16 %v6538, %v6538
      %v6603 = vpack.c.bf16 %v6539, %v6539
      %v6604 = vpack.c.bf16 %v6540, %v6540
      %v6605 = vpack.c.bf16 %v6541, %v6541
      %v6606 = vpack.c.bf16 %v6542, %v6542
      %v6607 = vpack.c.bf16 %v6543, %v6543
      %v6608 = vpack.c.bf16 %v6544, %v6544
      %v6609 = vpack.c.bf16 %v6545, %v6545
      %v6610 = vpack.c.bf16 %v6546, %v6546
      %v6611 = vpack.c.bf16 %v6547, %v6547
      %v6628 = vunpack.c.l.b16 %v6548
      %v6629 = vunpack.c.l.b16 %v6549
      %v6630 = vunpack.c.l.b16 %v6550
      %v6631 = vunpack.c.l.b16 %v6551
      %v6632 = vunpack.c.l.b16 %v6552
      %v6633 = vunpack.c.l.b16 %v6553
      %v6634 = vunpack.c.l.b16 %v6554
      %v6635 = vunpack.c.l.b16 %v6555
      %v6636 = vunpack.c.l.b16 %v6556
      %v6637 = vunpack.c.l.b16 %v6557
      %v6638 = vunpack.c.l.b16 %v6558
      %v6639 = vunpack.c.l.b16 %v6559
      %v6640 = vunpack.c.l.b16 %v6560
      %v6641 = vunpack.c.l.b16 %v6561
      %v6642 = vunpack.c.l.b16 %v6562
      %v6643 = vunpack.c.l.b16 %v6563
      %v6644 = vpack.c.b16 %v6629, %v6628
      %v6645 = vpack.c.b16 %v6631, %v6630
      %v6646 = vpack.c.b16 %v6633, %v6632
      %v6647 = vpack.c.b16 %v6635, %v6634
      %v6648 = vpack.c.b16 %v6637, %v6636
      %v6649 = vpack.c.b16 %v6639, %v6638
      %v6650 = vpack.c.b16 %v6641, %v6640
      %v6651 = vpack.c.b16 %v6643, %v6642
      %v6676 = vunpack.c.l.b16 %v5183
      %v6677 = vunpack.c.l.b16 %v5184
      %v6678 = vunpack.c.l.b16 %v5185
      %v6679 = vunpack.c.l.b16 %v5186
      %v6680 = vunpack.c.l.b16 %v5187
      %v6681 = vunpack.c.l.b16 %v5188
      %v6682 = vunpack.c.l.b16 %v5189
      %v6683 = vunpack.c.l.b16 %v5190
      %v6684 = vunpack.c.l.b16 %v5191
      %v6685 = vunpack.c.l.b16 %v5192
      %v6686 = vunpack.c.l.b16 %v5193
      %v6687 = vunpack.c.l.b16 %v5194
      %v6688 = vunpack.c.l.b16 %v5195
      %v6689 = vunpack.c.l.b16 %v5196
      %v6690 = vunpack.c.l.b16 %v5197
      %v6691 = vunpack.c.l.b16 %v5198
      %v6692 = vpack.c.b16 %v6677, %v6676
      %v6693 = vpack.c.b16 %v6679, %v6678
      %v6694 = vpack.c.b16 %v6681, %v6680
      %v6695 = vpack.c.b16 %v6683, %v6682
      %v6696 = vpack.c.b16 %v6685, %v6684
      %v6697 = vpack.c.b16 %v6687, %v6686
      %v6698 = vpack.c.b16 %v6689, %v6688
      %v6699 = vpack.c.b16 %v6691, %v6690
      %6708 = vmatpush.bf16.msra.mxu0 %v6699
      %6709 = vmatpush.bf16.msra.mxu0 %v6698
      %6710 = vmatpush.bf16.msra.mxu0 %v6697
      %6711 = vmatpush.bf16.msra.mxu0 %v6696
      %6712 = vmatpush.bf16.msra.mxu0 %v6695
      %6713 = vmatpush.bf16.msra.mxu0 %v6694
      %6714 = vmatpush.bf16.msra.mxu0 %v6693
      %6715 = vmatpush.bf16.msra.mxu0 %v6692
      %6716 = vmatmul.bf16.gmra.mxu0 %v6644
      %v6717 = vpop.f32.mrf.mxu0
      %v6718 = vadd.f32 0.0, %v6717
      %v6719 = vpop.f32.mrf.mxu0
      %v6720 = vadd.f32 0.0, %v6719
      %6721 = vmatmul.bf16.gmra.mxu0 %v6645
      %v6722 = vpop.f32.mrf.mxu0
      %v6723 = vadd.f32 0.0, %v6722
      %v6724 = vpop.f32.mrf.mxu0
      %v6725 = vadd.f32 0.0, %v6724
      %6726 = vmatmul.bf16.gmra.mxu0 %v6646
      %v6727 = vpop.f32.mrf.mxu0
      %v6728 = vadd.f32 0.0, %v6727
      %v6729 = vpop.f32.mrf.mxu0
      %v6730 = vadd.f32 0.0, %v6729
      %6731 = vmatmul.bf16.gmra.mxu0 %v6647
      %v6732 = vpop.f32.mrf.mxu0
      %v6733 = vadd.f32 0.0, %v6732
      %v6734 = vpop.f32.mrf.mxu0
      %v6735 = vadd.f32 0.0, %v6734
      %6736 = vmatmul.bf16.gmra.mxu0 %v6648
      %v6737 = vpop.f32.mrf.mxu0
      %v6738 = vadd.f32 0.0, %v6737
      %v6739 = vpop.f32.mrf.mxu0
      %v6740 = vadd.f32 0.0, %v6739
      %6741 = vmatmul.bf16.gmra.mxu0 %v6649
      %v6742 = vpop.f32.mrf.mxu0
      %v6743 = vadd.f32 0.0, %v6742
      %v6744 = vpop.f32.mrf.mxu0
      %v6745 = vadd.f32 0.0, %v6744
      %6746 = vmatmul.bf16.gmra.mxu0 %v6650
      %v6747 = vpop.f32.mrf.mxu0
      %v6748 = vadd.f32 0.0, %v6747
      %v6749 = vpop.f32.mrf.mxu0
      %v6750 = vadd.f32 0.0, %v6749
      %6751 = vmatmul.bf16.gmra.mxu0 %v6651
      %v6752 = vpop.f32.mrf.mxu0
      %v6753 = vadd.f32 0.0, %v6752
      %v6754 = vpop.f32.mrf.mxu0
      %v6755 = vadd.f32 0.0, %v6754
      %6756 = vdwg.mxu0
      %v6773 = vunpack.c.l.b16 %v6564
      %v6774 = vunpack.c.l.b16 %v6565
      %v6775 = vunpack.c.l.b16 %v6566
      %v6776 = vunpack.c.l.b16 %v6567
      %v6777 = vunpack.c.l.b16 %v6568
      %v6778 = vunpack.c.l.b16 %v6569
      %v6779 = vunpack.c.l.b16 %v6570
      %v6780 = vunpack.c.l.b16 %v6571
      %v6781 = vunpack.c.l.b16 %v6572
      %v6782 = vunpack.c.l.b16 %v6573
      %v6783 = vunpack.c.l.b16 %v6574
      %v6784 = vunpack.c.l.b16 %v6575
      %v6785 = vunpack.c.l.b16 %v6576
      %v6786 = vunpack.c.l.b16 %v6577
      %v6787 = vunpack.c.l.b16 %v6578
      %v6788 = vunpack.c.l.b16 %v6579
      %v6789 = vpack.c.b16 %v6774, %v6773
      %v6790 = vpack.c.b16 %v6776, %v6775
      %v6791 = vpack.c.b16 %v6778, %v6777
      %v6792 = vpack.c.b16 %v6780, %v6779
      %v6793 = vpack.c.b16 %v6782, %v6781
      %v6794 = vpack.c.b16 %v6784, %v6783
      %v6795 = vpack.c.b16 %v6786, %v6785
      %v6796 = vpack.c.b16 %v6788, %v6787
      %v6821 = vunpack.c.l.b16 %v5199
      %v6822 = vunpack.c.l.b16 %v5200
      %v6823 = vunpack.c.l.b16 %v5201
      %v6824 = vunpack.c.l.b16 %v5202
      %v6825 = vunpack.c.l.b16 %v5203
      %v6826 = vunpack.c.l.b16 %v5204
      %v6827 = vunpack.c.l.b16 %v5205
      %v6828 = vunpack.c.l.b16 %v5206
      %v6829 = vunpack.c.l.b16 %v5207
      %v6830 = vunpack.c.l.b16 %v5208
      %v6831 = vunpack.c.l.b16 %v5209
      %v6832 = vunpack.c.l.b16 %v5210
      %v6833 = vunpack.c.l.b16 %v5211
      %v6834 = vunpack.c.l.b16 %v5212
      %v6835 = vunpack.c.l.b16 %v5213
      %v6836 = vunpack.c.l.b16 %v5214
      %v6837 = vpack.c.b16 %v6822, %v6821
      %v6838 = vpack.c.b16 %v6824, %v6823
      %v6839 = vpack.c.b16 %v6826, %v6825
      %v6840 = vpack.c.b16 %v6828, %v6827
      %v6841 = vpack.c.b16 %v6830, %v6829
      %v6842 = vpack.c.b16 %v6832, %v6831
      %v6843 = vpack.c.b16 %v6834, %v6833
      %v6844 = vpack.c.b16 %v6836, %v6835
      %6853 = vmatpush.bf16.msra.mxu0 %v6844
      %6854 = vmatpush.bf16.msra.mxu0 %v6843
      %6855 = vmatpush.bf16.msra.mxu0 %v6842
      %6856 = vmatpush.bf16.msra.mxu0 %v6841
      %6857 = vmatpush.bf16.msra.mxu0 %v6840
      %6858 = vmatpush.bf16.msra.mxu0 %v6839
      %6859 = vmatpush.bf16.msra.mxu0 %v6838
      %6860 = vmatpush.bf16.msra.mxu0 %v6837
      %6861 = vmatmul.bf16.gmra.mxu0 %v6789
      %v6862 = vpop.f32.mrf.mxu0
      %v6863 = vadd.f32 0.0, %v6862
      %v6864 = vpop.f32.mrf.mxu0
      %v6865 = vadd.f32 0.0, %v6864
      %6866 = vmatmul.bf16.gmra.mxu0 %v6790
      %v6867 = vpop.f32.mrf.mxu0
      %v6868 = vadd.f32 0.0, %v6867
      %v6869 = vpop.f32.mrf.mxu0
      %v6870 = vadd.f32 0.0, %v6869
      %6871 = vmatmul.bf16.gmra.mxu0 %v6791
      %v6872 = vpop.f32.mrf.mxu0
      %v6873 = vadd.f32 0.0, %v6872
      %v6874 = vpop.f32.mrf.mxu0
      %v6875 = vadd.f32 0.0, %v6874
      %6876 = vmatmul.bf16.gmra.mxu0 %v6792
      %v6877 = vpop.f32.mrf.mxu0
      %v6878 = vadd.f32 0.0, %v6877
      %v6879 = vpop.f32.mrf.mxu0
      %v6880 = vadd.f32 0.0, %v6879
      %6881 = vmatmul.bf16.gmra.mxu0 %v6793
      %v6882 = vpop.f32.mrf.mxu0
      %v6883 = vadd.f32 0.0, %v6882
      %v6884 = vpop.f32.mrf.mxu0
      %v6885 = vadd.f32 0.0, %v6884
      %6886 = vmatmul.bf16.gmra.mxu0 %v6794
      %v6887 = vpop.f32.mrf.mxu0
      %v6888 = vadd.f32 0.0, %v6887
      %v6889 = vpop.f32.mrf.mxu0
      %v6890 = vadd.f32 0.0, %v6889
      %6891 = vmatmul.bf16.gmra.mxu0 %v6795
      %v6892 = vpop.f32.mrf.mxu0
      %v6893 = vadd.f32 0.0, %v6892
      %v6894 = vpop.f32.mrf.mxu0
      %v6895 = vadd.f32 0.0, %v6894
      %6896 = vmatmul.bf16.gmra.mxu0 %v6796
      %v6897 = vpop.f32.mrf.mxu0
      %v6898 = vadd.f32 0.0, %v6897
      %v6899 = vpop.f32.mrf.mxu0
      %v6900 = vadd.f32 0.0, %v6899
      %6901 = vdwg.mxu0
      %v6918 = vunpack.c.l.b16 %v6580
      %v6919 = vunpack.c.l.b16 %v6581
      %v6920 = vunpack.c.l.b16 %v6582
      %v6921 = vunpack.c.l.b16 %v6583
      %v6922 = vunpack.c.l.b16 %v6584
      %v6923 = vunpack.c.l.b16 %v6585
      %v6924 = vunpack.c.l.b16 %v6586
      %v6925 = vunpack.c.l.b16 %v6587
      %v6926 = vunpack.c.l.b16 %v6588
      %v6927 = vunpack.c.l.b16 %v6589
      %v6928 = vunpack.c.l.b16 %v6590
      %v6929 = vunpack.c.l.b16 %v6591
      %v6930 = vunpack.c.l.b16 %v6592
      %v6931 = vunpack.c.l.b16 %v6593
      %v6932 = vunpack.c.l.b16 %v6594
      %v6933 = vunpack.c.l.b16 %v6595
      %v6934 = vpack.c.b16 %v6919, %v6918
      %v6935 = vpack.c.b16 %v6921, %v6920
      %v6936 = vpack.c.b16 %v6923, %v6922
      %v6937 = vpack.c.b16 %v6925, %v6924
      %v6938 = vpack.c.b16 %v6927, %v6926
      %v6939 = vpack.c.b16 %v6929, %v6928
      %v6940 = vpack.c.b16 %v6931, %v6930
      %v6941 = vpack.c.b16 %v6933, %v6932
      %v6966 = vunpack.c.l.b16 %v5215
      %v6967 = vunpack.c.l.b16 %v5216
      %v6968 = vunpack.c.l.b16 %v5217
      %v6969 = vunpack.c.l.b16 %v5218
      %v6970 = vunpack.c.l.b16 %v5219
      %v6971 = vunpack.c.l.b16 %v5220
      %v6972 = vunpack.c.l.b16 %v5221
      %v6973 = vunpack.c.l.b16 %v5222
      %v6974 = vunpack.c.l.b16 %v5223
      %v6975 = vunpack.c.l.b16 %v5224
      %v6976 = vunpack.c.l.b16 %v5225
      %v6977 = vunpack.c.l.b16 %v5226
      %v6978 = vunpack.c.l.b16 %v5227
      %v6979 = vunpack.c.l.b16 %v5228
      %v6980 = vunpack.c.l.b16 %v5229
      %v6981 = vunpack.c.l.b16 %v5230
      %v6982 = vpack.c.b16 %v6967, %v6966
      %v6983 = vpack.c.b16 %v6969, %v6968
      %v6984 = vpack.c.b16 %v6971, %v6970
      %v6985 = vpack.c.b16 %v6973, %v6972
      %v6986 = vpack.c.b16 %v6975, %v6974
      %v6987 = vpack.c.b16 %v6977, %v6976
      %v6988 = vpack.c.b16 %v6979, %v6978
      %v6989 = vpack.c.b16 %v6981, %v6980
      %6998 = vmatpush.bf16.msra.mxu0 %v6989
      %6999 = vmatpush.bf16.msra.mxu0 %v6988
      %7000 = vmatpush.bf16.msra.mxu0 %v6987
      %7001 = vmatpush.bf16.msra.mxu0 %v6986
      %7002 = vmatpush.bf16.msra.mxu0 %v6985
      %7003 = vmatpush.bf16.msra.mxu0 %v6984
      %7004 = vmatpush.bf16.msra.mxu0 %v6983
      %7005 = vmatpush.bf16.msra.mxu0 %v6982
      %7006 = vmatmul.bf16.gmra.mxu0 %v6934
      %v7007 = vpop.f32.mrf.mxu0
      %v7008 = vadd.f32 0.0, %v7007
      %v7009 = vpop.f32.mrf.mxu0
      %v7010 = vadd.f32 0.0, %v7009
      %7011 = vmatmul.bf16.gmra.mxu0 %v6935
      %v7012 = vpop.f32.mrf.mxu0
      %v7013 = vadd.f32 0.0, %v7012
      %v7014 = vpop.f32.mrf.mxu0
      %v7015 = vadd.f32 0.0, %v7014
      %7016 = vmatmul.bf16.gmra.mxu0 %v6936
      %v7017 = vpop.f32.mrf.mxu0
      %v7018 = vadd.f32 0.0, %v7017
      %v7019 = vpop.f32.mrf.mxu0
      %v7020 = vadd.f32 0.0, %v7019
      %7021 = vmatmul.bf16.gmra.mxu0 %v6937
      %v7022 = vpop.f32.mrf.mxu0
      %v7023 = vadd.f32 0.0, %v7022
      %v7024 = vpop.f32.mrf.mxu0
      %v7025 = vadd.f32 0.0, %v7024
      %7026 = vmatmul.bf16.gmra.mxu0 %v6938
      %v7027 = vpop.f32.mrf.mxu0
      %v7028 = vadd.f32 0.0, %v7027
      %v7029 = vpop.f32.mrf.mxu0
      %v7030 = vadd.f32 0.0, %v7029
      %7031 = vmatmul.bf16.gmra.mxu0 %v6939
      %v7032 = vpop.f32.mrf.mxu0
      %v7033 = vadd.f32 0.0, %v7032
      %v7034 = vpop.f32.mrf.mxu0
      %v7035 = vadd.f32 0.0, %v7034
      %7036 = vmatmul.bf16.gmra.mxu0 %v6940
      %v7037 = vpop.f32.mrf.mxu0
      %v7038 = vadd.f32 0.0, %v7037
      %v7039 = vpop.f32.mrf.mxu0
      %v7040 = vadd.f32 0.0, %v7039
      %7041 = vmatmul.bf16.gmra.mxu0 %v6941
      %v7042 = vpop.f32.mrf.mxu0
      %v7043 = vadd.f32 0.0, %v7042
      %v7044 = vpop.f32.mrf.mxu0
      %v7045 = vadd.f32 0.0, %v7044
      %7046 = vdwg.mxu0
      %v7063 = vunpack.c.l.b16 %v6596
      %v7064 = vunpack.c.l.b16 %v6597
      %v7065 = vunpack.c.l.b16 %v6598
      %v7066 = vunpack.c.l.b16 %v6599
      %v7067 = vunpack.c.l.b16 %v6600
      %v7068 = vunpack.c.l.b16 %v6601
      %v7069 = vunpack.c.l.b16 %v6602
      %v7070 = vunpack.c.l.b16 %v6603
      %v7071 = vunpack.c.l.b16 %v6604
      %v7072 = vunpack.c.l.b16 %v6605
      %v7073 = vunpack.c.l.b16 %v6606
      %v7074 = vunpack.c.l.b16 %v6607
      %v7075 = vunpack.c.l.b16 %v6608
      %v7076 = vunpack.c.l.b16 %v6609
      %v7077 = vunpack.c.l.b16 %v6610
      %v7078 = vunpack.c.l.b16 %v6611
      %v7079 = vpack.c.b16 %v7064, %v7063
      %v7080 = vpack.c.b16 %v7066, %v7065
      %v7081 = vpack.c.b16 %v7068, %v7067
      %v7082 = vpack.c.b16 %v7070, %v7069
      %v7083 = vpack.c.b16 %v7072, %v7071
      %v7084 = vpack.c.b16 %v7074, %v7073
      %v7085 = vpack.c.b16 %v7076, %v7075
      %v7086 = vpack.c.b16 %v7078, %v7077
      %v7111 = vunpack.c.l.b16 %v5231
      %v7112 = vunpack.c.l.b16 %v5232
      %v7113 = vunpack.c.l.b16 %v5233
      %v7114 = vunpack.c.l.b16 %v5234
      %v7115 = vunpack.c.l.b16 %v5235
      %v7116 = vunpack.c.l.b16 %v5236
      %v7117 = vunpack.c.l.b16 %v5237
      %v7118 = vunpack.c.l.b16 %v5238
      %v7119 = vunpack.c.l.b16 %v5239
      %v7120 = vunpack.c.l.b16 %v5240
      %v7121 = vunpack.c.l.b16 %v5241
      %v7122 = vunpack.c.l.b16 %v5242
      %v7123 = vunpack.c.l.b16 %v5243
      %v7124 = vunpack.c.l.b16 %v5244
      %v7125 = vunpack.c.l.b16 %v5245
      %v7126 = vunpack.c.l.b16 %v5246
      %v7127 = vpack.c.b16 %v7112, %v7111
      %v7128 = vpack.c.b16 %v7114, %v7113
      %v7129 = vpack.c.b16 %v7116, %v7115
      %v7130 = vpack.c.b16 %v7118, %v7117
      %v7131 = vpack.c.b16 %v7120, %v7119
      %v7132 = vpack.c.b16 %v7122, %v7121
      %v7133 = vpack.c.b16 %v7124, %v7123
      %v7134 = vpack.c.b16 %v7126, %v7125
      %7143 = vmatpush.bf16.msra.mxu0 %v7134
      %7144 = vmatpush.bf16.msra.mxu0 %v7133
      %7145 = vmatpush.bf16.msra.mxu0 %v7132
      %7146 = vmatpush.bf16.msra.mxu0 %v7131
      %7147 = vmatpush.bf16.msra.mxu0 %v7130
      %7148 = vmatpush.bf16.msra.mxu0 %v7129
      %7149 = vmatpush.bf16.msra.mxu0 %v7128
      %7150 = vmatpush.bf16.msra.mxu0 %v7127
      %7151 = vmatmul.bf16.gmra.mxu0 %v7079
      %v7152 = vpop.f32.mrf.mxu0
      %v7153 = vadd.f32 0.0, %v7152
      %v7154 = vpop.f32.mrf.mxu0
      %v7155 = vadd.f32 0.0, %v7154
      %7156 = vmatmul.bf16.gmra.mxu0 %v7080
      %v7157 = vpop.f32.mrf.mxu0
      %v7158 = vadd.f32 0.0, %v7157
      %v7159 = vpop.f32.mrf.mxu0
      %v7160 = vadd.f32 0.0, %v7159
      %7161 = vmatmul.bf16.gmra.mxu0 %v7081
      %v7162 = vpop.f32.mrf.mxu0
      %v7163 = vadd.f32 0.0, %v7162
      %v7164 = vpop.f32.mrf.mxu0
      %v7165 = vadd.f32 0.0, %v7164
      %7166 = vmatmul.bf16.gmra.mxu0 %v7082
      %v7167 = vpop.f32.mrf.mxu0
      %v7168 = vadd.f32 0.0, %v7167
      %v7169 = vpop.f32.mrf.mxu0
      %v7170 = vadd.f32 0.0, %v7169
      %7171 = vmatmul.bf16.gmra.mxu0 %v7083
      %v7172 = vpop.f32.mrf.mxu0
      %v7173 = vadd.f32 0.0, %v7172
      %v7174 = vpop.f32.mrf.mxu0
      %v7175 = vadd.f32 0.0, %v7174
      %7176 = vmatmul.bf16.gmra.mxu0 %v7084
      %v7177 = vpop.f32.mrf.mxu0
      %v7178 = vadd.f32 0.0, %v7177
      %v7179 = vpop.f32.mrf.mxu0
      %v7180 = vadd.f32 0.0, %v7179
      %7181 = vmatmul.bf16.gmra.mxu0 %v7085
      %v7182 = vpop.f32.mrf.mxu0
      %v7183 = vadd.f32 0.0, %v7182
      %v7184 = vpop.f32.mrf.mxu0
      %v7185 = vadd.f32 0.0, %v7184
      %7186 = vmatmul.bf16.gmra.mxu0 %v7086
      %v7187 = vpop.f32.mrf.mxu0
      %v7188 = vadd.f32 0.0, %v7187
      %v7189 = vpop.f32.mrf.mxu0
      %v7190 = vadd.f32 0.0, %v7189
      %7191 = vdwg.mxu0
      %v7192 = vpack.c.bf16 %v6718, %v6718
      %v7193 = vpack.c.bf16 %v6720, %v6720
      %v7194 = vpack.c.bf16 %v6723, %v6723
      %v7195 = vpack.c.bf16 %v6725, %v6725
      %v7196 = vpack.c.bf16 %v6728, %v6728
      %v7197 = vpack.c.bf16 %v6730, %v6730
      %v7198 = vpack.c.bf16 %v6733, %v6733
      %v7199 = vpack.c.bf16 %v6735, %v6735
      %v7200 = vpack.c.bf16 %v6738, %v6738
      %v7201 = vpack.c.bf16 %v6740, %v6740
      %v7202 = vpack.c.bf16 %v6743, %v6743
      %v7203 = vpack.c.bf16 %v6745, %v6745
      %v7204 = vpack.c.bf16 %v6748, %v6748
      %v7205 = vpack.c.bf16 %v6750, %v6750
      %v7206 = vpack.c.bf16 %v6753, %v6753
      %v7207 = vpack.c.bf16 %v6755, %v6755
      %v7208 = vpack.c.bf16 %v6863, %v6863
      %v7209 = vpack.c.bf16 %v6865, %v6865
      %v7210 = vpack.c.bf16 %v6868, %v6868
      %v7211 = vpack.c.bf16 %v6870, %v6870
      %v7212 = vpack.c.bf16 %v6873, %v6873
      %v7213 = vpack.c.bf16 %v6875, %v6875
      %v7214 = vpack.c.bf16 %v6878, %v6878
      %v7215 = vpack.c.bf16 %v6880, %v6880
      %v7216 = vpack.c.bf16 %v6883, %v6883
      %v7217 = vpack.c.bf16 %v6885, %v6885
      %v7218 = vpack.c.bf16 %v6888, %v6888
      %v7219 = vpack.c.bf16 %v6890, %v6890
      %v7220 = vpack.c.bf16 %v6893, %v6893
      %v7221 = vpack.c.bf16 %v6895, %v6895
      %v7222 = vpack.c.bf16 %v6898, %v6898
      %v7223 = vpack.c.bf16 %v6900, %v6900
      %v7224 = vpack.c.bf16 %v7008, %v7008
      %v7225 = vpack.c.bf16 %v7010, %v7010
      %v7226 = vpack.c.bf16 %v7013, %v7013
      %v7227 = vpack.c.bf16 %v7015, %v7015
      %v7228 = vpack.c.bf16 %v7018, %v7018
      %v7229 = vpack.c.bf16 %v7020, %v7020
      %v7230 = vpack.c.bf16 %v7023, %v7023
      %v7231 = vpack.c.bf16 %v7025, %v7025
      %v7232 = vpack.c.bf16 %v7028, %v7028
      %v7233 = vpack.c.bf16 %v7030, %v7030
      %v7234 = vpack.c.bf16 %v7033, %v7033
      %v7235 = vpack.c.bf16 %v7035, %v7035
      %v7236 = vpack.c.bf16 %v7038, %v7038
      %v7237 = vpack.c.bf16 %v7040, %v7040
      %v7238 = vpack.c.bf16 %v7043, %v7043
      %v7239 = vpack.c.bf16 %v7045, %v7045
      %v7240 = vpack.c.bf16 %v7153, %v7153
      %v7241 = vpack.c.bf16 %v7155, %v7155
      %v7242 = vpack.c.bf16 %v7158, %v7158
      %v7243 = vpack.c.bf16 %v7160, %v7160
      %v7244 = vpack.c.bf16 %v7163, %v7163
      %v7245 = vpack.c.bf16 %v7165, %v7165
      %v7246 = vpack.c.bf16 %v7168, %v7168
      %v7247 = vpack.c.bf16 %v7170, %v7170
      %v7248 = vpack.c.bf16 %v7173, %v7173
      %v7249 = vpack.c.bf16 %v7175, %v7175
      %v7250 = vpack.c.bf16 %v7178, %v7178
      %v7251 = vpack.c.bf16 %v7180, %v7180
      %v7252 = vpack.c.bf16 %v7183, %v7183
      %v7253 = vpack.c.bf16 %v7185, %v7185
      %v7254 = vpack.c.bf16 %v7188, %v7188
      %v7255 = vpack.c.bf16 %v7190, %v7190
      %v7256 = vld [vmem:[%s23] sm:$0xf]
      %v7257 = vld [vmem:[%s23 + $0x4] sm:$0xf]
      %v7258 = vld [vmem:[%s23 + $0x8] sm:$0xf]
      %v7259 = vld [vmem:[%s23 + $0xc] sm:$0xf]
      %v7276 = vunpack.c.l.b16 %v7192
      %v7277 = vunpack.c.l.b16 %v7193
      %v7278 = vunpack.c.l.b16 %v7194
      %v7279 = vunpack.c.l.b16 %v7195
      %v7280 = vunpack.c.l.b16 %v7196
      %v7281 = vunpack.c.l.b16 %v7197
      %v7282 = vunpack.c.l.b16 %v7198
      %v7283 = vunpack.c.l.b16 %v7199
      %v7284 = vunpack.c.l.b16 %v7200
      %v7285 = vunpack.c.l.b16 %v7201
      %v7286 = vunpack.c.l.b16 %v7202
      %v7287 = vunpack.c.l.b16 %v7203
      %v7288 = vunpack.c.l.b16 %v7204
      %v7289 = vunpack.c.l.b16 %v7205
      %v7290 = vunpack.c.l.b16 %v7206
      %v7291 = vunpack.c.l.b16 %v7207
      %v7292 = vpack.c.b16 %v7277, %v7276
      %v7293 = vpack.c.b16 %v7279, %v7278
      %v7294 = vpack.c.b16 %v7281, %v7280
      %v7295 = vpack.c.b16 %v7283, %v7282
      %v7296 = vpack.c.b16 %v7285, %v7284
      %v7297 = vpack.c.b16 %v7287, %v7286
      %v7298 = vpack.c.b16 %v7289, %v7288
      %v7299 = vpack.c.b16 %v7291, %v7290
      %v7301 = vsel %vm5343, %v7292, 0
      %v7304 = vsel %vm5343, %v7293, 0
      %v7307 = vsel %vm5343, %v7294, 0
      %v7310 = vsel %vm5343, %v7295, 0
      %v7313 = vsel %vm5343, %v7296, 0
      %v7316 = vsel %vm5343, %v7297, 0
      %v7319 = vsel %vm5343, %v7298, 0
      %v7322 = vsel %vm5343, %v7299, 0
      %v7325 = vsel %vm2355, %v7256, 0
      %7327 = vmatpush.bf16.msra.mxu0 0
      %7328 = vmatpush.bf16.msra.mxu0 0
      %7329 = vmatpush.bf16.msra.mxu0 0
      %7330 = vmatpush.bf16.msra.mxu0 0
      %7331 = vmatpush.bf16.msra.mxu0 0
      %7332 = vmatpush.bf16.msra.mxu0 0
      %7333 = vmatpush.bf16.msra.mxu0 0
      %7334 = vmatpush.bf16.msra.mxu0 %v7325
      %7335 = vmatmul.bf16.gmra.mxu0 %v7301
      %v7336 = vpop.f32.mrf.mxu0
      %v7337 = vadd.f32 0.0, %v7336
      %v7338 = vpop.f32.mrf.mxu0
      %v7339 = vadd.f32 0.0, %v7338
      %7340 = vmatmul.bf16.gmra.mxu0 %v7304
      %v7341 = vpop.f32.mrf.mxu0
      %v7342 = vadd.f32 0.0, %v7341
      %v7343 = vpop.f32.mrf.mxu0
      %v7344 = vadd.f32 0.0, %v7343
      %7345 = vmatmul.bf16.gmra.mxu0 %v7307
      %v7346 = vpop.f32.mrf.mxu0
      %v7347 = vadd.f32 0.0, %v7346
      %v7348 = vpop.f32.mrf.mxu0
      %v7349 = vadd.f32 0.0, %v7348
      %7350 = vmatmul.bf16.gmra.mxu0 %v7310
      %v7351 = vpop.f32.mrf.mxu0
      %v7352 = vadd.f32 0.0, %v7351
      %v7353 = vpop.f32.mrf.mxu0
      %v7354 = vadd.f32 0.0, %v7353
      %7355 = vmatmul.bf16.gmra.mxu0 %v7313
      %v7356 = vpop.f32.mrf.mxu0
      %v7357 = vadd.f32 0.0, %v7356
      %v7358 = vpop.f32.mrf.mxu0
      %v7359 = vadd.f32 0.0, %v7358
      %7360 = vmatmul.bf16.gmra.mxu0 %v7316
      %v7361 = vpop.f32.mrf.mxu0
      %v7362 = vadd.f32 0.0, %v7361
      %v7363 = vpop.f32.mrf.mxu0
      %v7364 = vadd.f32 0.0, %v7363
      %7365 = vmatmul.bf16.gmra.mxu0 %v7319
      %v7366 = vpop.f32.mrf.mxu0
      %v7367 = vadd.f32 0.0, %v7366
      %v7368 = vpop.f32.mrf.mxu0
      %v7369 = vadd.f32 0.0, %v7368
      %7370 = vmatmul.bf16.gmra.mxu0 %v7322
      %v7371 = vpop.f32.mrf.mxu0
      %v7372 = vadd.f32 0.0, %v7371
      %v7373 = vpop.f32.mrf.mxu0
      %v7374 = vadd.f32 0.0, %v7373
      %7375 = vdwg.mxu0
      %v7392 = vunpack.c.l.b16 %v7208
      %v7393 = vunpack.c.l.b16 %v7209
      %v7394 = vunpack.c.l.b16 %v7210
      %v7395 = vunpack.c.l.b16 %v7211
      %v7396 = vunpack.c.l.b16 %v7212
      %v7397 = vunpack.c.l.b16 %v7213
      %v7398 = vunpack.c.l.b16 %v7214
      %v7399 = vunpack.c.l.b16 %v7215
      %v7400 = vunpack.c.l.b16 %v7216
      %v7401 = vunpack.c.l.b16 %v7217
      %v7402 = vunpack.c.l.b16 %v7218
      %v7403 = vunpack.c.l.b16 %v7219
      %v7404 = vunpack.c.l.b16 %v7220
      %v7405 = vunpack.c.l.b16 %v7221
      %v7406 = vunpack.c.l.b16 %v7222
      %v7407 = vunpack.c.l.b16 %v7223
      %v7408 = vpack.c.b16 %v7393, %v7392
      %v7409 = vpack.c.b16 %v7395, %v7394
      %v7410 = vpack.c.b16 %v7397, %v7396
      %v7411 = vpack.c.b16 %v7399, %v7398
      %v7412 = vpack.c.b16 %v7401, %v7400
      %v7413 = vpack.c.b16 %v7403, %v7402
      %v7414 = vpack.c.b16 %v7405, %v7404
      %v7415 = vpack.c.b16 %v7407, %v7406
      %v7417 = vsel %vm5343, %v7408, 0
      %v7420 = vsel %vm5343, %v7409, 0
      %v7423 = vsel %vm5343, %v7410, 0
      %v7426 = vsel %vm5343, %v7411, 0
      %v7429 = vsel %vm5343, %v7412, 0
      %v7432 = vsel %vm5343, %v7413, 0
      %v7435 = vsel %vm5343, %v7414, 0
      %v7438 = vsel %vm5343, %v7415, 0
      %v7441 = vsel %vm2355, %v7257, 0
      %7443 = vmatpush.bf16.msra.mxu0 0
      %7444 = vmatpush.bf16.msra.mxu0 0
      %7445 = vmatpush.bf16.msra.mxu0 0
      %7446 = vmatpush.bf16.msra.mxu0 0
      %7447 = vmatpush.bf16.msra.mxu0 0
      %7448 = vmatpush.bf16.msra.mxu0 0
      %7449 = vmatpush.bf16.msra.mxu0 0
      %7450 = vmatpush.bf16.msra.mxu0 %v7441
      %7451 = vmatmul.bf16.gmra.mxu0 %v7417
      %v7452 = vpop.f32.mrf.mxu0
      %v7453 = vadd.f32 0.0, %v7452
      %v7454 = vpop.f32.mrf.mxu0
      %v7455 = vadd.f32 0.0, %v7454
      %7456 = vmatmul.bf16.gmra.mxu0 %v7420
      %v7457 = vpop.f32.mrf.mxu0
      %v7458 = vadd.f32 0.0, %v7457
      %v7459 = vpop.f32.mrf.mxu0
      %v7460 = vadd.f32 0.0, %v7459
      %7461 = vmatmul.bf16.gmra.mxu0 %v7423
      %v7462 = vpop.f32.mrf.mxu0
      %v7463 = vadd.f32 0.0, %v7462
      %v7464 = vpop.f32.mrf.mxu0
      %v7465 = vadd.f32 0.0, %v7464
      %7466 = vmatmul.bf16.gmra.mxu0 %v7426
      %v7467 = vpop.f32.mrf.mxu0
      %v7468 = vadd.f32 0.0, %v7467
      %v7469 = vpop.f32.mrf.mxu0
      %v7470 = vadd.f32 0.0, %v7469
      %7471 = vmatmul.bf16.gmra.mxu0 %v7429
      %v7472 = vpop.f32.mrf.mxu0
      %v7473 = vadd.f32 0.0, %v7472
      %v7474 = vpop.f32.mrf.mxu0
      %v7475 = vadd.f32 0.0, %v7474
      %7476 = vmatmul.bf16.gmra.mxu0 %v7432
      %v7477 = vpop.f32.mrf.mxu0
      %v7478 = vadd.f32 0.0, %v7477
      %v7479 = vpop.f32.mrf.mxu0
      %v7480 = vadd.f32 0.0, %v7479
      %7481 = vmatmul.bf16.gmra.mxu0 %v7435
      %v7482 = vpop.f32.mrf.mxu0
      %v7483 = vadd.f32 0.0, %v7482
      %v7484 = vpop.f32.mrf.mxu0
      %v7485 = vadd.f32 0.0, %v7484
      %7486 = vmatmul.bf16.gmra.mxu0 %v7438
      %v7487 = vpop.f32.mrf.mxu0
      %v7488 = vadd.f32 0.0, %v7487
      %v7489 = vpop.f32.mrf.mxu0
      %v7490 = vadd.f32 0.0, %v7489
      %7491 = vdwg.mxu0
      %v7508 = vunpack.c.l.b16 %v7224
      %v7509 = vunpack.c.l.b16 %v7225
      %v7510 = vunpack.c.l.b16 %v7226
      %v7511 = vunpack.c.l.b16 %v7227
      %v7512 = vunpack.c.l.b16 %v7228
      %v7513 = vunpack.c.l.b16 %v7229
      %v7514 = vunpack.c.l.b16 %v7230
      %v7515 = vunpack.c.l.b16 %v7231
      %v7516 = vunpack.c.l.b16 %v7232
      %v7517 = vunpack.c.l.b16 %v7233
      %v7518 = vunpack.c.l.b16 %v7234
      %v7519 = vunpack.c.l.b16 %v7235
      %v7520 = vunpack.c.l.b16 %v7236
      %v7521 = vunpack.c.l.b16 %v7237
      %v7522 = vunpack.c.l.b16 %v7238
      %v7523 = vunpack.c.l.b16 %v7239
      %v7524 = vpack.c.b16 %v7509, %v7508
      %v7525 = vpack.c.b16 %v7511, %v7510
      %v7526 = vpack.c.b16 %v7513, %v7512
      %v7527 = vpack.c.b16 %v7515, %v7514
      %v7528 = vpack.c.b16 %v7517, %v7516
      %v7529 = vpack.c.b16 %v7519, %v7518
      %v7530 = vpack.c.b16 %v7521, %v7520
      %v7531 = vpack.c.b16 %v7523, %v7522
      %v7533 = vsel %vm5343, %v7524, 0
      %v7536 = vsel %vm5343, %v7525, 0
      %v7539 = vsel %vm5343, %v7526, 0
      %v7542 = vsel %vm5343, %v7527, 0
      %v7545 = vsel %vm5343, %v7528, 0
      %v7548 = vsel %vm5343, %v7529, 0
      %v7551 = vsel %vm5343, %v7530, 0
      %v7554 = vsel %vm5343, %v7531, 0
      %v7557 = vsel %vm2355, %v7258, 0
      %7559 = vmatpush.bf16.msra.mxu0 0
      %7560 = vmatpush.bf16.msra.mxu0 0
      %7561 = vmatpush.bf16.msra.mxu0 0
      %7562 = vmatpush.bf16.msra.mxu0 0
      %7563 = vmatpush.bf16.msra.mxu0 0
      %7564 = vmatpush.bf16.msra.mxu0 0
      %7565 = vmatpush.bf16.msra.mxu0 0
      %7566 = vmatpush.bf16.msra.mxu0 %v7557
      %7567 = vmatmul.bf16.gmra.mxu0 %v7533
      %v7568 = vpop.f32.mrf.mxu0
      %v7569 = vadd.f32 0.0, %v7568
      %v7570 = vpop.f32.mrf.mxu0
      %v7571 = vadd.f32 0.0, %v7570
      %7572 = vmatmul.bf16.gmra.mxu0 %v7536
      %v7573 = vpop.f32.mrf.mxu0
      %v7574 = vadd.f32 0.0, %v7573
      %v7575 = vpop.f32.mrf.mxu0
      %v7576 = vadd.f32 0.0, %v7575
      %7577 = vmatmul.bf16.gmra.mxu0 %v7539
      %v7578 = vpop.f32.mrf.mxu0
      %v7579 = vadd.f32 0.0, %v7578
      %v7580 = vpop.f32.mrf.mxu0
      %v7581 = vadd.f32 0.0, %v7580
      %7582 = vmatmul.bf16.gmra.mxu0 %v7542
      %v7583 = vpop.f32.mrf.mxu0
      %v7584 = vadd.f32 0.0, %v7583
      %v7585 = vpop.f32.mrf.mxu0
      %v7586 = vadd.f32 0.0, %v7585
      %7587 = vmatmul.bf16.gmra.mxu0 %v7545
      %v7588 = vpop.f32.mrf.mxu0
      %v7589 = vadd.f32 0.0, %v7588
      %v7590 = vpop.f32.mrf.mxu0
      %v7591 = vadd.f32 0.0, %v7590
      %7592 = vmatmul.bf16.gmra.mxu0 %v7548
      %v7593 = vpop.f32.mrf.mxu0
      %v7594 = vadd.f32 0.0, %v7593
      %v7595 = vpop.f32.mrf.mxu0
      %v7596 = vadd.f32 0.0, %v7595
      %7597 = vmatmul.bf16.gmra.mxu0 %v7551
      %v7598 = vpop.f32.mrf.mxu0
      %v7599 = vadd.f32 0.0, %v7598
      %v7600 = vpop.f32.mrf.mxu0
      %v7601 = vadd.f32 0.0, %v7600
      %7602 = vmatmul.bf16.gmra.mxu0 %v7554
      %v7603 = vpop.f32.mrf.mxu0
      %v7604 = vadd.f32 0.0, %v7603
      %v7605 = vpop.f32.mrf.mxu0
      %v7606 = vadd.f32 0.0, %v7605
      %7607 = vdwg.mxu0
      %v7624 = vunpack.c.l.b16 %v7240
      %v7625 = vunpack.c.l.b16 %v7241
      %v7626 = vunpack.c.l.b16 %v7242
      %v7627 = vunpack.c.l.b16 %v7243
      %v7628 = vunpack.c.l.b16 %v7244
      %v7629 = vunpack.c.l.b16 %v7245
      %v7630 = vunpack.c.l.b16 %v7246
      %v7631 = vunpack.c.l.b16 %v7247
      %v7632 = vunpack.c.l.b16 %v7248
      %v7633 = vunpack.c.l.b16 %v7249
      %v7634 = vunpack.c.l.b16 %v7250
      %v7635 = vunpack.c.l.b16 %v7251
      %v7636 = vunpack.c.l.b16 %v7252
      %v7637 = vunpack.c.l.b16 %v7253
      %v7638 = vunpack.c.l.b16 %v7254
      %v7639 = vunpack.c.l.b16 %v7255
      %v7640 = vpack.c.b16 %v7625, %v7624
      %v7641 = vpack.c.b16 %v7627, %v7626
      %v7642 = vpack.c.b16 %v7629, %v7628
      %v7643 = vpack.c.b16 %v7631, %v7630
      %v7644 = vpack.c.b16 %v7633, %v7632
      %v7645 = vpack.c.b16 %v7635, %v7634
      %v7646 = vpack.c.b16 %v7637, %v7636
      %v7647 = vpack.c.b16 %v7639, %v7638
      %v7649 = vsel %vm5343, %v7640, 0
      %v7652 = vsel %vm5343, %v7641, 0
      %v7655 = vsel %vm5343, %v7642, 0
      %v7658 = vsel %vm5343, %v7643, 0
      %v7661 = vsel %vm5343, %v7644, 0
      %v7664 = vsel %vm5343, %v7645, 0
      %v7667 = vsel %vm5343, %v7646, 0
      %v7670 = vsel %vm5343, %v7647, 0
      %v7673 = vsel %vm2355, %v7259, 0
      %7675 = vmatpush.bf16.msra.mxu0 0
      %7676 = vmatpush.bf16.msra.mxu0 0
      %7677 = vmatpush.bf16.msra.mxu0 0
      %7678 = vmatpush.bf16.msra.mxu0 0
      %7679 = vmatpush.bf16.msra.mxu0 0
      %7680 = vmatpush.bf16.msra.mxu0 0
      %7681 = vmatpush.bf16.msra.mxu0 0
      %7682 = vmatpush.bf16.msra.mxu0 %v7673
      %7683 = vmatmul.bf16.gmra.mxu0 %v7649
      %v7684 = vpop.f32.mrf.mxu0
      %v7685 = vadd.f32 0.0, %v7684
      %v7686 = vpop.f32.mrf.mxu0
      %v7687 = vadd.f32 0.0, %v7686
      %7688 = vmatmul.bf16.gmra.mxu0 %v7652
      %v7689 = vpop.f32.mrf.mxu0
      %v7690 = vadd.f32 0.0, %v7689
      %v7691 = vpop.f32.mrf.mxu0
      %v7692 = vadd.f32 0.0, %v7691
      %7693 = vmatmul.bf16.gmra.mxu0 %v7655
      %v7694 = vpop.f32.mrf.mxu0
      %v7695 = vadd.f32 0.0, %v7694
      %v7696 = vpop.f32.mrf.mxu0
      %v7697 = vadd.f32 0.0, %v7696
      %7698 = vmatmul.bf16.gmra.mxu0 %v7658
      %v7699 = vpop.f32.mrf.mxu0
      %v7700 = vadd.f32 0.0, %v7699
      %v7701 = vpop.f32.mrf.mxu0
      %v7702 = vadd.f32 0.0, %v7701
      %7703 = vmatmul.bf16.gmra.mxu0 %v7661
      %v7704 = vpop.f32.mrf.mxu0
      %v7705 = vadd.f32 0.0, %v7704
      %v7706 = vpop.f32.mrf.mxu0
      %v7707 = vadd.f32 0.0, %v7706
      %7708 = vmatmul.bf16.gmra.mxu0 %v7664
      %v7709 = vpop.f32.mrf.mxu0
      %v7710 = vadd.f32 0.0, %v7709
      %v7711 = vpop.f32.mrf.mxu0
      %v7712 = vadd.f32 0.0, %v7711
      %7713 = vmatmul.bf16.gmra.mxu0 %v7667
      %v7714 = vpop.f32.mrf.mxu0
      %v7715 = vadd.f32 0.0, %v7714
      %v7716 = vpop.f32.mrf.mxu0
      %v7717 = vadd.f32 0.0, %v7716
      %7718 = vmatmul.bf16.gmra.mxu0 %v7670
      %v7719 = vpop.f32.mrf.mxu0
      %v7720 = vadd.f32 0.0, %v7719
      %v7721 = vpop.f32.mrf.mxu0
      %v7722 = vadd.f32 0.0, %v7721
      %7723 = vdwg.mxu0
      %v7724 = vsel %vm918, %v7337, 0.0
      %v7725 = vsel %vm918, %v7453, 0.0
      %v7726 = vadd.f32 %v7724, %v7725
      %v7727 = vsel %vm918, %v7569, 0.0
      %v7728 = vadd.f32 %v7726, %v7727
      %v7729 = vsel %vm918, %v7685, 0.0
      %v7730 = vadd.f32 %v7728, %v7729
      %v7731 = vsel %vm918, %v7339, 0.0
      %v7732 = vsel %vm918, %v7455, 0.0
      %v7733 = vadd.f32 %v7731, %v7732
      %v7734 = vsel %vm918, %v7571, 0.0
      %v7735 = vadd.f32 %v7733, %v7734
      %v7736 = vsel %vm918, %v7687, 0.0
      %v7737 = vadd.f32 %v7735, %v7736
      %v7738 = vsel %vm918, %v7342, 0.0
      %v7739 = vsel %vm918, %v7458, 0.0
      %v7740 = vadd.f32 %v7738, %v7739
      %v7741 = vsel %vm918, %v7574, 0.0
      %v7742 = vadd.f32 %v7740, %v7741
      %v7743 = vsel %vm918, %v7690, 0.0
      %v7744 = vadd.f32 %v7742, %v7743
      %v7745 = vsel %vm918, %v7344, 0.0
      %v7746 = vsel %vm918, %v7460, 0.0
      %v7747 = vadd.f32 %v7745, %v7746
      %v7748 = vsel %vm918, %v7576, 0.0
      %v7749 = vadd.f32 %v7747, %v7748
      %v7750 = vsel %vm918, %v7692, 0.0
      %v7751 = vadd.f32 %v7749, %v7750
      %v7752 = vsel %vm918, %v7347, 0.0
      %v7753 = vsel %vm918, %v7463, 0.0
      %v7754 = vadd.f32 %v7752, %v7753
      %v7755 = vsel %vm918, %v7579, 0.0
      %v7756 = vadd.f32 %v7754, %v7755
      %v7757 = vsel %vm918, %v7695, 0.0
      %v7758 = vadd.f32 %v7756, %v7757
      %v7759 = vsel %vm918, %v7349, 0.0
      %v7760 = vsel %vm918, %v7465, 0.0
      %v7761 = vadd.f32 %v7759, %v7760
      %v7762 = vsel %vm918, %v7581, 0.0
      %v7763 = vadd.f32 %v7761, %v7762
      %v7764 = vsel %vm918, %v7697, 0.0
      %v7765 = vadd.f32 %v7763, %v7764
      %v7766 = vsel %vm918, %v7352, 0.0
      %v7767 = vsel %vm918, %v7468, 0.0
      %v7768 = vadd.f32 %v7766, %v7767
      %v7769 = vsel %vm918, %v7584, 0.0
      %v7770 = vadd.f32 %v7768, %v7769
      %v7771 = vsel %vm918, %v7700, 0.0
      %v7772 = vadd.f32 %v7770, %v7771
      %v7773 = vsel %vm918, %v7354, 0.0
      %v7774 = vsel %vm918, %v7470, 0.0
      %v7775 = vadd.f32 %v7773, %v7774
      %v7776 = vsel %vm918, %v7586, 0.0
      %v7777 = vadd.f32 %v7775, %v7776
      %v7778 = vsel %vm918, %v7702, 0.0
      %v7779 = vadd.f32 %v7777, %v7778
      %v7780 = vsel %vm918, %v7357, 0.0
      %v7781 = vsel %vm918, %v7473, 0.0
      %v7782 = vadd.f32 %v7780, %v7781
      %v7783 = vsel %vm918, %v7589, 0.0
      %v7784 = vadd.f32 %v7782, %v7783
      %v7785 = vsel %vm918, %v7705, 0.0
      %v7786 = vadd.f32 %v7784, %v7785
      %v7787 = vsel %vm918, %v7359, 0.0
      %v7788 = vsel %vm918, %v7475, 0.0
      %v7789 = vadd.f32 %v7787, %v7788
      %v7790 = vsel %vm918, %v7591, 0.0
      %v7791 = vadd.f32 %v7789, %v7790
      %v7792 = vsel %vm918, %v7707, 0.0
      %v7793 = vadd.f32 %v7791, %v7792
      %v7794 = vsel %vm918, %v7362, 0.0
      %v7795 = vsel %vm918, %v7478, 0.0
      %v7796 = vadd.f32 %v7794, %v7795
      %v7797 = vsel %vm918, %v7594, 0.0
      %v7798 = vadd.f32 %v7796, %v7797
      %v7799 = vsel %vm918, %v7710, 0.0
      %v7800 = vadd.f32 %v7798, %v7799
      %v7801 = vsel %vm918, %v7364, 0.0
      %v7802 = vsel %vm918, %v7480, 0.0
      %v7803 = vadd.f32 %v7801, %v7802
      %v7804 = vsel %vm918, %v7596, 0.0
      %v7805 = vadd.f32 %v7803, %v7804
      %v7806 = vsel %vm918, %v7712, 0.0
      %v7807 = vadd.f32 %v7805, %v7806
      %v7808 = vsel %vm918, %v7367, 0.0
      %v7809 = vsel %vm918, %v7483, 0.0
      %v7810 = vadd.f32 %v7808, %v7809
      %v7811 = vsel %vm918, %v7599, 0.0
      %v7812 = vadd.f32 %v7810, %v7811
      %v7813 = vsel %vm918, %v7715, 0.0
      %v7814 = vadd.f32 %v7812, %v7813
      %v7815 = vsel %vm918, %v7369, 0.0
      %v7816 = vsel %vm918, %v7485, 0.0
      %v7817 = vadd.f32 %v7815, %v7816
      %v7818 = vsel %vm918, %v7601, 0.0
      %v7819 = vadd.f32 %v7817, %v7818
      %v7820 = vsel %vm918, %v7717, 0.0
      %v7821 = vadd.f32 %v7819, %v7820
      %v7822 = vsel %vm918, %v7372, 0.0
      %v7823 = vsel %vm918, %v7488, 0.0
      %v7824 = vadd.f32 %v7822, %v7823
      %v7825 = vsel %vm918, %v7604, 0.0
      %v7826 = vadd.f32 %v7824, %v7825
      %v7827 = vsel %vm918, %v7720, 0.0
      %v7828 = vadd.f32 %v7826, %v7827
      %v7829 = vsel %vm918, %v7374, 0.0
      %v7830 = vsel %vm918, %v7490, 0.0
      %v7831 = vadd.f32 %v7829, %v7830
      %v7832 = vsel %vm918, %v7606, 0.0
      %v7833 = vadd.f32 %v7831, %v7832
      %v7834 = vsel %vm918, %v7722, 0.0
      %v7835 = vadd.f32 %v7833, %v7834
      %v7836 = vadd.f32 %v7730, %v3787
      %v7837 = vadd.f32 %v7737, %v3788
      %v7838 = vadd.f32 %v7744, %v3789
      %v7839 = vadd.f32 %v7751, %v3790
      %v7840 = vadd.f32 %v7758, %v3791
      %v7841 = vadd.f32 %v7765, %v3792
      %v7842 = vadd.f32 %v7772, %v3793
      %v7843 = vadd.f32 %v7779, %v3794
      %v7844 = vadd.f32 %v7786, %v3795
      %v7845 = vadd.f32 %v7793, %v3796
      %v7846 = vadd.f32 %v7800, %v3797
      %v7847 = vadd.f32 %v7807, %v3798
      %v7848 = vadd.f32 %v7814, %v3799
      %v7849 = vadd.f32 %v7821, %v3800
      %v7850 = vadd.f32 %v7828, %v3801
      %v7851 = vadd.f32 %v7835, %v3802
      %v7852 = vsel %vm918, %v7836, 0.0
      %7853 = vadd.xlane.f32.xlu0 %v7852
      %v7854 = vpop.xlane.xlu0 %7853
      %v7855 = vsel %vm918, %v7837, 0.0
      %7856 = vadd.xlane.f32.xlu0 %v7855
      %v7857 = vpop.xlane.xlu0 %7856
      %v7858 = vsel %vm918, %v7838, 0.0
      %7859 = vadd.xlane.f32.xlu0 %v7858
      %v7860 = vpop.xlane.xlu0 %7859
      %v7861 = vsel %vm918, %v7839, 0.0
      %7862 = vadd.xlane.f32.xlu0 %v7861
      %v7863 = vpop.xlane.xlu0 %7862
      %v7864 = vsel %vm918, %v7840, 0.0
      %7865 = vadd.xlane.f32.xlu0 %v7864
      %v7866 = vpop.xlane.xlu0 %7865
      %v7867 = vsel %vm918, %v7841, 0.0
      %7868 = vadd.xlane.f32.xlu0 %v7867
      %v7869 = vpop.xlane.xlu0 %7868
      %v7870 = vsel %vm918, %v7842, 0.0
      %7871 = vadd.xlane.f32.xlu0 %v7870
      %v7872 = vpop.xlane.xlu0 %7871
      %v7873 = vsel %vm918, %v7843, 0.0
      %7874 = vadd.xlane.f32.xlu0 %v7873
      %v7875 = vpop.xlane.xlu0 %7874
      %v7876 = vsel %vm918, %v7844, 0.0
      %7877 = vadd.xlane.f32.xlu0 %v7876
      %v7878 = vpop.xlane.xlu0 %7877
      %v7879 = vsel %vm918, %v7845, 0.0
      %7880 = vadd.xlane.f32.xlu0 %v7879
      %v7881 = vpop.xlane.xlu0 %7880
      %v7882 = vsel %vm918, %v7846, 0.0
      %7883 = vadd.xlane.f32.xlu0 %v7882
      %v7884 = vpop.xlane.xlu0 %7883
      %v7885 = vsel %vm918, %v7847, 0.0
      %7886 = vadd.xlane.f32.xlu0 %v7885
      %v7887 = vpop.xlane.xlu0 %7886
      %v7888 = vsel %vm918, %v7848, 0.0
      %7889 = vadd.xlane.f32.xlu0 %v7888
      %v7890 = vpop.xlane.xlu0 %7889
      %v7891 = vsel %vm918, %v7849, 0.0
      %7892 = vadd.xlane.f32.xlu0 %v7891
      %v7893 = vpop.xlane.xlu0 %7892
      %v7894 = vsel %vm918, %v7850, 0.0
      %7895 = vadd.xlane.f32.xlu0 %v7894
      %v7896 = vpop.xlane.xlu0 %7895
      %v7897 = vsel %vm918, %v7851, 0.0
      %7898 = vadd.xlane.f32.xlu0 %v7897
      %v7899 = vpop.xlane.xlu0 %7898
      %v7900 = vmul.f32 %v7854, %v973
      %v7901 = vmul.f32 %v7857, %v973
      %v7902 = vmul.f32 %v7860, %v973
      %v7903 = vmul.f32 %v7863, %v973
      %v7904 = vmul.f32 %v7866, %v973
      %v7905 = vmul.f32 %v7869, %v973
      %v7906 = vmul.f32 %v7872, %v973
      %v7907 = vmul.f32 %v7875, %v973
      %v7908 = vmul.f32 %v7878, %v973
      %v7909 = vmul.f32 %v7881, %v973
      %v7910 = vmul.f32 %v7884, %v973
      %v7911 = vmul.f32 %v7887, %v973
      %v7912 = vmul.f32 %v7890, %v973
      %v7913 = vmul.f32 %v7893, %v973
      %v7914 = vmul.f32 %v7896, %v973
      %v7915 = vmul.f32 %v7899, %v973
      %v7916 = vsub.f32 %v7836, %v7900
      %v7917 = vsub.f32 %v7837, %v7901
      %v7918 = vsub.f32 %v7838, %v7902
      %v7919 = vsub.f32 %v7839, %v7903
      %v7920 = vsub.f32 %v7840, %v7904
      %v7921 = vsub.f32 %v7841, %v7905
      %v7922 = vsub.f32 %v7842, %v7906
      %v7923 = vsub.f32 %v7843, %v7907
      %v7924 = vsub.f32 %v7844, %v7908
      %v7925 = vsub.f32 %v7845, %v7909
      %v7926 = vsub.f32 %v7846, %v7910
      %v7927 = vsub.f32 %v7847, %v7911
      %v7928 = vsub.f32 %v7848, %v7912
      %v7929 = vsub.f32 %v7849, %v7913
      %v7930 = vsub.f32 %v7850, %v7914
      %v7931 = vsub.f32 %v7851, %v7915
      %v7932 = vmul.f32 %v7916, %v7916
      %v7933 = vmul.f32 %v7917, %v7917
      %v7934 = vmul.f32 %v7918, %v7918
      %v7935 = vmul.f32 %v7919, %v7919
      %v7936 = vmul.f32 %v7920, %v7920
      %v7937 = vmul.f32 %v7921, %v7921
      %v7938 = vmul.f32 %v7922, %v7922
      %v7939 = vmul.f32 %v7923, %v7923
      %v7940 = vmul.f32 %v7924, %v7924
      %v7941 = vmul.f32 %v7925, %v7925
      %v7942 = vmul.f32 %v7926, %v7926
      %v7943 = vmul.f32 %v7927, %v7927
      %v7944 = vmul.f32 %v7928, %v7928
      %v7945 = vmul.f32 %v7929, %v7929
      %v7946 = vmul.f32 %v7930, %v7930
      %v7947 = vmul.f32 %v7931, %v7931
      %v7948 = vsel %vm918, %v7932, 0.0
      %7949 = vadd.xlane.f32.xlu0 %v7948
      %v7950 = vpop.xlane.xlu0 %7949
      %v7951 = vsel %vm918, %v7933, 0.0
      %7952 = vadd.xlane.f32.xlu0 %v7951
      %v7953 = vpop.xlane.xlu0 %7952
      %v7954 = vsel %vm918, %v7934, 0.0
      %7955 = vadd.xlane.f32.xlu0 %v7954
      %v7956 = vpop.xlane.xlu0 %7955
      %v7957 = vsel %vm918, %v7935, 0.0
      %7958 = vadd.xlane.f32.xlu0 %v7957
      %v7959 = vpop.xlane.xlu0 %7958
      %v7960 = vsel %vm918, %v7936, 0.0
      %7961 = vadd.xlane.f32.xlu0 %v7960
      %v7962 = vpop.xlane.xlu0 %7961
      %v7963 = vsel %vm918, %v7937, 0.0
      %7964 = vadd.xlane.f32.xlu0 %v7963
      %v7965 = vpop.xlane.xlu0 %7964
      %v7966 = vsel %vm918, %v7938, 0.0
      %7967 = vadd.xlane.f32.xlu0 %v7966
      %v7968 = vpop.xlane.xlu0 %7967
      %v7969 = vsel %vm918, %v7939, 0.0
      %7970 = vadd.xlane.f32.xlu0 %v7969
      %v7971 = vpop.xlane.xlu0 %7970
      %v7972 = vsel %vm918, %v7940, 0.0
      %7973 = vadd.xlane.f32.xlu0 %v7972
      %v7974 = vpop.xlane.xlu0 %7973
      %v7975 = vsel %vm918, %v7941, 0.0
      %7976 = vadd.xlane.f32.xlu0 %v7975
      %v7977 = vpop.xlane.xlu0 %7976
      %v7978 = vsel %vm918, %v7942, 0.0
      %7979 = vadd.xlane.f32.xlu0 %v7978
      %v7980 = vpop.xlane.xlu0 %7979
      %v7981 = vsel %vm918, %v7943, 0.0
      %7982 = vadd.xlane.f32.xlu0 %v7981
      %v7983 = vpop.xlane.xlu0 %7982
      %v7984 = vsel %vm918, %v7944, 0.0
      %7985 = vadd.xlane.f32.xlu0 %v7984
      %v7986 = vpop.xlane.xlu0 %7985
      %v7987 = vsel %vm918, %v7945, 0.0
      %7988 = vadd.xlane.f32.xlu0 %v7987
      %v7989 = vpop.xlane.xlu0 %7988
      %v7990 = vsel %vm918, %v7946, 0.0
      %7991 = vadd.xlane.f32.xlu0 %v7990
      %v7992 = vpop.xlane.xlu0 %7991
      %v7993 = vsel %vm918, %v7947, 0.0
      %7994 = vadd.xlane.f32.xlu0 %v7993
      %v7995 = vpop.xlane.xlu0 %7994
      %v7996 = vmul.f32 %v7950, %v973
      %v7997 = vmul.f32 %v7953, %v973
      %v7998 = vmul.f32 %v7956, %v973
      %v7999 = vmul.f32 %v7959, %v973
      %v8000 = vmul.f32 %v7962, %v973
      %v8001 = vmul.f32 %v7965, %v973
      %v8002 = vmul.f32 %v7968, %v973
      %v8003 = vmul.f32 %v7971, %v973
      %v8004 = vmul.f32 %v7974, %v973
      %v8005 = vmul.f32 %v7977, %v973
      %v8006 = vmul.f32 %v7980, %v973
      %v8007 = vmul.f32 %v7983, %v973
      %v8008 = vmul.f32 %v7986, %v973
      %v8009 = vmul.f32 %v7989, %v973
      %v8010 = vmul.f32 %v7992, %v973
      %v8011 = vmul.f32 %v7995, %v973
      %v8012 = vadd.f32 %v7996, 1e-05
      %v8013 = vadd.f32 %v7997, 1e-05
      %v8014 = vadd.f32 %v7998, 1e-05
      %v8015 = vadd.f32 %v7999, 1e-05
      %v8016 = vadd.f32 %v8000, 1e-05
      %v8017 = vadd.f32 %v8001, 1e-05
      %v8018 = vadd.f32 %v8002, 1e-05
      %v8019 = vadd.f32 %v8003, 1e-05
      %v8020 = vadd.f32 %v8004, 1e-05
      %v8021 = vadd.f32 %v8005, 1e-05
      %v8022 = vadd.f32 %v8006, 1e-05
      %v8023 = vadd.f32 %v8007, 1e-05
      %v8024 = vadd.f32 %v8008, 1e-05
      %v8025 = vadd.f32 %v8009, 1e-05
      %v8026 = vadd.f32 %v8010, 1e-05
      %v8027 = vadd.f32 %v8011, 1e-05
      %v8028 = vrsqrt.pop %v8012
      %v8029 = vmul.f32 %v8028, %v8012
      %v8030 = vmul.f32 %v8029, %v8028
      %v8031 = vmul.f32 0.5, %v8030
      %v8032 = vsub.f32 1.5, %v8031
      %v8033 = vmul.f32 %v8028, %v8032
      %vm8034 = vweird.f32 %v8012
      %vm8035 = vweird.f32 %v8028
      %vm8036 = vmor %vm8034, %vm8035
      %v8037 = vsel %vm8036, %v8028, %v8033
      %v8038 = vrsqrt.pop %v8013
      %v8039 = vmul.f32 %v8038, %v8013
      %v8040 = vmul.f32 %v8039, %v8038
      %v8041 = vmul.f32 0.5, %v8040
      %v8042 = vsub.f32 1.5, %v8041
      %v8043 = vmul.f32 %v8038, %v8042
      %vm8044 = vweird.f32 %v8013
      %vm8045 = vweird.f32 %v8038
      %vm8046 = vmor %vm8044, %vm8045
      %v8047 = vsel %vm8046, %v8038, %v8043
      %v8048 = vrsqrt.pop %v8014
      %v8049 = vmul.f32 %v8048, %v8014
      %v8050 = vmul.f32 %v8049, %v8048
      %v8051 = vmul.f32 0.5, %v8050
      %v8052 = vsub.f32 1.5, %v8051
      %v8053 = vmul.f32 %v8048, %v8052
      %vm8054 = vweird.f32 %v8014
      %vm8055 = vweird.f32 %v8048
      %vm8056 = vmor %vm8054, %vm8055
      %v8057 = vsel %vm8056, %v8048, %v8053
      %v8058 = vrsqrt.pop %v8015
      %v8059 = vmul.f32 %v8058, %v8015
      %v8060 = vmul.f32 %v8059, %v8058
      %v8061 = vmul.f32 0.5, %v8060
      %v8062 = vsub.f32 1.5, %v8061
      %v8063 = vmul.f32 %v8058, %v8062
      %vm8064 = vweird.f32 %v8015
      %vm8065 = vweird.f32 %v8058
      %vm8066 = vmor %vm8064, %vm8065
      %v8067 = vsel %vm8066, %v8058, %v8063
      %v8068 = vrsqrt.pop %v8016
      %v8069 = vmul.f32 %v8068, %v8016
      %v8070 = vmul.f32 %v8069, %v8068
      %v8071 = vmul.f32 0.5, %v8070
      %v8072 = vsub.f32 1.5, %v8071
      %v8073 = vmul.f32 %v8068, %v8072
      %vm8074 = vweird.f32 %v8016
      %vm8075 = vweird.f32 %v8068
      %vm8076 = vmor %vm8074, %vm8075
      %v8077 = vsel %vm8076, %v8068, %v8073
      %v8078 = vrsqrt.pop %v8017
      %v8079 = vmul.f32 %v8078, %v8017
      %v8080 = vmul.f32 %v8079, %v8078
      %v8081 = vmul.f32 0.5, %v8080
      %v8082 = vsub.f32 1.5, %v8081
      %v8083 = vmul.f32 %v8078, %v8082
      %vm8084 = vweird.f32 %v8017
      %vm8085 = vweird.f32 %v8078
      %vm8086 = vmor %vm8084, %vm8085
      %v8087 = vsel %vm8086, %v8078, %v8083
      %v8088 = vrsqrt.pop %v8018
      %v8089 = vmul.f32 %v8088, %v8018
      %v8090 = vmul.f32 %v8089, %v8088
      %v8091 = vmul.f32 0.5, %v8090
      %v8092 = vsub.f32 1.5, %v8091
      %v8093 = vmul.f32 %v8088, %v8092
      %vm8094 = vweird.f32 %v8018
      %vm8095 = vweird.f32 %v8088
      %vm8096 = vmor %vm8094, %vm8095
      %v8097 = vsel %vm8096, %v8088, %v8093
      %v8098 = vrsqrt.pop %v8019
      %v8099 = vmul.f32 %v8098, %v8019
      %v8100 = vmul.f32 %v8099, %v8098
      %v8101 = vmul.f32 0.5, %v8100
      %v8102 = vsub.f32 1.5, %v8101
      %v8103 = vmul.f32 %v8098, %v8102
      %vm8104 = vweird.f32 %v8019
      %vm8105 = vweird.f32 %v8098
      %vm8106 = vmor %vm8104, %vm8105
      %v8107 = vsel %vm8106, %v8098, %v8103
      %v8108 = vrsqrt.pop %v8020
      %v8109 = vmul.f32 %v8108, %v8020
      %v8110 = vmul.f32 %v8109, %v8108
      %v8111 = vmul.f32 0.5, %v8110
      %v8112 = vsub.f32 1.5, %v8111
      %v8113 = vmul.f32 %v8108, %v8112
      %vm8114 = vweird.f32 %v8020
      %vm8115 = vweird.f32 %v8108
      %vm8116 = vmor %vm8114, %vm8115
      %v8117 = vsel %vm8116, %v8108, %v8113
      %v8118 = vrsqrt.pop %v8021
      %v8119 = vmul.f32 %v8118, %v8021
      %v8120 = vmul.f32 %v8119, %v8118
      %v8121 = vmul.f32 0.5, %v8120
      %v8122 = vsub.f32 1.5, %v8121
      %v8123 = vmul.f32 %v8118, %v8122
      %vm8124 = vweird.f32 %v8021
      %vm8125 = vweird.f32 %v8118
      %vm8126 = vmor %vm8124, %vm8125
      %v8127 = vsel %vm8126, %v8118, %v8123
      %v8128 = vrsqrt.pop %v8022
      %v8129 = vmul.f32 %v8128, %v8022
      %v8130 = vmul.f32 %v8129, %v8128
      %v8131 = vmul.f32 0.5, %v8130
      %v8132 = vsub.f32 1.5, %v8131
      %v8133 = vmul.f32 %v8128, %v8132
      %vm8134 = vweird.f32 %v8022
      %vm8135 = vweird.f32 %v8128
      %vm8136 = vmor %vm8134, %vm8135
      %v8137 = vsel %vm8136, %v8128, %v8133
      %v8138 = vrsqrt.pop %v8023
      %v8139 = vmul.f32 %v8138, %v8023
      %v8140 = vmul.f32 %v8139, %v8138
      %v8141 = vmul.f32 0.5, %v8140
      %v8142 = vsub.f32 1.5, %v8141
      %v8143 = vmul.f32 %v8138, %v8142
      %vm8144 = vweird.f32 %v8023
      %vm8145 = vweird.f32 %v8138
      %vm8146 = vmor %vm8144, %vm8145
      %v8147 = vsel %vm8146, %v8138, %v8143
      %v8148 = vrsqrt.pop %v8024
      %v8149 = vmul.f32 %v8148, %v8024
      %v8150 = vmul.f32 %v8149, %v8148
      %v8151 = vmul.f32 0.5, %v8150
      %v8152 = vsub.f32 1.5, %v8151
      %v8153 = vmul.f32 %v8148, %v8152
      %vm8154 = vweird.f32 %v8024
      %vm8155 = vweird.f32 %v8148
      %vm8156 = vmor %vm8154, %vm8155
      %v8157 = vsel %vm8156, %v8148, %v8153
      %v8158 = vrsqrt.pop %v8025
      %v8159 = vmul.f32 %v8158, %v8025
      %v8160 = vmul.f32 %v8159, %v8158
      %v8161 = vmul.f32 0.5, %v8160
      %v8162 = vsub.f32 1.5, %v8161
      %v8163 = vmul.f32 %v8158, %v8162
      %vm8164 = vweird.f32 %v8025
      %vm8165 = vweird.f32 %v8158
      %vm8166 = vmor %vm8164, %vm8165
      %v8167 = vsel %vm8166, %v8158, %v8163
      %v8168 = vrsqrt.pop %v8026
      %v8169 = vmul.f32 %v8168, %v8026
      %v8170 = vmul.f32 %v8169, %v8168
      %v8171 = vmul.f32 0.5, %v8170
      %v8172 = vsub.f32 1.5, %v8171
      %v8173 = vmul.f32 %v8168, %v8172
      %vm8174 = vweird.f32 %v8026
      %vm8175 = vweird.f32 %v8168
      %vm8176 = vmor %vm8174, %vm8175
      %v8177 = vsel %vm8176, %v8168, %v8173
      %v8178 = vrsqrt.pop %v8027
      %v8179 = vmul.f32 %v8178, %v8027
      %v8180 = vmul.f32 %v8179, %v8178
      %v8181 = vmul.f32 0.5, %v8180
      %v8182 = vsub.f32 1.5, %v8181
      %v8183 = vmul.f32 %v8178, %v8182
      %vm8184 = vweird.f32 %v8027
      %vm8185 = vweird.f32 %v8178
      %vm8186 = vmor %vm8184, %vm8185
      %v8187 = vsel %vm8186, %v8178, %v8183
      %v8188 = vmul.f32 %v7916, %v8037
      %v8189 = vmul.f32 %v7917, %v8047
      %v8190 = vmul.f32 %v7918, %v8057
      %v8191 = vmul.f32 %v7919, %v8067
      %v8192 = vmul.f32 %v7920, %v8077
      %v8193 = vmul.f32 %v7921, %v8087
      %v8194 = vmul.f32 %v7922, %v8097
      %v8195 = vmul.f32 %v7923, %v8107
      %v8196 = vmul.f32 %v7924, %v8117
      %v8197 = vmul.f32 %v7925, %v8127
      %v8198 = vmul.f32 %v7926, %v8137
      %v8199 = vmul.f32 %v7927, %v8147
      %v8200 = vmul.f32 %v7928, %v8157
      %v8201 = vmul.f32 %v7929, %v8167
      %v8202 = vmul.f32 %v7930, %v8177
      %v8203 = vmul.f32 %v7931, %v8187
      %v8204 = vld [vmem:[%s18] sm:$0x1]
      %v8206 = vperm.slane %v8204, 0
      %v8208 = vmul.f32 %v8188, %v8206
      %v8209 = vmul.f32 %v8189, %v8206
      %v8210 = vmul.f32 %v8190, %v8206
      %v8211 = vmul.f32 %v8191, %v8206
      %v8212 = vmul.f32 %v8192, %v8206
      %v8213 = vmul.f32 %v8193, %v8206
      %v8214 = vmul.f32 %v8194, %v8206
      %v8215 = vmul.f32 %v8195, %v8206
      %v8216 = vmul.f32 %v8196, %v8206
      %v8217 = vmul.f32 %v8197, %v8206
      %v8218 = vmul.f32 %v8198, %v8206
      %v8219 = vmul.f32 %v8199, %v8206
      %v8220 = vmul.f32 %v8200, %v8206
      %v8221 = vmul.f32 %v8201, %v8206
      %v8222 = vmul.f32 %v8202, %v8206
      %v8223 = vmul.f32 %v8203, %v8206
      %v8224 = vld [vmem:[%s19] sm:$0x1]
      %v8226 = vperm.slane %v8224, 0
      %v8228 = vadd.f32 %v8208, %v8226
      %v8229 = vadd.f32 %v8209, %v8226
      %v8230 = vadd.f32 %v8210, %v8226
      %v8231 = vadd.f32 %v8211, %v8226
      %v8232 = vadd.f32 %v8212, %v8226
      %v8233 = vadd.f32 %v8213, %v8226
      %v8234 = vadd.f32 %v8214, %v8226
      %v8235 = vadd.f32 %v8215, %v8226
      %v8236 = vadd.f32 %v8216, %v8226
      %v8237 = vadd.f32 %v8217, %v8226
      %v8238 = vadd.f32 %v8218, %v8226
      %v8239 = vadd.f32 %v8219, %v8226
      %v8240 = vadd.f32 %v8220, %v8226
      %v8241 = vadd.f32 %v8221, %v8226
      %v8242 = vadd.f32 %v8222, %v8226
      %v8243 = vadd.f32 %v8223, %v8226
      %v8244 = vpack.c.bf16 %v8229, %v8228
      %v8245 = vpack.c.bf16 %v8231, %v8230
      %v8246 = vpack.c.bf16 %v8233, %v8232
      %v8247 = vpack.c.bf16 %v8235, %v8234
      %v8248 = vpack.c.bf16 %v8237, %v8236
      %v8249 = vpack.c.bf16 %v8239, %v8238
      %v8250 = vpack.c.bf16 %v8241, %v8240
      %v8251 = vpack.c.bf16 %v8243, %v8242
      %v8252 = vld [vmem:[%s24] sm:$0xf]
      %v8253 = vld [vmem:[%s24 + $0x4] sm:$0xf]
      %v8254 = vld [vmem:[%s24 + $0x8] sm:$0xf]
      %v8255 = vld [vmem:[%s24 + $0xc] sm:$0xf]
      %v8256 = vld [vmem:[%s25] sm:$0x1]
      %v8258 = vperm.slane %v8256, 0
      %v8264 = vunpack.c.l.b16 %v8252
      %v8265 = vunpack.c.l.b16 %v8253
      %v8266 = vunpack.c.l.b16 %v8254
      %v8267 = vunpack.c.l.b16 %v8255
      %v8268 = vpack.c.b16 %v8265, %v8264
      %v8269 = vpack.c.b16 %v8267, %v8266
      %v8273 = vsel %vm918, %v8244, 0
      %v8276 = vsel %vm918, %v8245, 0
      %v8279 = vsel %vm918, %v8246, 0
      %v8282 = vsel %vm918, %v8247, 0
      %v8285 = vsel %vm918, %v8248, 0
      %v8288 = vsel %vm918, %v8249, 0
      %v8291 = vsel %vm918, %v8250, 0
      %v8294 = vsel %vm918, %v8251, 0
      %8296 = vmatpush.bf16.msra.mxu0 0
      %8297 = vmatpush.bf16.msra.mxu0 0
      %8298 = vmatpush.bf16.msra.mxu0 0
      %8299 = vmatpush.bf16.msra.mxu0 0
      %8300 = vmatpush.bf16.msra.mxu0 0
      %8301 = vmatpush.bf16.msra.mxu0 0
      %8302 = vmatpush.bf16.msra.mxu0 %v8269
      %8303 = vmatpush.bf16.msra.mxu0 %v8268
      %8304 = vmatmul.bf16.gmra.mxu0 %v8273
      %v8305 = vpop.f32.mrf.mxu0
      %v8306 = vadd.f32 %v8258, %v8305
      %v8307 = vpop.f32.mrf.mxu0
      %v8308 = vadd.f32 %v8258, %v8307
      %8309 = vmatmul.bf16.gmra.mxu0 %v8276
      %v8310 = vpop.f32.mrf.mxu0
      %v8311 = vadd.f32 %v8258, %v8310
      %v8312 = vpop.f32.mrf.mxu0
      %v8313 = vadd.f32 %v8258, %v8312
      %8314 = vmatmul.bf16.gmra.mxu0 %v8279
      %v8315 = vpop.f32.mrf.mxu0
      %v8316 = vadd.f32 %v8258, %v8315
      %v8317 = vpop.f32.mrf.mxu0
      %v8318 = vadd.f32 %v8258, %v8317
      %8319 = vmatmul.bf16.gmra.mxu0 %v8282
      %v8320 = vpop.f32.mrf.mxu0
      %v8321 = vadd.f32 %v8258, %v8320
      %v8322 = vpop.f32.mrf.mxu0
      %v8323 = vadd.f32 %v8258, %v8322
      %8324 = vmatmul.bf16.gmra.mxu0 %v8285
      %v8325 = vpop.f32.mrf.mxu0
      %v8326 = vadd.f32 %v8258, %v8325
      %v8327 = vpop.f32.mrf.mxu0
      %v8328 = vadd.f32 %v8258, %v8327
      %8329 = vmatmul.bf16.gmra.mxu0 %v8288
      %v8330 = vpop.f32.mrf.mxu0
      %v8331 = vadd.f32 %v8258, %v8330
      %v8332 = vpop.f32.mrf.mxu0
      %v8333 = vadd.f32 %v8258, %v8332
      %8334 = vmatmul.bf16.gmra.mxu0 %v8291
      %v8335 = vpop.f32.mrf.mxu0
      %v8336 = vadd.f32 %v8258, %v8335
      %v8337 = vpop.f32.mrf.mxu0
      %v8338 = vadd.f32 %v8258, %v8337
      %8339 = vmatmul.bf16.gmra.mxu0 %v8294
      %v8340 = vpop.f32.mrf.mxu0
      %v8341 = vadd.f32 %v8258, %v8340
      %v8342 = vpop.f32.mrf.mxu0
      %v8343 = vadd.f32 %v8258, %v8342
      %8344 = vdwg.mxu0
      %v8345 = vmax.f32 %v8306, 0.0
      %v8346 = vmax.f32 %v8308, 0.0
      %v8347 = vmax.f32 %v8311, 0.0
      %v8348 = vmax.f32 %v8313, 0.0
      %v8349 = vmax.f32 %v8316, 0.0
      %v8350 = vmax.f32 %v8318, 0.0
      %v8351 = vmax.f32 %v8321, 0.0
      %v8352 = vmax.f32 %v8323, 0.0
      %v8353 = vmax.f32 %v8326, 0.0
      %v8354 = vmax.f32 %v8328, 0.0
      %v8355 = vmax.f32 %v8331, 0.0
      %v8356 = vmax.f32 %v8333, 0.0
      %v8357 = vmax.f32 %v8336, 0.0
      %v8358 = vmax.f32 %v8338, 0.0
      %v8359 = vmax.f32 %v8341, 0.0
      %v8360 = vmax.f32 %v8343, 0.0
      %v8361 = vpack.c.bf16 %v8346, %v8345
      %v8362 = vpack.c.bf16 %v8348, %v8347
      %v8363 = vpack.c.bf16 %v8350, %v8349
      %v8364 = vpack.c.bf16 %v8352, %v8351
      %v8365 = vpack.c.bf16 %v8354, %v8353
      %v8366 = vpack.c.bf16 %v8356, %v8355
      %v8367 = vpack.c.bf16 %v8358, %v8357
      %v8368 = vpack.c.bf16 %v8360, %v8359
      %v8369 = vld [vmem:[%s26] sm:$0xf]
      %v8370 = vld [vmem:[%s26 + $0x4] sm:$0xf]
      %v8371 = vld [vmem:[%s26 + $0x8] sm:$0xf]
      %v8372 = vld [vmem:[%s26 + $0xc] sm:$0xf]
      %v8373 = vld [vmem:[%s27] sm:$0x1]
      %v8375 = vperm.slane %v8373, 0
      %v8381 = vunpack.c.l.b16 %v8369
      %v8382 = vunpack.c.l.b16 %v8370
      %v8383 = vunpack.c.l.b16 %v8371
      %v8384 = vunpack.c.l.b16 %v8372
      %v8385 = vpack.c.b16 %v8382, %v8381
      %v8386 = vpack.c.b16 %v8384, %v8383
      %v8390 = vsel %vm918, %v8361, 0
      %v8393 = vsel %vm918, %v8362, 0
      %v8396 = vsel %vm918, %v8363, 0
      %v8399 = vsel %vm918, %v8364, 0
      %v8402 = vsel %vm918, %v8365, 0
      %v8405 = vsel %vm918, %v8366, 0
      %v8408 = vsel %vm918, %v8367, 0
      %v8411 = vsel %vm918, %v8368, 0
      %8413 = vmatpush.bf16.msra.mxu0 0
      %8414 = vmatpush.bf16.msra.mxu0 0
      %8415 = vmatpush.bf16.msra.mxu0 0
      %8416 = vmatpush.bf16.msra.mxu0 0
      %8417 = vmatpush.bf16.msra.mxu0 0
      %8418 = vmatpush.bf16.msra.mxu0 0
      %8419 = vmatpush.bf16.msra.mxu0 %v8386
      %8420 = vmatpush.bf16.msra.mxu0 %v8385
      %8421 = vmatmul.bf16.gmra.mxu0 %v8390
      %v8422 = vpop.f32.mrf.mxu0
      %v8423 = vadd.f32 %v8375, %v8422
      %v8424 = vpop.f32.mrf.mxu0
      %v8425 = vadd.f32 %v8375, %v8424
      %8426 = vmatmul.bf16.gmra.mxu0 %v8393
      %v8427 = vpop.f32.mrf.mxu0
      %v8428 = vadd.f32 %v8375, %v8427
      %v8429 = vpop.f32.mrf.mxu0
      %v8430 = vadd.f32 %v8375, %v8429
      %8431 = vmatmul.bf16.gmra.mxu0 %v8396
      %v8432 = vpop.f32.mrf.mxu0
      %v8433 = vadd.f32 %v8375, %v8432
      %v8434 = vpop.f32.mrf.mxu0
      %v8435 = vadd.f32 %v8375, %v8434
      %8436 = vmatmul.bf16.gmra.mxu0 %v8399
      %v8437 = vpop.f32.mrf.mxu0
      %v8438 = vadd.f32 %v8375, %v8437
      %v8439 = vpop.f32.mrf.mxu0
      %v8440 = vadd.f32 %v8375, %v8439
      %8441 = vmatmul.bf16.gmra.mxu0 %v8402
      %v8442 = vpop.f32.mrf.mxu0
      %v8443 = vadd.f32 %v8375, %v8442
      %v8444 = vpop.f32.mrf.mxu0
      %v8445 = vadd.f32 %v8375, %v8444
      %8446 = vmatmul.bf16.gmra.mxu0 %v8405
      %v8447 = vpop.f32.mrf.mxu0
      %v8448 = vadd.f32 %v8375, %v8447
      %v8449 = vpop.f32.mrf.mxu0
      %v8450 = vadd.f32 %v8375, %v8449
      %8451 = vmatmul.bf16.gmra.mxu0 %v8408
      %v8452 = vpop.f32.mrf.mxu0
      %v8453 = vadd.f32 %v8375, %v8452
      %v8454 = vpop.f32.mrf.mxu0
      %v8455 = vadd.f32 %v8375, %v8454
      %8456 = vmatmul.bf16.gmra.mxu0 %v8411
      %v8457 = vpop.f32.mrf.mxu0
      %v8458 = vadd.f32 %v8375, %v8457
      %v8459 = vpop.f32.mrf.mxu0
      %v8460 = vadd.f32 %v8375, %v8459
      %8461 = vdwg.mxu0
      %v8462 = vadd.f32 %v8423, %v7836
      %v8463 = vadd.f32 %v8425, %v7837
      %v8464 = vadd.f32 %v8428, %v7838
      %v8465 = vadd.f32 %v8430, %v7839
      %v8466 = vadd.f32 %v8433, %v7840
      %v8467 = vadd.f32 %v8435, %v7841
      %v8468 = vadd.f32 %v8438, %v7842
      %v8469 = vadd.f32 %v8440, %v7843
      %v8470 = vadd.f32 %v8443, %v7844
      %v8471 = vadd.f32 %v8445, %v7845
      %v8472 = vadd.f32 %v8448, %v7846
      %v8473 = vadd.f32 %v8450, %v7847
      %v8474 = vadd.f32 %v8453, %v7848
      %v8475 = vadd.f32 %v8455, %v7849
      %v8476 = vadd.f32 %v8458, %v7850
      %v8477 = vadd.f32 %v8460, %v7851
      %8478 = vst.msk [vmem:[%s867] sm:$0xff] %vm918, %v8462
      %8479 = vst.msk [vmem:[%s867 + $0x8] sm:$0xff] %vm918, %v8463
      %8480 = vst.msk [vmem:[%s867 + $0x10] sm:$0xff] %vm918, %v8464
      %8481 = vst.msk [vmem:[%s867 + $0x18] sm:$0xff] %vm918, %v8465
      %8482 = vst.msk [vmem:[%s867 + $0x20] sm:$0xff] %vm918, %v8466
      %8483 = vst.msk [vmem:[%s867 + $0x28] sm:$0xff] %vm918, %v8467
      %8484 = vst.msk [vmem:[%s867 + $0x30] sm:$0xff] %vm918, %v8468
      %8485 = vst.msk [vmem:[%s867 + $0x38] sm:$0xff] %vm918, %v8469
      %8486 = vst.msk [vmem:[%s867 + $0x40] sm:$0xff] %vm918, %v8470
      %8487 = vst.msk [vmem:[%s867 + $0x48] sm:$0xff] %vm918, %v8471
      %8488 = vst.msk [vmem:[%s867 + $0x50] sm:$0xff] %vm918, %v8472
      %8489 = vst.msk [vmem:[%s867 + $0x58] sm:$0xff] %vm918, %v8473
      %8490 = vst.msk [vmem:[%s867 + $0x60] sm:$0xff] %vm918, %v8474
      %8491 = vst.msk [vmem:[%s867 + $0x68] sm:$0xff] %vm918, %v8475
      %8492 = vst.msk [vmem:[%s867 + $0x70] sm:$0xff] %vm918, %v8476
      %8493 = vst.msk [vmem:[%s867 + $0x78] sm:$0xff] %vm918, %v8477
      %s8494 = smul.u32 16, %s39
      %p8495 = scmp.lt.s32.totalorder %s8494, 31
      %s8496 = scalar_select %p8495, %s8494, 31
      %s8497 = smul.addr %s8496, 8
      %s8498 = scalar_lea.vmem %s28, %s8497
      // Predicated region
      $region133: #{tpu_custom_call.1} parent=131 // pred_check
        %p8499 = pneg %p655
      $region134: #{tpu_custom_call.1} parent=131 // pred_check_branch
        %8501 = sbr.rel (%p8499) target = $region136
      $region135: #{tpu_custom_call.1} parent=131 // pred_region
        %s8502 = smul.u32 16, %s39
      $region136: #{tpu_custom_call.1} parent=131 // pred_fallthru
        _
    $region132: #{tpu_custom_call.1} parent=5 // pred_fallthru
      _
    %p8503 = scmp.le.s32.totalorder 2, %s34
    // Predicated region
    $region137: #{tpu_custom_call.1} parent=5 // pred_check
      %p8504 = pneg %p8503
    $region138: #{tpu_custom_call.1} parent=5 // pred_check_branch
      %8506 = sbr.rel (%p8504) target = $region140
    $region139: #{tpu_custom_call.1} parent=5 // pred_region
      %s8507 = ssub.s32 %s34, 2
      // Predicated region
      $region141: #{tpu_custom_call.1} parent=139 // pred_check
        %p8508 = pneg %p661
      $region142: #{tpu_custom_call.1} parent=139 // pred_check_branch
        %8510 = sbr.rel (%p8508) target = $region144
      $region143: #{tpu_custom_call.1} parent=139 // pred_region
        %s8511 = smul.u32 16, %s40
        %p8512 = scmp.lt.s32.totalorder %s8511, 31
        %s8513 = scalar_select %p8512, %s8511, 31
        %s8514 = smul.addr %s8513, 8
        %s8515 = scalar_lea.vmem %s28, %s8514
      $region144: #{tpu_custom_call.1} parent=139 // pred_fallthru
        _
    $region140: #{tpu_custom_call.1} parent=5 // pred_fallthru
      _
  $region6: #{tpu_custom_call.1} parent=0 // loop_footer
    %s38 = sadd.s32 1, %s34
  $region7: #{tpu_custom_call.1} parent=0 // loop_footer_branch
    %33 = sbr.rel target = $region3
  $region8: #{tpu_custom_call.1} parent=0 // loop_exit
    _

</llo_original>
